<compile_context>
chip_gen: v7x
topology: tpu7x:2x2x1
jax: 0.10.0
libtpu: 0.0.40
codegen_flags: <defaults>
</compile_context>

<pallas_src>
import functools

import jax
import jax.numpy as jnp
from jax.experimental import pallas as pl
from jax.experimental.pallas import tpu as pltpu


# ---------------------------------------------------------------------------
# Fused stride-2 conv kernel (im2col-free).
#
# s_ref : (HS*WS + 8, 4*Cin) bf16   space-to-depth rows of one padded image
#                                    (+8 zero slack rows for the WS+1 shift)
# w_ref : (4, 4*Cin, OC)      bf16   the four 2x2-tap weight matrices
# y_ref : (OH*WS, OC)         bf16   conv output, row stride WS (last column
#                                    of each row is garbage, dropped in glue)
# ---------------------------------------------------------------------------
def _conv_acc(s_ref, w_ref, M, WS):
    acc = jnp.dot(s_ref[pl.ds(0, M), :], w_ref[0],
                  preferred_element_type=jnp.float32)
    for tap, off in ((1, 1), (2, WS), (3, WS + 1)):
        acc = acc + jnp.dot(s_ref[pl.ds(off, M), :], w_ref[tap],
                            preferred_element_type=jnp.float32)
    return acc


def _conv_kernel(s_ref, w_ref, y_ref, *, M, WS, act, alpha):
    acc = _conv_acc(s_ref, w_ref, M, WS)
    if act == "leaky":
        acc = jnp.where(acc > 0, acc, alpha * acc)
    y_ref[...] = acc.astype(y_ref.dtype)


def _conv_stats_kernel(s_ref, w_ref, mask_ref, y_ref, ps_ref, pq_ref, *, M, WS):
    acc = _conv_acc(s_ref, w_ref, M, WS)
    y_ref[...] = acc.astype(y_ref.dtype)
    masked = acc * mask_ref[...]            # zero the per-row garbage column
    ps_ref[...] = jnp.sum(masked, axis=0, keepdims=True)
    pq_ref[...] = jnp.sum(masked * masked, axis=0, keepdims=True)


def conv_s2d(s, wtaps, *, OH, WS, act=None, alpha=0.2, with_stats=False):
    """Fused 4x4/stride-2/pad-1 conv (as 4 shifted-window matmuls) per image."""
    N, rows, C4 = s.shape
    OC = wtaps.shape[-1]
    M = OH * WS

    s_spec = pl.BlockSpec((None, rows, C4), lambda n: (n, 0, 0))
    w_spec = pl.BlockSpec((4, C4, OC), lambda n: (0, 0, 0))      # resident
    y_spec = pl.BlockSpec((None, M, OC), lambda n: (n, 0, 0))
    cparams = pltpu.CompilerParams(
        dimension_semantics=("parallel",),          # batch axis -> megacore
        vmem_limit_bytes=32 * 1024 * 1024)

    if with_stats:
        # 1.0 for real output columns, 0.0 for the per-row garbage column.
        mask = (jnp.arange(M, dtype=jnp.int32) % WS != WS - 1)
        mask = mask.astype(jnp.float32).reshape(M, 1)
        kern = functools.partial(_conv_stats_kernel, M=M, WS=WS)
        y, ps, pq = pl.pallas_call(
            kern,
            out_shape=(jax.ShapeDtypeStruct((N, M, OC), jnp.bfloat16),
                       jax.ShapeDtypeStruct((N, 1, OC), jnp.float32),
                       jax.ShapeDtypeStruct((N, 1, OC), jnp.float32)),
            grid_spec=pltpu.PrefetchScalarGridSpec(
                num_scalar_prefetch=0, grid=(N,),
                in_specs=[s_spec, w_spec,
                          pl.BlockSpec((M, 1), lambda n: (0, 0))],
                out_specs=(y_spec,
                           pl.BlockSpec((None, 1, OC), lambda n: (n, 0, 0)),
                           pl.BlockSpec((None, 1, OC), lambda n: (n, 0, 0)))),
            compiler_params=cparams,
        )(s, wtaps, mask)
        return y, jnp.sum(ps, axis=0)[0], jnp.sum(pq, axis=0)[0]   # (OC,) each

    kern = functools.partial(_conv_kernel, M=M, WS=WS, act=act, alpha=alpha)
    y = pl.pallas_call(
        kern,
        out_shape=jax.ShapeDtypeStruct((N, M, OC), jnp.bfloat16),
        grid_spec=pltpu.PrefetchScalarGridSpec(
            num_scalar_prefetch=0, grid=(N,),
            in_specs=[s_spec, w_spec],
            out_specs=y_spec),
        compiler_params=cparams,
    )(s, wtaps)
    return y


# ---------------------------------------------------------------------------
# Final layer: 4x4 "valid" conv == plain matmul, + Sigmoid.  Single block
# (batch is tiny); full K resident in VMEM.
# ---------------------------------------------------------------------------
def _matmul_sigmoid_kernel(a_ref, b_ref, o_ref):
    acc = jnp.dot(a_ref[...], b_ref[...], preferred_element_type=jnp.float32)
    o_ref[...] = jax.nn.sigmoid(acc)


def matmul_sigmoid(a, b):
    M, K = a.shape
    Np = b.shape[1]
    return pl.pallas_call(
        _matmul_sigmoid_kernel,
        out_shape=jax.ShapeDtypeStruct((M, Np), jnp.float32),
        grid_spec=pltpu.PrefetchScalarGridSpec(
            num_scalar_prefetch=0, grid=(1,),
            in_specs=[pl.BlockSpec((M, K), lambda i: (0, 0)),
                      pl.BlockSpec((K, Np), lambda i: (0, 0))],
            out_specs=pl.BlockSpec((M, Np), lambda i: (0, 0))),
        compiler_params=pltpu.CompilerParams(
            dimension_semantics=("arbitrary",),
            vmem_limit_bytes=32 * 1024 * 1024),
    )(a, b)


# ---------------------------------------------------------------------------
# XLA glue (pure layout / elementwise work that fuses into one transpose):
# deferred BN affine + LeakyReLU, pad(1), space-to-depth-by-2, row-flatten.
# ---------------------------------------------------------------------------
def s2d_input(x, scale=None, shift=None, alpha=0.2):
    if scale is not None:                      # deferred BN + LeakyReLU
        x = x.astype(jnp.float32) * scale + shift
        x = jnp.where(x > 0, x, alpha * x)
    x = x.astype(jnp.bfloat16)
    N, H, W, C = x.shape
    HS, WS = H // 2 + 1, W // 2 + 1
    xp = jnp.pad(x, ((0, 0), (1, 1), (1, 1), (0, 0)))
    s = xp.reshape(N, HS, 2, WS, 2, C)
    s = jnp.transpose(s, (0, 1, 3, 2, 4, 5)).reshape(N, HS * WS, 4 * C)
    s = jnp.pad(s, ((0, 0), (0, 8), (0, 0)))   # slack rows for the WS+1 shift
    return s, HS, WS


def conv_weight_taps(w, dtype=jnp.bfloat16):
    # (OC, IC, 4, 4) -> (4, 4*IC, OC).  Tap t = 2*di + dj; within-tap row
    # index = pi*2*IC + pj*IC + ic, matching the s2d channel order (pi,pj,ic);
    # ki = 2*di + pi, kj = 2*dj + pj.
    OC, IC, KH, KW = w.shape
    w6 = w.reshape(OC, IC, 2, 2, 2, 2)              # (oc, ic, di, pi, dj, pj)
    w6 = jnp.transpose(w6, (2, 4, 3, 5, 1, 0))      # (di, dj, pi, pj, ic, oc)
    return w6.reshape(4, 4 * IC, OC).astype(dtype)


def final_weight_matrix(w, ocp=128, dtype=jnp.bfloat16):
    # (OC, IC, KH, KW) -> (KH*KW*IC, ocp), matching NHWC (ki, kj, ic) order.
    OC, IC, KH, KW = w.shape
    mat = jnp.transpose(w, (2, 3, 1, 0)).reshape(KH * KW * IC, OC)
    return jnp.pad(mat, ((0, 0), (0, ocp - OC))).astype(dtype)


# ---------------------------------------------------------------------------
# Discriminator forward
# ---------------------------------------------------------------------------
def init_params(key, ndf):
    chans = [(3, ndf), (ndf, ndf * 2), (ndf * 2, ndf * 4),
             (ndf * 4, ndf * 8), (ndf * 8, 1)]
    params = []
    for cin, cout in chans:
        key, sub = jax.random.split(key)
        w = 0.02 * jax.random.normal(sub, (cout, cin, 4, 4), dtype=jnp.float32)
        params.append({"w": w,
                       "gamma": jnp.ones((cout,), jnp.float32),
                       "beta": jnp.zeros((cout,), jnp.float32)})
    return params


def discriminator_forward(x_nchw, params, eps=1e-5, alpha=0.2):
    x = jnp.transpose(x_nchw, (0, 2, 3, 1)).astype(jnp.bfloat16)   # NHWC bf16
    N = x.shape[0]

    # ---- layer 1: conv(3->ndf, 4, s2, p1) + LeakyReLU (no BN) ----
    s, HS, WS = s2d_input(x)
    OH, OW = HS - 1, WS - 1
    y = conv_s2d(s, conv_weight_taps(params[0]["w"]),
                 OH=OH, WS=WS, act="leaky", alpha=alpha)
    x = y.reshape(N, OH, WS, -1)[:, :, :OW, :]     # drop per-row garbage column
    scale = shift = None                           # layer-1 out already activated

    # ---- layers 2-4: conv + BatchNorm(batch stats) + LeakyReLU ----
    # BN affine + LeakyReLU of layer k is applied inside the glue that builds
    # layer k+1's s2d input (fuses with that transpose) -> no extra HBM pass.
    for li in (1, 2, 3):
        s, HS, WS = s2d_input(x, scale, shift, alpha)
        OH, OW = HS - 1, WS - 1
        y, ssum, sq = conv_s2d(s, conv_weight_taps(params[li]["w"]),
                               OH=OH, WS=WS, with_stats=True)
        cnt = N * OH * OW
        mean = ssum / cnt
        var = sq / cnt - mean * mean               # biased variance (PyTorch BN)
        scale = params[li]["gamma"] * jax.lax.rsqrt(var + eps)
        shift = params[li]["beta"] - mean * scale
        x = y.reshape(N, OH, WS, -1)[:, :, :OW, :]

    # ---- layer 5: deferred BN+LeakyReLU, conv(ndf*8 -> 1, 4, s1, p0), Sigmoid
    x = x.astype(jnp.float32) * scale + shift
    x = jnp.where(x > 0, x, alpha * x)
    a = x.reshape(N, -1).astype(jnp.bfloat16)      # (N, 4*4*8*ndf), (ki,kj,c)
    out = matmul_sigmoid(a, final_weight_matrix(params[4]["w"]))
    return out[:, :1].reshape(N, 1, 1, 1)          # NCHW (N, 1, 1, 1)


# ---------------------------------------------------------------------------
# Pure-JAX f32 reference (mirrors the PyTorch module exactly)
# ---------------------------------------------------------------------------
def reference_forward(x, params, eps=1e-5, alpha=0.2):
    def conv(h, w, stride, pad):
        return jax.lax.conv_general_dilated(
            h, w, window_strides=(stride, stride),
            padding=[(pad, pad), (pad, pad)],
            dimension_numbers=("NCHW", "OIHW", "NCHW"))

    def leaky(h):
        return jnp.where(h > 0, h, alpha * h)

    h = leaky(conv(x, params[0]["w"], 2, 1))
    for li in (1, 2, 3):
        h = conv(h, params[li]["w"], 2, 1)
        m = jnp.mean(h, axis=(0, 2, 3), keepdims=True)
        v = jnp.mean((h - m) ** 2, axis=(0, 2, 3), keepdims=True)
        g = params[li]["gamma"].reshape(1, -1, 1, 1)
        bb = params[li]["beta"].reshape(1, -1, 1, 1)
        h = leaky((h - m) * jax.lax.rsqrt(v + eps) * g + bb)
    h = conv(h, params[4]["w"], 1, 0)
    return jax.nn.sigmoid(h)


if __name__ == "__main__":
    ndf = 8
    key = jax.random.PRNGKey(0)
    kx, kp = jax.random.split(key)
    # DCGAN discriminator geometry requires 64x64 spatial input.
    x = jax.random.normal(kx, (2, 3, 64, 64), dtype=jnp.float32)
    params = init_params(kp, ndf)

    fwd = jax.jit(discriminator_forward)
    out = jax.block_until_ready(fwd(x, params))

    assert out.shape == (2, 1, 1, 1)
    assert bool(jnp.all(jnp.isfinite(out)))
    assert bool(jnp.all((out >= 0.0) & (out <= 1.0)))

    ref = jax.jit(reference_forward)(x, params)
    err = float(jnp.max(jnp.abs(out.astype(jnp.float32) - ref)))
    assert err < 0.05, f"mismatch vs f32 reference: {err}"
    print("KERNEL_OK")
</pallas_src>

<mosaic_0001>
module attributes {stable_mosaic.version = 11 : i64} {
  func.func @_conv_kernel(%arg0: i32, %arg1: memref<1x1097x12xbf16, #tpu.memory_space<vmem>>, %arg2: memref<4x12x8xbf16, #tpu.memory_space<vmem>>, %arg3: memref<1x1056x8xbf16, #tpu.memory_space<vmem>>) attributes {dimension_semantics = [#tpu.dimension_semantics<parallel>], iteration_bounds = array<i64: 2>, scalar_prefetch = 0 : i64, scratch_operands = 0 : i64, tpu.core_type = #tpu.core_type<tc>, window_params = [{transform_indices = @transform_0, window_bounds = array<i64: 1, 1097, 12>}, {pipeline_mode = #tpu.pipeline_mode<synchronous>, transform_indices = @transform_1, window_bounds = array<i64: 4, 12, 8>}, {transform_indices = @transform_2, window_bounds = array<i64: 1, 1056, 8>}]} {
    %c0 = arith.constant 0 : index
    %c0_0 = arith.constant 0 : index
    %c0_1 = arith.constant 0 : index
    %0 = vector.load %arg1[%c0, %c0_0, %c0_1] : memref<1x1097x12xbf16, #tpu.memory_space<vmem>>, vector<1x1056x12xbf16>
    %1 = vector.shape_cast %0 : vector<1x1056x12xbf16> to vector<1056x12xbf16>
    %c0_2 = arith.constant 0 : index
    %c0_3 = arith.constant 0 : index
    %c0_4 = arith.constant 0 : index
    %2 = vector.load %arg2[%c0_2, %c0_3, %c0_4] : memref<4x12x8xbf16, #tpu.memory_space<vmem>>, vector<1x12x8xbf16>
    %3 = vector.shape_cast %2 : vector<1x12x8xbf16> to vector<12x8xbf16>
    %cst = arith.constant dense<0.000000e+00> : vector<1056x8xf32>
    %4 = tpu.matmul %1, %3, %cst {dimension_numbers = #tpu.dot_dimension_numbers<[1], [0], [0], [1], [0, 0, 1, 1], [], []>} : vector<1056x12xbf16>, vector<12x8xbf16>, vector<1056x8xf32> -> vector<1056x8xf32>
    %c0_5 = arith.constant 0 : index
    %c1 = arith.constant 1 : index
    %c0_6 = arith.constant 0 : index
    %5 = vector.load %arg1[%c0_5, %c1, %c0_6] : memref<1x1097x12xbf16, #tpu.memory_space<vmem>>, vector<1x1056x12xbf16>
    %6 = vector.shape_cast %5 : vector<1x1056x12xbf16> to vector<1056x12xbf16>
    %c1_7 = arith.constant 1 : index
    %c0_8 = arith.constant 0 : index
    %c0_9 = arith.constant 0 : index
    %7 = vector.load %arg2[%c1_7, %c0_8, %c0_9] : memref<4x12x8xbf16, #tpu.memory_space<vmem>>, vector<1x12x8xbf16>
    %8 = vector.shape_cast %7 : vector<1x12x8xbf16> to vector<12x8xbf16>
    %cst_10 = arith.constant dense<0.000000e+00> : vector<1056x8xf32>
    %9 = tpu.matmul %6, %8, %cst_10 {dimension_numbers = #tpu.dot_dimension_numbers<[1], [0], [0], [1], [0, 0, 1, 1], [], []>} : vector<1056x12xbf16>, vector<12x8xbf16>, vector<1056x8xf32> -> vector<1056x8xf32>
    %10 = arith.addf %4, %9 : vector<1056x8xf32>
    %c0_11 = arith.constant 0 : index
    %c33 = arith.constant 33 : index
    %c0_12 = arith.constant 0 : index
    %11 = vector.load %arg1[%c0_11, %c33, %c0_12] : memref<1x1097x12xbf16, #tpu.memory_space<vmem>>, vector<1x1056x12xbf16>
    %12 = vector.shape_cast %11 : vector<1x1056x12xbf16> to vector<1056x12xbf16>
    %c2 = arith.constant 2 : index
    %c0_13 = arith.constant 0 : index
    %c0_14 = arith.constant 0 : index
    %13 = vector.load %arg2[%c2, %c0_13, %c0_14] : memref<4x12x8xbf16, #tpu.memory_space<vmem>>, vector<1x12x8xbf16>
    %14 = vector.shape_cast %13 : vector<1x12x8xbf16> to vector<12x8xbf16>
    %cst_15 = arith.constant dense<0.000000e+00> : vector<1056x8xf32>
    %15 = tpu.matmul %12, %14, %cst_15 {dimension_numbers = #tpu.dot_dimension_numbers<[1], [0], [0], [1], [0, 0, 1, 1], [], []>} : vector<1056x12xbf16>, vector<12x8xbf16>, vector<1056x8xf32> -> vector<1056x8xf32>
    %16 = arith.addf %10, %15 : vector<1056x8xf32>
    %c0_16 = arith.constant 0 : index
    %c34 = arith.constant 34 : index
    %c0_17 = arith.constant 0 : index
    %17 = vector.load %arg1[%c0_16, %c34, %c0_17] : memref<1x1097x12xbf16, #tpu.memory_space<vmem>>, vector<1x1056x12xbf16>
    %18 = vector.shape_cast %17 : vector<1x1056x12xbf16> to vector<1056x12xbf16>
    %c3 = arith.constant 3 : index
    %c0_18 = arith.constant 0 : index
    %c0_19 = arith.constant 0 : index
    %19 = vector.load %arg2[%c3, %c0_18, %c0_19] : memref<4x12x8xbf16, #tpu.memory_space<vmem>>, vector<1x12x8xbf16>
    %20 = vector.shape_cast %19 : vector<1x12x8xbf16> to vector<12x8xbf16>
    %cst_20 = arith.constant dense<0.000000e+00> : vector<1056x8xf32>
    %21 = tpu.matmul %18, %20, %cst_20 {dimension_numbers = #tpu.dot_dimension_numbers<[1], [0], [0], [1], [0, 0, 1, 1], [], []>} : vector<1056x12xbf16>, vector<12x8xbf16>, vector<1056x8xf32> -> vector<1056x8xf32>
    %22 = arith.addf %16, %21 : vector<1056x8xf32>
    %cst_21 = arith.constant 0.000000e+00 : f32
    %23 = vector.broadcast %cst_21 : f32 to vector<1056x8xf32>
    %24 = arith.cmpf ogt, %22, %23 : vector<1056x8xf32>
    %cst_22 = arith.constant 2.000000e-01 : f32
    %25 = vector.broadcast %cst_22 : f32 to vector<1056x8xf32>
    %26 = arith.mulf %25, %22 : vector<1056x8xf32>
    %27 = arith.select %24, %22, %26 : vector<1056x8xi1>, vector<1056x8xf32>
    %28 = arith.truncf %27 : vector<1056x8xf32> to vector<1056x8xbf16>
    %c0_23 = arith.constant 0 : index
    %c0_24 = arith.constant 0 : index
    %c0_25 = arith.constant 0 : index
    %29 = vector.load %arg3[%c0_23, %c0_24, %c0_25] : memref<1x1056x8xbf16, #tpu.memory_space<vmem>>, vector<1x1056x8xbf16>
    %30 = vector.shape_cast %29 : vector<1x1056x8xbf16> to vector<1056x8xbf16>
    %31 = vector.shape_cast %28 : vector<1056x8xbf16> to vector<1x1056x8xbf16>
    tpu.vector_store %arg3[%c0_23, %c0_24, %c0_25], %31 {strides = array<i32>} : memref<1x1056x8xbf16, #tpu.memory_space<vmem>>, vector<1x1056x8xbf16>,
    return
  }
  func.func @transform_0(%arg0: i32) -> (i32, i32, i32) {
    %c0_i32 = arith.constant 0 : i32
    %c0_i32_0 = arith.constant 0 : i32
    %c0_i32_1 = arith.constant 0 : i32
    return %arg0, %c0_i32, %c0_i32_0 : i32, i32, i32
  }
  func.func @transform_1(%arg0: i32) -> (i32, i32, i32) {
    %c0_i32 = arith.constant 0 : i32
    %c0_i32_0 = arith.constant 0 : i32
    %c0_i32_1 = arith.constant 0 : i32
    %c0_i32_2 = arith.constant 0 : i32
    return %c0_i32, %c0_i32_0, %c0_i32_1 : i32, i32, i32
  }
  func.func @transform_2(%arg0: i32) -> (i32, i32, i32) {
    %c0_i32 = arith.constant 0 : i32
    %c0_i32_0 = arith.constant 0 : i32
    %c0_i32_1 = arith.constant 0 : i32
    return %arg0, %c0_i32, %c0_i32_0 : i32, i32, i32
  }
}

module attributes {stable_mosaic.version = 11 : i64} {
  func.func @_conv_stats_kernel(%arg0: i32, %arg1: memref<1x297x32xbf16, #tpu.memory_space<vmem>>, %arg2: memref<4x32x16xbf16, #tpu.memory_space<vmem>>, %arg3: memref<272x1xf32, #tpu.memory_space<vmem>>, %arg4: memref<1x272x16xbf16, #tpu.memory_space<vmem>>, %arg5: memref<1x1x16xf32, #tpu.memory_space<vmem>>, %arg6: memref<1x1x16xf32, #tpu.memory_space<vmem>>) attributes {dimension_semantics = [#tpu.dimension_semantics<parallel>], iteration_bounds = array<i64: 2>, scalar_prefetch = 0 : i64, scratch_operands = 0 : i64, tpu.core_type = #tpu.core_type<tc>, window_params = [{transform_indices = @transform_0, window_bounds = array<i64: 1, 297, 32>}, {pipeline_mode = #tpu.pipeline_mode<synchronous>, transform_indices = @transform_1, window_bounds = array<i64: 4, 32, 16>}, {pipeline_mode = #tpu.pipeline_mode<synchronous>, transform_indices = @transform_2, window_bounds = array<i64: 272, 1>}, {transform_indices = @transform_3, window_bounds = array<i64: 1, 272, 16>}, {transform_indices = @transform_4, window_bounds = array<i64: 1, 1, 16>}, {transform_indices = @transform_5, window_bounds = array<i64: 1, 1, 16>}]} {
    %c0 = arith.constant 0 : index
    %c0_0 = arith.constant 0 : index
    %c0_1 = arith.constant 0 : index
    %0 = vector.load %arg1[%c0, %c0_0, %c0_1] : memref<1x297x32xbf16, #tpu.memory_space<vmem>>, vector<1x272x32xbf16>
    %1 = vector.shape_cast %0 : vector<1x272x32xbf16> to vector<272x32xbf16>
    %c0_2 = arith.constant 0 : index
    %c0_3 = arith.constant 0 : index
    %c0_4 = arith.constant 0 : index
    %2 = vector.load %arg2[%c0_2, %c0_3, %c0_4] : memref<4x32x16xbf16, #tpu.memory_space<vmem>>, vector<1x32x16xbf16>
    %3 = vector.shape_cast %2 : vector<1x32x16xbf16> to vector<32x16xbf16>
    %cst = arith.constant dense<0.000000e+00> : vector<272x16xf32>
    %4 = tpu.matmul %1, %3, %cst {dimension_numbers = #tpu.dot_dimension_numbers<[1], [0], [0], [1], [0, 0, 1, 1], [], []>} : vector<272x32xbf16>, vector<32x16xbf16>, vector<272x16xf32> -> vector<272x16xf32>
    %c0_5 = arith.constant 0 : index
    %c1 = arith.constant 1 : index
    %c0_6 = arith.constant 0 : index
    %5 = vector.load %arg1[%c0_5, %c1, %c0_6] : memref<1x297x32xbf16, #tpu.memory_space<vmem>>, vector<1x272x32xbf16>
    %6 = vector.shape_cast %5 : vector<1x272x32xbf16> to vector<272x32xbf16>
    %c1_7 = arith.constant 1 : index
    %c0_8 = arith.constant 0 : index
    %c0_9 = arith.constant 0 : index
    %7 = vector.load %arg2[%c1_7, %c0_8, %c0_9] : memref<4x32x16xbf16, #tpu.memory_space<vmem>>, vector<1x32x16xbf16>
    %8 = vector.shape_cast %7 : vector<1x32x16xbf16> to vector<32x16xbf16>
    %cst_10 = arith.constant dense<0.000000e+00> : vector<272x16xf32>
    %9 = tpu.matmul %6, %8, %cst_10 {dimension_numbers = #tpu.dot_dimension_numbers<[1], [0], [0], [1], [0, 0, 1, 1], [], []>} : vector<272x32xbf16>, vector<32x16xbf16>, vector<272x16xf32> -> vector<272x16xf32>
    %10 = arith.addf %4, %9 : vector<272x16xf32>
    %c0_11 = arith.constant 0 : index
    %c17 = arith.constant 17 : index
    %c0_12 = arith.constant 0 : index
    %11 = vector.load %arg1[%c0_11, %c17, %c0_12] : memref<1x297x32xbf16, #tpu.memory_space<vmem>>, vector<1x272x32xbf16>
    %12 = vector.shape_cast %11 : vector<1x272x32xbf16> to vector<272x32xbf16>
    %c2 = arith.constant 2 : index
    %c0_13 = arith.constant 0 : index
    %c0_14 = arith.constant 0 : index
    %13 = vector.load %arg2[%c2, %c0_13, %c0_14] : memref<4x32x16xbf16, #tpu.memory_space<vmem>>, vector<1x32x16xbf16>
    %14 = vector.shape_cast %13 : vector<1x32x16xbf16> to vector<32x16xbf16>
    %cst_15 = arith.constant dense<0.000000e+00> : vector<272x16xf32>
    %15 = tpu.matmul %12, %14, %cst_15 {dimension_numbers = #tpu.dot_dimension_numbers<[1], [0], [0], [1], [0, 0, 1, 1], [], []>} : vector<272x32xbf16>, vector<32x16xbf16>, vector<272x16xf32> -> vector<272x16xf32>
    %16 = arith.addf %10, %15 : vector<272x16xf32>
    %c0_16 = arith.constant 0 : index
    %c18 = arith.constant 18 : index
    %c0_17 = arith.constant 0 : index
    %17 = vector.load %arg1[%c0_16, %c18, %c0_17] : memref<1x297x32xbf16, #tpu.memory_space<vmem>>, vector<1x272x32xbf16>
    %18 = vector.shape_cast %17 : vector<1x272x32xbf16> to vector<272x32xbf16>
    %c3 = arith.constant 3 : index
    %c0_18 = arith.constant 0 : index
    %c0_19 = arith.constant 0 : index
    %19 = vector.load %arg2[%c3, %c0_18, %c0_19] : memref<4x32x16xbf16, #tpu.memory_space<vmem>>, vector<1x32x16xbf16>
    %20 = vector.shape_cast %19 : vector<1x32x16xbf16> to vector<32x16xbf16>
    %cst_20 = arith.constant dense<0.000000e+00> : vector<272x16xf32>
    %21 = tpu.matmul %18, %20, %cst_20 {dimension_numbers = #tpu.dot_dimension_numbers<[1], [0], [0], [1], [0, 0, 1, 1], [], []>} : vector<272x32xbf16>, vector<32x16xbf16>, vector<272x16xf32> -> vector<272x16xf32>
    %22 = arith.addf %16, %21 : vector<272x16xf32>
    %23 = arith.truncf %22 : vector<272x16xf32> to vector<272x16xbf16>
    %c0_21 = arith.constant 0 : index
    %c0_22 = arith.constant 0 : index
    %c0_23 = arith.constant 0 : index
    %24 = vector.load %arg4[%c0_21, %c0_22, %c0_23] : memref<1x272x16xbf16, #tpu.memory_space<vmem>>, vector<1x272x16xbf16>
    %25 = vector.shape_cast %24 : vector<1x272x16xbf16> to vector<272x16xbf16>
    %26 = vector.shape_cast %23 : vector<272x16xbf16> to vector<1x272x16xbf16>
    tpu.vector_store %arg4[%c0_21, %c0_22, %c0_23], %26 {strides = array<i32>} : memref<1x272x16xbf16, #tpu.memory_space<vmem>>, vector<1x272x16xbf16>,
    %c0_24 = arith.constant 0 : index
    %c0_25 = arith.constant 0 : index
    %27 = vector.load %arg3[%c0_24, %c0_25] : memref<272x1xf32, #tpu.memory_space<vmem>>, vector<272x1xf32>
    %28 = vector.broadcast %27 : vector<272x1xf32> to vector<272x16xf32>
    %29 = arith.mulf %22, %28 : vector<272x16xf32>
    %cst_26 = arith.constant dense<0.000000e+00> : vector<16xf32>
    %30 = vector.multi_reduction <add>, %29, %cst_26 [0] : vector<272x16xf32> to vector<16xf32>
    %31 = vector.shape_cast %30 : vector<16xf32> to vector<1x16xf32>
    %c0_27 = arith.constant 0 : index
    %c0_28 = arith.constant 0 : index
    %c0_29 = arith.constant 0 : index
    %32 = vector.load %arg5[%c0_27, %c0_28, %c0_29] : memref<1x1x16xf32, #tpu.memory_space<vmem>>, vector<1x1x16xf32>
    %33 = vector.shape_cast %32 : vector<1x1x16xf32> to vector<1x16xf32>
    %34 = vector.shape_cast %31 : vector<1x16xf32> to vector<1x1x16xf32>
    tpu.vector_store %arg5[%c0_27, %c0_28, %c0_29], %34 {strides = array<i32>} : memref<1x1x16xf32, #tpu.memory_space<vmem>>, vector<1x1x16xf32>,
    %35 = arith.mulf %29, %29 : vector<272x16xf32>
    %cst_30 = arith.constant dense<0.000000e+00> : vector<16xf32>
    %36 = vector.multi_reduction <add>, %35, %cst_30 [0] : vector<272x16xf32> to vector<16xf32>
    %37 = vector.shape_cast %36 : vector<16xf32> to vector<1x16xf32>
    %c0_31 = arith.constant 0 : index
    %c0_32 = arith.constant 0 : index
    %c0_33 = arith.constant 0 : index
    %38 = vector.load %arg6[%c0_31, %c0_32, %c0_33] : memref<1x1x16xf32, #tpu.memory_space<vmem>>, vector<1x1x16xf32>
    %39 = vector.shape_cast %38 : vector<1x1x16xf32> to vector<1x16xf32>
    %40 = vector.shape_cast %37 : vector<1x16xf32> to vector<1x1x16xf32>
    tpu.vector_store %arg6[%c0_31, %c0_32, %c0_33], %40 {strides = array<i32>} : memref<1x1x16xf32, #tpu.memory_space<vmem>>, vector<1x1x16xf32>,
    return
  }
  func.func @transform_0(%arg0: i32) -> (i32, i32, i32) {
    %c0_i32 = arith.constant 0 : i32
    %c0_i32_0 = arith.constant 0 : i32
    %c0_i32_1 = arith.constant 0 : i32
    return %arg0, %c0_i32, %c0_i32_0 : i32, i32, i32
  }
  func.func @transform_1(%arg0: i32) -> (i32, i32, i32) {
    %c0_i32 = arith.constant 0 : i32
    %c0_i32_0 = arith.constant 0 : i32
    %c0_i32_1 = arith.constant 0 : i32
    %c0_i32_2 = arith.constant 0 : i32
    return %c0_i32, %c0_i32_0, %c0_i32_1 : i32, i32, i32
  }
  func.func @transform_2(%arg0: i32) -> (i32, i32) {
    %c0_i32 = arith.constant 0 : i32
    %c0_i32_0 = arith.constant 0 : i32
    %c0_i32_1 = arith.constant 0 : i32
    return %c0_i32, %c0_i32_0 : i32, i32
  }
  func.func @transform_3(%arg0: i32) -> (i32, i32, i32) {
    %c0_i32 = arith.constant 0 : i32
    %c0_i32_0 = arith.constant 0 : i32
    %c0_i32_1 = arith.constant 0 : i32
    return %arg0, %c0_i32, %c0_i32_0 : i32, i32, i32
  }
  func.func @transform_4(%arg0: i32) -> (i32, i32, i32) {
    %c0_i32 = arith.constant 0 : i32
    %c0_i32_0 = arith.constant 0 : i32
    %c0_i32_1 = arith.constant 0 : i32
    return %arg0, %c0_i32, %c0_i32_0 : i32, i32, i32
  }
  func.func @transform_5(%arg0: i32) -> (i32, i32, i32) {
    %c0_i32 = arith.constant 0 : i32
    %c0_i32_0 = arith.constant 0 : i32
    %c0_i32_1 = arith.constant 0 : i32
    return %arg0, %c0_i32, %c0_i32_0 : i32, i32, i32
  }
}

module attributes {stable_mosaic.version = 11 : i64} {
  func.func @_conv_stats_kernel(%arg0: i32, %arg1: memref<1x89x64xbf16, #tpu.memory_space<vmem>>, %arg2: memref<4x64x32xbf16, #tpu.memory_space<vmem>>, %arg3: memref<72x1xf32, #tpu.memory_space<vmem>>, %arg4: memref<1x72x32xbf16, #tpu.memory_space<vmem>>, %arg5: memref<1x1x32xf32, #tpu.memory_space<vmem>>, %arg6: memref<1x1x32xf32, #tpu.memory_space<vmem>>) attributes {dimension_semantics = [#tpu.dimension_semantics<parallel>], iteration_bounds = array<i64: 2>, scalar_prefetch = 0 : i64, scratch_operands = 0 : i64, tpu.core_type = #tpu.core_type<tc>, window_params = [{transform_indices = @transform_0, window_bounds = array<i64: 1, 89, 64>}, {pipeline_mode = #tpu.pipeline_mode<synchronous>, transform_indices = @transform_1, window_bounds = array<i64: 4, 64, 32>}, {pipeline_mode = #tpu.pipeline_mode<synchronous>, transform_indices = @transform_2, window_bounds = array<i64: 72, 1>}, {transform_indices = @transform_3, window_bounds = array<i64: 1, 72, 32>}, {transform_indices = @transform_4, window_bounds = array<i64: 1, 1, 32>}, {transform_indices = @transform_5, window_bounds = array<i64: 1, 1, 32>}]} {
    %c0 = arith.constant 0 : index
    %c0_0 = arith.constant 0 : index
    %c0_1 = arith.constant 0 : index
    %0 = vector.load %arg1[%c0, %c0_0, %c0_1] : memref<1x89x64xbf16, #tpu.memory_space<vmem>>, vector<1x72x64xbf16>
    %1 = vector.shape_cast %0 : vector<1x72x64xbf16> to vector<72x64xbf16>
    %c0_2 = arith.constant 0 : index
    %c0_3 = arith.constant 0 : index
    %c0_4 = arith.constant 0 : index
    %2 = vector.load %arg2[%c0_2, %c0_3, %c0_4] : memref<4x64x32xbf16, #tpu.memory_space<vmem>>, vector<1x64x32xbf16>
    %3 = vector.shape_cast %2 : vector<1x64x32xbf16> to vector<64x32xbf16>
    %cst = arith.constant dense<0.000000e+00> : vector<72x32xf32>
    %4 = tpu.matmul %1, %3, %cst {dimension_numbers = #tpu.dot_dimension_numbers<[1], [0], [0], [1], [0, 0, 1, 1], [], []>} : vector<72x64xbf16>, vector<64x32xbf16>, vector<72x32xf32> -> vector<72x32xf32>
    %c0_5 = arith.constant 0 : index
    %c1 = arith.constant 1 : index
    %c0_6 = arith.constant 0 : index
    %5 = vector.load %arg1[%c0_5, %c1, %c0_6] : memref<1x89x64xbf16, #tpu.memory_space<vmem>>, vector<1x72x64xbf16>
    %6 = vector.shape_cast %5 : vector<1x72x64xbf16> to vector<72x64xbf16>
    %c1_7 = arith.constant 1 : index
    %c0_8 = arith.constant 0 : index
    %c0_9 = arith.constant 0 : index
    %7 = vector.load %arg2[%c1_7, %c0_8, %c0_9] : memref<4x64x32xbf16, #tpu.memory_space<vmem>>, vector<1x64x32xbf16>
    %8 = vector.shape_cast %7 : vector<1x64x32xbf16> to vector<64x32xbf16>
    %cst_10 = arith.constant dense<0.000000e+00> : vector<72x32xf32>
    %9 = tpu.matmul %6, %8, %cst_10 {dimension_numbers = #tpu.dot_dimension_numbers<[1], [0], [0], [1], [0, 0, 1, 1], [], []>} : vector<72x64xbf16>, vector<64x32xbf16>, vector<72x32xf32> -> vector<72x32xf32>
    %10 = arith.addf %4, %9 : vector<72x32xf32>
    %c0_11 = arith.constant 0 : index
    %c9 = arith.constant 9 : index
    %c0_12 = arith.constant 0 : index
    %11 = vector.load %arg1[%c0_11, %c9, %c0_12] : memref<1x89x64xbf16, #tpu.memory_space<vmem>>, vector<1x72x64xbf16>
    %12 = vector.shape_cast %11 : vector<1x72x64xbf16> to vector<72x64xbf16>
    %c2 = arith.constant 2 : index
    %c0_13 = arith.constant 0 : index
    %c0_14 = arith.constant 0 : index
    %13 = vector.load %arg2[%c2, %c0_13, %c0_14] : memref<4x64x32xbf16, #tpu.memory_space<vmem>>, vector<1x64x32xbf16>
    %14 = vector.shape_cast %13 : vector<1x64x32xbf16> to vector<64x32xbf16>
    %cst_15 = arith.constant dense<0.000000e+00> : vector<72x32xf32>
    %15 = tpu.matmul %12, %14, %cst_15 {dimension_numbers = #tpu.dot_dimension_numbers<[1], [0], [0], [1], [0, 0, 1, 1], [], []>} : vector<72x64xbf16>, vector<64x32xbf16>, vector<72x32xf32> -> vector<72x32xf32>
    %16 = arith.addf %10, %15 : vector<72x32xf32>
    %c0_16 = arith.constant 0 : index
    %c10 = arith.constant 10 : index
    %c0_17 = arith.constant 0 : index
    %17 = vector.load %arg1[%c0_16, %c10, %c0_17] : memref<1x89x64xbf16, #tpu.memory_space<vmem>>, vector<1x72x64xbf16>
    %18 = vector.shape_cast %17 : vector<1x72x64xbf16> to vector<72x64xbf16>
    %c3 = arith.constant 3 : index
    %c0_18 = arith.constant 0 : index
    %c0_19 = arith.constant 0 : index
    %19 = vector.load %arg2[%c3, %c0_18, %c0_19] : memref<4x64x32xbf16, #tpu.memory_space<vmem>>, vector<1x64x32xbf16>
    %20 = vector.shape_cast %19 : vector<1x64x32xbf16> to vector<64x32xbf16>
    %cst_20 = arith.constant dense<0.000000e+00> : vector<72x32xf32>
    %21 = tpu.matmul %18, %20, %cst_20 {dimension_numbers = #tpu.dot_dimension_numbers<[1], [0], [0], [1], [0, 0, 1, 1], [], []>} : vector<72x64xbf16>, vector<64x32xbf16>, vector<72x32xf32> -> vector<72x32xf32>
    %22 = arith.addf %16, %21 : vector<72x32xf32>
    %23 = arith.truncf %22 : vector<72x32xf32> to vector<72x32xbf16>
    %c0_21 = arith.constant 0 : index
    %c0_22 = arith.constant 0 : index
    %c0_23 = arith.constant 0 : index
    %24 = vector.load %arg4[%c0_21, %c0_22, %c0_23] : memref<1x72x32xbf16, #tpu.memory_space<vmem>>, vector<1x72x32xbf16>
    %25 = vector.shape_cast %24 : vector<1x72x32xbf16> to vector<72x32xbf16>
    %26 = vector.shape_cast %23 : vector<72x32xbf16> to vector<1x72x32xbf16>
    tpu.vector_store %arg4[%c0_21, %c0_22, %c0_23], %26 {strides = array<i32>} : memref<1x72x32xbf16, #tpu.memory_space<vmem>>, vector<1x72x32xbf16>,
    %c0_24 = arith.constant 0 : index
    %c0_25 = arith.constant 0 : index
    %27 = vector.load %arg3[%c0_24, %c0_25] : memref<72x1xf32, #tpu.memory_space<vmem>>, vector<72x1xf32>
    %28 = vector.broadcast %27 : vector<72x1xf32> to vector<72x32xf32>
    %29 = arith.mulf %22, %28 : vector<72x32xf32>
    %cst_26 = arith.constant dense<0.000000e+00> : vector<32xf32>
    %30 = vector.multi_reduction <add>, %29, %cst_26 [0] : vector<72x32xf32> to vector<32xf32>
    %31 = vector.shape_cast %30 : vector<32xf32> to vector<1x32xf32>
    %c0_27 = arith.constant 0 : index
    %c0_28 = arith.constant 0 : index
    %c0_29 = arith.constant 0 : index
    %32 = vector.load %arg5[%c0_27, %c0_28, %c0_29] : memref<1x1x32xf32, #tpu.memory_space<vmem>>, vector<1x1x32xf32>
    %33 = vector.shape_cast %32 : vector<1x1x32xf32> to vector<1x32xf32>
    %34 = vector.shape_cast %31 : vector<1x32xf32> to vector<1x1x32xf32>
    tpu.vector_store %arg5[%c0_27, %c0_28, %c0_29], %34 {strides = array<i32>} : memref<1x1x32xf32, #tpu.memory_space<vmem>>, vector<1x1x32xf32>,
    %35 = arith.mulf %29, %29 : vector<72x32xf32>
    %cst_30 = arith.constant dense<0.000000e+00> : vector<32xf32>
    %36 = vector.multi_reduction <add>, %35, %cst_30 [0] : vector<72x32xf32> to vector<32xf32>
    %37 = vector.shape_cast %36 : vector<32xf32> to vector<1x32xf32>
    %c0_31 = arith.constant 0 : index
    %c0_32 = arith.constant 0 : index
    %c0_33 = arith.constant 0 : index
    %38 = vector.load %arg6[%c0_31, %c0_32, %c0_33] : memref<1x1x32xf32, #tpu.memory_space<vmem>>, vector<1x1x32xf32>
    %39 = vector.shape_cast %38 : vector<1x1x32xf32> to vector<1x32xf32>
    %40 = vector.shape_cast %37 : vector<1x32xf32> to vector<1x1x32xf32>
    tpu.vector_store %arg6[%c0_31, %c0_32, %c0_33], %40 {strides = array<i32>} : memref<1x1x32xf32, #tpu.memory_space<vmem>>, vector<1x1x32xf32>,
    return
  }
  func.func @transform_0(%arg0: i32) -> (i32, i32, i32) {
    %c0_i32 = arith.constant 0 : i32
    %c0_i32_0 = arith.constant 0 : i32
    %c0_i32_1 = arith.constant 0 : i32
    return %arg0, %c0_i32, %c0_i32_0 : i32, i32, i32
  }
  func.func @transform_1(%arg0: i32) -> (i32, i32, i32) {
    %c0_i32 = arith.constant 0 : i32
    %c0_i32_0 = arith.constant 0 : i32
    %c0_i32_1 = arith.constant 0 : i32
    %c0_i32_2 = arith.constant 0 : i32
    return %c0_i32, %c0_i32_0, %c0_i32_1 : i32, i32, i32
  }
  func.func @transform_2(%arg0: i32) -> (i32, i32) {
    %c0_i32 = arith.constant 0 : i32
    %c0_i32_0 = arith.constant 0 : i32
    %c0_i32_1 = arith.constant 0 : i32
    return %c0_i32, %c0_i32_0 : i32, i32
  }
  func.func @transform_3(%arg0: i32) -> (i32, i32, i32) {
    %c0_i32 = arith.constant 0 : i32
    %c0_i32_0 = arith.constant 0 : i32
    %c0_i32_1 = arith.constant 0 : i32
    return %arg0, %c0_i32, %c0_i32_0 : i32, i32, i32
  }
  func.func @transform_4(%arg0: i32) -> (i32, i32, i32) {
    %c0_i32 = arith.constant 0 : i32
    %c0_i32_0 = arith.constant 0 : i32
    %c0_i32_1 = arith.constant 0 : i32
    return %arg0, %c0_i32, %c0_i32_0 : i32, i32, i32
  }
  func.func @transform_5(%arg0: i32) -> (i32, i32, i32) {
    %c0_i32 = arith.constant 0 : i32
    %c0_i32_0 = arith.constant 0 : i32
    %c0_i32_1 = arith.constant 0 : i32
    return %arg0, %c0_i32, %c0_i32_0 : i32, i32, i32
  }
}

module attributes {stable_mosaic.version = 11 : i64} {
  func.func @_conv_stats_kernel(%arg0: i32, %arg1: memref<1x33x128xbf16, #tpu.memory_space<vmem>>, %arg2: memref<4x128x64xbf16, #tpu.memory_space<vmem>>, %arg3: memref<20x1xf32, #tpu.memory_space<vmem>>, %arg4: memref<1x20x64xbf16, #tpu.memory_space<vmem>>, %arg5: memref<1x1x64xf32, #tpu.memory_space<vmem>>, %arg6: memref<1x1x64xf32, #tpu.memory_space<vmem>>) attributes {dimension_semantics = [#tpu.dimension_semantics<parallel>], iteration_bounds = array<i64: 2>, scalar_prefetch = 0 : i64, scratch_operands = 0 : i64, tpu.core_type = #tpu.core_type<tc>, window_params = [{transform_indices = @transform_0, window_bounds = array<i64: 1, 33, 128>}, {pipeline_mode = #tpu.pipeline_mode<synchronous>, transform_indices = @transform_1, window_bounds = array<i64: 4, 128, 64>}, {pipeline_mode = #tpu.pipeline_mode<synchronous>, transform_indices = @transform_2, window_bounds = array<i64: 20, 1>}, {transform_indices = @transform_3, window_bounds = array<i64: 1, 20, 64>}, {transform_indices = @transform_4, window_bounds = array<i64: 1, 1, 64>}, {transform_indices = @transform_5, window_bounds = array<i64: 1, 1, 64>}]} {
    %c0 = arith.constant 0 : index
    %c0_0 = arith.constant 0 : index
    %c0_1 = arith.constant 0 : index
    %0 = vector.load %arg1[%c0, %c0_0, %c0_1] : memref<1x33x128xbf16, #tpu.memory_space<vmem>>, vector<1x20x128xbf16>
    %1 = vector.shape_cast %0 : vector<1x20x128xbf16> to vector<20x128xbf16>
    %c0_2 = arith.constant 0 : index
    %c0_3 = arith.constant 0 : index
    %c0_4 = arith.constant 0 : index
    %2 = vector.load %arg2[%c0_2, %c0_3, %c0_4] : memref<4x128x64xbf16, #tpu.memory_space<vmem>>, vector<1x128x64xbf16>
    %3 = vector.shape_cast %2 : vector<1x128x64xbf16> to vector<128x64xbf16>
    %cst = arith.constant dense<0.000000e+00> : vector<20x64xf32>
    %4 = tpu.matmul %1, %3, %cst {dimension_numbers = #tpu.dot_dimension_numbers<[1], [0], [0], [1], [0, 0, 1, 1], [], []>} : vector<20x128xbf16>, vector<128x64xbf16>, vector<20x64xf32> -> vector<20x64xf32>
    %c0_5 = arith.constant 0 : index
    %c1 = arith.constant 1 : index
    %c0_6 = arith.constant 0 : index
    %5 = vector.load %arg1[%c0_5, %c1, %c0_6] : memref<1x33x128xbf16, #tpu.memory_space<vmem>>, vector<1x20x128xbf16>
    %6 = vector.shape_cast %5 : vector<1x20x128xbf16> to vector<20x128xbf16>
    %c1_7 = arith.constant 1 : index
    %c0_8 = arith.constant 0 : index
    %c0_9 = arith.constant 0 : index
    %7 = vector.load %arg2[%c1_7, %c0_8, %c0_9] : memref<4x128x64xbf16, #tpu.memory_space<vmem>>, vector<1x128x64xbf16>
    %8 = vector.shape_cast %7 : vector<1x128x64xbf16> to vector<128x64xbf16>
    %cst_10 = arith.constant dense<0.000000e+00> : vector<20x64xf32>
    %9 = tpu.matmul %6, %8, %cst_10 {dimension_numbers = #tpu.dot_dimension_numbers<[1], [0], [0], [1], [0, 0, 1, 1], [], []>} : vector<20x128xbf16>, vector<128x64xbf16>, vector<20x64xf32> -> vector<20x64xf32>
    %10 = arith.addf %4, %9 : vector<20x64xf32>
    %c0_11 = arith.constant 0 : index
    %c5 = arith.constant 5 : index
    %c0_12 = arith.constant 0 : index
    %11 = vector.load %arg1[%c0_11, %c5, %c0_12] : memref<1x33x128xbf16, #tpu.memory_space<vmem>>, vector<1x20x128xbf16>
    %12 = vector.shape_cast %11 : vector<1x20x128xbf16> to vector<20x128xbf16>
    %c2 = arith.constant 2 : index
    %c0_13 = arith.constant 0 : index
    %c0_14 = arith.constant 0 : index
    %13 = vector.load %arg2[%c2, %c0_13, %c0_14] : memref<4x128x64xbf16, #tpu.memory_space<vmem>>, vector<1x128x64xbf16>
    %14 = vector.shape_cast %13 : vector<1x128x64xbf16> to vector<128x64xbf16>
    %cst_15 = arith.constant dense<0.000000e+00> : vector<20x64xf32>
    %15 = tpu.matmul %12, %14, %cst_15 {dimension_numbers = #tpu.dot_dimension_numbers<[1], [0], [0], [1], [0, 0, 1, 1], [], []>} : vector<20x128xbf16>, vector<128x64xbf16>, vector<20x64xf32> -> vector<20x64xf32>
    %16 = arith.addf %10, %15 : vector<20x64xf32>
    %c0_16 = arith.constant 0 : index
    %c6 = arith.constant 6 : index
    %c0_17 = arith.constant 0 : index
    %17 = vector.load %arg1[%c0_16, %c6, %c0_17] : memref<1x33x128xbf16, #tpu.memory_space<vmem>>, vector<1x20x128xbf16>
    %18 = vector.shape_cast %17 : vector<1x20x128xbf16> to vector<20x128xbf16>
    %c3 = arith.constant 3 : index
    %c0_18 = arith.constant 0 : index
    %c0_19 = arith.constant 0 : index
    %19 = vector.load %arg2[%c3, %c0_18, %c0_19] : memref<4x128x64xbf16, #tpu.memory_space<vmem>>, vector<1x128x64xbf16>
    %20 = vector.shape_cast %19 : vector<1x128x64xbf16> to vector<128x64xbf16>
    %cst_20 = arith.constant dense<0.000000e+00> : vector<20x64xf32>
    %21 = tpu.matmul %18, %20, %cst_20 {dimension_numbers = #tpu.dot_dimension_numbers<[1], [0], [0], [1], [0, 0, 1, 1], [], []>} : vector<20x128xbf16>, vector<128x64xbf16>, vector<20x64xf32> -> vector<20x64xf32>
    %22 = arith.addf %16, %21 : vector<20x64xf32>
    %23 = arith.truncf %22 : vector<20x64xf32> to vector<20x64xbf16>
    %c0_21 = arith.constant 0 : index
    %c0_22 = arith.constant 0 : index
    %c0_23 = arith.constant 0 : index
    %24 = vector.load %arg4[%c0_21, %c0_22, %c0_23] : memref<1x20x64xbf16, #tpu.memory_space<vmem>>, vector<1x20x64xbf16>
    %25 = vector.shape_cast %24 : vector<1x20x64xbf16> to vector<20x64xbf16>
    %26 = vector.shape_cast %23 : vector<20x64xbf16> to vector<1x20x64xbf16>
    tpu.vector_store %arg4[%c0_21, %c0_22, %c0_23], %26 {strides = array<i32>} : memref<1x20x64xbf16, #tpu.memory_space<vmem>>, vector<1x20x64xbf16>,
    %c0_24 = arith.constant 0 : index
    %c0_25 = arith.constant 0 : index
    %27 = vector.load %arg3[%c0_24, %c0_25] : memref<20x1xf32, #tpu.memory_space<vmem>>, vector<20x1xf32>
    %28 = vector.broadcast %27 : vector<20x1xf32> to vector<20x64xf32>
    %29 = arith.mulf %22, %28 : vector<20x64xf32>
    %cst_26 = arith.constant dense<0.000000e+00> : vector<64xf32>
    %30 = vector.multi_reduction <add>, %29, %cst_26 [0] : vector<20x64xf32> to vector<64xf32>
    %31 = vector.shape_cast %30 : vector<64xf32> to vector<1x64xf32>
    %c0_27 = arith.constant 0 : index
    %c0_28 = arith.constant 0 : index
    %c0_29 = arith.constant 0 : index
    %32 = vector.load %arg5[%c0_27, %c0_28, %c0_29] : memref<1x1x64xf32, #tpu.memory_space<vmem>>, vector<1x1x64xf32>
    %33 = vector.shape_cast %32 : vector<1x1x64xf32> to vector<1x64xf32>
    %34 = vector.shape_cast %31 : vector<1x64xf32> to vector<1x1x64xf32>
    tpu.vector_store %arg5[%c0_27, %c0_28, %c0_29], %34 {strides = array<i32>} : memref<1x1x64xf32, #tpu.memory_space<vmem>>, vector<1x1x64xf32>,
    %35 = arith.mulf %29, %29 : vector<20x64xf32>
    %cst_30 = arith.constant dense<0.000000e+00> : vector<64xf32>
    %36 = vector.multi_reduction <add>, %35, %cst_30 [0] : vector<20x64xf32> to vector<64xf32>
    %37 = vector.shape_cast %36 : vector<64xf32> to vector<1x64xf32>
    %c0_31 = arith.constant 0 : index
    %c0_32 = arith.constant 0 : index
    %c0_33 = arith.constant 0 : index
    %38 = vector.load %arg6[%c0_31, %c0_32, %c0_33] : memref<1x1x64xf32, #tpu.memory_space<vmem>>, vector<1x1x64xf32>
    %39 = vector.shape_cast %38 : vector<1x1x64xf32> to vector<1x64xf32>
    %40 = vector.shape_cast %37 : vector<1x64xf32> to vector<1x1x64xf32>
    tpu.vector_store %arg6[%c0_31, %c0_32, %c0_33], %40 {strides = array<i32>} : memref<1x1x64xf32, #tpu.memory_space<vmem>>, vector<1x1x64xf32>,
    return
  }
  func.func @transform_0(%arg0: i32) -> (i32, i32, i32) {
    %c0_i32 = arith.constant 0 : i32
    %c0_i32_0 = arith.constant 0 : i32
    %c0_i32_1 = arith.constant 0 : i32
    return %arg0, %c0_i32, %c0_i32_0 : i32, i32, i32
  }
  func.func @transform_1(%arg0: i32) -> (i32, i32, i32) {
    %c0_i32 = arith.constant 0 : i32
    %c0_i32_0 = arith.constant 0 : i32
    %c0_i32_1 = arith.constant 0 : i32
    %c0_i32_2 = arith.constant 0 : i32
    return %c0_i32, %c0_i32_0, %c0_i32_1 : i32, i32, i32
  }
  func.func @transform_2(%arg0: i32) -> (i32, i32) {
    %c0_i32 = arith.constant 0 : i32
    %c0_i32_0 = arith.constant 0 : i32
    %c0_i32_1 = arith.constant 0 : i32
    return %c0_i32, %c0_i32_0 : i32, i32
  }
  func.func @transform_3(%arg0: i32) -> (i32, i32, i32) {
    %c0_i32 = arith.constant 0 : i32
    %c0_i32_0 = arith.constant 0 : i32
    %c0_i32_1 = arith.constant 0 : i32
    return %arg0, %c0_i32, %c0_i32_0 : i32, i32, i32
  }
  func.func @transform_4(%arg0: i32) -> (i32, i32, i32) {
    %c0_i32 = arith.constant 0 : i32
    %c0_i32_0 = arith.constant 0 : i32
    %c0_i32_1 = arith.constant 0 : i32
    return %arg0, %c0_i32, %c0_i32_0 : i32, i32, i32
  }
  func.func @transform_5(%arg0: i32) -> (i32, i32, i32) {
    %c0_i32 = arith.constant 0 : i32
    %c0_i32_0 = arith.constant 0 : i32
    %c0_i32_1 = arith.constant 0 : i32
    return %arg0, %c0_i32, %c0_i32_0 : i32, i32, i32
  }
}

module attributes {stable_mosaic.version = 11 : i64} {
  func.func @_matmul_sigmoid_kernel(%arg0: i32, %arg1: memref<2x1024xbf16, #tpu.memory_space<vmem>>, %arg2: memref<1024x128xbf16, #tpu.memory_space<vmem>>, %arg3: memref<2x128xf32, #tpu.memory_space<vmem>>) attributes {dimension_semantics = [#tpu.dimension_semantics<arbitrary>], iteration_bounds = array<i64: 1>, scalar_prefetch = 0 : i64, scratch_operands = 0 : i64, tpu.core_type = #tpu.core_type<tc>, window_params = [{pipeline_mode = #tpu.pipeline_mode<synchronous>, transform_indices = @transform_0, window_bounds = array<i64: 2, 1024>}, {pipeline_mode = #tpu.pipeline_mode<synchronous>, transform_indices = @transform_1, window_bounds = array<i64: 1024, 128>}, {pipeline_mode = #tpu.pipeline_mode<synchronous>, transform_indices = @transform_2, window_bounds = array<i64: 2, 128>}]} {
    %c0 = arith.constant 0 : index
    %c0_0 = arith.constant 0 : index
    %0 = vector.load %arg1[%c0, %c0_0] : memref<2x1024xbf16, #tpu.memory_space<vmem>>, vector<2x1024xbf16>
    %c0_1 = arith.constant 0 : index
    %c0_2 = arith.constant 0 : index
    %1 = vector.load %arg2[%c0_1, %c0_2] : memref<1024x128xbf16, #tpu.memory_space<vmem>>, vector<1024x128xbf16>
    %cst = arith.constant dense<0.000000e+00> : vector<2x128xf32>
    %2 = tpu.matmul %0, %1, %cst {dimension_numbers = #tpu.dot_dimension_numbers<[1], [0], [0], [1], [0, 0, 1, 1], [], []>} : vector<2x1024xbf16>, vector<1024x128xbf16>, vector<2x128xf32> -> vector<2x128xf32>
    %3 = arith.negf %2 : vector<2x128xf32>
    %4 = math.exp %3 : vector<2x128xf32>
    %cst_3 = arith.constant 1.000000e+00 : f32
    %5 = vector.broadcast %cst_3 : f32 to vector<2x128xf32>
    %6 = arith.addf %5, %4 : vector<2x128xf32>
    %7 = arith.divf %5, %6 : vector<2x128xf32>
    %c0_4 = arith.constant 0 : index
    %c0_5 = arith.constant 0 : index
    %8 = vector.load %arg3[%c0_4, %c0_5] : memref<2x128xf32, #tpu.memory_space<vmem>>, vector<2x128xf32>
    tpu.vector_store %arg3[%c0_4, %c0_5], %7 {strides = array<i32>} : memref<2x128xf32, #tpu.memory_space<vmem>>, vector<2x128xf32>,
    return
  }
  func.func @transform_0(%arg0: i32) -> (i32, i32) {
    %c0_i32 = arith.constant 0 : i32
    %c0_i32_0 = arith.constant 0 : i32
    %c0_i32_1 = arith.constant 0 : i32
    return %c0_i32, %c0_i32_0 : i32, i32
  }
  func.func @transform_1(%arg0: i32) -> (i32, i32) {
    %c0_i32 = arith.constant 0 : i32
    %c0_i32_0 = arith.constant 0 : i32
    %c0_i32_1 = arith.constant 0 : i32
    return %c0_i32, %c0_i32_0 : i32, i32
  }
  func.func @transform_2(%arg0: i32) -> (i32, i32) {
    %c0_i32 = arith.constant 0 : i32
    %c0_i32_0 = arith.constant 0 : i32
    %c0_i32_1 = arith.constant 0 : i32
    return %c0_i32, %c0_i32_0 : i32, i32
  }
}

</mosaic_0001>

<llo_original>
// kernel: discriminator_forward.5
$region0: #{discriminator_forward.5}
  #allocation0 [shape = 'u32[]', space=smem, size = 0x4, offset = 0x4, fixed_abs, tag = 'smem constant byte address 0x4 - core index']
  #allocation1 [shape = 'u32[144,128]{1,0:T(1,128)}', space=vmem, size = 0x12000, scoped, tag = 'internal scratch']
  %s0 = inlined_call_operand.vmem [shape: bf16[2,1097,12], index: 0, kind: input, shape index: {}]
  %s1 = inlined_call_operand.vmem [shape: bf16[4,12,8], index: 1, kind: input, shape index: {}]
  %s2 = inlined_call_operand.vmem [shape: bf16[2,1056,8], index: 2, kind: output, shape index: {}]
  %s3 = sld [smem:[#allocation0]]
  $region41: #{discriminator_forward.5} parent=0
    _
  %s5 = ssub.s32 1, %s3
  %s6 = scalar_select 0, %s5, %s3
  loop: start=0, step=1, limit=4
  $region2: #{discriminator_forward.5} parent=0 // loop_pre_header
    _
  $region3: #{discriminator_forward.5} parent=0 // loop_header
    %s8 = sphi 0, %s12
    %p9 = scmp.ge.s32.totalorder %s8, 4
    %s18 = sphi 0, %s20
    %s21 = sphi 0, %s18
    %s22 = sphi 0, %s21
    %s38 = sphi 0, %s22
    %s42 = sphi 0, %s42
    %s44 = sphi 0, %s42
    %s45 = sphi 0, %s44
    %s59 = sphi 0, %s45
    %s65 = sphi 0, %s67
    %s68 = sphi 0, %s65
    %s69 = sphi 0, %s68
    %s85 = sphi 0, %s69
  $region4: #{discriminator_forward.5} parent=0 // loop_header_branch
    %11 = sbr.rel (%p9) target = $region8
  $region5: #{discriminator_forward.5} parent=0 // loop_body
    %s13 = ssub.s32 %s8, 1
    %s14 = ssub.s32 %s8, 2
    %s15 = sadd.s32 %s8, 1
    %s16 = ssub.s32 %s8, %s15
    %p17 = scmp.eq.s32.totalorder %s16, 0
    %s19 = sadd.s32 %s18, 1
    %s20 = scalar_select %p17, %s18, %s19
    %p23 = pneg %p17
    %p24 = scmp.eq.s32.totalorder %s8, 1
    %p25 = por %p23, %p24
    %p26 = scmp.ne.s32.totalorder %s18, %s21
    %p27 = scmp.eq.s32.totalorder %s8, 0
    %p28 = por %p26, %p27
    %p29 = scmp.ne.s32.totalorder %s18, %s21
    %p30 = scmp.eq.s32.totalorder %s13, 1
    %p31 = por %p29, %p30
    %p32 = scmp.ne.s32.totalorder %s21, %s22
    %p33 = scmp.eq.s32.totalorder %s13, 0
    %p34 = por %p32, %p33
    %p35 = scmp.ne.s32.totalorder %s21, %s22
    %p36 = scmp.eq.s32.totalorder %s14, 1
    %p37 = por %p35, %p36
    %p39 = scmp.ne.s32.totalorder %s22, %s38
    %p40 = scmp.eq.s32.totalorder %s14, 0
    %p41 = por %p39, %p40
    %s43 = sadd.s32 %s42, 1
    %p46 = scmp.eq.s32.totalorder %s8, 1
    %p47 = scmp.ne.s32.totalorder %s42, %s44
    %p48 = scmp.eq.s32.totalorder %s8, 0
    %p49 = por %p47, %p48
    %p50 = scmp.ne.s32.totalorder %s42, %s44
    %p51 = scmp.eq.s32.totalorder %s13, 1
    %p52 = por %p50, %p51
    %p53 = scmp.ne.s32.totalorder %s44, %s45
    %p54 = scmp.eq.s32.totalorder %s13, 0
    %p55 = por %p53, %p54
    %p56 = scmp.ne.s32.totalorder %s44, %s45
    %p57 = scmp.eq.s32.totalorder %s14, 1
    %p58 = por %p56, %p57
    %p60 = scmp.ne.s32.totalorder %s45, %s59
    %p61 = scmp.eq.s32.totalorder %s14, 0
    %p62 = por %p60, %p61
    %s63 = ssub.s32 %s8, %s15
    %p64 = scmp.eq.s32.totalorder %s63, 0
    %s66 = sadd.s32 %s65, 1
    %s67 = scalar_select %p64, %s65, %s66
    %p70 = pneg %p64
    %p71 = scmp.eq.s32.totalorder %s8, 1
    %p72 = por %p70, %p71
    %p73 = scmp.ne.s32.totalorder %s65, %s68
    %p74 = scmp.eq.s32.totalorder %s8, 0
    %p75 = por %p73, %p74
    %p76 = scmp.ne.s32.totalorder %s65, %s68
    %p77 = scmp.eq.s32.totalorder %s13, 1
    %p78 = por %p76, %p77
    %p79 = scmp.ne.s32.totalorder %s68, %s69
    %p80 = scmp.eq.s32.totalorder %s13, 0
    %p81 = por %p79, %p80
    %p82 = scmp.ne.s32.totalorder %s68, %s69
    %p83 = scmp.eq.s32.totalorder %s14, 1
    %p84 = por %p82, %p83
    %p86 = scmp.ne.s32.totalorder %s69, %s85
    %p87 = scmp.eq.s32.totalorder %s14, 0
    %p88 = por %p86, %p87
    %p89 = scmp.le.s32.totalorder 1, %s8
    %p90 = scmp.lt.s32.totalorder %s8, 3
    %p91 = pnand %p89, %p90
    %p92 = pneg %p91
    // Predicated region
    $region9: #{discriminator_forward.5} parent=5 // pred_check
      _
    $region10: #{discriminator_forward.5} parent=5 // pred_check_branch
      %94 = sbr.rel (%p91) target = $region12
    $region11: #{discriminator_forward.5} parent=5 // pred_region
      %s95 = ssub.s32 %s8, 1
      // Predicated region
      $region13: #{discriminator_forward.5} parent=11 // pred_check
        %p96 = pneg %p55
      $region14: #{discriminator_forward.5} parent=11 // pred_check_branch
        %98 = sbr.rel (%p96) target = $region16
      $region15: #{discriminator_forward.5} parent=11 // pred_region
        _
      $region16: #{discriminator_forward.5} parent=11 // pred_fallthru
        _
    $region12: #{discriminator_forward.5} parent=5 // pred_fallthru
      _
    %p99 = scmp.lt.s32.totalorder %s8, 2
    // Predicated region
    $region17: #{discriminator_forward.5} parent=5 // pred_check
      %p100 = pneg %p99
    $region18: #{discriminator_forward.5} parent=5 // pred_check_branch
      %102 = sbr.rel (%p100) target = $region20
    $region19: #{discriminator_forward.5} parent=5 // pred_region
      // Predicated region
      $region21: #{discriminator_forward.5} parent=19 // pred_check
        %p103 = pneg %p28
      $region22: #{discriminator_forward.5} parent=19 // pred_check_branch
        %105 = sbr.rel (%p103) target = $region24
      $region23: #{discriminator_forward.5} parent=19 // pred_region
        %p106 = scmp.lt.s32.totalorder %s8, 1
        %s107 = scalar_select %p106, %s8, 1
        %s108 = smul.addr %s107, 138
        %s109 = smul.addr %s108, 4
        %s110 = scalar_lea.vmem %s0, %s109
      $region24: #{discriminator_forward.5} parent=19 // pred_fallthru
        _
    $region20: #{discriminator_forward.5} parent=5 // pred_fallthru
      _
    %p111 = scmp.le.s32.totalorder 1, %s8
    %p112 = scmp.lt.s32.totalorder %s8, 3
    %p113 = pnand %p111, %p112
    %p114 = pneg %p113
    // Predicated region
    $region25: #{discriminator_forward.5} parent=5 // pred_check
      _
    $region26: #{discriminator_forward.5} parent=5 // pred_check_branch
      %116 = sbr.rel (%p113) target = $region28
    $region27: #{discriminator_forward.5} parent=5 // pred_region
      %s117 = ssub.s32 %s8, 1
      %p118 = scmp.lt.s32.totalorder %s13, 1
      %s119 = scalar_select %p118, %s13, 1
      %s120 = smul.addr %s119, 138
      %s121 = smul.addr %s120, 4
      %s122 = scalar_lea.vmem %s0, %s121
      %p123 = pneg %p34
      %p124 = pneg %p31
      %p125 = pneg %p55
      %p126 = pneg %p52
      %p127 = pneg %p81
      %p128 = pneg %p78
      %p129 = scmp.lt.s32.totalorder %s13, 1
      %s130 = scalar_select %p129, %s13, 1
      %s131 = smul.addr %s130, 132
      %s132 = smul.addr %s131, 4
      %s133 = scalar_lea.vmem %s2, %s132
      %p134 = scmp.lt.s32.totalorder %s13, 1
      %s135 = scalar_select %p134, %s13, 1
      %s136 = smul.addr %s135, 138
      %s137 = smul.addr %s136, 4
      %s138 = scalar_lea.vmem %s0, %s137
      %p139 = scmp.lt.s32.totalorder %s13, 1
      %s140 = scalar_select %p139, %s13, 1
      %s141 = smul.addr %s140, 132
      %s142 = smul.addr %s141, 4
      %s143 = scalar_lea.vmem %s2, %s142
      %v145 = vld [vmem:[%s138] sm:$0xf]
      %v146 = vld [vmem:[%s138 + $0x4] sm:$0xf]
      %v147 = vld [vmem:[%s138 + $0x8] sm:$0xf]
      %v148 = vld [vmem:[%s138 + $0xc] sm:$0xf]
      %v149 = vld [vmem:[%s138 + $0x10] sm:$0xf]
      %v150 = vld [vmem:[%s138 + $0x14] sm:$0xf]
      %v151 = vld [vmem:[%s138 + $0x18] sm:$0xf]
      %v152 = vld [vmem:[%s138 + $0x1c] sm:$0xf]
      %v153 = vld [vmem:[%s138 + $0x20] sm:$0xf]
      %v154 = vld [vmem:[%s138 + $0x24] sm:$0xf]
      %v155 = vld [vmem:[%s138 + $0x28] sm:$0xf]
      %v156 = vld [vmem:[%s138 + $0x2c] sm:$0xf]
      %v157 = vld [vmem:[%s138 + $0x30] sm:$0xf]
      %v158 = vld [vmem:[%s138 + $0x34] sm:$0xf]
      %v159 = vld [vmem:[%s138 + $0x38] sm:$0xf]
      %v160 = vld [vmem:[%s138 + $0x3c] sm:$0xf]
      %v161 = vld [vmem:[%s138 + $0x40] sm:$0xf]
      %v162 = vld [vmem:[%s138 + $0x44] sm:$0xf]
      %v163 = vld [vmem:[%s138 + $0x48] sm:$0xf]
      %v164 = vld [vmem:[%s138 + $0x4c] sm:$0xf]
      %v165 = vld [vmem:[%s138 + $0x50] sm:$0xf]
      %v166 = vld [vmem:[%s138 + $0x54] sm:$0xf]
      %v167 = vld [vmem:[%s138 + $0x58] sm:$0xf]
      %v168 = vld [vmem:[%s138 + $0x5c] sm:$0xf]
      %v169 = vld [vmem:[%s138 + $0x60] sm:$0xf]
      %v170 = vld [vmem:[%s138 + $0x64] sm:$0xf]
      %v171 = vld [vmem:[%s138 + $0x68] sm:$0xf]
      %v172 = vld [vmem:[%s138 + $0x6c] sm:$0xf]
      %v173 = vld [vmem:[%s138 + $0x70] sm:$0xf]
      %v174 = vld [vmem:[%s138 + $0x74] sm:$0xf]
      %v175 = vld [vmem:[%s138 + $0x78] sm:$0xf]
      %v176 = vld [vmem:[%s138 + $0x7c] sm:$0xf]
      %v177 = vld [vmem:[%s138 + $0x80] sm:$0xf]
      %v178 = vld [vmem:[%s138 + $0x84] sm:$0xf]
      %v179 = vld [vmem:[%s138 + $0x88] sm:$0xf]
      %v180 = vld [vmem:[%s138 + $0x8c] sm:$0xf]
      %v181 = vld [vmem:[%s138 + $0x90] sm:$0xf]
      %v182 = vld [vmem:[%s138 + $0x94] sm:$0xf]
      %v183 = vld [vmem:[%s138 + $0x98] sm:$0xf]
      %v184 = vld [vmem:[%s138 + $0x9c] sm:$0xf]
      %v185 = vld [vmem:[%s138 + $0xa0] sm:$0xf]
      %v186 = vld [vmem:[%s138 + $0xa4] sm:$0xf]
      %v187 = vld [vmem:[%s138 + $0xa8] sm:$0xf]
      %v188 = vld [vmem:[%s138 + $0xac] sm:$0xf]
      %v189 = vld [vmem:[%s138 + $0xb0] sm:$0xf]
      %v190 = vld [vmem:[%s138 + $0xb4] sm:$0xf]
      %v191 = vld [vmem:[%s138 + $0xb8] sm:$0xf]
      %v192 = vld [vmem:[%s138 + $0xbc] sm:$0xf]
      %v193 = vld [vmem:[%s138 + $0xc0] sm:$0xf]
      %v194 = vld [vmem:[%s138 + $0xc4] sm:$0xf]
      %v195 = vld [vmem:[%s138 + $0xc8] sm:$0xf]
      %v196 = vld [vmem:[%s138 + $0xcc] sm:$0xf]
      %v197 = vld [vmem:[%s138 + $0xd0] sm:$0xf]
      %v198 = vld [vmem:[%s138 + $0xd4] sm:$0xf]
      %v199 = vld [vmem:[%s138 + $0xd8] sm:$0xf]
      %v200 = vld [vmem:[%s138 + $0xdc] sm:$0xf]
      %v201 = vld [vmem:[%s138 + $0xe0] sm:$0xf]
      %v202 = vld [vmem:[%s138 + $0xe4] sm:$0xf]
      %v203 = vld [vmem:[%s138 + $0xe8] sm:$0xf]
      %v204 = vld [vmem:[%s138 + $0xec] sm:$0xf]
      %v205 = vld [vmem:[%s138 + $0xf0] sm:$0xf]
      %v206 = vld [vmem:[%s138 + $0xf4] sm:$0xf]
      %v207 = vld [vmem:[%s138 + $0xf8] sm:$0xf]
      %v208 = vld [vmem:[%s138 + $0xfc] sm:$0xf]
      %v209 = vld [vmem:[%s138 + $0x100] sm:$0xf]
      %v210 = vld [vmem:[%s138 + $0x104] sm:$0xf]
      %v211 = vld [vmem:[%s138 + $0x108] sm:$0xf]
      %v212 = vld [vmem:[%s138 + $0x10c] sm:$0xf]
      %v213 = vld [vmem:[%s138 + $0x110] sm:$0xf]
      %v214 = vld [vmem:[%s138 + $0x114] sm:$0xf]
      %v215 = vld [vmem:[%s138 + $0x118] sm:$0xf]
      %v216 = vld [vmem:[%s138 + $0x11c] sm:$0xf]
      %v217 = vld [vmem:[%s138 + $0x120] sm:$0xf]
      %v218 = vld [vmem:[%s138 + $0x124] sm:$0xf]
      %v219 = vld [vmem:[%s138 + $0x128] sm:$0xf]
      %v220 = vld [vmem:[%s138 + $0x12c] sm:$0xf]
      %v221 = vld [vmem:[%s138 + $0x130] sm:$0xf]
      %v222 = vld [vmem:[%s138 + $0x134] sm:$0xf]
      %v223 = vld [vmem:[%s138 + $0x138] sm:$0xf]
      %v224 = vld [vmem:[%s138 + $0x13c] sm:$0xf]
      %v225 = vld [vmem:[%s138 + $0x140] sm:$0xf]
      %v226 = vld [vmem:[%s138 + $0x144] sm:$0xf]
      %v227 = vld [vmem:[%s138 + $0x148] sm:$0xf]
      %v228 = vld [vmem:[%s138 + $0x14c] sm:$0xf]
      %v229 = vld [vmem:[%s138 + $0x150] sm:$0xf]
      %v230 = vld [vmem:[%s138 + $0x154] sm:$0xf]
      %v231 = vld [vmem:[%s138 + $0x158] sm:$0xf]
      %v232 = vld [vmem:[%s138 + $0x15c] sm:$0xf]
      %v233 = vld [vmem:[%s138 + $0x160] sm:$0xf]
      %v234 = vld [vmem:[%s138 + $0x164] sm:$0xf]
      %v235 = vld [vmem:[%s138 + $0x168] sm:$0xf]
      %v236 = vld [vmem:[%s138 + $0x16c] sm:$0xf]
      %v237 = vld [vmem:[%s138 + $0x170] sm:$0xf]
      %v238 = vld [vmem:[%s138 + $0x174] sm:$0xf]
      %v239 = vld [vmem:[%s138 + $0x178] sm:$0xf]
      %v240 = vld [vmem:[%s138 + $0x17c] sm:$0xf]
      %v241 = vld [vmem:[%s138 + $0x180] sm:$0xf]
      %v242 = vld [vmem:[%s138 + $0x184] sm:$0xf]
      %v243 = vld [vmem:[%s138 + $0x188] sm:$0xf]
      %v244 = vld [vmem:[%s138 + $0x18c] sm:$0xf]
      %v245 = vld [vmem:[%s138 + $0x190] sm:$0xf]
      %v246 = vld [vmem:[%s138 + $0x194] sm:$0xf]
      %v247 = vld [vmem:[%s138 + $0x198] sm:$0xf]
      %v248 = vld [vmem:[%s138 + $0x19c] sm:$0xf]
      %v249 = vld [vmem:[%s138 + $0x1a0] sm:$0xf]
      %v250 = vld [vmem:[%s138 + $0x1a4] sm:$0xf]
      %v251 = vld [vmem:[%s138 + $0x1a8] sm:$0xf]
      %v252 = vld [vmem:[%s138 + $0x1ac] sm:$0xf]
      %v253 = vld [vmem:[%s138 + $0x1b0] sm:$0xf]
      %v254 = vld [vmem:[%s138 + $0x1b4] sm:$0xf]
      %v255 = vld [vmem:[%s138 + $0x1b8] sm:$0xf]
      %v256 = vld [vmem:[%s138 + $0x1bc] sm:$0xf]
      %v257 = vld [vmem:[%s138 + $0x1c0] sm:$0xf]
      %v258 = vld [vmem:[%s138 + $0x1c4] sm:$0xf]
      %v259 = vld [vmem:[%s138 + $0x1c8] sm:$0xf]
      %v260 = vld [vmem:[%s138 + $0x1cc] sm:$0xf]
      %v261 = vld [vmem:[%s138 + $0x1d0] sm:$0xf]
      %v262 = vld [vmem:[%s138 + $0x1d4] sm:$0xf]
      %v263 = vld [vmem:[%s138 + $0x1d8] sm:$0xf]
      %v264 = vld [vmem:[%s138 + $0x1dc] sm:$0xf]
      %v265 = vld [vmem:[%s138 + $0x1e0] sm:$0xf]
      %v266 = vld [vmem:[%s138 + $0x1e4] sm:$0xf]
      %v267 = vld [vmem:[%s138 + $0x1e8] sm:$0xf]
      %v268 = vld [vmem:[%s138 + $0x1ec] sm:$0xf]
      %v269 = vld [vmem:[%s138 + $0x1f0] sm:$0xf]
      %v270 = vld [vmem:[%s138 + $0x1f4] sm:$0xf]
      %v271 = vld [vmem:[%s138 + $0x1f8] sm:$0xf]
      %v272 = vld [vmem:[%s138 + $0x1fc] sm:$0xf]
      %v273 = vld [vmem:[%s138 + $0x200] sm:$0xf]
      %v274 = vld [vmem:[%s138 + $0x204] sm:$0xf]
      %v275 = vld [vmem:[%s138 + $0x208] sm:$0xf]
      %v276 = vld [vmem:[%s138 + $0x20c] sm:$0xf]
      %v277 = vld [vmem:[%s1] sm:$0xf]
      %v278 = vld [vmem:[%s1 + $0x4] sm:$0x3]
      %v279 = vld [vmem:[%s138 + $0x210] sm:$0x1]
      %s280 = scalar_lea.vmem %s1, 8
      %v281 = vld [vmem:[%s280] sm:$0xf]
      %v282 = vld [vmem:[%s280 + $0x4] sm:$0x3]
      %v416 = vunpack.c.l.b16 %v145
      %v417 = vunpack.c.l.b16 %v146
      %v418 = vunpack.c.l.b16 %v147
      %v419 = vunpack.c.l.b16 %v148
      %v420 = vunpack.c.l.b16 %v149
      %v421 = vunpack.c.l.b16 %v150
      %v422 = vunpack.c.l.b16 %v151
      %v423 = vunpack.c.l.b16 %v152
      %v424 = vunpack.c.l.b16 %v153
      %v425 = vunpack.c.l.b16 %v154
      %v426 = vunpack.c.l.b16 %v155
      %v427 = vunpack.c.l.b16 %v156
      %v428 = vunpack.c.l.b16 %v157
      %v429 = vunpack.c.l.b16 %v158
      %v430 = vunpack.c.l.b16 %v159
      %v431 = vunpack.c.l.b16 %v160
      %v432 = vunpack.c.l.b16 %v161
      %v433 = vunpack.c.l.b16 %v162
      %v434 = vunpack.c.l.b16 %v163
      %v435 = vunpack.c.l.b16 %v164
      %v436 = vunpack.c.l.b16 %v165
      %v437 = vunpack.c.l.b16 %v166
      %v438 = vunpack.c.l.b16 %v167
      %v439 = vunpack.c.l.b16 %v168
      %v440 = vunpack.c.l.b16 %v169
      %v441 = vunpack.c.l.b16 %v170
      %v442 = vunpack.c.l.b16 %v171
      %v443 = vunpack.c.l.b16 %v172
      %v444 = vunpack.c.l.b16 %v173
      %v445 = vunpack.c.l.b16 %v174
      %v446 = vunpack.c.l.b16 %v175
      %v447 = vunpack.c.l.b16 %v176
      %v448 = vunpack.c.l.b16 %v177
      %v449 = vunpack.c.l.b16 %v178
      %v450 = vunpack.c.l.b16 %v179
      %v451 = vunpack.c.l.b16 %v180
      %v452 = vunpack.c.l.b16 %v181
      %v453 = vunpack.c.l.b16 %v182
      %v454 = vunpack.c.l.b16 %v183
      %v455 = vunpack.c.l.b16 %v184
      %v456 = vunpack.c.l.b16 %v185
      %v457 = vunpack.c.l.b16 %v186
      %v458 = vunpack.c.l.b16 %v187
      %v459 = vunpack.c.l.b16 %v188
      %v460 = vunpack.c.l.b16 %v189
      %v461 = vunpack.c.l.b16 %v190
      %v462 = vunpack.c.l.b16 %v191
      %v463 = vunpack.c.l.b16 %v192
      %v464 = vunpack.c.l.b16 %v193
      %v465 = vunpack.c.l.b16 %v194
      %v466 = vunpack.c.l.b16 %v195
      %v467 = vunpack.c.l.b16 %v196
      %v468 = vunpack.c.l.b16 %v197
      %v469 = vunpack.c.l.b16 %v198
      %v470 = vunpack.c.l.b16 %v199
      %v471 = vunpack.c.l.b16 %v200
      %v472 = vunpack.c.l.b16 %v201
      %v473 = vunpack.c.l.b16 %v202
      %v474 = vunpack.c.l.b16 %v203
      %v475 = vunpack.c.l.b16 %v204
      %v476 = vunpack.c.l.b16 %v205
      %v477 = vunpack.c.l.b16 %v206
      %v478 = vunpack.c.l.b16 %v207
      %v479 = vunpack.c.l.b16 %v208
      %v480 = vunpack.c.l.b16 %v209
      %v481 = vunpack.c.l.b16 %v210
      %v482 = vunpack.c.l.b16 %v211
      %v483 = vunpack.c.l.b16 %v212
      %v484 = vunpack.c.l.b16 %v213
      %v485 = vunpack.c.l.b16 %v214
      %v486 = vunpack.c.l.b16 %v215
      %v487 = vunpack.c.l.b16 %v216
      %v488 = vunpack.c.l.b16 %v217
      %v489 = vunpack.c.l.b16 %v218
      %v490 = vunpack.c.l.b16 %v219
      %v491 = vunpack.c.l.b16 %v220
      %v492 = vunpack.c.l.b16 %v221
      %v493 = vunpack.c.l.b16 %v222
      %v494 = vunpack.c.l.b16 %v223
      %v495 = vunpack.c.l.b16 %v224
      %v496 = vunpack.c.l.b16 %v225
      %v497 = vunpack.c.l.b16 %v226
      %v498 = vunpack.c.l.b16 %v227
      %v499 = vunpack.c.l.b16 %v228
      %v500 = vunpack.c.l.b16 %v229
      %v501 = vunpack.c.l.b16 %v230
      %v502 = vunpack.c.l.b16 %v231
      %v503 = vunpack.c.l.b16 %v232
      %v504 = vunpack.c.l.b16 %v233
      %v505 = vunpack.c.l.b16 %v234
      %v506 = vunpack.c.l.b16 %v235
      %v507 = vunpack.c.l.b16 %v236
      %v508 = vunpack.c.l.b16 %v237
      %v509 = vunpack.c.l.b16 %v238
      %v510 = vunpack.c.l.b16 %v239
      %v511 = vunpack.c.l.b16 %v240
      %v512 = vunpack.c.l.b16 %v241
      %v513 = vunpack.c.l.b16 %v242
      %v514 = vunpack.c.l.b16 %v243
      %v515 = vunpack.c.l.b16 %v244
      %v516 = vunpack.c.l.b16 %v245
      %v517 = vunpack.c.l.b16 %v246
      %v518 = vunpack.c.l.b16 %v247
      %v519 = vunpack.c.l.b16 %v248
      %v520 = vunpack.c.l.b16 %v249
      %v521 = vunpack.c.l.b16 %v250
      %v522 = vunpack.c.l.b16 %v251
      %v523 = vunpack.c.l.b16 %v252
      %v524 = vunpack.c.l.b16 %v253
      %v525 = vunpack.c.l.b16 %v254
      %v526 = vunpack.c.l.b16 %v255
      %v527 = vunpack.c.l.b16 %v256
      %v528 = vunpack.c.l.b16 %v257
      %v529 = vunpack.c.l.b16 %v258
      %v530 = vunpack.c.l.b16 %v259
      %v531 = vunpack.c.l.b16 %v260
      %v532 = vunpack.c.l.b16 %v261
      %v533 = vunpack.c.l.b16 %v262
      %v534 = vunpack.c.l.b16 %v263
      %v535 = vunpack.c.l.b16 %v264
      %v536 = vunpack.c.l.b16 %v265
      %v537 = vunpack.c.l.b16 %v266
      %v538 = vunpack.c.l.b16 %v267
      %v539 = vunpack.c.l.b16 %v268
      %v540 = vunpack.c.l.b16 %v269
      %v541 = vunpack.c.l.b16 %v270
      %v542 = vunpack.c.l.b16 %v271
      %v543 = vunpack.c.l.b16 %v272
      %v544 = vunpack.c.l.b16 %v273
      %v545 = vunpack.c.l.b16 %v274
      %v546 = vunpack.c.l.b16 %v275
      %v547 = vunpack.c.l.b16 %v276
      %v548 = vunpack.c.l.b16 %v279
      %v549 = vpack.c.b16 %v417, %v416
      %v550 = vpack.c.b16 %v419, %v418
      %v551 = vpack.c.b16 %v421, %v420
      %v552 = vpack.c.b16 %v423, %v422
      %v553 = vpack.c.b16 %v425, %v424
      %v554 = vpack.c.b16 %v427, %v426
      %v555 = vpack.c.b16 %v429, %v428
      %v556 = vpack.c.b16 %v431, %v430
      %v557 = vpack.c.b16 %v433, %v432
      %v558 = vpack.c.b16 %v435, %v434
      %v559 = vpack.c.b16 %v437, %v436
      %v560 = vpack.c.b16 %v439, %v438
      %v561 = vpack.c.b16 %v441, %v440
      %v562 = vpack.c.b16 %v443, %v442
      %v563 = vpack.c.b16 %v445, %v444
      %v564 = vpack.c.b16 %v447, %v446
      %v565 = vpack.c.b16 %v449, %v448
      %v566 = vpack.c.b16 %v451, %v450
      %v567 = vpack.c.b16 %v453, %v452
      %v568 = vpack.c.b16 %v455, %v454
      %v569 = vpack.c.b16 %v457, %v456
      %v570 = vpack.c.b16 %v459, %v458
      %v571 = vpack.c.b16 %v461, %v460
      %v572 = vpack.c.b16 %v463, %v462
      %v573 = vpack.c.b16 %v465, %v464
      %v574 = vpack.c.b16 %v467, %v466
      %v575 = vpack.c.b16 %v469, %v468
      %v576 = vpack.c.b16 %v471, %v470
      %v577 = vpack.c.b16 %v473, %v472
      %v578 = vpack.c.b16 %v475, %v474
      %v579 = vpack.c.b16 %v477, %v476
      %v580 = vpack.c.b16 %v479, %v478
      %v581 = vpack.c.b16 %v481, %v480
      %v582 = vpack.c.b16 %v483, %v482
      %v583 = vpack.c.b16 %v485, %v484
      %v584 = vpack.c.b16 %v487, %v486
      %v585 = vpack.c.b16 %v489, %v488
      %v586 = vpack.c.b16 %v491, %v490
      %v587 = vpack.c.b16 %v493, %v492
      %v588 = vpack.c.b16 %v495, %v494
      %v589 = vpack.c.b16 %v497, %v496
      %v590 = vpack.c.b16 %v499, %v498
      %v591 = vpack.c.b16 %v501, %v500
      %v592 = vpack.c.b16 %v503, %v502
      %v593 = vpack.c.b16 %v505, %v504
      %v594 = vpack.c.b16 %v507, %v506
      %v595 = vpack.c.b16 %v509, %v508
      %v596 = vpack.c.b16 %v511, %v510
      %v597 = vpack.c.b16 %v513, %v512
      %v598 = vpack.c.b16 %v515, %v514
      %v599 = vpack.c.b16 %v517, %v516
      %v600 = vpack.c.b16 %v519, %v518
      %v601 = vpack.c.b16 %v521, %v520
      %v602 = vpack.c.b16 %v523, %v522
      %v603 = vpack.c.b16 %v525, %v524
      %v604 = vpack.c.b16 %v527, %v526
      %v605 = vpack.c.b16 %v529, %v528
      %v606 = vpack.c.b16 %v531, %v530
      %v607 = vpack.c.b16 %v533, %v532
      %v608 = vpack.c.b16 %v535, %v534
      %v609 = vpack.c.b16 %v537, %v536
      %v610 = vpack.c.b16 %v539, %v538
      %v611 = vpack.c.b16 %v541, %v540
      %v612 = vpack.c.b16 %v543, %v542
      %v613 = vpack.c.b16 %v545, %v544
      %v614 = vpack.c.b16 %v547, %v546
      %v615 = vpack.c.b16 %v548, %v548
      %vm616 = vsmask.f32 7424
      %v618 = vshrl.u32 %v549, 16
      %v620 = vshll.u32 %v549, 16
      %v622 = vrot.slane %v620, 1
      %v623 = vor.u32 %v618, %v622
      %v625 = vshll.u32 %v550, 16
      %v627 = vrot.slane %v625, 1
      %v628 = vsel %vm616, %v623, %v627
      %v629 = vshrl.u32 %v550, 16
      %v631 = vor.u32 %v629, %v627
      %v633 = vshll.u32 %v551, 16
      %v635 = vrot.slane %v633, 1
      %v636 = vsel %vm616, %v631, %v635
      %v637 = vshrl.u32 %v551, 16
      %v639 = vor.u32 %v637, %v635
      %v641 = vshll.u32 %v552, 16
      %v643 = vrot.slane %v641, 1
      %v644 = vsel %vm616, %v639, %v643
      %v645 = vshrl.u32 %v552, 16
      %v647 = vor.u32 %v645, %v643
      %v649 = vshll.u32 %v553, 16
      %v651 = vrot.slane %v649, 1
      %v652 = vsel %vm616, %v647, %v651
      %v653 = vshrl.u32 %v553, 16
      %v655 = vor.u32 %v653, %v651
      %v657 = vshll.u32 %v554, 16
      %v659 = vrot.slane %v657, 1
      %v660 = vsel %vm616, %v655, %v659
      %v661 = vshrl.u32 %v554, 16
      %v663 = vor.u32 %v661, %v659
      %v665 = vshll.u32 %v555, 16
      %v667 = vrot.slane %v665, 1
      %v668 = vsel %vm616, %v663, %v667
      %v669 = vshrl.u32 %v555, 16
      %v671 = vor.u32 %v669, %v667
      %v673 = vshll.u32 %v556, 16
      %v675 = vrot.slane %v673, 1
      %v676 = vsel %vm616, %v671, %v675
      %v677 = vshrl.u32 %v556, 16
      %v679 = vor.u32 %v677, %v675
      %v681 = vshll.u32 %v557, 16
      %v683 = vrot.slane %v681, 1
      %v684 = vsel %vm616, %v679, %v683
      %v685 = vshrl.u32 %v557, 16
      %v687 = vor.u32 %v685, %v683
      %v689 = vshll.u32 %v558, 16
      %v691 = vrot.slane %v689, 1
      %v692 = vsel %vm616, %v687, %v691
      %v693 = vshrl.u32 %v558, 16
      %v695 = vor.u32 %v693, %v691
      %v697 = vshll.u32 %v559, 16
      %v699 = vrot.slane %v697, 1
      %v700 = vsel %vm616, %v695, %v699
      %v701 = vshrl.u32 %v559, 16
      %v703 = vor.u32 %v701, %v699
      %v705 = vshll.u32 %v560, 16
      %v707 = vrot.slane %v705, 1
      %v708 = vsel %vm616, %v703, %v707
      %v709 = vshrl.u32 %v560, 16
      %v711 = vor.u32 %v709, %v707
      %v713 = vshll.u32 %v561, 16
      %v715 = vrot.slane %v713, 1
      %v716 = vsel %vm616, %v711, %v715
      %v717 = vshrl.u32 %v561, 16
      %v719 = vor.u32 %v717, %v715
      %v721 = vshll.u32 %v562, 16
      %v723 = vrot.slane %v721, 1
      %v724 = vsel %vm616, %v719, %v723
      %v725 = vshrl.u32 %v562, 16
      %v727 = vor.u32 %v725, %v723
      %v729 = vshll.u32 %v563, 16
      %v731 = vrot.slane %v729, 1
      %v732 = vsel %vm616, %v727, %v731
      %v733 = vshrl.u32 %v563, 16
      %v735 = vor.u32 %v733, %v731
      %v737 = vshll.u32 %v564, 16
      %v739 = vrot.slane %v737, 1
      %v740 = vsel %vm616, %v735, %v739
      %v741 = vshrl.u32 %v564, 16
      %v743 = vor.u32 %v741, %v739
      %v745 = vshll.u32 %v565, 16
      %v747 = vrot.slane %v745, 1
      %v748 = vsel %vm616, %v743, %v747
      %v749 = vshrl.u32 %v565, 16
      %v751 = vor.u32 %v749, %v747
      %v753 = vshll.u32 %v566, 16
      %v755 = vrot.slane %v753, 1
      %v756 = vsel %vm616, %v751, %v755
      %v757 = vshrl.u32 %v566, 16
      %v759 = vor.u32 %v757, %v755
      %v761 = vshll.u32 %v567, 16
      %v763 = vrot.slane %v761, 1
      %v764 = vsel %vm616, %v759, %v763
      %v765 = vshrl.u32 %v567, 16
      %v767 = vor.u32 %v765, %v763
      %v769 = vshll.u32 %v568, 16
      %v771 = vrot.slane %v769, 1
      %v772 = vsel %vm616, %v767, %v771
      %v773 = vshrl.u32 %v568, 16
      %v775 = vor.u32 %v773, %v771
      %v777 = vshll.u32 %v569, 16
      %v779 = vrot.slane %v777, 1
      %v780 = vsel %vm616, %v775, %v779
      %v781 = vshrl.u32 %v569, 16
      %v783 = vor.u32 %v781, %v779
      %v785 = vshll.u32 %v570, 16
      %v787 = vrot.slane %v785, 1
      %v788 = vsel %vm616, %v783, %v787
      %v789 = vshrl.u32 %v570, 16
      %v791 = vor.u32 %v789, %v787
      %v793 = vshll.u32 %v571, 16
      %v795 = vrot.slane %v793, 1
      %v796 = vsel %vm616, %v791, %v795
      %v797 = vshrl.u32 %v571, 16
      %v799 = vor.u32 %v797, %v795
      %v801 = vshll.u32 %v572, 16
      %v803 = vrot.slane %v801, 1
      %v804 = vsel %vm616, %v799, %v803
      %v805 = vshrl.u32 %v572, 16
      %v807 = vor.u32 %v805, %v803
      %v809 = vshll.u32 %v573, 16
      %v811 = vrot.slane %v809, 1
      %v812 = vsel %vm616, %v807, %v811
      %v813 = vshrl.u32 %v573, 16
      %v815 = vor.u32 %v813, %v811
      %v817 = vshll.u32 %v574, 16
      %v819 = vrot.slane %v817, 1
      %v820 = vsel %vm616, %v815, %v819
      %v821 = vshrl.u32 %v574, 16
      %v823 = vor.u32 %v821, %v819
      %v825 = vshll.u32 %v575, 16
      %v827 = vrot.slane %v825, 1
      %v828 = vsel %vm616, %v823, %v827
      %v829 = vshrl.u32 %v575, 16
      %v831 = vor.u32 %v829, %v827
      %v833 = vshll.u32 %v576, 16
      %v835 = vrot.slane %v833, 1
      %v836 = vsel %vm616, %v831, %v835
      %v837 = vshrl.u32 %v576, 16
      %v839 = vor.u32 %v837, %v835
      %v841 = vshll.u32 %v577, 16
      %v843 = vrot.slane %v841, 1
      %v844 = vsel %vm616, %v839, %v843
      %v845 = vshrl.u32 %v577, 16
      %v847 = vor.u32 %v845, %v843
      %v849 = vshll.u32 %v578, 16
      %v851 = vrot.slane %v849, 1
      %v852 = vsel %vm616, %v847, %v851
      %v853 = vshrl.u32 %v578, 16
      %v855 = vor.u32 %v853, %v851
      %v857 = vshll.u32 %v579, 16
      %v859 = vrot.slane %v857, 1
      %v860 = vsel %vm616, %v855, %v859
      %v861 = vshrl.u32 %v579, 16
      %v863 = vor.u32 %v861, %v859
      %v865 = vshll.u32 %v580, 16
      %v867 = vrot.slane %v865, 1
      %v868 = vsel %vm616, %v863, %v867
      %v869 = vshrl.u32 %v580, 16
      %v871 = vor.u32 %v869, %v867
      %v873 = vshll.u32 %v581, 16
      %v875 = vrot.slane %v873, 1
      %v876 = vsel %vm616, %v871, %v875
      %v877 = vshrl.u32 %v581, 16
      %v879 = vor.u32 %v877, %v875
      %v881 = vshll.u32 %v582, 16
      %v883 = vrot.slane %v881, 1
      %v884 = vsel %vm616, %v879, %v883
      %v885 = vshrl.u32 %v582, 16
      %v887 = vor.u32 %v885, %v883
      %v889 = vshll.u32 %v583, 16
      %v891 = vrot.slane %v889, 1
      %v892 = vsel %vm616, %v887, %v891
      %v893 = vshrl.u32 %v583, 16
      %v895 = vor.u32 %v893, %v891
      %v897 = vshll.u32 %v584, 16
      %v899 = vrot.slane %v897, 1
      %v900 = vsel %vm616, %v895, %v899
      %v901 = vshrl.u32 %v584, 16
      %v903 = vor.u32 %v901, %v899
      %v905 = vshll.u32 %v585, 16
      %v907 = vrot.slane %v905, 1
      %v908 = vsel %vm616, %v903, %v907
      %v909 = vshrl.u32 %v585, 16
      %v911 = vor.u32 %v909, %v907
      %v913 = vshll.u32 %v586, 16
      %v915 = vrot.slane %v913, 1
      %v916 = vsel %vm616, %v911, %v915
      %v917 = vshrl.u32 %v586, 16
      %v919 = vor.u32 %v917, %v915
      %v921 = vshll.u32 %v587, 16
      %v923 = vrot.slane %v921, 1
      %v924 = vsel %vm616, %v919, %v923
      %v925 = vshrl.u32 %v587, 16
      %v927 = vor.u32 %v925, %v923
      %v929 = vshll.u32 %v588, 16
      %v931 = vrot.slane %v929, 1
      %v932 = vsel %vm616, %v927, %v931
      %v933 = vshrl.u32 %v588, 16
      %v935 = vor.u32 %v933, %v931
      %v937 = vshll.u32 %v589, 16
      %v939 = vrot.slane %v937, 1
      %v940 = vsel %vm616, %v935, %v939
      %v941 = vshrl.u32 %v589, 16
      %v943 = vor.u32 %v941, %v939
      %v945 = vshll.u32 %v590, 16
      %v947 = vrot.slane %v945, 1
      %v948 = vsel %vm616, %v943, %v947
      %v949 = vshrl.u32 %v590, 16
      %v951 = vor.u32 %v949, %v947
      %v953 = vshll.u32 %v591, 16
      %v955 = vrot.slane %v953, 1
      %v956 = vsel %vm616, %v951, %v955
      %v957 = vshrl.u32 %v591, 16
      %v959 = vor.u32 %v957, %v955
      %v961 = vshll.u32 %v592, 16
      %v963 = vrot.slane %v961, 1
      %v964 = vsel %vm616, %v959, %v963
      %v965 = vshrl.u32 %v592, 16
      %v967 = vor.u32 %v965, %v963
      %v969 = vshll.u32 %v593, 16
      %v971 = vrot.slane %v969, 1
      %v972 = vsel %vm616, %v967, %v971
      %v973 = vshrl.u32 %v593, 16
      %v975 = vor.u32 %v973, %v971
      %v977 = vshll.u32 %v594, 16
      %v979 = vrot.slane %v977, 1
      %v980 = vsel %vm616, %v975, %v979
      %v981 = vshrl.u32 %v594, 16
      %v983 = vor.u32 %v981, %v979
      %v985 = vshll.u32 %v595, 16
      %v987 = vrot.slane %v985, 1
      %v988 = vsel %vm616, %v983, %v987
      %v989 = vshrl.u32 %v595, 16
      %v991 = vor.u32 %v989, %v987
      %v993 = vshll.u32 %v596, 16
      %v995 = vrot.slane %v993, 1
      %v996 = vsel %vm616, %v991, %v995
      %v997 = vshrl.u32 %v596, 16
      %v999 = vor.u32 %v997, %v995
      %v1001 = vshll.u32 %v597, 16
      %v1003 = vrot.slane %v1001, 1
      %v1004 = vsel %vm616, %v999, %v1003
      %v1005 = vshrl.u32 %v597, 16
      %v1007 = vor.u32 %v1005, %v1003
      %v1009 = vshll.u32 %v598, 16
      %v1011 = vrot.slane %v1009, 1
      %v1012 = vsel %vm616, %v1007, %v1011
      %v1013 = vshrl.u32 %v598, 16
      %v1015 = vor.u32 %v1013, %v1011
      %v1017 = vshll.u32 %v599, 16
      %v1019 = vrot.slane %v1017, 1
      %v1020 = vsel %vm616, %v1015, %v1019
      %v1021 = vshrl.u32 %v599, 16
      %v1023 = vor.u32 %v1021, %v1019
      %v1025 = vshll.u32 %v600, 16
      %v1027 = vrot.slane %v1025, 1
      %v1028 = vsel %vm616, %v1023, %v1027
      %v1029 = vshrl.u32 %v600, 16
      %v1031 = vor.u32 %v1029, %v1027
      %v1033 = vshll.u32 %v601, 16
      %v1035 = vrot.slane %v1033, 1
      %v1036 = vsel %vm616, %v1031, %v1035
      %v1037 = vshrl.u32 %v601, 16
      %v1039 = vor.u32 %v1037, %v1035
      %v1041 = vshll.u32 %v602, 16
      %v1043 = vrot.slane %v1041, 1
      %v1044 = vsel %vm616, %v1039, %v1043
      %v1045 = vshrl.u32 %v602, 16
      %v1047 = vor.u32 %v1045, %v1043
      %v1049 = vshll.u32 %v603, 16
      %v1051 = vrot.slane %v1049, 1
      %v1052 = vsel %vm616, %v1047, %v1051
      %v1053 = vshrl.u32 %v603, 16
      %v1055 = vor.u32 %v1053, %v1051
      %v1057 = vshll.u32 %v604, 16
      %v1059 = vrot.slane %v1057, 1
      %v1060 = vsel %vm616, %v1055, %v1059
      %v1061 = vshrl.u32 %v604, 16
      %v1063 = vor.u32 %v1061, %v1059
      %v1065 = vshll.u32 %v605, 16
      %v1067 = vrot.slane %v1065, 1
      %v1068 = vsel %vm616, %v1063, %v1067
      %v1069 = vshrl.u32 %v605, 16
      %v1071 = vor.u32 %v1069, %v1067
      %v1073 = vshll.u32 %v606, 16
      %v1075 = vrot.slane %v1073, 1
      %v1076 = vsel %vm616, %v1071, %v1075
      %v1077 = vshrl.u32 %v606, 16
      %v1079 = vor.u32 %v1077, %v1075
      %v1081 = vshll.u32 %v607, 16
      %v1083 = vrot.slane %v1081, 1
      %v1084 = vsel %vm616, %v1079, %v1083
      %v1085 = vshrl.u32 %v607, 16
      %v1087 = vor.u32 %v1085, %v1083
      %v1089 = vshll.u32 %v608, 16
      %v1091 = vrot.slane %v1089, 1
      %v1092 = vsel %vm616, %v1087, %v1091
      %v1093 = vshrl.u32 %v608, 16
      %v1095 = vor.u32 %v1093, %v1091
      %v1097 = vshll.u32 %v609, 16
      %v1099 = vrot.slane %v1097, 1
      %v1100 = vsel %vm616, %v1095, %v1099
      %v1101 = vshrl.u32 %v609, 16
      %v1103 = vor.u32 %v1101, %v1099
      %v1105 = vshll.u32 %v610, 16
      %v1107 = vrot.slane %v1105, 1
      %v1108 = vsel %vm616, %v1103, %v1107
      %v1109 = vshrl.u32 %v610, 16
      %v1111 = vor.u32 %v1109, %v1107
      %v1113 = vshll.u32 %v611, 16
      %v1115 = vrot.slane %v1113, 1
      %v1116 = vsel %vm616, %v1111, %v1115
      %v1117 = vshrl.u32 %v611, 16
      %v1119 = vor.u32 %v1117, %v1115
      %v1121 = vshll.u32 %v612, 16
      %v1123 = vrot.slane %v1121, 1
      %v1124 = vsel %vm616, %v1119, %v1123
      %v1125 = vshrl.u32 %v612, 16
      %v1127 = vor.u32 %v1125, %v1123
      %v1129 = vshll.u32 %v613, 16
      %v1131 = vrot.slane %v1129, 1
      %v1132 = vsel %vm616, %v1127, %v1131
      %v1133 = vshrl.u32 %v613, 16
      %v1135 = vor.u32 %v1133, %v1131
      %v1137 = vshll.u32 %v614, 16
      %v1139 = vrot.slane %v1137, 1
      %v1140 = vsel %vm616, %v1135, %v1139
      %v1141 = vshrl.u32 %v614, 16
      %v1143 = vor.u32 %v1141, %v1139
      %v1145 = vshll.u32 %v615, 16
      %v1147 = vrot.slane %v1145, 1
      %v1148 = vsel %vm616, %v1143, %v1147
      %v1151 = vunpack.c.l.b16 %v281
      %v1152 = vunpack.c.l.b16 %v282
      %v1153 = vpack.c.b16 %v1152, %v1151
      %vm1154 = vcmask 97280
      %v1156 = vsel %vm1154, %v628, 0
      %v1159 = vsel %vm1154, %v636, 0
      %v1162 = vsel %vm1154, %v644, 0
      %v1165 = vsel %vm1154, %v652, 0
      %v1168 = vsel %vm1154, %v660, 0
      %v1171 = vsel %vm1154, %v668, 0
      %v1174 = vsel %vm1154, %v676, 0
      %v1177 = vsel %vm1154, %v684, 0
      %v1180 = vsel %vm1154, %v692, 0
      %v1183 = vsel %vm1154, %v700, 0
      %v1186 = vsel %vm1154, %v708, 0
      %v1189 = vsel %vm1154, %v716, 0
      %v1192 = vsel %vm1154, %v724, 0
      %v1195 = vsel %vm1154, %v732, 0
      %v1198 = vsel %vm1154, %v740, 0
      %v1201 = vsel %vm1154, %v748, 0
      %v1204 = vsel %vm1154, %v756, 0
      %v1207 = vsel %vm1154, %v764, 0
      %v1210 = vsel %vm1154, %v772, 0
      %v1213 = vsel %vm1154, %v780, 0
      %v1216 = vsel %vm1154, %v788, 0
      %v1219 = vsel %vm1154, %v796, 0
      %v1222 = vsel %vm1154, %v804, 0
      %v1225 = vsel %vm1154, %v812, 0
      %v1228 = vsel %vm1154, %v820, 0
      %v1231 = vsel %vm1154, %v828, 0
      %v1234 = vsel %vm1154, %v836, 0
      %v1237 = vsel %vm1154, %v844, 0
      %v1240 = vsel %vm1154, %v852, 0
      %v1243 = vsel %vm1154, %v860, 0
      %v1246 = vsel %vm1154, %v868, 0
      %v1249 = vsel %vm1154, %v876, 0
      %v1252 = vsel %vm1154, %v884, 0
      %v1255 = vsel %vm1154, %v892, 0
      %v1258 = vsel %vm1154, %v900, 0
      %v1261 = vsel %vm1154, %v908, 0
      %v1264 = vsel %vm1154, %v916, 0
      %v1267 = vsel %vm1154, %v924, 0
      %v1270 = vsel %vm1154, %v932, 0
      %v1273 = vsel %vm1154, %v940, 0
      %v1276 = vsel %vm1154, %v948, 0
      %v1279 = vsel %vm1154, %v956, 0
      %v1282 = vsel %vm1154, %v964, 0
      %v1285 = vsel %vm1154, %v972, 0
      %v1288 = vsel %vm1154, %v980, 0
      %v1291 = vsel %vm1154, %v988, 0
      %v1294 = vsel %vm1154, %v996, 0
      %v1297 = vsel %vm1154, %v1004, 0
      %v1300 = vsel %vm1154, %v1012, 0
      %v1303 = vsel %vm1154, %v1020, 0
      %v1306 = vsel %vm1154, %v1028, 0
      %v1309 = vsel %vm1154, %v1036, 0
      %v1312 = vsel %vm1154, %v1044, 0
      %v1315 = vsel %vm1154, %v1052, 0
      %v1318 = vsel %vm1154, %v1060, 0
      %v1321 = vsel %vm1154, %v1068, 0
      %v1324 = vsel %vm1154, %v1076, 0
      %v1327 = vsel %vm1154, %v1084, 0
      %v1330 = vsel %vm1154, %v1092, 0
      %v1333 = vsel %vm1154, %v1100, 0
      %v1336 = vsel %vm1154, %v1108, 0
      %v1339 = vsel %vm1154, %v1116, 0
      %v1342 = vsel %vm1154, %v1124, 0
      %v1345 = vsel %vm1154, %v1132, 0
      %v1348 = vsel %vm1154, %v1140, 0
      %v1351 = vsel %vm1154, %v1148, 0
      %vm1353 = vcmask 1045504
      %v1355 = vsel %vm1353, %v1153, 0
      %1357 = vmatprep.subr.bf16.mxu0 0
      %1358 = vmatpush1.bf16.msra.mxu0 %v1355
      %1359 = vmatprep.subr.bf16.mxu0 0
      %1360 = vmatpush1.bf16.msra.mxu0 0
      %1361 = vmatprep.subr.bf16.mxu0 0
      %1362 = vmatpush1.bf16.msra.mxu0 0
      %1363 = vmatprep.subr.bf16.mxu0 0
      %1364 = vmatpush1.bf16.msra.mxu0 0
      %1365 = vmatprep.subr.bf16.mxu0 0
      %1366 = vmatpush1.bf16.msra.mxu0 0
      %1367 = vmatprep.subr.bf16.mxu0 0
      %1368 = vmatpush1.bf16.msra.mxu0 0
      %1369 = vmatprep.subr.bf16.mxu0 0
      %1370 = vmatpush1.bf16.msra.mxu0 0
      %1371 = vmatprep.subr.bf16.mxu0 0
      %1372 = vmatpush1.bf16.msra.mxu0 0
      %1373 = vmatprep.subr.bf16.mxu0 0
      %1374 = vmatpush1.bf16.msra.mxu0 0
      %1375 = vmatprep.subr.bf16.mxu0 0
      %1376 = vmatpush1.bf16.msra.mxu0 0
      %1377 = vmatprep.subr.bf16.mxu0 0
      %1378 = vmatpush1.bf16.msra.mxu0 0
      %1379 = vmatprep.subr.bf16.mxu0 0
      %1380 = vmatpush1.bf16.msra.mxu0 0
      %1381 = vmatprep.subr.bf16.mxu0 0
      %1382 = vmatpush1.bf16.msra.mxu0 0
      %1383 = vmatprep.subr.bf16.mxu0 0
      %1384 = vmatpush1.bf16.msra.mxu0 0
      %1385 = vmatprep.subr.bf16.mxu0 0
      %1386 = vmatpush1.bf16.msra.mxu0 0
      %1387 = vmatprep.subr.bf16.mxu0 0
      %1388 = vmatpush1.bf16.msra.mxu0 0
      %1389 = vmatprep.mubr.bf16.mxu0 0
      %1390 = vmatmul.mubr.bf16.gmra.mrb[0].mxu0 %v1156
      %v1391 = vpop.f32.mrb[0].mxu0
      %v1392 = vadd.f32 0.0, %v1391
      %v1393 = vpop.f32.mrb[0].mxu0
      %v1394 = vpop.f32.mrb[0].mxu0
      %v1395 = vadd.f32 0.0, %v1394
      %v1396 = vpop.f32.mrb[0].mxu0
      %1397 = vmatprep.mubr.bf16.mxu0 0
      %1398 = vmatmul.mubr.bf16.gmra.mrb[0].mxu0 %v1159
      %v1399 = vpop.f32.mrb[0].mxu0
      %v1400 = vadd.f32 0.0, %v1399
      %v1401 = vpop.f32.mrb[0].mxu0
      %v1402 = vpop.f32.mrb[0].mxu0
      %v1403 = vadd.f32 0.0, %v1402
      %v1404 = vpop.f32.mrb[0].mxu0
      %1405 = vmatprep.mubr.bf16.mxu0 0
      %1406 = vmatmul.mubr.bf16.gmra.mrb[0].mxu0 %v1162
      %v1407 = vpop.f32.mrb[0].mxu0
      %v1408 = vadd.f32 0.0, %v1407
      %v1409 = vpop.f32.mrb[0].mxu0
      %v1410 = vpop.f32.mrb[0].mxu0
      %v1411 = vadd.f32 0.0, %v1410
      %v1412 = vpop.f32.mrb[0].mxu0
      %1413 = vmatprep.mubr.bf16.mxu0 0
      %1414 = vmatmul.mubr.bf16.gmra.mrb[0].mxu0 %v1165
      %v1415 = vpop.f32.mrb[0].mxu0
      %v1416 = vadd.f32 0.0, %v1415
      %v1417 = vpop.f32.mrb[0].mxu0
      %v1418 = vpop.f32.mrb[0].mxu0
      %v1419 = vadd.f32 0.0, %v1418
      %v1420 = vpop.f32.mrb[0].mxu0
      %1421 = vmatprep.mubr.bf16.mxu0 0
      %1422 = vmatmul.mubr.bf16.gmra.mrb[0].mxu0 %v1168
      %v1423 = vpop.f32.mrb[0].mxu0
      %v1424 = vadd.f32 0.0, %v1423
      %v1425 = vpop.f32.mrb[0].mxu0
      %v1426 = vpop.f32.mrb[0].mxu0
      %v1427 = vadd.f32 0.0, %v1426
      %v1428 = vpop.f32.mrb[0].mxu0
      %1429 = vmatprep.mubr.bf16.mxu0 0
      %1430 = vmatmul.mubr.bf16.gmra.mrb[0].mxu0 %v1171
      %v1431 = vpop.f32.mrb[0].mxu0
      %v1432 = vadd.f32 0.0, %v1431
      %v1433 = vpop.f32.mrb[0].mxu0
      %v1434 = vpop.f32.mrb[0].mxu0
      %v1435 = vadd.f32 0.0, %v1434
      %v1436 = vpop.f32.mrb[0].mxu0
      %1437 = vmatprep.mubr.bf16.mxu0 0
      %1438 = vmatmul.mubr.bf16.gmra.mrb[0].mxu0 %v1174
      %v1439 = vpop.f32.mrb[0].mxu0
      %v1440 = vadd.f32 0.0, %v1439
      %v1441 = vpop.f32.mrb[0].mxu0
      %v1442 = vpop.f32.mrb[0].mxu0
      %v1443 = vadd.f32 0.0, %v1442
      %v1444 = vpop.f32.mrb[0].mxu0
      %1445 = vmatprep.mubr.bf16.mxu0 0
      %1446 = vmatmul.mubr.bf16.gmra.mrb[0].mxu0 %v1177
      %v1447 = vpop.f32.mrb[0].mxu0
      %v1448 = vadd.f32 0.0, %v1447
      %v1449 = vpop.f32.mrb[0].mxu0
      %v1450 = vpop.f32.mrb[0].mxu0
      %v1451 = vadd.f32 0.0, %v1450
      %v1452 = vpop.f32.mrb[0].mxu0
      %1453 = vmatprep.mubr.bf16.mxu0 0
      %1454 = vmatmul.mubr.bf16.gmra.mrb[0].mxu0 %v1180
      %v1455 = vpop.f32.mrb[0].mxu0
      %v1456 = vadd.f32 0.0, %v1455
      %v1457 = vpop.f32.mrb[0].mxu0
      %v1458 = vpop.f32.mrb[0].mxu0
      %v1459 = vadd.f32 0.0, %v1458
      %v1460 = vpop.f32.mrb[0].mxu0
      %1461 = vmatprep.mubr.bf16.mxu0 0
      %1462 = vmatmul.mubr.bf16.gmra.mrb[0].mxu0 %v1183
      %v1463 = vpop.f32.mrb[0].mxu0
      %v1464 = vadd.f32 0.0, %v1463
      %v1465 = vpop.f32.mrb[0].mxu0
      %v1466 = vpop.f32.mrb[0].mxu0
      %v1467 = vadd.f32 0.0, %v1466
      %v1468 = vpop.f32.mrb[0].mxu0
      %1469 = vmatprep.mubr.bf16.mxu0 0
      %1470 = vmatmul.mubr.bf16.gmra.mrb[0].mxu0 %v1186
      %v1471 = vpop.f32.mrb[0].mxu0
      %v1472 = vadd.f32 0.0, %v1471
      %v1473 = vpop.f32.mrb[0].mxu0
      %v1474 = vpop.f32.mrb[0].mxu0
      %v1475 = vadd.f32 0.0, %v1474
      %v1476 = vpop.f32.mrb[0].mxu0
      %1477 = vmatprep.mubr.bf16.mxu0 0
      %1478 = vmatmul.mubr.bf16.gmra.mrb[0].mxu0 %v1189
      %v1479 = vpop.f32.mrb[0].mxu0
      %v1480 = vadd.f32 0.0, %v1479
      %v1481 = vpop.f32.mrb[0].mxu0
      %v1482 = vpop.f32.mrb[0].mxu0
      %v1483 = vadd.f32 0.0, %v1482
      %v1484 = vpop.f32.mrb[0].mxu0
      %1485 = vmatprep.mubr.bf16.mxu0 0
      %1486 = vmatmul.mubr.bf16.gmra.mrb[0].mxu0 %v1192
      %v1487 = vpop.f32.mrb[0].mxu0
      %v1488 = vadd.f32 0.0, %v1487
      %v1489 = vpop.f32.mrb[0].mxu0
      %v1490 = vpop.f32.mrb[0].mxu0
      %v1491 = vadd.f32 0.0, %v1490
      %v1492 = vpop.f32.mrb[0].mxu0
      %1493 = vmatprep.mubr.bf16.mxu0 0
      %1494 = vmatmul.mubr.bf16.gmra.mrb[0].mxu0 %v1195
      %v1495 = vpop.f32.mrb[0].mxu0
      %v1496 = vadd.f32 0.0, %v1495
      %v1497 = vpop.f32.mrb[0].mxu0
      %v1498 = vpop.f32.mrb[0].mxu0
      %v1499 = vadd.f32 0.0, %v1498
      %v1500 = vpop.f32.mrb[0].mxu0
      %1501 = vmatprep.mubr.bf16.mxu0 0
      %1502 = vmatmul.mubr.bf16.gmra.mrb[0].mxu0 %v1198
      %v1503 = vpop.f32.mrb[0].mxu0
      %v1504 = vadd.f32 0.0, %v1503
      %v1505 = vpop.f32.mrb[0].mxu0
      %v1506 = vpop.f32.mrb[0].mxu0
      %v1507 = vadd.f32 0.0, %v1506
      %v1508 = vpop.f32.mrb[0].mxu0
      %1509 = vmatprep.mubr.bf16.mxu0 0
      %1510 = vmatmul.mubr.bf16.gmra.mrb[0].mxu0 %v1201
      %v1511 = vpop.f32.mrb[0].mxu0
      %v1512 = vadd.f32 0.0, %v1511
      %v1513 = vpop.f32.mrb[0].mxu0
      %v1514 = vpop.f32.mrb[0].mxu0
      %v1515 = vadd.f32 0.0, %v1514
      %v1516 = vpop.f32.mrb[0].mxu0
      %1517 = vmatprep.mubr.bf16.mxu0 0
      %1518 = vmatmul.mubr.bf16.gmra.mrb[0].mxu0 %v1204
      %v1519 = vpop.f32.mrb[0].mxu0
      %v1520 = vadd.f32 0.0, %v1519
      %v1521 = vpop.f32.mrb[0].mxu0
      %v1522 = vpop.f32.mrb[0].mxu0
      %v1523 = vadd.f32 0.0, %v1522
      %v1524 = vpop.f32.mrb[0].mxu0
      %1525 = vmatprep.mubr.bf16.mxu0 0
      %1526 = vmatmul.mubr.bf16.gmra.mrb[0].mxu0 %v1207
      %v1527 = vpop.f32.mrb[0].mxu0
      %v1528 = vadd.f32 0.0, %v1527
      %v1529 = vpop.f32.mrb[0].mxu0
      %v1530 = vpop.f32.mrb[0].mxu0
      %v1531 = vadd.f32 0.0, %v1530
      %v1532 = vpop.f32.mrb[0].mxu0
      %1533 = vmatprep.mubr.bf16.mxu0 0
      %1534 = vmatmul.mubr.bf16.gmra.mrb[0].mxu0 %v1210
      %v1535 = vpop.f32.mrb[0].mxu0
      %v1536 = vadd.f32 0.0, %v1535
      %v1537 = vpop.f32.mrb[0].mxu0
      %v1538 = vpop.f32.mrb[0].mxu0
      %v1539 = vadd.f32 0.0, %v1538
      %v1540 = vpop.f32.mrb[0].mxu0
      %1541 = vmatprep.mubr.bf16.mxu0 0
      %1542 = vmatmul.mubr.bf16.gmra.mrb[0].mxu0 %v1213
      %v1543 = vpop.f32.mrb[0].mxu0
      %v1544 = vadd.f32 0.0, %v1543
      %v1545 = vpop.f32.mrb[0].mxu0
      %v1546 = vpop.f32.mrb[0].mxu0
      %v1547 = vadd.f32 0.0, %v1546
      %v1548 = vpop.f32.mrb[0].mxu0
      %1549 = vmatprep.mubr.bf16.mxu0 0
      %1550 = vmatmul.mubr.bf16.gmra.mrb[0].mxu0 %v1216
      %v1551 = vpop.f32.mrb[0].mxu0
      %v1552 = vadd.f32 0.0, %v1551
      %v1553 = vpop.f32.mrb[0].mxu0
      %v1554 = vpop.f32.mrb[0].mxu0
      %v1555 = vadd.f32 0.0, %v1554
      %v1556 = vpop.f32.mrb[0].mxu0
      %1557 = vmatprep.mubr.bf16.mxu0 0
      %1558 = vmatmul.mubr.bf16.gmra.mrb[0].mxu0 %v1219
      %v1559 = vpop.f32.mrb[0].mxu0
      %v1560 = vadd.f32 0.0, %v1559
      %v1561 = vpop.f32.mrb[0].mxu0
      %v1562 = vpop.f32.mrb[0].mxu0
      %v1563 = vadd.f32 0.0, %v1562
      %v1564 = vpop.f32.mrb[0].mxu0
      %1565 = vmatprep.mubr.bf16.mxu0 0
      %1566 = vmatmul.mubr.bf16.gmra.mrb[0].mxu0 %v1222
      %v1567 = vpop.f32.mrb[0].mxu0
      %v1568 = vadd.f32 0.0, %v1567
      %v1569 = vpop.f32.mrb[0].mxu0
      %v1570 = vpop.f32.mrb[0].mxu0
      %v1571 = vadd.f32 0.0, %v1570
      %v1572 = vpop.f32.mrb[0].mxu0
      %1573 = vmatprep.mubr.bf16.mxu0 0
      %1574 = vmatmul.mubr.bf16.gmra.mrb[0].mxu0 %v1225
      %v1575 = vpop.f32.mrb[0].mxu0
      %v1576 = vadd.f32 0.0, %v1575
      %v1577 = vpop.f32.mrb[0].mxu0
      %v1578 = vpop.f32.mrb[0].mxu0
      %v1579 = vadd.f32 0.0, %v1578
      %v1580 = vpop.f32.mrb[0].mxu0
      %1581 = vmatprep.mubr.bf16.mxu0 0
      %1582 = vmatmul.mubr.bf16.gmra.mrb[0].mxu0 %v1228
      %v1583 = vpop.f32.mrb[0].mxu0
      %v1584 = vadd.f32 0.0, %v1583
      %v1585 = vpop.f32.mrb[0].mxu0
      %v1586 = vpop.f32.mrb[0].mxu0
      %v1587 = vadd.f32 0.0, %v1586
      %v1588 = vpop.f32.mrb[0].mxu0
      %1589 = vmatprep.mubr.bf16.mxu0 0
      %1590 = vmatmul.mubr.bf16.gmra.mrb[0].mxu0 %v1231
      %v1591 = vpop.f32.mrb[0].mxu0
      %v1592 = vadd.f32 0.0, %v1591
      %v1593 = vpop.f32.mrb[0].mxu0
      %v1594 = vpop.f32.mrb[0].mxu0
      %v1595 = vadd.f32 0.0, %v1594
      %v1596 = vpop.f32.mrb[0].mxu0
      %1597 = vmatprep.mubr.bf16.mxu0 0
      %1598 = vmatmul.mubr.bf16.gmra.mrb[0].mxu0 %v1234
      %v1599 = vpop.f32.mrb[0].mxu0
      %v1600 = vadd.f32 0.0, %v1599
      %v1601 = vpop.f32.mrb[0].mxu0
      %v1602 = vpop.f32.mrb[0].mxu0
      %v1603 = vadd.f32 0.0, %v1602
      %v1604 = vpop.f32.mrb[0].mxu0
      %1605 = vmatprep.mubr.bf16.mxu0 0
      %1606 = vmatmul.mubr.bf16.gmra.mrb[0].mxu0 %v1237
      %v1607 = vpop.f32.mrb[0].mxu0
      %v1608 = vadd.f32 0.0, %v1607
      %v1609 = vpop.f32.mrb[0].mxu0
      %v1610 = vpop.f32.mrb[0].mxu0
      %v1611 = vadd.f32 0.0, %v1610
      %v1612 = vpop.f32.mrb[0].mxu0
      %1613 = vmatprep.mubr.bf16.mxu0 0
      %1614 = vmatmul.mubr.bf16.gmra.mrb[0].mxu0 %v1240
      %v1615 = vpop.f32.mrb[0].mxu0
      %v1616 = vadd.f32 0.0, %v1615
      %v1617 = vpop.f32.mrb[0].mxu0
      %v1618 = vpop.f32.mrb[0].mxu0
      %v1619 = vadd.f32 0.0, %v1618
      %v1620 = vpop.f32.mrb[0].mxu0
      %1621 = vmatprep.mubr.bf16.mxu0 0
      %1622 = vmatmul.mubr.bf16.gmra.mrb[0].mxu0 %v1243
      %v1623 = vpop.f32.mrb[0].mxu0
      %v1624 = vadd.f32 0.0, %v1623
      %v1625 = vpop.f32.mrb[0].mxu0
      %v1626 = vpop.f32.mrb[0].mxu0
      %v1627 = vadd.f32 0.0, %v1626
      %v1628 = vpop.f32.mrb[0].mxu0
      %1629 = vmatprep.mubr.bf16.mxu0 0
      %1630 = vmatmul.mubr.bf16.gmra.mrb[0].mxu0 %v1246
      %v1631 = vpop.f32.mrb[0].mxu0
      %v1632 = vadd.f32 0.0, %v1631
      %v1633 = vpop.f32.mrb[0].mxu0
      %v1634 = vpop.f32.mrb[0].mxu0
      %v1635 = vadd.f32 0.0, %v1634
      %v1636 = vpop.f32.mrb[0].mxu0
      %1637 = vmatprep.mubr.bf16.mxu0 0
      %1638 = vmatmul.mubr.bf16.gmra.mrb[0].mxu0 %v1249
      %v1639 = vpop.f32.mrb[0].mxu0
      %v1640 = vadd.f32 0.0, %v1639
      %v1641 = vpop.f32.mrb[0].mxu0
      %v1642 = vpop.f32.mrb[0].mxu0
      %v1643 = vadd.f32 0.0, %v1642
      %v1644 = vpop.f32.mrb[0].mxu0
      %1645 = vmatprep.mubr.bf16.mxu0 0
      %1646 = vmatmul.mubr.bf16.gmra.mrb[0].mxu0 %v1252
      %v1647 = vpop.f32.mrb[0].mxu0
      %v1648 = vadd.f32 0.0, %v1647
      %v1649 = vpop.f32.mrb[0].mxu0
      %v1650 = vpop.f32.mrb[0].mxu0
      %v1651 = vadd.f32 0.0, %v1650
      %v1652 = vpop.f32.mrb[0].mxu0
      %1653 = vmatprep.mubr.bf16.mxu0 0
      %1654 = vmatmul.mubr.bf16.gmra.mrb[0].mxu0 %v1255
      %v1655 = vpop.f32.mrb[0].mxu0
      %v1656 = vadd.f32 0.0, %v1655
      %v1657 = vpop.f32.mrb[0].mxu0
      %v1658 = vpop.f32.mrb[0].mxu0
      %v1659 = vadd.f32 0.0, %v1658
      %v1660 = vpop.f32.mrb[0].mxu0
      %1661 = vmatprep.mubr.bf16.mxu0 0
      %1662 = vmatmul.mubr.bf16.gmra.mrb[0].mxu0 %v1258
      %v1663 = vpop.f32.mrb[0].mxu0
      %v1664 = vadd.f32 0.0, %v1663
      %v1665 = vpop.f32.mrb[0].mxu0
      %v1666 = vpop.f32.mrb[0].mxu0
      %v1667 = vadd.f32 0.0, %v1666
      %v1668 = vpop.f32.mrb[0].mxu0
      %1669 = vmatprep.mubr.bf16.mxu0 0
      %1670 = vmatmul.mubr.bf16.gmra.mrb[0].mxu0 %v1261
      %v1671 = vpop.f32.mrb[0].mxu0
      %v1672 = vadd.f32 0.0, %v1671
      %v1673 = vpop.f32.mrb[0].mxu0
      %v1674 = vpop.f32.mrb[0].mxu0
      %v1675 = vadd.f32 0.0, %v1674
      %v1676 = vpop.f32.mrb[0].mxu0
      %1677 = vmatprep.mubr.bf16.mxu0 0
      %1678 = vmatmul.mubr.bf16.gmra.mrb[0].mxu0 %v1264
      %v1679 = vpop.f32.mrb[0].mxu0
      %v1680 = vadd.f32 0.0, %v1679
      %v1681 = vpop.f32.mrb[0].mxu0
      %v1682 = vpop.f32.mrb[0].mxu0
      %v1683 = vadd.f32 0.0, %v1682
      %v1684 = vpop.f32.mrb[0].mxu0
      %1685 = vmatprep.mubr.bf16.mxu0 0
      %1686 = vmatmul.mubr.bf16.gmra.mrb[0].mxu0 %v1267
      %v1687 = vpop.f32.mrb[0].mxu0
      %v1688 = vadd.f32 0.0, %v1687
      %v1689 = vpop.f32.mrb[0].mxu0
      %v1690 = vpop.f32.mrb[0].mxu0
      %v1691 = vadd.f32 0.0, %v1690
      %v1692 = vpop.f32.mrb[0].mxu0
      %1693 = vmatprep.mubr.bf16.mxu0 0
      %1694 = vmatmul.mubr.bf16.gmra.mrb[0].mxu0 %v1270
      %v1695 = vpop.f32.mrb[0].mxu0
      %v1696 = vadd.f32 0.0, %v1695
      %v1697 = vpop.f32.mrb[0].mxu0
      %v1698 = vpop.f32.mrb[0].mxu0
      %v1699 = vadd.f32 0.0, %v1698
      %v1700 = vpop.f32.mrb[0].mxu0
      %1701 = vmatprep.mubr.bf16.mxu0 0
      %1702 = vmatmul.mubr.bf16.gmra.mrb[0].mxu0 %v1273
      %v1703 = vpop.f32.mrb[0].mxu0
      %v1704 = vadd.f32 0.0, %v1703
      %v1705 = vpop.f32.mrb[0].mxu0
      %v1706 = vpop.f32.mrb[0].mxu0
      %v1707 = vadd.f32 0.0, %v1706
      %v1708 = vpop.f32.mrb[0].mxu0
      %1709 = vmatprep.mubr.bf16.mxu0 0
      %1710 = vmatmul.mubr.bf16.gmra.mrb[0].mxu0 %v1276
      %v1711 = vpop.f32.mrb[0].mxu0
      %v1712 = vadd.f32 0.0, %v1711
      %v1713 = vpop.f32.mrb[0].mxu0
      %v1714 = vpop.f32.mrb[0].mxu0
      %v1715 = vadd.f32 0.0, %v1714
      %v1716 = vpop.f32.mrb[0].mxu0
      %1717 = vmatprep.mubr.bf16.mxu0 0
      %1718 = vmatmul.mubr.bf16.gmra.mrb[0].mxu0 %v1279
      %v1719 = vpop.f32.mrb[0].mxu0
      %v1720 = vadd.f32 0.0, %v1719
      %v1721 = vpop.f32.mrb[0].mxu0
      %v1722 = vpop.f32.mrb[0].mxu0
      %v1723 = vadd.f32 0.0, %v1722
      %v1724 = vpop.f32.mrb[0].mxu0
      %1725 = vmatprep.mubr.bf16.mxu0 0
      %1726 = vmatmul.mubr.bf16.gmra.mrb[0].mxu0 %v1282
      %v1727 = vpop.f32.mrb[0].mxu0
      %v1728 = vadd.f32 0.0, %v1727
      %v1729 = vpop.f32.mrb[0].mxu0
      %v1730 = vpop.f32.mrb[0].mxu0
      %v1731 = vadd.f32 0.0, %v1730
      %v1732 = vpop.f32.mrb[0].mxu0
      %1733 = vmatprep.mubr.bf16.mxu0 0
      %1734 = vmatmul.mubr.bf16.gmra.mrb[0].mxu0 %v1285
      %v1735 = vpop.f32.mrb[0].mxu0
      %v1736 = vadd.f32 0.0, %v1735
      %v1737 = vpop.f32.mrb[0].mxu0
      %v1738 = vpop.f32.mrb[0].mxu0
      %v1739 = vadd.f32 0.0, %v1738
      %v1740 = vpop.f32.mrb[0].mxu0
      %1741 = vmatprep.mubr.bf16.mxu0 0
      %1742 = vmatmul.mubr.bf16.gmra.mrb[0].mxu0 %v1288
      %v1743 = vpop.f32.mrb[0].mxu0
      %v1744 = vadd.f32 0.0, %v1743
      %v1745 = vpop.f32.mrb[0].mxu0
      %v1746 = vpop.f32.mrb[0].mxu0
      %v1747 = vadd.f32 0.0, %v1746
      %v1748 = vpop.f32.mrb[0].mxu0
      %1749 = vmatprep.mubr.bf16.mxu0 0
      %1750 = vmatmul.mubr.bf16.gmra.mrb[0].mxu0 %v1291
      %v1751 = vpop.f32.mrb[0].mxu0
      %v1752 = vadd.f32 0.0, %v1751
      %v1753 = vpop.f32.mrb[0].mxu0
      %v1754 = vpop.f32.mrb[0].mxu0
      %v1755 = vadd.f32 0.0, %v1754
      %v1756 = vpop.f32.mrb[0].mxu0
      %1757 = vmatprep.mubr.bf16.mxu0 0
      %1758 = vmatmul.mubr.bf16.gmra.mrb[0].mxu0 %v1294
      %v1759 = vpop.f32.mrb[0].mxu0
      %v1760 = vadd.f32 0.0, %v1759
      %v1761 = vpop.f32.mrb[0].mxu0
      %v1762 = vpop.f32.mrb[0].mxu0
      %v1763 = vadd.f32 0.0, %v1762
      %v1764 = vpop.f32.mrb[0].mxu0
      %1765 = vmatprep.mubr.bf16.mxu0 0
      %1766 = vmatmul.mubr.bf16.gmra.mrb[0].mxu0 %v1297
      %v1767 = vpop.f32.mrb[0].mxu0
      %v1768 = vadd.f32 0.0, %v1767
      %v1769 = vpop.f32.mrb[0].mxu0
      %v1770 = vpop.f32.mrb[0].mxu0
      %v1771 = vadd.f32 0.0, %v1770
      %v1772 = vpop.f32.mrb[0].mxu0
      %1773 = vmatprep.mubr.bf16.mxu0 0
      %1774 = vmatmul.mubr.bf16.gmra.mrb[0].mxu0 %v1300
      %v1775 = vpop.f32.mrb[0].mxu0
      %v1776 = vadd.f32 0.0, %v1775
      %v1777 = vpop.f32.mrb[0].mxu0
      %v1778 = vpop.f32.mrb[0].mxu0
      %v1779 = vadd.f32 0.0, %v1778
      %v1780 = vpop.f32.mrb[0].mxu0
      %1781 = vmatprep.mubr.bf16.mxu0 0
      %1782 = vmatmul.mubr.bf16.gmra.mrb[0].mxu0 %v1303
      %v1783 = vpop.f32.mrb[0].mxu0
      %v1784 = vadd.f32 0.0, %v1783
      %v1785 = vpop.f32.mrb[0].mxu0
      %v1786 = vpop.f32.mrb[0].mxu0
      %v1787 = vadd.f32 0.0, %v1786
      %v1788 = vpop.f32.mrb[0].mxu0
      %1789 = vmatprep.mubr.bf16.mxu0 0
      %1790 = vmatmul.mubr.bf16.gmra.mrb[0].mxu0 %v1306
      %v1791 = vpop.f32.mrb[0].mxu0
      %v1792 = vadd.f32 0.0, %v1791
      %v1793 = vpop.f32.mrb[0].mxu0
      %v1794 = vpop.f32.mrb[0].mxu0
      %v1795 = vadd.f32 0.0, %v1794
      %v1796 = vpop.f32.mrb[0].mxu0
      %1797 = vmatprep.mubr.bf16.mxu0 0
      %1798 = vmatmul.mubr.bf16.gmra.mrb[0].mxu0 %v1309
      %v1799 = vpop.f32.mrb[0].mxu0
      %v1800 = vadd.f32 0.0, %v1799
      %v1801 = vpop.f32.mrb[0].mxu0
      %v1802 = vpop.f32.mrb[0].mxu0
      %v1803 = vadd.f32 0.0, %v1802
      %v1804 = vpop.f32.mrb[0].mxu0
      %1805 = vmatprep.mubr.bf16.mxu0 0
      %1806 = vmatmul.mubr.bf16.gmra.mrb[0].mxu0 %v1312
      %v1807 = vpop.f32.mrb[0].mxu0
      %v1808 = vadd.f32 0.0, %v1807
      %v1809 = vpop.f32.mrb[0].mxu0
      %v1810 = vpop.f32.mrb[0].mxu0
      %v1811 = vadd.f32 0.0, %v1810
      %v1812 = vpop.f32.mrb[0].mxu0
      %1813 = vmatprep.mubr.bf16.mxu0 0
      %1814 = vmatmul.mubr.bf16.gmra.mrb[0].mxu0 %v1315
      %v1815 = vpop.f32.mrb[0].mxu0
      %v1816 = vadd.f32 0.0, %v1815
      %v1817 = vpop.f32.mrb[0].mxu0
      %v1818 = vpop.f32.mrb[0].mxu0
      %v1819 = vadd.f32 0.0, %v1818
      %v1820 = vpop.f32.mrb[0].mxu0
      %1821 = vmatprep.mubr.bf16.mxu0 0
      %1822 = vmatmul.mubr.bf16.gmra.mrb[0].mxu0 %v1318
      %v1823 = vpop.f32.mrb[0].mxu0
      %v1824 = vadd.f32 0.0, %v1823
      %v1825 = vpop.f32.mrb[0].mxu0
      %v1826 = vpop.f32.mrb[0].mxu0
      %v1827 = vadd.f32 0.0, %v1826
      %v1828 = vpop.f32.mrb[0].mxu0
      %1829 = vmatprep.mubr.bf16.mxu0 0
      %1830 = vmatmul.mubr.bf16.gmra.mrb[0].mxu0 %v1321
      %v1831 = vpop.f32.mrb[0].mxu0
      %v1832 = vadd.f32 0.0, %v1831
      %v1833 = vpop.f32.mrb[0].mxu0
      %v1834 = vpop.f32.mrb[0].mxu0
      %v1835 = vadd.f32 0.0, %v1834
      %v1836 = vpop.f32.mrb[0].mxu0
      %1837 = vmatprep.mubr.bf16.mxu0 0
      %1838 = vmatmul.mubr.bf16.gmra.mrb[0].mxu0 %v1324
      %v1839 = vpop.f32.mrb[0].mxu0
      %v1840 = vadd.f32 0.0, %v1839
      %v1841 = vpop.f32.mrb[0].mxu0
      %v1842 = vpop.f32.mrb[0].mxu0
      %v1843 = vadd.f32 0.0, %v1842
      %v1844 = vpop.f32.mrb[0].mxu0
      %1845 = vmatprep.mubr.bf16.mxu0 0
      %1846 = vmatmul.mubr.bf16.gmra.mrb[0].mxu0 %v1327
      %v1847 = vpop.f32.mrb[0].mxu0
      %v1848 = vadd.f32 0.0, %v1847
      %v1849 = vpop.f32.mrb[0].mxu0
      %v1850 = vpop.f32.mrb[0].mxu0
      %v1851 = vadd.f32 0.0, %v1850
      %v1852 = vpop.f32.mrb[0].mxu0
      %1853 = vmatprep.mubr.bf16.mxu0 0
      %1854 = vmatmul.mubr.bf16.gmra.mrb[0].mxu0 %v1330
      %v1855 = vpop.f32.mrb[0].mxu0
      %v1856 = vadd.f32 0.0, %v1855
      %v1857 = vpop.f32.mrb[0].mxu0
      %v1858 = vpop.f32.mrb[0].mxu0
      %v1859 = vadd.f32 0.0, %v1858
      %v1860 = vpop.f32.mrb[0].mxu0
      %1861 = vmatprep.mubr.bf16.mxu0 0
      %1862 = vmatmul.mubr.bf16.gmra.mrb[0].mxu0 %v1333
      %v1863 = vpop.f32.mrb[0].mxu0
      %v1864 = vadd.f32 0.0, %v1863
      %v1865 = vpop.f32.mrb[0].mxu0
      %v1866 = vpop.f32.mrb[0].mxu0
      %v1867 = vadd.f32 0.0, %v1866
      %v1868 = vpop.f32.mrb[0].mxu0
      %1869 = vmatprep.mubr.bf16.mxu0 0
      %1870 = vmatmul.mubr.bf16.gmra.mrb[0].mxu0 %v1336
      %v1871 = vpop.f32.mrb[0].mxu0
      %v1872 = vadd.f32 0.0, %v1871
      %v1873 = vpop.f32.mrb[0].mxu0
      %v1874 = vpop.f32.mrb[0].mxu0
      %v1875 = vadd.f32 0.0, %v1874
      %v1876 = vpop.f32.mrb[0].mxu0
      %1877 = vmatprep.mubr.bf16.mxu0 0
      %1878 = vmatmul.mubr.bf16.gmra.mrb[0].mxu0 %v1339
      %v1879 = vpop.f32.mrb[0].mxu0
      %v1880 = vadd.f32 0.0, %v1879
      %v1881 = vpop.f32.mrb[0].mxu0
      %v1882 = vpop.f32.mrb[0].mxu0
      %v1883 = vadd.f32 0.0, %v1882
      %v1884 = vpop.f32.mrb[0].mxu0
      %1885 = vmatprep.mubr.bf16.mxu0 0
      %1886 = vmatmul.mubr.bf16.gmra.mrb[0].mxu0 %v1342
      %v1887 = vpop.f32.mrb[0].mxu0
      %v1888 = vadd.f32 0.0, %v1887
      %v1889 = vpop.f32.mrb[0].mxu0
      %v1890 = vpop.f32.mrb[0].mxu0
      %v1891 = vadd.f32 0.0, %v1890
      %v1892 = vpop.f32.mrb[0].mxu0
      %1893 = vmatprep.mubr.bf16.mxu0 0
      %1894 = vmatmul.mubr.bf16.gmra.mrb[0].mxu0 %v1345
      %v1895 = vpop.f32.mrb[0].mxu0
      %v1896 = vadd.f32 0.0, %v1895
      %v1897 = vpop.f32.mrb[0].mxu0
      %v1898 = vpop.f32.mrb[0].mxu0
      %v1899 = vadd.f32 0.0, %v1898
      %v1900 = vpop.f32.mrb[0].mxu0
      %1901 = vmatprep.mubr.bf16.mxu0 0
      %1902 = vmatmul.mubr.bf16.gmra.mrb[0].mxu0 %v1348
      %v1903 = vpop.f32.mrb[0].mxu0
      %v1904 = vadd.f32 0.0, %v1903
      %v1905 = vpop.f32.mrb[0].mxu0
      %v1906 = vpop.f32.mrb[0].mxu0
      %v1907 = vadd.f32 0.0, %v1906
      %v1908 = vpop.f32.mrb[0].mxu0
      %1909 = vmatprep.mubr.bf16.mxu0 0
      %1910 = vmatmul.mubr.bf16.gmra.mrb[0].mxu0 %v1351
      %v1911 = vpop.f32.mrb[0].mxu0
      %v1912 = vadd.f32 0.0, %v1911
      %v1913 = vpop.f32.mrb[0].mxu0
      %v1914 = vpop.f32.mrb[0].mxu0
      %v1915 = vadd.f32 0.0, %v1914
      %v1916 = vpop.f32.mrb[0].mxu0
      %1917 = vdwg.mxu0
      %v1920 = vunpack.c.l.b16 %v277
      %v1921 = vunpack.c.l.b16 %v278
      %v1922 = vpack.c.b16 %v1921, %v1920
      %v1923 = vsel %vm1154, %v549, 0
      %v1925 = vsel %vm1154, %v550, 0
      %v1927 = vsel %vm1154, %v551, 0
      %v1929 = vsel %vm1154, %v552, 0
      %v1931 = vsel %vm1154, %v553, 0
      %v1933 = vsel %vm1154, %v554, 0
      %v1935 = vsel %vm1154, %v555, 0
      %v1937 = vsel %vm1154, %v556, 0
      %v1939 = vsel %vm1154, %v557, 0
      %v1941 = vsel %vm1154, %v558, 0
      %v1943 = vsel %vm1154, %v559, 0
      %v1945 = vsel %vm1154, %v560, 0
      %v1947 = vsel %vm1154, %v561, 0
      %v1949 = vsel %vm1154, %v562, 0
      %v1951 = vsel %vm1154, %v563, 0
      %v1953 = vsel %vm1154, %v564, 0
      %v1955 = vsel %vm1154, %v565, 0
      %v1957 = vsel %vm1154, %v566, 0
      %v1959 = vsel %vm1154, %v567, 0
      %v1961 = vsel %vm1154, %v568, 0
      %v1963 = vsel %vm1154, %v569, 0
      %v1965 = vsel %vm1154, %v570, 0
      %v1967 = vsel %vm1154, %v571, 0
      %v1969 = vsel %vm1154, %v572, 0
      %v1971 = vsel %vm1154, %v573, 0
      %v1973 = vsel %vm1154, %v574, 0
      %v1975 = vsel %vm1154, %v575, 0
      %v1977 = vsel %vm1154, %v576, 0
      %v1979 = vsel %vm1154, %v577, 0
      %v1981 = vsel %vm1154, %v578, 0
      %v1983 = vsel %vm1154, %v579, 0
      %v1985 = vsel %vm1154, %v580, 0
      %v1987 = vsel %vm1154, %v581, 0
      %v1989 = vsel %vm1154, %v582, 0
      %v1991 = vsel %vm1154, %v583, 0
      %v1993 = vsel %vm1154, %v584, 0
      %v1995 = vsel %vm1154, %v585, 0
      %v1997 = vsel %vm1154, %v586, 0
      %v1999 = vsel %vm1154, %v587, 0
      %v2001 = vsel %vm1154, %v588, 0
      %v2003 = vsel %vm1154, %v589, 0
      %v2005 = vsel %vm1154, %v590, 0
      %v2007 = vsel %vm1154, %v591, 0
      %v2009 = vsel %vm1154, %v592, 0
      %v2011 = vsel %vm1154, %v593, 0
      %v2013 = vsel %vm1154, %v594, 0
      %v2015 = vsel %vm1154, %v595, 0
      %v2017 = vsel %vm1154, %v596, 0
      %v2019 = vsel %vm1154, %v597, 0
      %v2021 = vsel %vm1154, %v598, 0
      %v2023 = vsel %vm1154, %v599, 0
      %v2025 = vsel %vm1154, %v600, 0
      %v2027 = vsel %vm1154, %v601, 0
      %v2029 = vsel %vm1154, %v602, 0
      %v2031 = vsel %vm1154, %v603, 0
      %v2033 = vsel %vm1154, %v604, 0
      %v2035 = vsel %vm1154, %v605, 0
      %v2037 = vsel %vm1154, %v606, 0
      %v2039 = vsel %vm1154, %v607, 0
      %v2041 = vsel %vm1154, %v608, 0
      %v2043 = vsel %vm1154, %v609, 0
      %v2045 = vsel %vm1154, %v610, 0
      %v2047 = vsel %vm1154, %v611, 0
      %v2049 = vsel %vm1154, %v612, 0
      %v2051 = vsel %vm1154, %v613, 0
      %v2053 = vsel %vm1154, %v614, 0
      %v2056 = vsel %vm1353, %v1922, 0
      %2058 = vmatprep.subr.bf16.mxu0 0
      %2059 = vmatpush1.bf16.msra.mxu0 %v2056
      %2060 = vmatprep.subr.bf16.mxu0 0
      %2061 = vmatpush1.bf16.msra.mxu0 0
      %2062 = vmatprep.subr.bf16.mxu0 0
      %2063 = vmatpush1.bf16.msra.mxu0 0
      %2064 = vmatprep.subr.bf16.mxu0 0
      %2065 = vmatpush1.bf16.msra.mxu0 0
      %2066 = vmatprep.subr.bf16.mxu0 0
      %2067 = vmatpush1.bf16.msra.mxu0 0
      %2068 = vmatprep.subr.bf16.mxu0 0
      %2069 = vmatpush1.bf16.msra.mxu0 0
      %2070 = vmatprep.subr.bf16.mxu0 0
      %2071 = vmatpush1.bf16.msra.mxu0 0
      %2072 = vmatprep.subr.bf16.mxu0 0
      %2073 = vmatpush1.bf16.msra.mxu0 0
      %2074 = vmatprep.subr.bf16.mxu0 0
      %2075 = vmatpush1.bf16.msra.mxu0 0
      %2076 = vmatprep.subr.bf16.mxu0 0
      %2077 = vmatpush1.bf16.msra.mxu0 0
      %2078 = vmatprep.subr.bf16.mxu0 0
      %2079 = vmatpush1.bf16.msra.mxu0 0
      %2080 = vmatprep.subr.bf16.mxu0 0
      %2081 = vmatpush1.bf16.msra.mxu0 0
      %2082 = vmatprep.subr.bf16.mxu0 0
      %2083 = vmatpush1.bf16.msra.mxu0 0
      %2084 = vmatprep.subr.bf16.mxu0 0
      %2085 = vmatpush1.bf16.msra.mxu0 0
      %2086 = vmatprep.subr.bf16.mxu0 0
      %2087 = vmatpush1.bf16.msra.mxu0 0
      %2088 = vmatprep.subr.bf16.mxu0 0
      %2089 = vmatpush1.bf16.msra.mxu0 0
      %2090 = vmatprep.mubr.bf16.mxu0 0
      %2091 = vmatmul.mubr.bf16.gmra.mrb[0].mxu0 %v1923
      %v2092 = vpop.f32.mrb[0].mxu0
      %v2093 = vadd.f32 %v1392, %v2092
      %v2094 = vpop.f32.mrb[0].mxu0
      %v2095 = vpop.f32.mrb[0].mxu0
      %v2096 = vadd.f32 %v1395, %v2095
      %v2097 = vpop.f32.mrb[0].mxu0
      %2098 = vmatprep.mubr.bf16.mxu0 0
      %2099 = vmatmul.mubr.bf16.gmra.mrb[0].mxu0 %v1925
      %v2100 = vpop.f32.mrb[0].mxu0
      %v2101 = vadd.f32 %v1400, %v2100
      %v2102 = vpop.f32.mrb[0].mxu0
      %v2103 = vpop.f32.mrb[0].mxu0
      %v2104 = vadd.f32 %v1403, %v2103
      %v2105 = vpop.f32.mrb[0].mxu0
      %2106 = vmatprep.mubr.bf16.mxu0 0
      %2107 = vmatmul.mubr.bf16.gmra.mrb[0].mxu0 %v1927
      %v2108 = vpop.f32.mrb[0].mxu0
      %v2109 = vadd.f32 %v1408, %v2108
      %v2110 = vpop.f32.mrb[0].mxu0
      %v2111 = vpop.f32.mrb[0].mxu0
      %v2112 = vadd.f32 %v1411, %v2111
      %v2113 = vpop.f32.mrb[0].mxu0
      %2114 = vmatprep.mubr.bf16.mxu0 0
      %2115 = vmatmul.mubr.bf16.gmra.mrb[0].mxu0 %v1929
      %v2116 = vpop.f32.mrb[0].mxu0
      %v2117 = vadd.f32 %v1416, %v2116
      %v2118 = vpop.f32.mrb[0].mxu0
      %v2119 = vpop.f32.mrb[0].mxu0
      %v2120 = vadd.f32 %v1419, %v2119
      %v2121 = vpop.f32.mrb[0].mxu0
      %2122 = vmatprep.mubr.bf16.mxu0 0
      %2123 = vmatmul.mubr.bf16.gmra.mrb[0].mxu0 %v1931
      %v2124 = vpop.f32.mrb[0].mxu0
      %v2125 = vadd.f32 %v1424, %v2124
      %v2126 = vpop.f32.mrb[0].mxu0
      %v2127 = vpop.f32.mrb[0].mxu0
      %v2128 = vadd.f32 %v1427, %v2127
      %v2129 = vpop.f32.mrb[0].mxu0
      %2130 = vmatprep.mubr.bf16.mxu0 0
      %2131 = vmatmul.mubr.bf16.gmra.mrb[0].mxu0 %v1933
      %v2132 = vpop.f32.mrb[0].mxu0
      %v2133 = vadd.f32 %v1432, %v2132
      %v2134 = vpop.f32.mrb[0].mxu0
      %v2135 = vpop.f32.mrb[0].mxu0
      %v2136 = vadd.f32 %v1435, %v2135
      %v2137 = vpop.f32.mrb[0].mxu0
      %2138 = vmatprep.mubr.bf16.mxu0 0
      %2139 = vmatmul.mubr.bf16.gmra.mrb[0].mxu0 %v1935
      %v2140 = vpop.f32.mrb[0].mxu0
      %v2141 = vadd.f32 %v1440, %v2140
      %v2142 = vpop.f32.mrb[0].mxu0
      %v2143 = vpop.f32.mrb[0].mxu0
      %v2144 = vadd.f32 %v1443, %v2143
      %v2145 = vpop.f32.mrb[0].mxu0
      %2146 = vmatprep.mubr.bf16.mxu0 0
      %2147 = vmatmul.mubr.bf16.gmra.mrb[0].mxu0 %v1937
      %v2148 = vpop.f32.mrb[0].mxu0
      %v2149 = vadd.f32 %v1448, %v2148
      %v2150 = vpop.f32.mrb[0].mxu0
      %v2151 = vpop.f32.mrb[0].mxu0
      %v2152 = vadd.f32 %v1451, %v2151
      %v2153 = vpop.f32.mrb[0].mxu0
      %2154 = vmatprep.mubr.bf16.mxu0 0
      %2155 = vmatmul.mubr.bf16.gmra.mrb[0].mxu0 %v1939
      %v2156 = vpop.f32.mrb[0].mxu0
      %v2157 = vadd.f32 %v1456, %v2156
      %v2158 = vpop.f32.mrb[0].mxu0
      %v2159 = vpop.f32.mrb[0].mxu0
      %v2160 = vadd.f32 %v1459, %v2159
      %v2161 = vpop.f32.mrb[0].mxu0
      %2162 = vmatprep.mubr.bf16.mxu0 0
      %2163 = vmatmul.mubr.bf16.gmra.mrb[0].mxu0 %v1941
      %v2164 = vpop.f32.mrb[0].mxu0
      %v2165 = vadd.f32 %v1464, %v2164
      %v2166 = vpop.f32.mrb[0].mxu0
      %v2167 = vpop.f32.mrb[0].mxu0
      %v2168 = vadd.f32 %v1467, %v2167
      %v2169 = vpop.f32.mrb[0].mxu0
      %2170 = vmatprep.mubr.bf16.mxu0 0
      %2171 = vmatmul.mubr.bf16.gmra.mrb[0].mxu0 %v1943
      %v2172 = vpop.f32.mrb[0].mxu0
      %v2173 = vadd.f32 %v1472, %v2172
      %v2174 = vpop.f32.mrb[0].mxu0
      %v2175 = vpop.f32.mrb[0].mxu0
      %v2176 = vadd.f32 %v1475, %v2175
      %v2177 = vpop.f32.mrb[0].mxu0
      %2178 = vmatprep.mubr.bf16.mxu0 0
      %2179 = vmatmul.mubr.bf16.gmra.mrb[0].mxu0 %v1945
      %v2180 = vpop.f32.mrb[0].mxu0
      %v2181 = vadd.f32 %v1480, %v2180
      %v2182 = vpop.f32.mrb[0].mxu0
      %v2183 = vpop.f32.mrb[0].mxu0
      %v2184 = vadd.f32 %v1483, %v2183
      %v2185 = vpop.f32.mrb[0].mxu0
      %2186 = vmatprep.mubr.bf16.mxu0 0
      %2187 = vmatmul.mubr.bf16.gmra.mrb[0].mxu0 %v1947
      %v2188 = vpop.f32.mrb[0].mxu0
      %v2189 = vadd.f32 %v1488, %v2188
      %v2190 = vpop.f32.mrb[0].mxu0
      %v2191 = vpop.f32.mrb[0].mxu0
      %v2192 = vadd.f32 %v1491, %v2191
      %v2193 = vpop.f32.mrb[0].mxu0
      %2194 = vmatprep.mubr.bf16.mxu0 0
      %2195 = vmatmul.mubr.bf16.gmra.mrb[0].mxu0 %v1949
      %v2196 = vpop.f32.mrb[0].mxu0
      %v2197 = vadd.f32 %v1496, %v2196
      %v2198 = vpop.f32.mrb[0].mxu0
      %v2199 = vpop.f32.mrb[0].mxu0
      %v2200 = vadd.f32 %v1499, %v2199
      %v2201 = vpop.f32.mrb[0].mxu0
      %2202 = vmatprep.mubr.bf16.mxu0 0
      %2203 = vmatmul.mubr.bf16.gmra.mrb[0].mxu0 %v1951
      %v2204 = vpop.f32.mrb[0].mxu0
      %v2205 = vadd.f32 %v1504, %v2204
      %v2206 = vpop.f32.mrb[0].mxu0
      %v2207 = vpop.f32.mrb[0].mxu0
      %v2208 = vadd.f32 %v1507, %v2207
      %v2209 = vpop.f32.mrb[0].mxu0
      %2210 = vmatprep.mubr.bf16.mxu0 0
      %2211 = vmatmul.mubr.bf16.gmra.mrb[0].mxu0 %v1953
      %v2212 = vpop.f32.mrb[0].mxu0
      %v2213 = vadd.f32 %v1512, %v2212
      %v2214 = vpop.f32.mrb[0].mxu0
      %v2215 = vpop.f32.mrb[0].mxu0
      %v2216 = vadd.f32 %v1515, %v2215
      %v2217 = vpop.f32.mrb[0].mxu0
      %2218 = vmatprep.mubr.bf16.mxu0 0
      %2219 = vmatmul.mubr.bf16.gmra.mrb[0].mxu0 %v1955
      %v2220 = vpop.f32.mrb[0].mxu0
      %v2221 = vadd.f32 %v1520, %v2220
      %v2222 = vpop.f32.mrb[0].mxu0
      %v2223 = vpop.f32.mrb[0].mxu0
      %v2224 = vadd.f32 %v1523, %v2223
      %v2225 = vpop.f32.mrb[0].mxu0
      %2226 = vmatprep.mubr.bf16.mxu0 0
      %2227 = vmatmul.mubr.bf16.gmra.mrb[0].mxu0 %v1957
      %v2228 = vpop.f32.mrb[0].mxu0
      %v2229 = vadd.f32 %v1528, %v2228
      %v2230 = vpop.f32.mrb[0].mxu0
      %v2231 = vpop.f32.mrb[0].mxu0
      %v2232 = vadd.f32 %v1531, %v2231
      %v2233 = vpop.f32.mrb[0].mxu0
      %2234 = vmatprep.mubr.bf16.mxu0 0
      %2235 = vmatmul.mubr.bf16.gmra.mrb[0].mxu0 %v1959
      %v2236 = vpop.f32.mrb[0].mxu0
      %v2237 = vadd.f32 %v1536, %v2236
      %v2238 = vpop.f32.mrb[0].mxu0
      %v2239 = vpop.f32.mrb[0].mxu0
      %v2240 = vadd.f32 %v1539, %v2239
      %v2241 = vpop.f32.mrb[0].mxu0
      %2242 = vmatprep.mubr.bf16.mxu0 0
      %2243 = vmatmul.mubr.bf16.gmra.mrb[0].mxu0 %v1961
      %v2244 = vpop.f32.mrb[0].mxu0
      %v2245 = vadd.f32 %v1544, %v2244
      %v2246 = vpop.f32.mrb[0].mxu0
      %v2247 = vpop.f32.mrb[0].mxu0
      %v2248 = vadd.f32 %v1547, %v2247
      %v2249 = vpop.f32.mrb[0].mxu0
      %2250 = vmatprep.mubr.bf16.mxu0 0
      %2251 = vmatmul.mubr.bf16.gmra.mrb[0].mxu0 %v1963
      %v2252 = vpop.f32.mrb[0].mxu0
      %v2253 = vadd.f32 %v1552, %v2252
      %v2254 = vpop.f32.mrb[0].mxu0
      %v2255 = vpop.f32.mrb[0].mxu0
      %v2256 = vadd.f32 %v1555, %v2255
      %v2257 = vpop.f32.mrb[0].mxu0
      %2258 = vmatprep.mubr.bf16.mxu0 0
      %2259 = vmatmul.mubr.bf16.gmra.mrb[0].mxu0 %v1965
      %v2260 = vpop.f32.mrb[0].mxu0
      %v2261 = vadd.f32 %v1560, %v2260
      %v2262 = vpop.f32.mrb[0].mxu0
      %v2263 = vpop.f32.mrb[0].mxu0
      %v2264 = vadd.f32 %v1563, %v2263
      %v2265 = vpop.f32.mrb[0].mxu0
      %2266 = vmatprep.mubr.bf16.mxu0 0
      %2267 = vmatmul.mubr.bf16.gmra.mrb[0].mxu0 %v1967
      %v2268 = vpop.f32.mrb[0].mxu0
      %v2269 = vadd.f32 %v1568, %v2268
      %v2270 = vpop.f32.mrb[0].mxu0
      %v2271 = vpop.f32.mrb[0].mxu0
      %v2272 = vadd.f32 %v1571, %v2271
      %v2273 = vpop.f32.mrb[0].mxu0
      %2274 = vmatprep.mubr.bf16.mxu0 0
      %2275 = vmatmul.mubr.bf16.gmra.mrb[0].mxu0 %v1969
      %v2276 = vpop.f32.mrb[0].mxu0
      %v2277 = vadd.f32 %v1576, %v2276
      %v2278 = vpop.f32.mrb[0].mxu0
      %v2279 = vpop.f32.mrb[0].mxu0
      %v2280 = vadd.f32 %v1579, %v2279
      %v2281 = vpop.f32.mrb[0].mxu0
      %2282 = vmatprep.mubr.bf16.mxu0 0
      %2283 = vmatmul.mubr.bf16.gmra.mrb[0].mxu0 %v1971
      %v2284 = vpop.f32.mrb[0].mxu0
      %v2285 = vadd.f32 %v1584, %v2284
      %v2286 = vpop.f32.mrb[0].mxu0
      %v2287 = vpop.f32.mrb[0].mxu0
      %v2288 = vadd.f32 %v1587, %v2287
      %v2289 = vpop.f32.mrb[0].mxu0
      %2290 = vmatprep.mubr.bf16.mxu0 0
      %2291 = vmatmul.mubr.bf16.gmra.mrb[0].mxu0 %v1973
      %v2292 = vpop.f32.mrb[0].mxu0
      %v2293 = vadd.f32 %v1592, %v2292
      %v2294 = vpop.f32.mrb[0].mxu0
      %v2295 = vpop.f32.mrb[0].mxu0
      %v2296 = vadd.f32 %v1595, %v2295
      %v2297 = vpop.f32.mrb[0].mxu0
      %2298 = vmatprep.mubr.bf16.mxu0 0
      %2299 = vmatmul.mubr.bf16.gmra.mrb[0].mxu0 %v1975
      %v2300 = vpop.f32.mrb[0].mxu0
      %v2301 = vadd.f32 %v1600, %v2300
      %v2302 = vpop.f32.mrb[0].mxu0
      %v2303 = vpop.f32.mrb[0].mxu0
      %v2304 = vadd.f32 %v1603, %v2303
      %v2305 = vpop.f32.mrb[0].mxu0
      %2306 = vmatprep.mubr.bf16.mxu0 0
      %2307 = vmatmul.mubr.bf16.gmra.mrb[0].mxu0 %v1977
      %v2308 = vpop.f32.mrb[0].mxu0
      %v2309 = vadd.f32 %v1608, %v2308
      %v2310 = vpop.f32.mrb[0].mxu0
      %v2311 = vpop.f32.mrb[0].mxu0
      %v2312 = vadd.f32 %v1611, %v2311
      %v2313 = vpop.f32.mrb[0].mxu0
      %2314 = vmatprep.mubr.bf16.mxu0 0
      %2315 = vmatmul.mubr.bf16.gmra.mrb[0].mxu0 %v1979
      %v2316 = vpop.f32.mrb[0].mxu0
      %v2317 = vadd.f32 %v1616, %v2316
      %v2318 = vpop.f32.mrb[0].mxu0
      %v2319 = vpop.f32.mrb[0].mxu0
      %v2320 = vadd.f32 %v1619, %v2319
      %v2321 = vpop.f32.mrb[0].mxu0
      %2322 = vmatprep.mubr.bf16.mxu0 0
      %2323 = vmatmul.mubr.bf16.gmra.mrb[0].mxu0 %v1981
      %v2324 = vpop.f32.mrb[0].mxu0
      %v2325 = vadd.f32 %v1624, %v2324
      %v2326 = vpop.f32.mrb[0].mxu0
      %v2327 = vpop.f32.mrb[0].mxu0
      %v2328 = vadd.f32 %v1627, %v2327
      %v2329 = vpop.f32.mrb[0].mxu0
      %2330 = vmatprep.mubr.bf16.mxu0 0
      %2331 = vmatmul.mubr.bf16.gmra.mrb[0].mxu0 %v1983
      %v2332 = vpop.f32.mrb[0].mxu0
      %v2333 = vadd.f32 %v1632, %v2332
      %v2334 = vpop.f32.mrb[0].mxu0
      %v2335 = vpop.f32.mrb[0].mxu0
      %v2336 = vadd.f32 %v1635, %v2335
      %v2337 = vpop.f32.mrb[0].mxu0
      %2338 = vmatprep.mubr.bf16.mxu0 0
      %2339 = vmatmul.mubr.bf16.gmra.mrb[0].mxu0 %v1985
      %v2340 = vpop.f32.mrb[0].mxu0
      %v2341 = vadd.f32 %v1640, %v2340
      %v2342 = vpop.f32.mrb[0].mxu0
      %v2343 = vpop.f32.mrb[0].mxu0
      %v2344 = vadd.f32 %v1643, %v2343
      %v2345 = vpop.f32.mrb[0].mxu0
      %2346 = vmatprep.mubr.bf16.mxu0 0
      %2347 = vmatmul.mubr.bf16.gmra.mrb[0].mxu0 %v1987
      %v2348 = vpop.f32.mrb[0].mxu0
      %v2349 = vadd.f32 %v1648, %v2348
      %v2350 = vpop.f32.mrb[0].mxu0
      %v2351 = vpop.f32.mrb[0].mxu0
      %v2352 = vadd.f32 %v1651, %v2351
      %v2353 = vpop.f32.mrb[0].mxu0
      %2354 = vmatprep.mubr.bf16.mxu0 0
      %2355 = vmatmul.mubr.bf16.gmra.mrb[0].mxu0 %v1989
      %v2356 = vpop.f32.mrb[0].mxu0
      %v2357 = vadd.f32 %v1656, %v2356
      %v2358 = vpop.f32.mrb[0].mxu0
      %v2359 = vpop.f32.mrb[0].mxu0
      %v2360 = vadd.f32 %v1659, %v2359
      %v2361 = vpop.f32.mrb[0].mxu0
      %2362 = vmatprep.mubr.bf16.mxu0 0
      %2363 = vmatmul.mubr.bf16.gmra.mrb[0].mxu0 %v1991
      %v2364 = vpop.f32.mrb[0].mxu0
      %v2365 = vadd.f32 %v1664, %v2364
      %v2366 = vpop.f32.mrb[0].mxu0
      %v2367 = vpop.f32.mrb[0].mxu0
      %v2368 = vadd.f32 %v1667, %v2367
      %v2369 = vpop.f32.mrb[0].mxu0
      %2370 = vmatprep.mubr.bf16.mxu0 0
      %2371 = vmatmul.mubr.bf16.gmra.mrb[0].mxu0 %v1993
      %v2372 = vpop.f32.mrb[0].mxu0
      %v2373 = vadd.f32 %v1672, %v2372
      %v2374 = vpop.f32.mrb[0].mxu0
      %v2375 = vpop.f32.mrb[0].mxu0
      %v2376 = vadd.f32 %v1675, %v2375
      %v2377 = vpop.f32.mrb[0].mxu0
      %2378 = vmatprep.mubr.bf16.mxu0 0
      %2379 = vmatmul.mubr.bf16.gmra.mrb[0].mxu0 %v1995
      %v2380 = vpop.f32.mrb[0].mxu0
      %v2381 = vadd.f32 %v1680, %v2380
      %v2382 = vpop.f32.mrb[0].mxu0
      %v2383 = vpop.f32.mrb[0].mxu0
      %v2384 = vadd.f32 %v1683, %v2383
      %v2385 = vpop.f32.mrb[0].mxu0
      %2386 = vmatprep.mubr.bf16.mxu0 0
      %2387 = vmatmul.mubr.bf16.gmra.mrb[0].mxu0 %v1997
      %v2388 = vpop.f32.mrb[0].mxu0
      %v2389 = vadd.f32 %v1688, %v2388
      %v2390 = vpop.f32.mrb[0].mxu0
      %v2391 = vpop.f32.mrb[0].mxu0
      %v2392 = vadd.f32 %v1691, %v2391
      %v2393 = vpop.f32.mrb[0].mxu0
      %2394 = vmatprep.mubr.bf16.mxu0 0
      %2395 = vmatmul.mubr.bf16.gmra.mrb[0].mxu0 %v1999
      %v2396 = vpop.f32.mrb[0].mxu0
      %v2397 = vadd.f32 %v1696, %v2396
      %v2398 = vpop.f32.mrb[0].mxu0
      %v2399 = vpop.f32.mrb[0].mxu0
      %v2400 = vadd.f32 %v1699, %v2399
      %v2401 = vpop.f32.mrb[0].mxu0
      %2402 = vmatprep.mubr.bf16.mxu0 0
      %2403 = vmatmul.mubr.bf16.gmra.mrb[0].mxu0 %v2001
      %v2404 = vpop.f32.mrb[0].mxu0
      %v2405 = vadd.f32 %v1704, %v2404
      %v2406 = vpop.f32.mrb[0].mxu0
      %v2407 = vpop.f32.mrb[0].mxu0
      %v2408 = vadd.f32 %v1707, %v2407
      %v2409 = vpop.f32.mrb[0].mxu0
      %2410 = vmatprep.mubr.bf16.mxu0 0
      %2411 = vmatmul.mubr.bf16.gmra.mrb[0].mxu0 %v2003
      %v2412 = vpop.f32.mrb[0].mxu0
      %v2413 = vadd.f32 %v1712, %v2412
      %v2414 = vpop.f32.mrb[0].mxu0
      %v2415 = vpop.f32.mrb[0].mxu0
      %v2416 = vadd.f32 %v1715, %v2415
      %v2417 = vpop.f32.mrb[0].mxu0
      %2418 = vmatprep.mubr.bf16.mxu0 0
      %2419 = vmatmul.mubr.bf16.gmra.mrb[0].mxu0 %v2005
      %v2420 = vpop.f32.mrb[0].mxu0
      %v2421 = vadd.f32 %v1720, %v2420
      %v2422 = vpop.f32.mrb[0].mxu0
      %v2423 = vpop.f32.mrb[0].mxu0
      %v2424 = vadd.f32 %v1723, %v2423
      %v2425 = vpop.f32.mrb[0].mxu0
      %2426 = vmatprep.mubr.bf16.mxu0 0
      %2427 = vmatmul.mubr.bf16.gmra.mrb[0].mxu0 %v2007
      %v2428 = vpop.f32.mrb[0].mxu0
      %v2429 = vadd.f32 %v1728, %v2428
      %v2430 = vpop.f32.mrb[0].mxu0
      %v2431 = vpop.f32.mrb[0].mxu0
      %v2432 = vadd.f32 %v1731, %v2431
      %v2433 = vpop.f32.mrb[0].mxu0
      %2434 = vmatprep.mubr.bf16.mxu0 0
      %2435 = vmatmul.mubr.bf16.gmra.mrb[0].mxu0 %v2009
      %v2436 = vpop.f32.mrb[0].mxu0
      %v2437 = vadd.f32 %v1736, %v2436
      %v2438 = vpop.f32.mrb[0].mxu0
      %v2439 = vpop.f32.mrb[0].mxu0
      %v2440 = vadd.f32 %v1739, %v2439
      %v2441 = vpop.f32.mrb[0].mxu0
      %2442 = vmatprep.mubr.bf16.mxu0 0
      %2443 = vmatmul.mubr.bf16.gmra.mrb[0].mxu0 %v2011
      %v2444 = vpop.f32.mrb[0].mxu0
      %v2445 = vadd.f32 %v1744, %v2444
      %v2446 = vpop.f32.mrb[0].mxu0
      %v2447 = vpop.f32.mrb[0].mxu0
      %v2448 = vadd.f32 %v1747, %v2447
      %v2449 = vpop.f32.mrb[0].mxu0
      %2450 = vmatprep.mubr.bf16.mxu0 0
      %2451 = vmatmul.mubr.bf16.gmra.mrb[0].mxu0 %v2013
      %v2452 = vpop.f32.mrb[0].mxu0
      %v2453 = vadd.f32 %v1752, %v2452
      %v2454 = vpop.f32.mrb[0].mxu0
      %v2455 = vpop.f32.mrb[0].mxu0
      %v2456 = vadd.f32 %v1755, %v2455
      %v2457 = vpop.f32.mrb[0].mxu0
      %2458 = vmatprep.mubr.bf16.mxu0 0
      %2459 = vmatmul.mubr.bf16.gmra.mrb[0].mxu0 %v2015
      %v2460 = vpop.f32.mrb[0].mxu0
      %v2461 = vadd.f32 %v1760, %v2460
      %v2462 = vpop.f32.mrb[0].mxu0
      %v2463 = vpop.f32.mrb[0].mxu0
      %v2464 = vadd.f32 %v1763, %v2463
      %v2465 = vpop.f32.mrb[0].mxu0
      %2466 = vmatprep.mubr.bf16.mxu0 0
      %2467 = vmatmul.mubr.bf16.gmra.mrb[0].mxu0 %v2017
      %v2468 = vpop.f32.mrb[0].mxu0
      %v2469 = vadd.f32 %v1768, %v2468
      %v2470 = vpop.f32.mrb[0].mxu0
      %v2471 = vpop.f32.mrb[0].mxu0
      %v2472 = vadd.f32 %v1771, %v2471
      %v2473 = vpop.f32.mrb[0].mxu0
      %2474 = vmatprep.mubr.bf16.mxu0 0
      %2475 = vmatmul.mubr.bf16.gmra.mrb[0].mxu0 %v2019
      %v2476 = vpop.f32.mrb[0].mxu0
      %v2477 = vadd.f32 %v1776, %v2476
      %v2478 = vpop.f32.mrb[0].mxu0
      %v2479 = vpop.f32.mrb[0].mxu0
      %v2480 = vadd.f32 %v1779, %v2479
      %v2481 = vpop.f32.mrb[0].mxu0
      %2482 = vmatprep.mubr.bf16.mxu0 0
      %2483 = vmatmul.mubr.bf16.gmra.mrb[0].mxu0 %v2021
      %v2484 = vpop.f32.mrb[0].mxu0
      %v2485 = vadd.f32 %v1784, %v2484
      %v2486 = vpop.f32.mrb[0].mxu0
      %v2487 = vpop.f32.mrb[0].mxu0
      %v2488 = vadd.f32 %v1787, %v2487
      %v2489 = vpop.f32.mrb[0].mxu0
      %2490 = vmatprep.mubr.bf16.mxu0 0
      %2491 = vmatmul.mubr.bf16.gmra.mrb[0].mxu0 %v2023
      %v2492 = vpop.f32.mrb[0].mxu0
      %v2493 = vadd.f32 %v1792, %v2492
      %v2494 = vpop.f32.mrb[0].mxu0
      %v2495 = vpop.f32.mrb[0].mxu0
      %v2496 = vadd.f32 %v1795, %v2495
      %v2497 = vpop.f32.mrb[0].mxu0
      %2498 = vmatprep.mubr.bf16.mxu0 0
      %2499 = vmatmul.mubr.bf16.gmra.mrb[0].mxu0 %v2025
      %v2500 = vpop.f32.mrb[0].mxu0
      %v2501 = vadd.f32 %v1800, %v2500
      %v2502 = vpop.f32.mrb[0].mxu0
      %v2503 = vpop.f32.mrb[0].mxu0
      %v2504 = vadd.f32 %v1803, %v2503
      %v2505 = vpop.f32.mrb[0].mxu0
      %2506 = vmatprep.mubr.bf16.mxu0 0
      %2507 = vmatmul.mubr.bf16.gmra.mrb[0].mxu0 %v2027
      %v2508 = vpop.f32.mrb[0].mxu0
      %v2509 = vadd.f32 %v1808, %v2508
      %v2510 = vpop.f32.mrb[0].mxu0
      %v2511 = vpop.f32.mrb[0].mxu0
      %v2512 = vadd.f32 %v1811, %v2511
      %v2513 = vpop.f32.mrb[0].mxu0
      %2514 = vmatprep.mubr.bf16.mxu0 0
      %2515 = vmatmul.mubr.bf16.gmra.mrb[0].mxu0 %v2029
      %v2516 = vpop.f32.mrb[0].mxu0
      %v2517 = vadd.f32 %v1816, %v2516
      %v2518 = vpop.f32.mrb[0].mxu0
      %v2519 = vpop.f32.mrb[0].mxu0
      %v2520 = vadd.f32 %v1819, %v2519
      %v2521 = vpop.f32.mrb[0].mxu0
      %2522 = vmatprep.mubr.bf16.mxu0 0
      %2523 = vmatmul.mubr.bf16.gmra.mrb[0].mxu0 %v2031
      %v2524 = vpop.f32.mrb[0].mxu0
      %v2525 = vadd.f32 %v1824, %v2524
      %v2526 = vpop.f32.mrb[0].mxu0
      %v2527 = vpop.f32.mrb[0].mxu0
      %v2528 = vadd.f32 %v1827, %v2527
      %v2529 = vpop.f32.mrb[0].mxu0
      %2530 = vmatprep.mubr.bf16.mxu0 0
      %2531 = vmatmul.mubr.bf16.gmra.mrb[0].mxu0 %v2033
      %v2532 = vpop.f32.mrb[0].mxu0
      %v2533 = vadd.f32 %v1832, %v2532
      %v2534 = vpop.f32.mrb[0].mxu0
      %v2535 = vpop.f32.mrb[0].mxu0
      %v2536 = vadd.f32 %v1835, %v2535
      %v2537 = vpop.f32.mrb[0].mxu0
      %2538 = vmatprep.mubr.bf16.mxu0 0
      %2539 = vmatmul.mubr.bf16.gmra.mrb[0].mxu0 %v2035
      %v2540 = vpop.f32.mrb[0].mxu0
      %v2541 = vadd.f32 %v1840, %v2540
      %v2542 = vpop.f32.mrb[0].mxu0
      %v2543 = vpop.f32.mrb[0].mxu0
      %v2544 = vadd.f32 %v1843, %v2543
      %v2545 = vpop.f32.mrb[0].mxu0
      %2546 = vmatprep.mubr.bf16.mxu0 0
      %2547 = vmatmul.mubr.bf16.gmra.mrb[0].mxu0 %v2037
      %v2548 = vpop.f32.mrb[0].mxu0
      %v2549 = vadd.f32 %v1848, %v2548
      %v2550 = vpop.f32.mrb[0].mxu0
      %v2551 = vpop.f32.mrb[0].mxu0
      %v2552 = vadd.f32 %v1851, %v2551
      %v2553 = vpop.f32.mrb[0].mxu0
      %2554 = vmatprep.mubr.bf16.mxu0 0
      %2555 = vmatmul.mubr.bf16.gmra.mrb[0].mxu0 %v2039
      %v2556 = vpop.f32.mrb[0].mxu0
      %v2557 = vadd.f32 %v1856, %v2556
      %v2558 = vpop.f32.mrb[0].mxu0
      %v2559 = vpop.f32.mrb[0].mxu0
      %v2560 = vadd.f32 %v1859, %v2559
      %v2561 = vpop.f32.mrb[0].mxu0
      %2562 = vmatprep.mubr.bf16.mxu0 0
      %2563 = vmatmul.mubr.bf16.gmra.mrb[0].mxu0 %v2041
      %v2564 = vpop.f32.mrb[0].mxu0
      %v2565 = vadd.f32 %v1864, %v2564
      %v2566 = vpop.f32.mrb[0].mxu0
      %v2567 = vpop.f32.mrb[0].mxu0
      %v2568 = vadd.f32 %v1867, %v2567
      %v2569 = vpop.f32.mrb[0].mxu0
      %2570 = vmatprep.mubr.bf16.mxu0 0
      %2571 = vmatmul.mubr.bf16.gmra.mrb[0].mxu0 %v2043
      %v2572 = vpop.f32.mrb[0].mxu0
      %v2573 = vadd.f32 %v1872, %v2572
      %v2574 = vpop.f32.mrb[0].mxu0
      %v2575 = vpop.f32.mrb[0].mxu0
      %v2576 = vadd.f32 %v1875, %v2575
      %v2577 = vpop.f32.mrb[0].mxu0
      %2578 = vmatprep.mubr.bf16.mxu0 0
      %2579 = vmatmul.mubr.bf16.gmra.mrb[0].mxu0 %v2045
      %v2580 = vpop.f32.mrb[0].mxu0
      %v2581 = vadd.f32 %v1880, %v2580
      %v2582 = vpop.f32.mrb[0].mxu0
      %v2583 = vpop.f32.mrb[0].mxu0
      %v2584 = vadd.f32 %v1883, %v2583
      %v2585 = vpop.f32.mrb[0].mxu0
      %2586 = vmatprep.mubr.bf16.mxu0 0
      %2587 = vmatmul.mubr.bf16.gmra.mrb[0].mxu0 %v2047
      %v2588 = vpop.f32.mrb[0].mxu0
      %v2589 = vadd.f32 %v1888, %v2588
      %v2590 = vpop.f32.mrb[0].mxu0
      %v2591 = vpop.f32.mrb[0].mxu0
      %v2592 = vadd.f32 %v1891, %v2591
      %v2593 = vpop.f32.mrb[0].mxu0
      %2594 = vmatprep.mubr.bf16.mxu0 0
      %2595 = vmatmul.mubr.bf16.gmra.mrb[0].mxu0 %v2049
      %v2596 = vpop.f32.mrb[0].mxu0
      %v2597 = vadd.f32 %v1896, %v2596
      %v2598 = vpop.f32.mrb[0].mxu0
      %v2599 = vpop.f32.mrb[0].mxu0
      %v2600 = vadd.f32 %v1899, %v2599
      %v2601 = vpop.f32.mrb[0].mxu0
      %2602 = vmatprep.mubr.bf16.mxu0 0
      %2603 = vmatmul.mubr.bf16.gmra.mrb[0].mxu0 %v2051
      %v2604 = vpop.f32.mrb[0].mxu0
      %v2605 = vadd.f32 %v1904, %v2604
      %v2606 = vpop.f32.mrb[0].mxu0
      %v2607 = vpop.f32.mrb[0].mxu0
      %v2608 = vadd.f32 %v1907, %v2607
      %v2609 = vpop.f32.mrb[0].mxu0
      %2610 = vmatprep.mubr.bf16.mxu0 0
      %2611 = vmatmul.mubr.bf16.gmra.mrb[0].mxu0 %v2053
      %v2612 = vpop.f32.mrb[0].mxu0
      %v2613 = vadd.f32 %v1912, %v2612
      %v2614 = vpop.f32.mrb[0].mxu0
      %v2615 = vpop.f32.mrb[0].mxu0
      %v2616 = vadd.f32 %v1915, %v2615
      %v2617 = vpop.f32.mrb[0].mxu0
      %2618 = vdwg.mxu0
      %v2619 = vld [vmem:[%s138 + $0x10] sm:$0xf]
      %v2620 = vld [vmem:[%s138 + $0x14] sm:$0xf]
      %v2621 = vld [vmem:[%s138 + $0x18] sm:$0xf]
      %v2622 = vld [vmem:[%s138 + $0x1c] sm:$0xf]
      %v2623 = vld [vmem:[%s138 + $0x20] sm:$0xf]
      %v2624 = vld [vmem:[%s138 + $0x24] sm:$0xf]
      %v2625 = vld [vmem:[%s138 + $0x28] sm:$0xf]
      %v2626 = vld [vmem:[%s138 + $0x2c] sm:$0xf]
      %v2627 = vld [vmem:[%s138 + $0x30] sm:$0xf]
      %v2628 = vld [vmem:[%s138 + $0x34] sm:$0xf]
      %v2629 = vld [vmem:[%s138 + $0x38] sm:$0xf]
      %v2630 = vld [vmem:[%s138 + $0x3c] sm:$0xf]
      %v2631 = vld [vmem:[%s138 + $0x40] sm:$0xf]
      %v2632 = vld [vmem:[%s138 + $0x44] sm:$0xf]
      %v2633 = vld [vmem:[%s138 + $0x48] sm:$0xf]
      %v2634 = vld [vmem:[%s138 + $0x4c] sm:$0xf]
      %v2635 = vld [vmem:[%s138 + $0x50] sm:$0xf]
      %v2636 = vld [vmem:[%s138 + $0x54] sm:$0xf]
      %v2637 = vld [vmem:[%s138 + $0x58] sm:$0xf]
      %v2638 = vld [vmem:[%s138 + $0x5c] sm:$0xf]
      %v2639 = vld [vmem:[%s138 + $0x60] sm:$0xf]
      %v2640 = vld [vmem:[%s138 + $0x64] sm:$0xf]
      %v2641 = vld [vmem:[%s138 + $0x68] sm:$0xf]
      %v2642 = vld [vmem:[%s138 + $0x6c] sm:$0xf]
      %v2643 = vld [vmem:[%s138 + $0x70] sm:$0xf]
      %v2644 = vld [vmem:[%s138 + $0x74] sm:$0xf]
      %v2645 = vld [vmem:[%s138 + $0x78] sm:$0xf]
      %v2646 = vld [vmem:[%s138 + $0x7c] sm:$0xf]
      %v2647 = vld [vmem:[%s138 + $0x80] sm:$0xf]
      %v2648 = vld [vmem:[%s138 + $0x84] sm:$0xf]
      %v2649 = vld [vmem:[%s138 + $0x88] sm:$0xf]
      %v2650 = vld [vmem:[%s138 + $0x8c] sm:$0xf]
      %v2651 = vld [vmem:[%s138 + $0x90] sm:$0xf]
      %v2652 = vld [vmem:[%s138 + $0x94] sm:$0xf]
      %v2653 = vld [vmem:[%s138 + $0x98] sm:$0xf]
      %v2654 = vld [vmem:[%s138 + $0x9c] sm:$0xf]
      %v2655 = vld [vmem:[%s138 + $0xa0] sm:$0xf]
      %v2656 = vld [vmem:[%s138 + $0xa4] sm:$0xf]
      %v2657 = vld [vmem:[%s138 + $0xa8] sm:$0xf]
      %v2658 = vld [vmem:[%s138 + $0xac] sm:$0xf]
      %v2659 = vld [vmem:[%s138 + $0xb0] sm:$0xf]
      %v2660 = vld [vmem:[%s138 + $0xb4] sm:$0xf]
      %v2661 = vld [vmem:[%s138 + $0xb8] sm:$0xf]
      %v2662 = vld [vmem:[%s138 + $0xbc] sm:$0xf]
      %v2663 = vld [vmem:[%s138 + $0xc0] sm:$0xf]
      %v2664 = vld [vmem:[%s138 + $0xc4] sm:$0xf]
      %v2665 = vld [vmem:[%s138 + $0xc8] sm:$0xf]
      %v2666 = vld [vmem:[%s138 + $0xcc] sm:$0xf]
      %v2667 = vld [vmem:[%s138 + $0xd0] sm:$0xf]
      %v2668 = vld [vmem:[%s138 + $0xd4] sm:$0xf]
      %v2669 = vld [vmem:[%s138 + $0xd8] sm:$0xf]
      %v2670 = vld [vmem:[%s138 + $0xdc] sm:$0xf]
      %v2671 = vld [vmem:[%s138 + $0xe0] sm:$0xf]
      %v2672 = vld [vmem:[%s138 + $0xe4] sm:$0xf]
      %v2673 = vld [vmem:[%s138 + $0xe8] sm:$0xf]
      %v2674 = vld [vmem:[%s138 + $0xec] sm:$0xf]
      %v2675 = vld [vmem:[%s138 + $0xf0] sm:$0xf]
      %v2676 = vld [vmem:[%s138 + $0xf4] sm:$0xf]
      %v2677 = vld [vmem:[%s138 + $0xf8] sm:$0xf]
      %v2678 = vld [vmem:[%s138 + $0xfc] sm:$0xf]
      %v2679 = vld [vmem:[%s138 + $0x100] sm:$0xf]
      %v2680 = vld [vmem:[%s138 + $0x104] sm:$0xf]
      %v2681 = vld [vmem:[%s138 + $0x108] sm:$0xf]
      %v2682 = vld [vmem:[%s138 + $0x10c] sm:$0xf]
      %v2683 = vld [vmem:[%s138 + $0x110] sm:$0xf]
      %v2684 = vld [vmem:[%s138 + $0x114] sm:$0xf]
      %v2685 = vld [vmem:[%s138 + $0x118] sm:$0xf]
      %v2686 = vld [vmem:[%s138 + $0x11c] sm:$0xf]
      %v2687 = vld [vmem:[%s138 + $0x120] sm:$0xf]
      %v2688 = vld [vmem:[%s138 + $0x124] sm:$0xf]
      %v2689 = vld [vmem:[%s138 + $0x128] sm:$0xf]
      %v2690 = vld [vmem:[%s138 + $0x12c] sm:$0xf]
      %v2691 = vld [vmem:[%s138 + $0x130] sm:$0xf]
      %v2692 = vld [vmem:[%s138 + $0x134] sm:$0xf]
      %v2693 = vld [vmem:[%s138 + $0x138] sm:$0xf]
      %v2694 = vld [vmem:[%s138 + $0x13c] sm:$0xf]
      %v2695 = vld [vmem:[%s138 + $0x140] sm:$0xf]
      %v2696 = vld [vmem:[%s138 + $0x144] sm:$0xf]
      %v2697 = vld [vmem:[%s138 + $0x148] sm:$0xf]
      %v2698 = vld [vmem:[%s138 + $0x14c] sm:$0xf]
      %v2699 = vld [vmem:[%s138 + $0x150] sm:$0xf]
      %v2700 = vld [vmem:[%s138 + $0x154] sm:$0xf]
      %v2701 = vld [vmem:[%s138 + $0x158] sm:$0xf]
      %v2702 = vld [vmem:[%s138 + $0x15c] sm:$0xf]
      %v2703 = vld [vmem:[%s138 + $0x160] sm:$0xf]
      %v2704 = vld [vmem:[%s138 + $0x164] sm:$0xf]
      %v2705 = vld [vmem:[%s138 + $0x168] sm:$0xf]
      %v2706 = vld [vmem:[%s138 + $0x16c] sm:$0xf]
      %v2707 = vld [vmem:[%s138 + $0x170] sm:$0xf]
      %v2708 = vld [vmem:[%s138 + $0x174] sm:$0xf]
      %v2709 = vld [vmem:[%s138 + $0x178] sm:$0xf]
      %v2710 = vld [vmem:[%s138 + $0x17c] sm:$0xf]
      %v2711 = vld [vmem:[%s138 + $0x180] sm:$0xf]
      %v2712 = vld [vmem:[%s138 + $0x184] sm:$0xf]
      %v2713 = vld [vmem:[%s138 + $0x188] sm:$0xf]
      %v2714 = vld [vmem:[%s138 + $0x18c] sm:$0xf]
      %v2715 = vld [vmem:[%s138 + $0x190] sm:$0xf]
      %v2716 = vld [vmem:[%s138 + $0x194] sm:$0xf]
      %v2717 = vld [vmem:[%s138 + $0x198] sm:$0xf]
      %v2718 = vld [vmem:[%s138 + $0x19c] sm:$0xf]
      %v2719 = vld [vmem:[%s138 + $0x1a0] sm:$0xf]
      %v2720 = vld [vmem:[%s138 + $0x1a4] sm:$0xf]
      %v2721 = vld [vmem:[%s138 + $0x1a8] sm:$0xf]
      %v2722 = vld [vmem:[%s138 + $0x1ac] sm:$0xf]
      %v2723 = vld [vmem:[%s138 + $0x1b0] sm:$0xf]
      %v2724 = vld [vmem:[%s138 + $0x1b4] sm:$0xf]
      %v2725 = vld [vmem:[%s138 + $0x1b8] sm:$0xf]
      %v2726 = vld [vmem:[%s138 + $0x1bc] sm:$0xf]
      %v2727 = vld [vmem:[%s138 + $0x1c0] sm:$0xf]
      %v2728 = vld [vmem:[%s138 + $0x1c4] sm:$0xf]
      %v2729 = vld [vmem:[%s138 + $0x1c8] sm:$0xf]
      %v2730 = vld [vmem:[%s138 + $0x1cc] sm:$0xf]
      %v2731 = vld [vmem:[%s138 + $0x1d0] sm:$0xf]
      %v2732 = vld [vmem:[%s138 + $0x1d4] sm:$0xf]
      %v2733 = vld [vmem:[%s138 + $0x1d8] sm:$0xf]
      %v2734 = vld [vmem:[%s138 + $0x1dc] sm:$0xf]
      %v2735 = vld [vmem:[%s138 + $0x1e0] sm:$0xf]
      %v2736 = vld [vmem:[%s138 + $0x1e4] sm:$0xf]
      %v2737 = vld [vmem:[%s138 + $0x1e8] sm:$0xf]
      %v2738 = vld [vmem:[%s138 + $0x1ec] sm:$0xf]
      %v2739 = vld [vmem:[%s138 + $0x1f0] sm:$0xf]
      %v2740 = vld [vmem:[%s138 + $0x1f4] sm:$0xf]
      %v2741 = vld [vmem:[%s138 + $0x1f8] sm:$0xf]
      %v2742 = vld [vmem:[%s138 + $0x1fc] sm:$0xf]
      %v2743 = vld [vmem:[%s138 + $0x200] sm:$0xf]
      %v2744 = vld [vmem:[%s138 + $0x204] sm:$0xf]
      %v2745 = vld [vmem:[%s138 + $0x208] sm:$0xf]
      %v2746 = vld [vmem:[%s138 + $0x20c] sm:$0xf]
      %v2747 = vld [vmem:[%s138 + $0x210] sm:$0xf]
      %v2748 = vld [vmem:[%s138 + $0x214] sm:$0xf]
      %v2749 = vld [vmem:[%s138 + $0x218] sm:$0xf]
      %v2750 = vld [vmem:[%s138 + $0x21c] sm:$0xf]
      %v2751 = vld [vmem:[%s138 + $0x220] sm:$0x1]
      %s2752 = scalar_lea.vmem %s1, 16
      %v2753 = vld [vmem:[%s2752] sm:$0xf]
      %v2754 = vld [vmem:[%s2752 + $0x4] sm:$0x3]
      %v2888 = vunpack.c.l.b16 %v2619
      %v2889 = vunpack.c.l.b16 %v2620
      %v2890 = vunpack.c.l.b16 %v2621
      %v2891 = vunpack.c.l.b16 %v2622
      %v2892 = vunpack.c.l.b16 %v2623
      %v2893 = vunpack.c.l.b16 %v2624
      %v2894 = vunpack.c.l.b16 %v2625
      %v2895 = vunpack.c.l.b16 %v2626
      %v2896 = vunpack.c.l.b16 %v2627
      %v2897 = vunpack.c.l.b16 %v2628
      %v2898 = vunpack.c.l.b16 %v2629
      %v2899 = vunpack.c.l.b16 %v2630
      %v2900 = vunpack.c.l.b16 %v2631
      %v2901 = vunpack.c.l.b16 %v2632
      %v2902 = vunpack.c.l.b16 %v2633
      %v2903 = vunpack.c.l.b16 %v2634
      %v2904 = vunpack.c.l.b16 %v2635
      %v2905 = vunpack.c.l.b16 %v2636
      %v2906 = vunpack.c.l.b16 %v2637
      %v2907 = vunpack.c.l.b16 %v2638
      %v2908 = vunpack.c.l.b16 %v2639
      %v2909 = vunpack.c.l.b16 %v2640
      %v2910 = vunpack.c.l.b16 %v2641
      %v2911 = vunpack.c.l.b16 %v2642
      %v2912 = vunpack.c.l.b16 %v2643
      %v2913 = vunpack.c.l.b16 %v2644
      %v2914 = vunpack.c.l.b16 %v2645
      %v2915 = vunpack.c.l.b16 %v2646
      %v2916 = vunpack.c.l.b16 %v2647
      %v2917 = vunpack.c.l.b16 %v2648
      %v2918 = vunpack.c.l.b16 %v2649
      %v2919 = vunpack.c.l.b16 %v2650
      %v2920 = vunpack.c.l.b16 %v2651
      %v2921 = vunpack.c.l.b16 %v2652
      %v2922 = vunpack.c.l.b16 %v2653
      %v2923 = vunpack.c.l.b16 %v2654
      %v2924 = vunpack.c.l.b16 %v2655
      %v2925 = vunpack.c.l.b16 %v2656
      %v2926 = vunpack.c.l.b16 %v2657
      %v2927 = vunpack.c.l.b16 %v2658
      %v2928 = vunpack.c.l.b16 %v2659
      %v2929 = vunpack.c.l.b16 %v2660
      %v2930 = vunpack.c.l.b16 %v2661
      %v2931 = vunpack.c.l.b16 %v2662
      %v2932 = vunpack.c.l.b16 %v2663
      %v2933 = vunpack.c.l.b16 %v2664
      %v2934 = vunpack.c.l.b16 %v2665
      %v2935 = vunpack.c.l.b16 %v2666
      %v2936 = vunpack.c.l.b16 %v2667
      %v2937 = vunpack.c.l.b16 %v2668
      %v2938 = vunpack.c.l.b16 %v2669
      %v2939 = vunpack.c.l.b16 %v2670
      %v2940 = vunpack.c.l.b16 %v2671
      %v2941 = vunpack.c.l.b16 %v2672
      %v2942 = vunpack.c.l.b16 %v2673
      %v2943 = vunpack.c.l.b16 %v2674
      %v2944 = vunpack.c.l.b16 %v2675
      %v2945 = vunpack.c.l.b16 %v2676
      %v2946 = vunpack.c.l.b16 %v2677
      %v2947 = vunpack.c.l.b16 %v2678
      %v2948 = vunpack.c.l.b16 %v2679
      %v2949 = vunpack.c.l.b16 %v2680
      %v2950 = vunpack.c.l.b16 %v2681
      %v2951 = vunpack.c.l.b16 %v2682
      %v2952 = vunpack.c.l.b16 %v2683
      %v2953 = vunpack.c.l.b16 %v2684
      %v2954 = vunpack.c.l.b16 %v2685
      %v2955 = vunpack.c.l.b16 %v2686
      %v2956 = vunpack.c.l.b16 %v2687
      %v2957 = vunpack.c.l.b16 %v2688
      %v2958 = vunpack.c.l.b16 %v2689
      %v2959 = vunpack.c.l.b16 %v2690
      %v2960 = vunpack.c.l.b16 %v2691
      %v2961 = vunpack.c.l.b16 %v2692
      %v2962 = vunpack.c.l.b16 %v2693
      %v2963 = vunpack.c.l.b16 %v2694
      %v2964 = vunpack.c.l.b16 %v2695
      %v2965 = vunpack.c.l.b16 %v2696
      %v2966 = vunpack.c.l.b16 %v2697
      %v2967 = vunpack.c.l.b16 %v2698
      %v2968 = vunpack.c.l.b16 %v2699
      %v2969 = vunpack.c.l.b16 %v2700
      %v2970 = vunpack.c.l.b16 %v2701
      %v2971 = vunpack.c.l.b16 %v2702
      %v2972 = vunpack.c.l.b16 %v2703
      %v2973 = vunpack.c.l.b16 %v2704
      %v2974 = vunpack.c.l.b16 %v2705
      %v2975 = vunpack.c.l.b16 %v2706
      %v2976 = vunpack.c.l.b16 %v2707
      %v2977 = vunpack.c.l.b16 %v2708
      %v2978 = vunpack.c.l.b16 %v2709
      %v2979 = vunpack.c.l.b16 %v2710
      %v2980 = vunpack.c.l.b16 %v2711
      %v2981 = vunpack.c.l.b16 %v2712
      %v2982 = vunpack.c.l.b16 %v2713
      %v2983 = vunpack.c.l.b16 %v2714
      %v2984 = vunpack.c.l.b16 %v2715
      %v2985 = vunpack.c.l.b16 %v2716
      %v2986 = vunpack.c.l.b16 %v2717
      %v2987 = vunpack.c.l.b16 %v2718
      %v2988 = vunpack.c.l.b16 %v2719
      %v2989 = vunpack.c.l.b16 %v2720
      %v2990 = vunpack.c.l.b16 %v2721
      %v2991 = vunpack.c.l.b16 %v2722
      %v2992 = vunpack.c.l.b16 %v2723
      %v2993 = vunpack.c.l.b16 %v2724
      %v2994 = vunpack.c.l.b16 %v2725
      %v2995 = vunpack.c.l.b16 %v2726
      %v2996 = vunpack.c.l.b16 %v2727
      %v2997 = vunpack.c.l.b16 %v2728
      %v2998 = vunpack.c.l.b16 %v2729
      %v2999 = vunpack.c.l.b16 %v2730
      %v3000 = vunpack.c.l.b16 %v2731
      %v3001 = vunpack.c.l.b16 %v2732
      %v3002 = vunpack.c.l.b16 %v2733
      %v3003 = vunpack.c.l.b16 %v2734
      %v3004 = vunpack.c.l.b16 %v2735
      %v3005 = vunpack.c.l.b16 %v2736
      %v3006 = vunpack.c.l.b16 %v2737
      %v3007 = vunpack.c.l.b16 %v2738
      %v3008 = vunpack.c.l.b16 %v2739
      %v3009 = vunpack.c.l.b16 %v2740
      %v3010 = vunpack.c.l.b16 %v2741
      %v3011 = vunpack.c.l.b16 %v2742
      %v3012 = vunpack.c.l.b16 %v2743
      %v3013 = vunpack.c.l.b16 %v2744
      %v3014 = vunpack.c.l.b16 %v2745
      %v3015 = vunpack.c.l.b16 %v2746
      %v3016 = vunpack.c.l.b16 %v2747
      %v3017 = vunpack.c.l.b16 %v2748
      %v3018 = vunpack.c.l.b16 %v2749
      %v3019 = vunpack.c.l.b16 %v2750
      %v3020 = vunpack.c.l.b16 %v2751
      %v3021 = vpack.c.b16 %v2889, %v2888
      %v3022 = vpack.c.b16 %v2891, %v2890
      %v3023 = vpack.c.b16 %v2893, %v2892
      %v3024 = vpack.c.b16 %v2895, %v2894
      %v3025 = vpack.c.b16 %v2897, %v2896
      %v3026 = vpack.c.b16 %v2899, %v2898
      %v3027 = vpack.c.b16 %v2901, %v2900
      %v3028 = vpack.c.b16 %v2903, %v2902
      %v3029 = vpack.c.b16 %v2905, %v2904
      %v3030 = vpack.c.b16 %v2907, %v2906
      %v3031 = vpack.c.b16 %v2909, %v2908
      %v3032 = vpack.c.b16 %v2911, %v2910
      %v3033 = vpack.c.b16 %v2913, %v2912
      %v3034 = vpack.c.b16 %v2915, %v2914
      %v3035 = vpack.c.b16 %v2917, %v2916
      %v3036 = vpack.c.b16 %v2919, %v2918
      %v3037 = vpack.c.b16 %v2921, %v2920
      %v3038 = vpack.c.b16 %v2923, %v2922
      %v3039 = vpack.c.b16 %v2925, %v2924
      %v3040 = vpack.c.b16 %v2927, %v2926
      %v3041 = vpack.c.b16 %v2929, %v2928
      %v3042 = vpack.c.b16 %v2931, %v2930
      %v3043 = vpack.c.b16 %v2933, %v2932
      %v3044 = vpack.c.b16 %v2935, %v2934
      %v3045 = vpack.c.b16 %v2937, %v2936
      %v3046 = vpack.c.b16 %v2939, %v2938
      %v3047 = vpack.c.b16 %v2941, %v2940
      %v3048 = vpack.c.b16 %v2943, %v2942
      %v3049 = vpack.c.b16 %v2945, %v2944
      %v3050 = vpack.c.b16 %v2947, %v2946
      %v3051 = vpack.c.b16 %v2949, %v2948
      %v3052 = vpack.c.b16 %v2951, %v2950
      %v3053 = vpack.c.b16 %v2953, %v2952
      %v3054 = vpack.c.b16 %v2955, %v2954
      %v3055 = vpack.c.b16 %v2957, %v2956
      %v3056 = vpack.c.b16 %v2959, %v2958
      %v3057 = vpack.c.b16 %v2961, %v2960
      %v3058 = vpack.c.b16 %v2963, %v2962
      %v3059 = vpack.c.b16 %v2965, %v2964
      %v3060 = vpack.c.b16 %v2967, %v2966
      %v3061 = vpack.c.b16 %v2969, %v2968
      %v3062 = vpack.c.b16 %v2971, %v2970
      %v3063 = vpack.c.b16 %v2973, %v2972
      %v3064 = vpack.c.b16 %v2975, %v2974
      %v3065 = vpack.c.b16 %v2977, %v2976
      %v3066 = vpack.c.b16 %v2979, %v2978
      %v3067 = vpack.c.b16 %v2981, %v2980
      %v3068 = vpack.c.b16 %v2983, %v2982
      %v3069 = vpack.c.b16 %v2985, %v2984
      %v3070 = vpack.c.b16 %v2987, %v2986
      %v3071 = vpack.c.b16 %v2989, %v2988
      %v3072 = vpack.c.b16 %v2991, %v2990
      %v3073 = vpack.c.b16 %v2993, %v2992
      %v3074 = vpack.c.b16 %v2995, %v2994
      %v3075 = vpack.c.b16 %v2997, %v2996
      %v3076 = vpack.c.b16 %v2999, %v2998
      %v3077 = vpack.c.b16 %v3001, %v3000
      %v3078 = vpack.c.b16 %v3003, %v3002
      %v3079 = vpack.c.b16 %v3005, %v3004
      %v3080 = vpack.c.b16 %v3007, %v3006
      %v3081 = vpack.c.b16 %v3009, %v3008
      %v3082 = vpack.c.b16 %v3011, %v3010
      %v3083 = vpack.c.b16 %v3013, %v3012
      %v3084 = vpack.c.b16 %v3015, %v3014
      %v3085 = vpack.c.b16 %v3017, %v3016
      %v3086 = vpack.c.b16 %v3019, %v3018
      %v3087 = vpack.c.b16 %v3020, %v3020
      %v3089 = vshrl.u32 %v3021, 16
      %v3091 = vshll.u32 %v3021, 16
      %v3093 = vrot.slane %v3091, 1
      %v3094 = vor.u32 %v3089, %v3093
      %v3096 = vshll.u32 %v3022, 16
      %v3098 = vrot.slane %v3096, 1
      %v3099 = vsel %vm616, %v3094, %v3098
      %v3100 = vshrl.u32 %v3022, 16
      %v3102 = vor.u32 %v3100, %v3098
      %v3104 = vshll.u32 %v3023, 16
      %v3106 = vrot.slane %v3104, 1
      %v3107 = vsel %vm616, %v3102, %v3106
      %v3108 = vshrl.u32 %v3023, 16
      %v3110 = vor.u32 %v3108, %v3106
      %v3112 = vshll.u32 %v3024, 16
      %v3114 = vrot.slane %v3112, 1
      %v3115 = vsel %vm616, %v3110, %v3114
      %v3116 = vshrl.u32 %v3024, 16
      %v3118 = vor.u32 %v3116, %v3114
      %v3120 = vshll.u32 %v3025, 16
      %v3122 = vrot.slane %v3120, 1
      %v3123 = vsel %vm616, %v3118, %v3122
      %v3124 = vshrl.u32 %v3025, 16
      %v3126 = vor.u32 %v3124, %v3122
      %v3128 = vshll.u32 %v3026, 16
      %v3130 = vrot.slane %v3128, 1
      %v3131 = vsel %vm616, %v3126, %v3130
      %v3132 = vshrl.u32 %v3026, 16
      %v3134 = vor.u32 %v3132, %v3130
      %v3136 = vshll.u32 %v3027, 16
      %v3138 = vrot.slane %v3136, 1
      %v3139 = vsel %vm616, %v3134, %v3138
      %v3140 = vshrl.u32 %v3027, 16
      %v3142 = vor.u32 %v3140, %v3138
      %v3144 = vshll.u32 %v3028, 16
      %v3146 = vrot.slane %v3144, 1
      %v3147 = vsel %vm616, %v3142, %v3146
      %v3148 = vshrl.u32 %v3028, 16
      %v3150 = vor.u32 %v3148, %v3146
      %v3152 = vshll.u32 %v3029, 16
      %v3154 = vrot.slane %v3152, 1
      %v3155 = vsel %vm616, %v3150, %v3154
      %v3156 = vshrl.u32 %v3029, 16
      %v3158 = vor.u32 %v3156, %v3154
      %v3160 = vshll.u32 %v3030, 16
      %v3162 = vrot.slane %v3160, 1
      %v3163 = vsel %vm616, %v3158, %v3162
      %v3164 = vshrl.u32 %v3030, 16
      %v3166 = vor.u32 %v3164, %v3162
      %v3168 = vshll.u32 %v3031, 16
      %v3170 = vrot.slane %v3168, 1
      %v3171 = vsel %vm616, %v3166, %v3170
      %v3172 = vshrl.u32 %v3031, 16
      %v3174 = vor.u32 %v3172, %v3170
      %v3176 = vshll.u32 %v3032, 16
      %v3178 = vrot.slane %v3176, 1
      %v3179 = vsel %vm616, %v3174, %v3178
      %v3180 = vshrl.u32 %v3032, 16
      %v3182 = vor.u32 %v3180, %v3178
      %v3184 = vshll.u32 %v3033, 16
      %v3186 = vrot.slane %v3184, 1
      %v3187 = vsel %vm616, %v3182, %v3186
      %v3188 = vshrl.u32 %v3033, 16
      %v3190 = vor.u32 %v3188, %v3186
      %v3192 = vshll.u32 %v3034, 16
      %v3194 = vrot.slane %v3192, 1
      %v3195 = vsel %vm616, %v3190, %v3194
      %v3196 = vshrl.u32 %v3034, 16
      %v3198 = vor.u32 %v3196, %v3194
      %v3200 = vshll.u32 %v3035, 16
      %v3202 = vrot.slane %v3200, 1
      %v3203 = vsel %vm616, %v3198, %v3202
      %v3204 = vshrl.u32 %v3035, 16
      %v3206 = vor.u32 %v3204, %v3202
      %v3208 = vshll.u32 %v3036, 16
      %v3210 = vrot.slane %v3208, 1
      %v3211 = vsel %vm616, %v3206, %v3210
      %v3212 = vshrl.u32 %v3036, 16
      %v3214 = vor.u32 %v3212, %v3210
      %v3216 = vshll.u32 %v3037, 16
      %v3218 = vrot.slane %v3216, 1
      %v3219 = vsel %vm616, %v3214, %v3218
      %v3220 = vshrl.u32 %v3037, 16
      %v3222 = vor.u32 %v3220, %v3218
      %v3224 = vshll.u32 %v3038, 16
      %v3226 = vrot.slane %v3224, 1
      %v3227 = vsel %vm616, %v3222, %v3226
      %v3228 = vshrl.u32 %v3038, 16
      %v3230 = vor.u32 %v3228, %v3226
      %v3232 = vshll.u32 %v3039, 16
      %v3234 = vrot.slane %v3232, 1
      %v3235 = vsel %vm616, %v3230, %v3234
      %v3236 = vshrl.u32 %v3039, 16
      %v3238 = vor.u32 %v3236, %v3234
      %v3240 = vshll.u32 %v3040, 16
      %v3242 = vrot.slane %v3240, 1
      %v3243 = vsel %vm616, %v3238, %v3242
      %v3244 = vshrl.u32 %v3040, 16
      %v3246 = vor.u32 %v3244, %v3242
      %v3248 = vshll.u32 %v3041, 16
      %v3250 = vrot.slane %v3248, 1
      %v3251 = vsel %vm616, %v3246, %v3250
      %v3252 = vshrl.u32 %v3041, 16
      %v3254 = vor.u32 %v3252, %v3250
      %v3256 = vshll.u32 %v3042, 16
      %v3258 = vrot.slane %v3256, 1
      %v3259 = vsel %vm616, %v3254, %v3258
      %v3260 = vshrl.u32 %v3042, 16
      %v3262 = vor.u32 %v3260, %v3258
      %v3264 = vshll.u32 %v3043, 16
      %v3266 = vrot.slane %v3264, 1
      %v3267 = vsel %vm616, %v3262, %v3266
      %v3268 = vshrl.u32 %v3043, 16
      %v3270 = vor.u32 %v3268, %v3266
      %v3272 = vshll.u32 %v3044, 16
      %v3274 = vrot.slane %v3272, 1
      %v3275 = vsel %vm616, %v3270, %v3274
      %v3276 = vshrl.u32 %v3044, 16
      %v3278 = vor.u32 %v3276, %v3274
      %v3280 = vshll.u32 %v3045, 16
      %v3282 = vrot.slane %v3280, 1
      %v3283 = vsel %vm616, %v3278, %v3282
      %v3284 = vshrl.u32 %v3045, 16
      %v3286 = vor.u32 %v3284, %v3282
      %v3288 = vshll.u32 %v3046, 16
      %v3290 = vrot.slane %v3288, 1
      %v3291 = vsel %vm616, %v3286, %v3290
      %v3292 = vshrl.u32 %v3046, 16
      %v3294 = vor.u32 %v3292, %v3290
      %v3296 = vshll.u32 %v3047, 16
      %v3298 = vrot.slane %v3296, 1
      %v3299 = vsel %vm616, %v3294, %v3298
      %v3300 = vshrl.u32 %v3047, 16
      %v3302 = vor.u32 %v3300, %v3298
      %v3304 = vshll.u32 %v3048, 16
      %v3306 = vrot.slane %v3304, 1
      %v3307 = vsel %vm616, %v3302, %v3306
      %v3308 = vshrl.u32 %v3048, 16
      %v3310 = vor.u32 %v3308, %v3306
      %v3312 = vshll.u32 %v3049, 16
      %v3314 = vrot.slane %v3312, 1
      %v3315 = vsel %vm616, %v3310, %v3314
      %v3316 = vshrl.u32 %v3049, 16
      %v3318 = vor.u32 %v3316, %v3314
      %v3320 = vshll.u32 %v3050, 16
      %v3322 = vrot.slane %v3320, 1
      %v3323 = vsel %vm616, %v3318, %v3322
      %v3324 = vshrl.u32 %v3050, 16
      %v3326 = vor.u32 %v3324, %v3322
      %v3328 = vshll.u32 %v3051, 16
      %v3330 = vrot.slane %v3328, 1
      %v3331 = vsel %vm616, %v3326, %v3330
      %v3332 = vshrl.u32 %v3051, 16
      %v3334 = vor.u32 %v3332, %v3330
      %v3336 = vshll.u32 %v3052, 16
      %v3338 = vrot.slane %v3336, 1
      %v3339 = vsel %vm616, %v3334, %v3338
      %v3340 = vshrl.u32 %v3052, 16
      %v3342 = vor.u32 %v3340, %v3338
      %v3344 = vshll.u32 %v3053, 16
      %v3346 = vrot.slane %v3344, 1
      %v3347 = vsel %vm616, %v3342, %v3346
      %v3348 = vshrl.u32 %v3053, 16
      %v3350 = vor.u32 %v3348, %v3346
      %v3352 = vshll.u32 %v3054, 16
      %v3354 = vrot.slane %v3352, 1
      %v3355 = vsel %vm616, %v3350, %v3354
      %v3356 = vshrl.u32 %v3054, 16
      %v3358 = vor.u32 %v3356, %v3354
      %v3360 = vshll.u32 %v3055, 16
      %v3362 = vrot.slane %v3360, 1
      %v3363 = vsel %vm616, %v3358, %v3362
      %v3364 = vshrl.u32 %v3055, 16
      %v3366 = vor.u32 %v3364, %v3362
      %v3368 = vshll.u32 %v3056, 16
      %v3370 = vrot.slane %v3368, 1
      %v3371 = vsel %vm616, %v3366, %v3370
      %v3372 = vshrl.u32 %v3056, 16
      %v3374 = vor.u32 %v3372, %v3370
      %v3376 = vshll.u32 %v3057, 16
      %v3378 = vrot.slane %v3376, 1
      %v3379 = vsel %vm616, %v3374, %v3378
      %v3380 = vshrl.u32 %v3057, 16
      %v3382 = vor.u32 %v3380, %v3378
      %v3384 = vshll.u32 %v3058, 16
      %v3386 = vrot.slane %v3384, 1
      %v3387 = vsel %vm616, %v3382, %v3386
      %v3388 = vshrl.u32 %v3058, 16
      %v3390 = vor.u32 %v3388, %v3386
      %v3392 = vshll.u32 %v3059, 16
      %v3394 = vrot.slane %v3392, 1
      %v3395 = vsel %vm616, %v3390, %v3394
      %v3396 = vshrl.u32 %v3059, 16
      %v3398 = vor.u32 %v3396, %v3394
      %v3400 = vshll.u32 %v3060, 16
      %v3402 = vrot.slane %v3400, 1
      %v3403 = vsel %vm616, %v3398, %v3402
      %v3404 = vshrl.u32 %v3060, 16
      %v3406 = vor.u32 %v3404, %v3402
      %v3408 = vshll.u32 %v3061, 16
      %v3410 = vrot.slane %v3408, 1
      %v3411 = vsel %vm616, %v3406, %v3410
      %v3412 = vshrl.u32 %v3061, 16
      %v3414 = vor.u32 %v3412, %v3410
      %v3416 = vshll.u32 %v3062, 16
      %v3418 = vrot.slane %v3416, 1
      %v3419 = vsel %vm616, %v3414, %v3418
      %v3420 = vshrl.u32 %v3062, 16
      %v3422 = vor.u32 %v3420, %v3418
      %v3424 = vshll.u32 %v3063, 16
      %v3426 = vrot.slane %v3424, 1
      %v3427 = vsel %vm616, %v3422, %v3426
      %v3428 = vshrl.u32 %v3063, 16
      %v3430 = vor.u32 %v3428, %v3426
      %v3432 = vshll.u32 %v3064, 16
      %v3434 = vrot.slane %v3432, 1
      %v3435 = vsel %vm616, %v3430, %v3434
      %v3436 = vshrl.u32 %v3064, 16
      %v3438 = vor.u32 %v3436, %v3434
      %v3440 = vshll.u32 %v3065, 16
      %v3442 = vrot.slane %v3440, 1
      %v3443 = vsel %vm616, %v3438, %v3442
      %v3444 = vshrl.u32 %v3065, 16
      %v3446 = vor.u32 %v3444, %v3442
      %v3448 = vshll.u32 %v3066, 16
      %v3450 = vrot.slane %v3448, 1
      %v3451 = vsel %vm616, %v3446, %v3450
      %v3452 = vshrl.u32 %v3066, 16
      %v3454 = vor.u32 %v3452, %v3450
      %v3456 = vshll.u32 %v3067, 16
      %v3458 = vrot.slane %v3456, 1
      %v3459 = vsel %vm616, %v3454, %v3458
      %v3460 = vshrl.u32 %v3067, 16
      %v3462 = vor.u32 %v3460, %v3458
      %v3464 = vshll.u32 %v3068, 16
      %v3466 = vrot.slane %v3464, 1
      %v3467 = vsel %vm616, %v3462, %v3466
      %v3468 = vshrl.u32 %v3068, 16
      %v3470 = vor.u32 %v3468, %v3466
      %v3472 = vshll.u32 %v3069, 16
      %v3474 = vrot.slane %v3472, 1
      %v3475 = vsel %vm616, %v3470, %v3474
      %v3476 = vshrl.u32 %v3069, 16
      %v3478 = vor.u32 %v3476, %v3474
      %v3480 = vshll.u32 %v3070, 16
      %v3482 = vrot.slane %v3480, 1
      %v3483 = vsel %vm616, %v3478, %v3482
      %v3484 = vshrl.u32 %v3070, 16
      %v3486 = vor.u32 %v3484, %v3482
      %v3488 = vshll.u32 %v3071, 16
      %v3490 = vrot.slane %v3488, 1
      %v3491 = vsel %vm616, %v3486, %v3490
      %v3492 = vshrl.u32 %v3071, 16
      %v3494 = vor.u32 %v3492, %v3490
      %v3496 = vshll.u32 %v3072, 16
      %v3498 = vrot.slane %v3496, 1
      %v3499 = vsel %vm616, %v3494, %v3498
      %v3500 = vshrl.u32 %v3072, 16
      %v3502 = vor.u32 %v3500, %v3498
      %v3504 = vshll.u32 %v3073, 16
      %v3506 = vrot.slane %v3504, 1
      %v3507 = vsel %vm616, %v3502, %v3506
      %v3508 = vshrl.u32 %v3073, 16
      %v3510 = vor.u32 %v3508, %v3506
      %v3512 = vshll.u32 %v3074, 16
      %v3514 = vrot.slane %v3512, 1
      %v3515 = vsel %vm616, %v3510, %v3514
      %v3516 = vshrl.u32 %v3074, 16
      %v3518 = vor.u32 %v3516, %v3514
      %v3520 = vshll.u32 %v3075, 16
      %v3522 = vrot.slane %v3520, 1
      %v3523 = vsel %vm616, %v3518, %v3522
      %v3524 = vshrl.u32 %v3075, 16
      %v3526 = vor.u32 %v3524, %v3522
      %v3528 = vshll.u32 %v3076, 16
      %v3530 = vrot.slane %v3528, 1
      %v3531 = vsel %vm616, %v3526, %v3530
      %v3532 = vshrl.u32 %v3076, 16
      %v3534 = vor.u32 %v3532, %v3530
      %v3536 = vshll.u32 %v3077, 16
      %v3538 = vrot.slane %v3536, 1
      %v3539 = vsel %vm616, %v3534, %v3538
      %v3540 = vshrl.u32 %v3077, 16
      %v3542 = vor.u32 %v3540, %v3538
      %v3544 = vshll.u32 %v3078, 16
      %v3546 = vrot.slane %v3544, 1
      %v3547 = vsel %vm616, %v3542, %v3546
      %v3548 = vshrl.u32 %v3078, 16
      %v3550 = vor.u32 %v3548, %v3546
      %v3552 = vshll.u32 %v3079, 16
      %v3554 = vrot.slane %v3552, 1
      %v3555 = vsel %vm616, %v3550, %v3554
      %v3556 = vshrl.u32 %v3079, 16
      %v3558 = vor.u32 %v3556, %v3554
      %v3560 = vshll.u32 %v3080, 16
      %v3562 = vrot.slane %v3560, 1
      %v3563 = vsel %vm616, %v3558, %v3562
      %v3564 = vshrl.u32 %v3080, 16
      %v3566 = vor.u32 %v3564, %v3562
      %v3568 = vshll.u32 %v3081, 16
      %v3570 = vrot.slane %v3568, 1
      %v3571 = vsel %vm616, %v3566, %v3570
      %v3572 = vshrl.u32 %v3081, 16
      %v3574 = vor.u32 %v3572, %v3570
      %v3576 = vshll.u32 %v3082, 16
      %v3578 = vrot.slane %v3576, 1
      %v3579 = vsel %vm616, %v3574, %v3578
      %v3580 = vshrl.u32 %v3082, 16
      %v3582 = vor.u32 %v3580, %v3578
      %v3584 = vshll.u32 %v3083, 16
      %v3586 = vrot.slane %v3584, 1
      %v3587 = vsel %vm616, %v3582, %v3586
      %v3588 = vshrl.u32 %v3083, 16
      %v3590 = vor.u32 %v3588, %v3586
      %v3592 = vshll.u32 %v3084, 16
      %v3594 = vrot.slane %v3592, 1
      %v3595 = vsel %vm616, %v3590, %v3594
      %v3596 = vshrl.u32 %v3084, 16
      %v3598 = vor.u32 %v3596, %v3594
      %v3600 = vshll.u32 %v3085, 16
      %v3602 = vrot.slane %v3600, 1
      %v3603 = vsel %vm616, %v3598, %v3602
      %v3604 = vshrl.u32 %v3085, 16
      %v3606 = vor.u32 %v3604, %v3602
      %v3608 = vshll.u32 %v3086, 16
      %v3610 = vrot.slane %v3608, 1
      %v3611 = vsel %vm616, %v3606, %v3610
      %v3612 = vshrl.u32 %v3086, 16
      %v3614 = vor.u32 %v3612, %v3610
      %v3616 = vshll.u32 %v3087, 16
      %v3618 = vrot.slane %v3616, 1
      %v3619 = vsel %vm616, %v3614, %v3618
      %v3622 = vunpack.c.l.b16 %v2753
      %v3623 = vunpack.c.l.b16 %v2754
      %v3624 = vpack.c.b16 %v3623, %v3622
      %v3626 = vsel %vm1154, %v3099, 0
      %v3629 = vsel %vm1154, %v3107, 0
      %v3632 = vsel %vm1154, %v3115, 0
      %v3635 = vsel %vm1154, %v3123, 0
      %v3638 = vsel %vm1154, %v3131, 0
      %v3641 = vsel %vm1154, %v3139, 0
      %v3644 = vsel %vm1154, %v3147, 0
      %v3647 = vsel %vm1154, %v3155, 0
      %v3650 = vsel %vm1154, %v3163, 0
      %v3653 = vsel %vm1154, %v3171, 0
      %v3656 = vsel %vm1154, %v3179, 0
      %v3659 = vsel %vm1154, %v3187, 0
      %v3662 = vsel %vm1154, %v3195, 0
      %v3665 = vsel %vm1154, %v3203, 0
      %v3668 = vsel %vm1154, %v3211, 0
      %v3671 = vsel %vm1154, %v3219, 0
      %v3674 = vsel %vm1154, %v3227, 0
      %v3677 = vsel %vm1154, %v3235, 0
      %v3680 = vsel %vm1154, %v3243, 0
      %v3683 = vsel %vm1154, %v3251, 0
      %v3686 = vsel %vm1154, %v3259, 0
      %v3689 = vsel %vm1154, %v3267, 0
      %v3692 = vsel %vm1154, %v3275, 0
      %v3695 = vsel %vm1154, %v3283, 0
      %v3698 = vsel %vm1154, %v3291, 0
      %v3701 = vsel %vm1154, %v3299, 0
      %v3704 = vsel %vm1154, %v3307, 0
      %v3707 = vsel %vm1154, %v3315, 0
      %v3710 = vsel %vm1154, %v3323, 0
      %v3713 = vsel %vm1154, %v3331, 0
      %v3716 = vsel %vm1154, %v3339, 0
      %v3719 = vsel %vm1154, %v3347, 0
      %v3722 = vsel %vm1154, %v3355, 0
      %v3725 = vsel %vm1154, %v3363, 0
      %v3728 = vsel %vm1154, %v3371, 0
      %v3731 = vsel %vm1154, %v3379, 0
      %v3734 = vsel %vm1154, %v3387, 0
      %v3737 = vsel %vm1154, %v3395, 0
      %v3740 = vsel %vm1154, %v3403, 0
      %v3743 = vsel %vm1154, %v3411, 0
      %v3746 = vsel %vm1154, %v3419, 0
      %v3749 = vsel %vm1154, %v3427, 0
      %v3752 = vsel %vm1154, %v3435, 0
      %v3755 = vsel %vm1154, %v3443, 0
      %v3758 = vsel %vm1154, %v3451, 0
      %v3761 = vsel %vm1154, %v3459, 0
      %v3764 = vsel %vm1154, %v3467, 0
      %v3767 = vsel %vm1154, %v3475, 0
      %v3770 = vsel %vm1154, %v3483, 0
      %v3773 = vsel %vm1154, %v3491, 0
      %v3776 = vsel %vm1154, %v3499, 0
      %v3779 = vsel %vm1154, %v3507, 0
      %v3782 = vsel %vm1154, %v3515, 0
      %v3785 = vsel %vm1154, %v3523, 0
      %v3788 = vsel %vm1154, %v3531, 0
      %v3791 = vsel %vm1154, %v3539, 0
      %v3794 = vsel %vm1154, %v3547, 0
      %v3797 = vsel %vm1154, %v3555, 0
      %v3800 = vsel %vm1154, %v3563, 0
      %v3803 = vsel %vm1154, %v3571, 0
      %v3806 = vsel %vm1154, %v3579, 0
      %v3809 = vsel %vm1154, %v3587, 0
      %v3812 = vsel %vm1154, %v3595, 0
      %v3815 = vsel %vm1154, %v3603, 0
      %v3818 = vsel %vm1154, %v3611, 0
      %v3821 = vsel %vm1154, %v3619, 0
      %v3824 = vsel %vm1353, %v3624, 0
      %3826 = vmatprep.subr.bf16.mxu0 0
      %3827 = vmatpush1.bf16.msra.mxu0 %v3824
      %3828 = vmatprep.subr.bf16.mxu0 0
      %3829 = vmatpush1.bf16.msra.mxu0 0
      %3830 = vmatprep.subr.bf16.mxu0 0
      %3831 = vmatpush1.bf16.msra.mxu0 0
      %3832 = vmatprep.subr.bf16.mxu0 0
      %3833 = vmatpush1.bf16.msra.mxu0 0
      %3834 = vmatprep.subr.bf16.mxu0 0
      %3835 = vmatpush1.bf16.msra.mxu0 0
      %3836 = vmatprep.subr.bf16.mxu0 0
      %3837 = vmatpush1.bf16.msra.mxu0 0
      %3838 = vmatprep.subr.bf16.mxu0 0
      %3839 = vmatpush1.bf16.msra.mxu0 0
      %3840 = vmatprep.subr.bf16.mxu0 0
      %3841 = vmatpush1.bf16.msra.mxu0 0
      %3842 = vmatprep.subr.bf16.mxu0 0
      %3843 = vmatpush1.bf16.msra.mxu0 0
      %3844 = vmatprep.subr.bf16.mxu0 0
      %3845 = vmatpush1.bf16.msra.mxu0 0
      %3846 = vmatprep.subr.bf16.mxu0 0
      %3847 = vmatpush1.bf16.msra.mxu0 0
      %3848 = vmatprep.subr.bf16.mxu0 0
      %3849 = vmatpush1.bf16.msra.mxu0 0
      %3850 = vmatprep.subr.bf16.mxu0 0
      %3851 = vmatpush1.bf16.msra.mxu0 0
      %3852 = vmatprep.subr.bf16.mxu0 0
      %3853 = vmatpush1.bf16.msra.mxu0 0
      %3854 = vmatprep.subr.bf16.mxu0 0
      %3855 = vmatpush1.bf16.msra.mxu0 0
      %3856 = vmatprep.subr.bf16.mxu0 0
      %3857 = vmatpush1.bf16.msra.mxu0 0
      %3858 = vmatprep.mubr.bf16.mxu0 0
      %3859 = vmatmul.mubr.bf16.gmra.mrb[0].mxu0 %v3626
      %v3860 = vpop.f32.mrb[0].mxu0
      %v3861 = vadd.f32 0.0, %v3860
      %v3862 = vpop.f32.mrb[0].mxu0
      %v3863 = vpop.f32.mrb[0].mxu0
      %v3864 = vadd.f32 0.0, %v3863
      %v3865 = vpop.f32.mrb[0].mxu0
      %3866 = vmatprep.mubr.bf16.mxu0 0
      %3867 = vmatmul.mubr.bf16.gmra.mrb[0].mxu0 %v3629
      %v3868 = vpop.f32.mrb[0].mxu0
      %v3869 = vadd.f32 0.0, %v3868
      %v3870 = vpop.f32.mrb[0].mxu0
      %v3871 = vpop.f32.mrb[0].mxu0
      %v3872 = vadd.f32 0.0, %v3871
      %v3873 = vpop.f32.mrb[0].mxu0
      %3874 = vmatprep.mubr.bf16.mxu0 0
      %3875 = vmatmul.mubr.bf16.gmra.mrb[0].mxu0 %v3632
      %v3876 = vpop.f32.mrb[0].mxu0
      %v3877 = vadd.f32 0.0, %v3876
      %v3878 = vpop.f32.mrb[0].mxu0
      %v3879 = vpop.f32.mrb[0].mxu0
      %v3880 = vadd.f32 0.0, %v3879
      %v3881 = vpop.f32.mrb[0].mxu0
      %3882 = vmatprep.mubr.bf16.mxu0 0
      %3883 = vmatmul.mubr.bf16.gmra.mrb[0].mxu0 %v3635
      %v3884 = vpop.f32.mrb[0].mxu0
      %v3885 = vadd.f32 0.0, %v3884
      %v3886 = vpop.f32.mrb[0].mxu0
      %v3887 = vpop.f32.mrb[0].mxu0
      %v3888 = vadd.f32 0.0, %v3887
      %v3889 = vpop.f32.mrb[0].mxu0
      %3890 = vmatprep.mubr.bf16.mxu0 0
      %3891 = vmatmul.mubr.bf16.gmra.mrb[0].mxu0 %v3638
      %v3892 = vpop.f32.mrb[0].mxu0
      %v3893 = vadd.f32 0.0, %v3892
      %v3894 = vpop.f32.mrb[0].mxu0
      %v3895 = vpop.f32.mrb[0].mxu0
      %v3896 = vadd.f32 0.0, %v3895
      %v3897 = vpop.f32.mrb[0].mxu0
      %3898 = vmatprep.mubr.bf16.mxu0 0
      %3899 = vmatmul.mubr.bf16.gmra.mrb[0].mxu0 %v3641
      %v3900 = vpop.f32.mrb[0].mxu0
      %v3901 = vadd.f32 0.0, %v3900
      %v3902 = vpop.f32.mrb[0].mxu0
      %v3903 = vpop.f32.mrb[0].mxu0
      %v3904 = vadd.f32 0.0, %v3903
      %v3905 = vpop.f32.mrb[0].mxu0
      %3906 = vmatprep.mubr.bf16.mxu0 0
      %3907 = vmatmul.mubr.bf16.gmra.mrb[0].mxu0 %v3644
      %v3908 = vpop.f32.mrb[0].mxu0
      %v3909 = vadd.f32 0.0, %v3908
      %v3910 = vpop.f32.mrb[0].mxu0
      %v3911 = vpop.f32.mrb[0].mxu0
      %v3912 = vadd.f32 0.0, %v3911
      %v3913 = vpop.f32.mrb[0].mxu0
      %3914 = vmatprep.mubr.bf16.mxu0 0
      %3915 = vmatmul.mubr.bf16.gmra.mrb[0].mxu0 %v3647
      %v3916 = vpop.f32.mrb[0].mxu0
      %v3917 = vadd.f32 0.0, %v3916
      %v3918 = vpop.f32.mrb[0].mxu0
      %v3919 = vpop.f32.mrb[0].mxu0
      %v3920 = vadd.f32 0.0, %v3919
      %v3921 = vpop.f32.mrb[0].mxu0
      %3922 = vmatprep.mubr.bf16.mxu0 0
      %3923 = vmatmul.mubr.bf16.gmra.mrb[0].mxu0 %v3650
      %v3924 = vpop.f32.mrb[0].mxu0
      %v3925 = vadd.f32 0.0, %v3924
      %v3926 = vpop.f32.mrb[0].mxu0
      %v3927 = vpop.f32.mrb[0].mxu0
      %v3928 = vadd.f32 0.0, %v3927
      %v3929 = vpop.f32.mrb[0].mxu0
      %3930 = vmatprep.mubr.bf16.mxu0 0
      %3931 = vmatmul.mubr.bf16.gmra.mrb[0].mxu0 %v3653
      %v3932 = vpop.f32.mrb[0].mxu0
      %v3933 = vadd.f32 0.0, %v3932
      %v3934 = vpop.f32.mrb[0].mxu0
      %v3935 = vpop.f32.mrb[0].mxu0
      %v3936 = vadd.f32 0.0, %v3935
      %v3937 = vpop.f32.mrb[0].mxu0
      %3938 = vmatprep.mubr.bf16.mxu0 0
      %3939 = vmatmul.mubr.bf16.gmra.mrb[0].mxu0 %v3656
      %v3940 = vpop.f32.mrb[0].mxu0
      %v3941 = vadd.f32 0.0, %v3940
      %v3942 = vpop.f32.mrb[0].mxu0
      %v3943 = vpop.f32.mrb[0].mxu0
      %v3944 = vadd.f32 0.0, %v3943
      %v3945 = vpop.f32.mrb[0].mxu0
      %3946 = vmatprep.mubr.bf16.mxu0 0
      %3947 = vmatmul.mubr.bf16.gmra.mrb[0].mxu0 %v3659
      %v3948 = vpop.f32.mrb[0].mxu0
      %v3949 = vadd.f32 0.0, %v3948
      %v3950 = vpop.f32.mrb[0].mxu0
      %v3951 = vpop.f32.mrb[0].mxu0
      %v3952 = vadd.f32 0.0, %v3951
      %v3953 = vpop.f32.mrb[0].mxu0
      %3954 = vmatprep.mubr.bf16.mxu0 0
      %3955 = vmatmul.mubr.bf16.gmra.mrb[0].mxu0 %v3662
      %v3956 = vpop.f32.mrb[0].mxu0
      %v3957 = vadd.f32 0.0, %v3956
      %v3958 = vpop.f32.mrb[0].mxu0
      %v3959 = vpop.f32.mrb[0].mxu0
      %v3960 = vadd.f32 0.0, %v3959
      %v3961 = vpop.f32.mrb[0].mxu0
      %3962 = vmatprep.mubr.bf16.mxu0 0
      %3963 = vmatmul.mubr.bf16.gmra.mrb[0].mxu0 %v3665
      %v3964 = vpop.f32.mrb[0].mxu0
      %v3965 = vadd.f32 0.0, %v3964
      %v3966 = vpop.f32.mrb[0].mxu0
      %v3967 = vpop.f32.mrb[0].mxu0
      %v3968 = vadd.f32 0.0, %v3967
      %v3969 = vpop.f32.mrb[0].mxu0
      %3970 = vmatprep.mubr.bf16.mxu0 0
      %3971 = vmatmul.mubr.bf16.gmra.mrb[0].mxu0 %v3668
      %v3972 = vpop.f32.mrb[0].mxu0
      %v3973 = vadd.f32 0.0, %v3972
      %v3974 = vpop.f32.mrb[0].mxu0
      %v3975 = vpop.f32.mrb[0].mxu0
      %v3976 = vadd.f32 0.0, %v3975
      %v3977 = vpop.f32.mrb[0].mxu0
      %3978 = vmatprep.mubr.bf16.mxu0 0
      %3979 = vmatmul.mubr.bf16.gmra.mrb[0].mxu0 %v3671
      %v3980 = vpop.f32.mrb[0].mxu0
      %v3981 = vadd.f32 0.0, %v3980
      %v3982 = vpop.f32.mrb[0].mxu0
      %v3983 = vpop.f32.mrb[0].mxu0
      %v3984 = vadd.f32 0.0, %v3983
      %v3985 = vpop.f32.mrb[0].mxu0
      %3986 = vmatprep.mubr.bf16.mxu0 0
      %3987 = vmatmul.mubr.bf16.gmra.mrb[0].mxu0 %v3674
      %v3988 = vpop.f32.mrb[0].mxu0
      %v3989 = vadd.f32 0.0, %v3988
      %v3990 = vpop.f32.mrb[0].mxu0
      %v3991 = vpop.f32.mrb[0].mxu0
      %v3992 = vadd.f32 0.0, %v3991
      %v3993 = vpop.f32.mrb[0].mxu0
      %3994 = vmatprep.mubr.bf16.mxu0 0
      %3995 = vmatmul.mubr.bf16.gmra.mrb[0].mxu0 %v3677
      %v3996 = vpop.f32.mrb[0].mxu0
      %v3997 = vadd.f32 0.0, %v3996
      %v3998 = vpop.f32.mrb[0].mxu0
      %v3999 = vpop.f32.mrb[0].mxu0
      %v4000 = vadd.f32 0.0, %v3999
      %v4001 = vpop.f32.mrb[0].mxu0
      %4002 = vmatprep.mubr.bf16.mxu0 0
      %4003 = vmatmul.mubr.bf16.gmra.mrb[0].mxu0 %v3680
      %v4004 = vpop.f32.mrb[0].mxu0
      %v4005 = vadd.f32 0.0, %v4004
      %v4006 = vpop.f32.mrb[0].mxu0
      %v4007 = vpop.f32.mrb[0].mxu0
      %v4008 = vadd.f32 0.0, %v4007
      %v4009 = vpop.f32.mrb[0].mxu0
      %4010 = vmatprep.mubr.bf16.mxu0 0
      %4011 = vmatmul.mubr.bf16.gmra.mrb[0].mxu0 %v3683
      %v4012 = vpop.f32.mrb[0].mxu0
      %v4013 = vadd.f32 0.0, %v4012
      %v4014 = vpop.f32.mrb[0].mxu0
      %v4015 = vpop.f32.mrb[0].mxu0
      %v4016 = vadd.f32 0.0, %v4015
      %v4017 = vpop.f32.mrb[0].mxu0
      %4018 = vmatprep.mubr.bf16.mxu0 0
      %4019 = vmatmul.mubr.bf16.gmra.mrb[0].mxu0 %v3686
      %v4020 = vpop.f32.mrb[0].mxu0
      %v4021 = vadd.f32 0.0, %v4020
      %v4022 = vpop.f32.mrb[0].mxu0
      %v4023 = vpop.f32.mrb[0].mxu0
      %v4024 = vadd.f32 0.0, %v4023
      %v4025 = vpop.f32.mrb[0].mxu0
      %4026 = vmatprep.mubr.bf16.mxu0 0
      %4027 = vmatmul.mubr.bf16.gmra.mrb[0].mxu0 %v3689
      %v4028 = vpop.f32.mrb[0].mxu0
      %v4029 = vadd.f32 0.0, %v4028
      %v4030 = vpop.f32.mrb[0].mxu0
      %v4031 = vpop.f32.mrb[0].mxu0
      %v4032 = vadd.f32 0.0, %v4031
      %v4033 = vpop.f32.mrb[0].mxu0
      %4034 = vmatprep.mubr.bf16.mxu0 0
      %4035 = vmatmul.mubr.bf16.gmra.mrb[0].mxu0 %v3692
      %v4036 = vpop.f32.mrb[0].mxu0
      %v4037 = vadd.f32 0.0, %v4036
      %v4038 = vpop.f32.mrb[0].mxu0
      %v4039 = vpop.f32.mrb[0].mxu0
      %v4040 = vadd.f32 0.0, %v4039
      %v4041 = vpop.f32.mrb[0].mxu0
      %4042 = vmatprep.mubr.bf16.mxu0 0
      %4043 = vmatmul.mubr.bf16.gmra.mrb[0].mxu0 %v3695
      %v4044 = vpop.f32.mrb[0].mxu0
      %v4045 = vadd.f32 0.0, %v4044
      %v4046 = vpop.f32.mrb[0].mxu0
      %v4047 = vpop.f32.mrb[0].mxu0
      %v4048 = vadd.f32 0.0, %v4047
      %v4049 = vpop.f32.mrb[0].mxu0
      %4050 = vmatprep.mubr.bf16.mxu0 0
      %4051 = vmatmul.mubr.bf16.gmra.mrb[0].mxu0 %v3698
      %v4052 = vpop.f32.mrb[0].mxu0
      %v4053 = vadd.f32 0.0, %v4052
      %v4054 = vpop.f32.mrb[0].mxu0
      %v4055 = vpop.f32.mrb[0].mxu0
      %v4056 = vadd.f32 0.0, %v4055
      %v4057 = vpop.f32.mrb[0].mxu0
      %4058 = vmatprep.mubr.bf16.mxu0 0
      %4059 = vmatmul.mubr.bf16.gmra.mrb[0].mxu0 %v3701
      %v4060 = vpop.f32.mrb[0].mxu0
      %v4061 = vadd.f32 0.0, %v4060
      %v4062 = vpop.f32.mrb[0].mxu0
      %v4063 = vpop.f32.mrb[0].mxu0
      %v4064 = vadd.f32 0.0, %v4063
      %v4065 = vpop.f32.mrb[0].mxu0
      %4066 = vmatprep.mubr.bf16.mxu0 0
      %4067 = vmatmul.mubr.bf16.gmra.mrb[0].mxu0 %v3704
      %v4068 = vpop.f32.mrb[0].mxu0
      %v4069 = vadd.f32 0.0, %v4068
      %v4070 = vpop.f32.mrb[0].mxu0
      %v4071 = vpop.f32.mrb[0].mxu0
      %v4072 = vadd.f32 0.0, %v4071
      %v4073 = vpop.f32.mrb[0].mxu0
      %4074 = vmatprep.mubr.bf16.mxu0 0
      %4075 = vmatmul.mubr.bf16.gmra.mrb[0].mxu0 %v3707
      %v4076 = vpop.f32.mrb[0].mxu0
      %v4077 = vadd.f32 0.0, %v4076
      %v4078 = vpop.f32.mrb[0].mxu0
      %v4079 = vpop.f32.mrb[0].mxu0
      %v4080 = vadd.f32 0.0, %v4079
      %v4081 = vpop.f32.mrb[0].mxu0
      %4082 = vmatprep.mubr.bf16.mxu0 0
      %4083 = vmatmul.mubr.bf16.gmra.mrb[0].mxu0 %v3710
      %v4084 = vpop.f32.mrb[0].mxu0
      %v4085 = vadd.f32 0.0, %v4084
      %v4086 = vpop.f32.mrb[0].mxu0
      %v4087 = vpop.f32.mrb[0].mxu0
      %v4088 = vadd.f32 0.0, %v4087
      %v4089 = vpop.f32.mrb[0].mxu0
      %4090 = vmatprep.mubr.bf16.mxu0 0
      %4091 = vmatmul.mubr.bf16.gmra.mrb[0].mxu0 %v3713
      %v4092 = vpop.f32.mrb[0].mxu0
      %v4093 = vadd.f32 0.0, %v4092
      %v4094 = vpop.f32.mrb[0].mxu0
      %v4095 = vpop.f32.mrb[0].mxu0
      %v4096 = vadd.f32 0.0, %v4095
      %v4097 = vpop.f32.mrb[0].mxu0
      %4098 = vmatprep.mubr.bf16.mxu0 0
      %4099 = vmatmul.mubr.bf16.gmra.mrb[0].mxu0 %v3716
      %v4100 = vpop.f32.mrb[0].mxu0
      %v4101 = vadd.f32 0.0, %v4100
      %v4102 = vpop.f32.mrb[0].mxu0
      %v4103 = vpop.f32.mrb[0].mxu0
      %v4104 = vadd.f32 0.0, %v4103
      %v4105 = vpop.f32.mrb[0].mxu0
      %4106 = vmatprep.mubr.bf16.mxu0 0
      %4107 = vmatmul.mubr.bf16.gmra.mrb[0].mxu0 %v3719
      %v4108 = vpop.f32.mrb[0].mxu0
      %v4109 = vadd.f32 0.0, %v4108
      %v4110 = vpop.f32.mrb[0].mxu0
      %v4111 = vpop.f32.mrb[0].mxu0
      %v4112 = vadd.f32 0.0, %v4111
      %v4113 = vpop.f32.mrb[0].mxu0
      %4114 = vmatprep.mubr.bf16.mxu0 0
      %4115 = vmatmul.mubr.bf16.gmra.mrb[0].mxu0 %v3722
      %v4116 = vpop.f32.mrb[0].mxu0
      %v4117 = vadd.f32 0.0, %v4116
      %v4118 = vpop.f32.mrb[0].mxu0
      %v4119 = vpop.f32.mrb[0].mxu0
      %v4120 = vadd.f32 0.0, %v4119
      %v4121 = vpop.f32.mrb[0].mxu0
      %4122 = vmatprep.mubr.bf16.mxu0 0
      %4123 = vmatmul.mubr.bf16.gmra.mrb[0].mxu0 %v3725
      %v4124 = vpop.f32.mrb[0].mxu0
      %v4125 = vadd.f32 0.0, %v4124
      %v4126 = vpop.f32.mrb[0].mxu0
      %v4127 = vpop.f32.mrb[0].mxu0
      %v4128 = vadd.f32 0.0, %v4127
      %v4129 = vpop.f32.mrb[0].mxu0
      %4130 = vmatprep.mubr.bf16.mxu0 0
      %4131 = vmatmul.mubr.bf16.gmra.mrb[0].mxu0 %v3728
      %v4132 = vpop.f32.mrb[0].mxu0
      %v4133 = vadd.f32 0.0, %v4132
      %v4134 = vpop.f32.mrb[0].mxu0
      %v4135 = vpop.f32.mrb[0].mxu0
      %v4136 = vadd.f32 0.0, %v4135
      %v4137 = vpop.f32.mrb[0].mxu0
      %4138 = vmatprep.mubr.bf16.mxu0 0
      %4139 = vmatmul.mubr.bf16.gmra.mrb[0].mxu0 %v3731
      %v4140 = vpop.f32.mrb[0].mxu0
      %v4141 = vadd.f32 0.0, %v4140
      %v4142 = vpop.f32.mrb[0].mxu0
      %v4143 = vpop.f32.mrb[0].mxu0
      %v4144 = vadd.f32 0.0, %v4143
      %v4145 = vpop.f32.mrb[0].mxu0
      %4146 = vmatprep.mubr.bf16.mxu0 0
      %4147 = vmatmul.mubr.bf16.gmra.mrb[0].mxu0 %v3734
      %v4148 = vpop.f32.mrb[0].mxu0
      %v4149 = vadd.f32 0.0, %v4148
      %v4150 = vpop.f32.mrb[0].mxu0
      %v4151 = vpop.f32.mrb[0].mxu0
      %v4152 = vadd.f32 0.0, %v4151
      %v4153 = vpop.f32.mrb[0].mxu0
      %4154 = vmatprep.mubr.bf16.mxu0 0
      %4155 = vmatmul.mubr.bf16.gmra.mrb[0].mxu0 %v3737
      %v4156 = vpop.f32.mrb[0].mxu0
      %v4157 = vadd.f32 0.0, %v4156
      %v4158 = vpop.f32.mrb[0].mxu0
      %v4159 = vpop.f32.mrb[0].mxu0
      %v4160 = vadd.f32 0.0, %v4159
      %v4161 = vpop.f32.mrb[0].mxu0
      %4162 = vmatprep.mubr.bf16.mxu0 0
      %4163 = vmatmul.mubr.bf16.gmra.mrb[0].mxu0 %v3740
      %v4164 = vpop.f32.mrb[0].mxu0
      %v4165 = vadd.f32 0.0, %v4164
      %v4166 = vpop.f32.mrb[0].mxu0
      %v4167 = vpop.f32.mrb[0].mxu0
      %v4168 = vadd.f32 0.0, %v4167
      %v4169 = vpop.f32.mrb[0].mxu0
      %4170 = vmatprep.mubr.bf16.mxu0 0
      %4171 = vmatmul.mubr.bf16.gmra.mrb[0].mxu0 %v3743
      %v4172 = vpop.f32.mrb[0].mxu0
      %v4173 = vadd.f32 0.0, %v4172
      %v4174 = vpop.f32.mrb[0].mxu0
      %v4175 = vpop.f32.mrb[0].mxu0
      %v4176 = vadd.f32 0.0, %v4175
      %v4177 = vpop.f32.mrb[0].mxu0
      %4178 = vmatprep.mubr.bf16.mxu0 0
      %4179 = vmatmul.mubr.bf16.gmra.mrb[0].mxu0 %v3746
      %v4180 = vpop.f32.mrb[0].mxu0
      %v4181 = vadd.f32 0.0, %v4180
      %v4182 = vpop.f32.mrb[0].mxu0
      %v4183 = vpop.f32.mrb[0].mxu0
      %v4184 = vadd.f32 0.0, %v4183
      %v4185 = vpop.f32.mrb[0].mxu0
      %4186 = vmatprep.mubr.bf16.mxu0 0
      %4187 = vmatmul.mubr.bf16.gmra.mrb[0].mxu0 %v3749
      %v4188 = vpop.f32.mrb[0].mxu0
      %v4189 = vadd.f32 0.0, %v4188
      %v4190 = vpop.f32.mrb[0].mxu0
      %v4191 = vpop.f32.mrb[0].mxu0
      %v4192 = vadd.f32 0.0, %v4191
      %v4193 = vpop.f32.mrb[0].mxu0
      %4194 = vmatprep.mubr.bf16.mxu0 0
      %4195 = vmatmul.mubr.bf16.gmra.mrb[0].mxu0 %v3752
      %v4196 = vpop.f32.mrb[0].mxu0
      %v4197 = vadd.f32 0.0, %v4196
      %v4198 = vpop.f32.mrb[0].mxu0
      %v4199 = vpop.f32.mrb[0].mxu0
      %v4200 = vadd.f32 0.0, %v4199
      %v4201 = vpop.f32.mrb[0].mxu0
      %4202 = vmatprep.mubr.bf16.mxu0 0
      %4203 = vmatmul.mubr.bf16.gmra.mrb[0].mxu0 %v3755
      %v4204 = vpop.f32.mrb[0].mxu0
      %v4205 = vadd.f32 0.0, %v4204
      %v4206 = vpop.f32.mrb[0].mxu0
      %v4207 = vpop.f32.mrb[0].mxu0
      %v4208 = vadd.f32 0.0, %v4207
      %v4209 = vpop.f32.mrb[0].mxu0
      %4210 = vmatprep.mubr.bf16.mxu0 0
      %4211 = vmatmul.mubr.bf16.gmra.mrb[0].mxu0 %v3758
      %v4212 = vpop.f32.mrb[0].mxu0
      %v4213 = vadd.f32 0.0, %v4212
      %v4214 = vpop.f32.mrb[0].mxu0
      %v4215 = vpop.f32.mrb[0].mxu0
      %v4216 = vadd.f32 0.0, %v4215
      %v4217 = vpop.f32.mrb[0].mxu0
      %4218 = vmatprep.mubr.bf16.mxu0 0
      %4219 = vmatmul.mubr.bf16.gmra.mrb[0].mxu0 %v3761
      %v4220 = vpop.f32.mrb[0].mxu0
      %v4221 = vadd.f32 0.0, %v4220
      %v4222 = vpop.f32.mrb[0].mxu0
      %v4223 = vpop.f32.mrb[0].mxu0
      %v4224 = vadd.f32 0.0, %v4223
      %v4225 = vpop.f32.mrb[0].mxu0
      %4226 = vmatprep.mubr.bf16.mxu0 0
      %4227 = vmatmul.mubr.bf16.gmra.mrb[0].mxu0 %v3764
      %v4228 = vpop.f32.mrb[0].mxu0
      %v4229 = vadd.f32 0.0, %v4228
      %v4230 = vpop.f32.mrb[0].mxu0
      %v4231 = vpop.f32.mrb[0].mxu0
      %v4232 = vadd.f32 0.0, %v4231
      %v4233 = vpop.f32.mrb[0].mxu0
      %4234 = vmatprep.mubr.bf16.mxu0 0
      %4235 = vmatmul.mubr.bf16.gmra.mrb[0].mxu0 %v3767
      %v4236 = vpop.f32.mrb[0].mxu0
      %v4237 = vadd.f32 0.0, %v4236
      %v4238 = vpop.f32.mrb[0].mxu0
      %v4239 = vpop.f32.mrb[0].mxu0
      %v4240 = vadd.f32 0.0, %v4239
      %v4241 = vpop.f32.mrb[0].mxu0
      %4242 = vmatprep.mubr.bf16.mxu0 0
      %4243 = vmatmul.mubr.bf16.gmra.mrb[0].mxu0 %v3770
      %v4244 = vpop.f32.mrb[0].mxu0
      %v4245 = vadd.f32 0.0, %v4244
      %v4246 = vpop.f32.mrb[0].mxu0
      %v4247 = vpop.f32.mrb[0].mxu0
      %v4248 = vadd.f32 0.0, %v4247
      %v4249 = vpop.f32.mrb[0].mxu0
      %4250 = vmatprep.mubr.bf16.mxu0 0
      %4251 = vmatmul.mubr.bf16.gmra.mrb[0].mxu0 %v3773
      %v4252 = vpop.f32.mrb[0].mxu0
      %v4253 = vadd.f32 0.0, %v4252
      %v4254 = vpop.f32.mrb[0].mxu0
      %v4255 = vpop.f32.mrb[0].mxu0
      %v4256 = vadd.f32 0.0, %v4255
      %v4257 = vpop.f32.mrb[0].mxu0
      %4258 = vmatprep.mubr.bf16.mxu0 0
      %4259 = vmatmul.mubr.bf16.gmra.mrb[0].mxu0 %v3776
      %v4260 = vpop.f32.mrb[0].mxu0
      %v4261 = vadd.f32 0.0, %v4260
      %v4262 = vpop.f32.mrb[0].mxu0
      %v4263 = vpop.f32.mrb[0].mxu0
      %v4264 = vadd.f32 0.0, %v4263
      %v4265 = vpop.f32.mrb[0].mxu0
      %4266 = vmatprep.mubr.bf16.mxu0 0
      %4267 = vmatmul.mubr.bf16.gmra.mrb[0].mxu0 %v3779
      %v4268 = vpop.f32.mrb[0].mxu0
      %v4269 = vadd.f32 0.0, %v4268
      %v4270 = vpop.f32.mrb[0].mxu0
      %v4271 = vpop.f32.mrb[0].mxu0
      %v4272 = vadd.f32 0.0, %v4271
      %v4273 = vpop.f32.mrb[0].mxu0
      %4274 = vmatprep.mubr.bf16.mxu0 0
      %4275 = vmatmul.mubr.bf16.gmra.mrb[0].mxu0 %v3782
      %v4276 = vpop.f32.mrb[0].mxu0
      %v4277 = vadd.f32 0.0, %v4276
      %v4278 = vpop.f32.mrb[0].mxu0
      %v4279 = vpop.f32.mrb[0].mxu0
      %v4280 = vadd.f32 0.0, %v4279
      %v4281 = vpop.f32.mrb[0].mxu0
      %4282 = vmatprep.mubr.bf16.mxu0 0
      %4283 = vmatmul.mubr.bf16.gmra.mrb[0].mxu0 %v3785
      %v4284 = vpop.f32.mrb[0].mxu0
      %v4285 = vadd.f32 0.0, %v4284
      %v4286 = vpop.f32.mrb[0].mxu0
      %v4287 = vpop.f32.mrb[0].mxu0
      %v4288 = vadd.f32 0.0, %v4287
      %v4289 = vpop.f32.mrb[0].mxu0
      %4290 = vmatprep.mubr.bf16.mxu0 0
      %4291 = vmatmul.mubr.bf16.gmra.mrb[0].mxu0 %v3788
      %v4292 = vpop.f32.mrb[0].mxu0
      %v4293 = vadd.f32 0.0, %v4292
      %v4294 = vpop.f32.mrb[0].mxu0
      %v4295 = vpop.f32.mrb[0].mxu0
      %v4296 = vadd.f32 0.0, %v4295
      %v4297 = vpop.f32.mrb[0].mxu0
      %4298 = vmatprep.mubr.bf16.mxu0 0
      %4299 = vmatmul.mubr.bf16.gmra.mrb[0].mxu0 %v3791
      %v4300 = vpop.f32.mrb[0].mxu0
      %v4301 = vadd.f32 0.0, %v4300
      %v4302 = vpop.f32.mrb[0].mxu0
      %v4303 = vpop.f32.mrb[0].mxu0
      %v4304 = vadd.f32 0.0, %v4303
      %v4305 = vpop.f32.mrb[0].mxu0
      %4306 = vmatprep.mubr.bf16.mxu0 0
      %4307 = vmatmul.mubr.bf16.gmra.mrb[0].mxu0 %v3794
      %v4308 = vpop.f32.mrb[0].mxu0
      %v4309 = vadd.f32 0.0, %v4308
      %v4310 = vpop.f32.mrb[0].mxu0
      %v4311 = vpop.f32.mrb[0].mxu0
      %v4312 = vadd.f32 0.0, %v4311
      %v4313 = vpop.f32.mrb[0].mxu0
      %4314 = vmatprep.mubr.bf16.mxu0 0
      %4315 = vmatmul.mubr.bf16.gmra.mrb[0].mxu0 %v3797
      %v4316 = vpop.f32.mrb[0].mxu0
      %v4317 = vadd.f32 0.0, %v4316
      %v4318 = vpop.f32.mrb[0].mxu0
      %v4319 = vpop.f32.mrb[0].mxu0
      %v4320 = vadd.f32 0.0, %v4319
      %v4321 = vpop.f32.mrb[0].mxu0
      %4322 = vmatprep.mubr.bf16.mxu0 0
      %4323 = vmatmul.mubr.bf16.gmra.mrb[0].mxu0 %v3800
      %v4324 = vpop.f32.mrb[0].mxu0
      %v4325 = vadd.f32 0.0, %v4324
      %v4326 = vpop.f32.mrb[0].mxu0
      %v4327 = vpop.f32.mrb[0].mxu0
      %v4328 = vadd.f32 0.0, %v4327
      %v4329 = vpop.f32.mrb[0].mxu0
      %4330 = vmatprep.mubr.bf16.mxu0 0
      %4331 = vmatmul.mubr.bf16.gmra.mrb[0].mxu0 %v3803
      %v4332 = vpop.f32.mrb[0].mxu0
      %v4333 = vadd.f32 0.0, %v4332
      %v4334 = vpop.f32.mrb[0].mxu0
      %v4335 = vpop.f32.mrb[0].mxu0
      %v4336 = vadd.f32 0.0, %v4335
      %v4337 = vpop.f32.mrb[0].mxu0
      %4338 = vmatprep.mubr.bf16.mxu0 0
      %4339 = vmatmul.mubr.bf16.gmra.mrb[0].mxu0 %v3806
      %v4340 = vpop.f32.mrb[0].mxu0
      %v4341 = vadd.f32 0.0, %v4340
      %v4342 = vpop.f32.mrb[0].mxu0
      %v4343 = vpop.f32.mrb[0].mxu0
      %v4344 = vadd.f32 0.0, %v4343
      %v4345 = vpop.f32.mrb[0].mxu0
      %4346 = vmatprep.mubr.bf16.mxu0 0
      %4347 = vmatmul.mubr.bf16.gmra.mrb[0].mxu0 %v3809
      %v4348 = vpop.f32.mrb[0].mxu0
      %v4349 = vadd.f32 0.0, %v4348
      %v4350 = vpop.f32.mrb[0].mxu0
      %v4351 = vpop.f32.mrb[0].mxu0
      %v4352 = vadd.f32 0.0, %v4351
      %v4353 = vpop.f32.mrb[0].mxu0
      %4354 = vmatprep.mubr.bf16.mxu0 0
      %4355 = vmatmul.mubr.bf16.gmra.mrb[0].mxu0 %v3812
      %v4356 = vpop.f32.mrb[0].mxu0
      %v4357 = vadd.f32 0.0, %v4356
      %v4358 = vpop.f32.mrb[0].mxu0
      %v4359 = vpop.f32.mrb[0].mxu0
      %v4360 = vadd.f32 0.0, %v4359
      %v4361 = vpop.f32.mrb[0].mxu0
      %4362 = vmatprep.mubr.bf16.mxu0 0
      %4363 = vmatmul.mubr.bf16.gmra.mrb[0].mxu0 %v3815
      %v4364 = vpop.f32.mrb[0].mxu0
      %v4365 = vadd.f32 0.0, %v4364
      %v4366 = vpop.f32.mrb[0].mxu0
      %v4367 = vpop.f32.mrb[0].mxu0
      %v4368 = vadd.f32 0.0, %v4367
      %v4369 = vpop.f32.mrb[0].mxu0
      %4370 = vmatprep.mubr.bf16.mxu0 0
      %4371 = vmatmul.mubr.bf16.gmra.mrb[0].mxu0 %v3818
      %v4372 = vpop.f32.mrb[0].mxu0
      %v4373 = vadd.f32 0.0, %v4372
      %v4374 = vpop.f32.mrb[0].mxu0
      %v4375 = vpop.f32.mrb[0].mxu0
      %v4376 = vadd.f32 0.0, %v4375
      %v4377 = vpop.f32.mrb[0].mxu0
      %4378 = vmatprep.mubr.bf16.mxu0 0
      %4379 = vmatmul.mubr.bf16.gmra.mrb[0].mxu0 %v3821
      %v4380 = vpop.f32.mrb[0].mxu0
      %v4381 = vadd.f32 0.0, %v4380
      %v4382 = vpop.f32.mrb[0].mxu0
      %v4383 = vpop.f32.mrb[0].mxu0
      %v4384 = vadd.f32 0.0, %v4383
      %v4385 = vpop.f32.mrb[0].mxu0
      %4386 = vdwg.mxu0
      %v4387 = vadd.f32 %v2093, %v3861
      %v4388 = vadd.f32 %v2096, %v3864
      %v4389 = vadd.f32 %v2101, %v3869
      %v4390 = vadd.f32 %v2104, %v3872
      %v4391 = vadd.f32 %v2109, %v3877
      %v4392 = vadd.f32 %v2112, %v3880
      %v4393 = vadd.f32 %v2117, %v3885
      %v4394 = vadd.f32 %v2120, %v3888
      %v4395 = vadd.f32 %v2125, %v3893
      %v4396 = vadd.f32 %v2128, %v3896
      %v4397 = vadd.f32 %v2133, %v3901
      %v4398 = vadd.f32 %v2136, %v3904
      %v4399 = vadd.f32 %v2141, %v3909
      %v4400 = vadd.f32 %v2144, %v3912
      %v4401 = vadd.f32 %v2149, %v3917
      %v4402 = vadd.f32 %v2152, %v3920
      %v4403 = vadd.f32 %v2157, %v3925
      %v4404 = vadd.f32 %v2160, %v3928
      %v4405 = vadd.f32 %v2165, %v3933
      %v4406 = vadd.f32 %v2168, %v3936
      %v4407 = vadd.f32 %v2173, %v3941
      %v4408 = vadd.f32 %v2176, %v3944
      %v4409 = vadd.f32 %v2181, %v3949
      %v4410 = vadd.f32 %v2184, %v3952
      %v4411 = vadd.f32 %v2189, %v3957
      %v4412 = vadd.f32 %v2192, %v3960
      %v4413 = vadd.f32 %v2197, %v3965
      %v4414 = vadd.f32 %v2200, %v3968
      %v4415 = vadd.f32 %v2205, %v3973
      %v4416 = vadd.f32 %v2208, %v3976
      %v4417 = vadd.f32 %v2213, %v3981
      %v4418 = vadd.f32 %v2216, %v3984
      %v4419 = vadd.f32 %v2221, %v3989
      %v4420 = vadd.f32 %v2224, %v3992
      %v4421 = vadd.f32 %v2229, %v3997
      %v4422 = vadd.f32 %v2232, %v4000
      %v4423 = vadd.f32 %v2237, %v4005
      %v4424 = vadd.f32 %v2240, %v4008
      %v4425 = vadd.f32 %v2245, %v4013
      %v4426 = vadd.f32 %v2248, %v4016
      %v4427 = vadd.f32 %v2253, %v4021
      %v4428 = vadd.f32 %v2256, %v4024
      %v4429 = vadd.f32 %v2261, %v4029
      %v4430 = vadd.f32 %v2264, %v4032
      %v4431 = vadd.f32 %v2269, %v4037
      %v4432 = vadd.f32 %v2272, %v4040
      %v4433 = vadd.f32 %v2277, %v4045
      %v4434 = vadd.f32 %v2280, %v4048
      %v4435 = vadd.f32 %v2285, %v4053
      %v4436 = vadd.f32 %v2288, %v4056
      %v4437 = vadd.f32 %v2293, %v4061
      %v4438 = vadd.f32 %v2296, %v4064
      %v4439 = vadd.f32 %v2301, %v4069
      %v4440 = vadd.f32 %v2304, %v4072
      %v4441 = vadd.f32 %v2309, %v4077
      %v4442 = vadd.f32 %v2312, %v4080
      %v4443 = vadd.f32 %v2317, %v4085
      %v4444 = vadd.f32 %v2320, %v4088
      %v4445 = vadd.f32 %v2325, %v4093
      %v4446 = vadd.f32 %v2328, %v4096
      %v4447 = vadd.f32 %v2333, %v4101
      %v4448 = vadd.f32 %v2336, %v4104
      %v4449 = vadd.f32 %v2341, %v4109
      %v4450 = vadd.f32 %v2344, %v4112
      %v4451 = vadd.f32 %v2349, %v4117
      %v4452 = vadd.f32 %v2352, %v4120
      %v4453 = vadd.f32 %v2357, %v4125
      %v4454 = vadd.f32 %v2360, %v4128
      %v4455 = vadd.f32 %v2365, %v4133
      %v4456 = vadd.f32 %v2368, %v4136
      %v4457 = vadd.f32 %v2373, %v4141
      %v4458 = vadd.f32 %v2376, %v4144
      %v4459 = vadd.f32 %v2381, %v4149
      %v4460 = vadd.f32 %v2384, %v4152
      %v4461 = vadd.f32 %v2389, %v4157
      %v4462 = vadd.f32 %v2392, %v4160
      %v4463 = vadd.f32 %v2397, %v4165
      %v4464 = vadd.f32 %v2400, %v4168
      %v4465 = vadd.f32 %v2405, %v4173
      %v4466 = vadd.f32 %v2408, %v4176
      %v4467 = vadd.f32 %v2413, %v4181
      %v4468 = vadd.f32 %v2416, %v4184
      %v4469 = vadd.f32 %v2421, %v4189
      %v4470 = vadd.f32 %v2424, %v4192
      %v4471 = vadd.f32 %v2429, %v4197
      %v4472 = vadd.f32 %v2432, %v4200
      %v4473 = vadd.f32 %v2437, %v4205
      %v4474 = vadd.f32 %v2440, %v4208
      %v4475 = vadd.f32 %v2445, %v4213
      %v4476 = vadd.f32 %v2448, %v4216
      %v4477 = vadd.f32 %v2453, %v4221
      %v4478 = vadd.f32 %v2456, %v4224
      %v4479 = vadd.f32 %v2461, %v4229
      %v4480 = vadd.f32 %v2464, %v4232
      %v4481 = vadd.f32 %v2469, %v4237
      %v4482 = vadd.f32 %v2472, %v4240
      %v4483 = vadd.f32 %v2477, %v4245
      %v4484 = vadd.f32 %v2480, %v4248
      %v4485 = vadd.f32 %v2485, %v4253
      %v4486 = vadd.f32 %v2488, %v4256
      %v4487 = vadd.f32 %v2493, %v4261
      %v4488 = vadd.f32 %v2496, %v4264
      %v4489 = vadd.f32 %v2501, %v4269
      %v4490 = vadd.f32 %v2504, %v4272
      %v4491 = vadd.f32 %v2509, %v4277
      %v4492 = vadd.f32 %v2512, %v4280
      %v4493 = vadd.f32 %v2517, %v4285
      %v4494 = vadd.f32 %v2520, %v4288
      %v4495 = vadd.f32 %v2525, %v4293
      %v4496 = vadd.f32 %v2528, %v4296
      %v4497 = vadd.f32 %v2533, %v4301
      %v4498 = vadd.f32 %v2536, %v4304
      %v4499 = vadd.f32 %v2541, %v4309
      %v4500 = vadd.f32 %v2544, %v4312
      %v4501 = vadd.f32 %v2549, %v4317
      %v4502 = vadd.f32 %v2552, %v4320
      %v4503 = vadd.f32 %v2557, %v4325
      %v4504 = vadd.f32 %v2560, %v4328
      %v4505 = vadd.f32 %v2565, %v4333
      %v4506 = vadd.f32 %v2568, %v4336
      %v4507 = vadd.f32 %v2573, %v4341
      %v4508 = vadd.f32 %v2576, %v4344
      %v4509 = vadd.f32 %v2581, %v4349
      %v4510 = vadd.f32 %v2584, %v4352
      %v4511 = vadd.f32 %v2589, %v4357
      %v4512 = vadd.f32 %v2592, %v4360
      %v4513 = vadd.f32 %v2597, %v4365
      %v4514 = vadd.f32 %v2600, %v4368
      %v4515 = vadd.f32 %v2605, %v4373
      %v4516 = vadd.f32 %v2608, %v4376
      %v4517 = vadd.f32 %v2613, %v4381
      %v4518 = vadd.f32 %v2616, %v4384
      %v4519 = vld [vmem:[%s138 + $0x10] sm:$0xe]
      %s4520 = scalar_lea.vmem %s1, 24
      %v4521 = vld [vmem:[%s4520] sm:$0xf]
      %v4522 = vld [vmem:[%s4520 + $0x4] sm:$0x3]
      %v4524 = vunpack.c.l.b16 %v4519
      %v4525 = vpack.c.b16 %v2889, %v4524
      %vm4526 = vcmask 1046528
      %v4527 = vrot.slane %v4525, 1
      %v4528 = vrot.slane %v3022, 1
      %v4529 = vsel %vm4526, %v4527, %v4528
      %v4530 = vrot.slane %v3023, 1
      %v4531 = vsel %vm4526, %v4528, %v4530
      %v4532 = vrot.slane %v3024, 1
      %v4533 = vsel %vm4526, %v4530, %v4532
      %v4534 = vrot.slane %v3025, 1
      %v4535 = vsel %vm4526, %v4532, %v4534
      %v4536 = vrot.slane %v3026, 1
      %v4537 = vsel %vm4526, %v4534, %v4536
      %v4538 = vrot.slane %v3027, 1
      %v4539 = vsel %vm4526, %v4536, %v4538
      %v4540 = vrot.slane %v3028, 1
      %v4541 = vsel %vm4526, %v4538, %v4540
      %v4542 = vrot.slane %v3029, 1
      %v4543 = vsel %vm4526, %v4540, %v4542
      %v4544 = vrot.slane %v3030, 1
      %v4545 = vsel %vm4526, %v4542, %v4544
      %v4546 = vrot.slane %v3031, 1
      %v4547 = vsel %vm4526, %v4544, %v4546
      %v4548 = vrot.slane %v3032, 1
      %v4549 = vsel %vm4526, %v4546, %v4548
      %v4550 = vrot.slane %v3033, 1
      %v4551 = vsel %vm4526, %v4548, %v4550
      %v4552 = vrot.slane %v3034, 1
      %v4553 = vsel %vm4526, %v4550, %v4552
      %v4554 = vrot.slane %v3035, 1
      %v4555 = vsel %vm4526, %v4552, %v4554
      %v4556 = vrot.slane %v3036, 1
      %v4557 = vsel %vm4526, %v4554, %v4556
      %v4558 = vrot.slane %v3037, 1
      %v4559 = vsel %vm4526, %v4556, %v4558
      %v4560 = vrot.slane %v3038, 1
      %v4561 = vsel %vm4526, %v4558, %v4560
      %v4562 = vrot.slane %v3039, 1
      %v4563 = vsel %vm4526, %v4560, %v4562
      %v4564 = vrot.slane %v3040, 1
      %v4565 = vsel %vm4526, %v4562, %v4564
      %v4566 = vrot.slane %v3041, 1
      %v4567 = vsel %vm4526, %v4564, %v4566
      %v4568 = vrot.slane %v3042, 1
      %v4569 = vsel %vm4526, %v4566, %v4568
      %v4570 = vrot.slane %v3043, 1
      %v4571 = vsel %vm4526, %v4568, %v4570
      %v4572 = vrot.slane %v3044, 1
      %v4573 = vsel %vm4526, %v4570, %v4572
      %v4574 = vrot.slane %v3045, 1
      %v4575 = vsel %vm4526, %v4572, %v4574
      %v4576 = vrot.slane %v3046, 1
      %v4577 = vsel %vm4526, %v4574, %v4576
      %v4578 = vrot.slane %v3047, 1
      %v4579 = vsel %vm4526, %v4576, %v4578
      %v4580 = vrot.slane %v3048, 1
      %v4581 = vsel %vm4526, %v4578, %v4580
      %v4582 = vrot.slane %v3049, 1
      %v4583 = vsel %vm4526, %v4580, %v4582
      %v4584 = vrot.slane %v3050, 1
      %v4585 = vsel %vm4526, %v4582, %v4584
      %v4586 = vrot.slane %v3051, 1
      %v4587 = vsel %vm4526, %v4584, %v4586
      %v4588 = vrot.slane %v3052, 1
      %v4589 = vsel %vm4526, %v4586, %v4588
      %v4590 = vrot.slane %v3053, 1
      %v4591 = vsel %vm4526, %v4588, %v4590
      %v4592 = vrot.slane %v3054, 1
      %v4593 = vsel %vm4526, %v4590, %v4592
      %v4594 = vrot.slane %v3055, 1
      %v4595 = vsel %vm4526, %v4592, %v4594
      %v4596 = vrot.slane %v3056, 1
      %v4597 = vsel %vm4526, %v4594, %v4596
      %v4598 = vrot.slane %v3057, 1
      %v4599 = vsel %vm4526, %v4596, %v4598
      %v4600 = vrot.slane %v3058, 1
      %v4601 = vsel %vm4526, %v4598, %v4600
      %v4602 = vrot.slane %v3059, 1
      %v4603 = vsel %vm4526, %v4600, %v4602
      %v4604 = vrot.slane %v3060, 1
      %v4605 = vsel %vm4526, %v4602, %v4604
      %v4606 = vrot.slane %v3061, 1
      %v4607 = vsel %vm4526, %v4604, %v4606
      %v4608 = vrot.slane %v3062, 1
      %v4609 = vsel %vm4526, %v4606, %v4608
      %v4610 = vrot.slane %v3063, 1
      %v4611 = vsel %vm4526, %v4608, %v4610
      %v4612 = vrot.slane %v3064, 1
      %v4613 = vsel %vm4526, %v4610, %v4612
      %v4614 = vrot.slane %v3065, 1
      %v4615 = vsel %vm4526, %v4612, %v4614
      %v4616 = vrot.slane %v3066, 1
      %v4617 = vsel %vm4526, %v4614, %v4616
      %v4618 = vrot.slane %v3067, 1
      %v4619 = vsel %vm4526, %v4616, %v4618
      %v4620 = vrot.slane %v3068, 1
      %v4621 = vsel %vm4526, %v4618, %v4620
      %v4622 = vrot.slane %v3069, 1
      %v4623 = vsel %vm4526, %v4620, %v4622
      %v4624 = vrot.slane %v3070, 1
      %v4625 = vsel %vm4526, %v4622, %v4624
      %v4626 = vrot.slane %v3071, 1
      %v4627 = vsel %vm4526, %v4624, %v4626
      %v4628 = vrot.slane %v3072, 1
      %v4629 = vsel %vm4526, %v4626, %v4628
      %v4630 = vrot.slane %v3073, 1
      %v4631 = vsel %vm4526, %v4628, %v4630
      %v4632 = vrot.slane %v3074, 1
      %v4633 = vsel %vm4526, %v4630, %v4632
      %v4634 = vrot.slane %v3075, 1
      %v4635 = vsel %vm4526, %v4632, %v4634
      %v4636 = vrot.slane %v3076, 1
      %v4637 = vsel %vm4526, %v4634, %v4636
      %v4638 = vrot.slane %v3077, 1
      %v4639 = vsel %vm4526, %v4636, %v4638
      %v4640 = vrot.slane %v3078, 1
      %v4641 = vsel %vm4526, %v4638, %v4640
      %v4642 = vrot.slane %v3079, 1
      %v4643 = vsel %vm4526, %v4640, %v4642
      %v4644 = vrot.slane %v3080, 1
      %v4645 = vsel %vm4526, %v4642, %v4644
      %v4646 = vrot.slane %v3081, 1
      %v4647 = vsel %vm4526, %v4644, %v4646
      %v4648 = vrot.slane %v3082, 1
      %v4649 = vsel %vm4526, %v4646, %v4648
      %v4650 = vrot.slane %v3083, 1
      %v4651 = vsel %vm4526, %v4648, %v4650
      %v4652 = vrot.slane %v3084, 1
      %v4653 = vsel %vm4526, %v4650, %v4652
      %v4654 = vrot.slane %v3085, 1
      %v4655 = vsel %vm4526, %v4652, %v4654
      %v4656 = vrot.slane %v3086, 1
      %v4657 = vsel %vm4526, %v4654, %v4656
      %v4658 = vrot.slane %v3087, 1
      %v4659 = vsel %vm4526, %v4656, %v4658
      %v4662 = vunpack.c.l.b16 %v4521
      %v4663 = vunpack.c.l.b16 %v4522
      %v4664 = vpack.c.b16 %v4663, %v4662
      %v4666 = vsel %vm1154, %v4529, 0
      %v4669 = vsel %vm1154, %v4531, 0
      %v4672 = vsel %vm1154, %v4533, 0
      %v4675 = vsel %vm1154, %v4535, 0
      %v4678 = vsel %vm1154, %v4537, 0
      %v4681 = vsel %vm1154, %v4539, 0
      %v4684 = vsel %vm1154, %v4541, 0
      %v4687 = vsel %vm1154, %v4543, 0
      %v4690 = vsel %vm1154, %v4545, 0
      %v4693 = vsel %vm1154, %v4547, 0
      %v4696 = vsel %vm1154, %v4549, 0
      %v4699 = vsel %vm1154, %v4551, 0
      %v4702 = vsel %vm1154, %v4553, 0
      %v4705 = vsel %vm1154, %v4555, 0
      %v4708 = vsel %vm1154, %v4557, 0
      %v4711 = vsel %vm1154, %v4559, 0
      %v4714 = vsel %vm1154, %v4561, 0
      %v4717 = vsel %vm1154, %v4563, 0
      %v4720 = vsel %vm1154, %v4565, 0
      %v4723 = vsel %vm1154, %v4567, 0
      %v4726 = vsel %vm1154, %v4569, 0
      %v4729 = vsel %vm1154, %v4571, 0
      %v4732 = vsel %vm1154, %v4573, 0
      %v4735 = vsel %vm1154, %v4575, 0
      %v4738 = vsel %vm1154, %v4577, 0
      %v4741 = vsel %vm1154, %v4579, 0
      %v4744 = vsel %vm1154, %v4581, 0
      %v4747 = vsel %vm1154, %v4583, 0
      %v4750 = vsel %vm1154, %v4585, 0
      %v4753 = vsel %vm1154, %v4587, 0
      %v4756 = vsel %vm1154, %v4589, 0
      %v4759 = vsel %vm1154, %v4591, 0
      %v4762 = vsel %vm1154, %v4593, 0
      %v4765 = vsel %vm1154, %v4595, 0
      %v4768 = vsel %vm1154, %v4597, 0
      %v4771 = vsel %vm1154, %v4599, 0
      %v4774 = vsel %vm1154, %v4601, 0
      %v4777 = vsel %vm1154, %v4603, 0
      %v4780 = vsel %vm1154, %v4605, 0
      %v4783 = vsel %vm1154, %v4607, 0
      %v4786 = vsel %vm1154, %v4609, 0
      %v4789 = vsel %vm1154, %v4611, 0
      %v4792 = vsel %vm1154, %v4613, 0
      %v4795 = vsel %vm1154, %v4615, 0
      %v4798 = vsel %vm1154, %v4617, 0
      %v4801 = vsel %vm1154, %v4619, 0
      %v4804 = vsel %vm1154, %v4621, 0
      %v4807 = vsel %vm1154, %v4623, 0
      %v4810 = vsel %vm1154, %v4625, 0
      %v4813 = vsel %vm1154, %v4627, 0
      %v4816 = vsel %vm1154, %v4629, 0
      %v4819 = vsel %vm1154, %v4631, 0
      %v4822 = vsel %vm1154, %v4633, 0
      %v4825 = vsel %vm1154, %v4635, 0
      %v4828 = vsel %vm1154, %v4637, 0
      %v4831 = vsel %vm1154, %v4639, 0
      %v4834 = vsel %vm1154, %v4641, 0
      %v4837 = vsel %vm1154, %v4643, 0
      %v4840 = vsel %vm1154, %v4645, 0
      %v4843 = vsel %vm1154, %v4647, 0
      %v4846 = vsel %vm1154, %v4649, 0
      %v4849 = vsel %vm1154, %v4651, 0
      %v4852 = vsel %vm1154, %v4653, 0
      %v4855 = vsel %vm1154, %v4655, 0
      %v4858 = vsel %vm1154, %v4657, 0
      %v4861 = vsel %vm1154, %v4659, 0
      %v4864 = vsel %vm1353, %v4664, 0
      %4866 = vmatprep.subr.bf16.mxu0 0
      %4867 = vmatpush1.bf16.msra.mxu0 %v4864
      %4868 = vmatprep.subr.bf16.mxu0 0
      %4869 = vmatpush1.bf16.msra.mxu0 0
      %4870 = vmatprep.subr.bf16.mxu0 0
      %4871 = vmatpush1.bf16.msra.mxu0 0
      %4872 = vmatprep.subr.bf16.mxu0 0
      %4873 = vmatpush1.bf16.msra.mxu0 0
      %4874 = vmatprep.subr.bf16.mxu0 0
      %4875 = vmatpush1.bf16.msra.mxu0 0
      %4876 = vmatprep.subr.bf16.mxu0 0
      %4877 = vmatpush1.bf16.msra.mxu0 0
      %4878 = vmatprep.subr.bf16.mxu0 0
      %4879 = vmatpush1.bf16.msra.mxu0 0
      %4880 = vmatprep.subr.bf16.mxu0 0
      %4881 = vmatpush1.bf16.msra.mxu0 0
      %4882 = vmatprep.subr.bf16.mxu0 0
      %4883 = vmatpush1.bf16.msra.mxu0 0
      %4884 = vmatprep.subr.bf16.mxu0 0
      %4885 = vmatpush1.bf16.msra.mxu0 0
      %4886 = vmatprep.subr.bf16.mxu0 0
      %4887 = vmatpush1.bf16.msra.mxu0 0
      %4888 = vmatprep.subr.bf16.mxu0 0
      %4889 = vmatpush1.bf16.msra.mxu0 0
      %4890 = vmatprep.subr.bf16.mxu0 0
      %4891 = vmatpush1.bf16.msra.mxu0 0
      %4892 = vmatprep.subr.bf16.mxu0 0
      %4893 = vmatpush1.bf16.msra.mxu0 0
      %4894 = vmatprep.subr.bf16.mxu0 0
      %4895 = vmatpush1.bf16.msra.mxu0 0
      %4896 = vmatprep.subr.bf16.mxu0 0
      %4897 = vmatpush1.bf16.msra.mxu0 0
      %4898 = vmatprep.mubr.bf16.mxu0 0
      %4899 = vmatmul.mubr.bf16.gmra.mrb[0].mxu0 %v4666
      %v4900 = vpop.f32.mrb[0].mxu0
      %v4901 = vadd.f32 0.0, %v4900
      %v4902 = vpop.f32.mrb[0].mxu0
      %v4903 = vpop.f32.mrb[0].mxu0
      %v4904 = vadd.f32 0.0, %v4903
      %v4905 = vpop.f32.mrb[0].mxu0
      %4906 = vmatprep.mubr.bf16.mxu0 0
      %4907 = vmatmul.mubr.bf16.gmra.mrb[0].mxu0 %v4669
      %v4908 = vpop.f32.mrb[0].mxu0
      %v4909 = vadd.f32 0.0, %v4908
      %v4910 = vpop.f32.mrb[0].mxu0
      %v4911 = vpop.f32.mrb[0].mxu0
      %v4912 = vadd.f32 0.0, %v4911
      %v4913 = vpop.f32.mrb[0].mxu0
      %4914 = vmatprep.mubr.bf16.mxu0 0
      %4915 = vmatmul.mubr.bf16.gmra.mrb[0].mxu0 %v4672
      %v4916 = vpop.f32.mrb[0].mxu0
      %v4917 = vadd.f32 0.0, %v4916
      %v4918 = vpop.f32.mrb[0].mxu0
      %v4919 = vpop.f32.mrb[0].mxu0
      %v4920 = vadd.f32 0.0, %v4919
      %v4921 = vpop.f32.mrb[0].mxu0
      %4922 = vmatprep.mubr.bf16.mxu0 0
      %4923 = vmatmul.mubr.bf16.gmra.mrb[0].mxu0 %v4675
      %v4924 = vpop.f32.mrb[0].mxu0
      %v4925 = vadd.f32 0.0, %v4924
      %v4926 = vpop.f32.mrb[0].mxu0
      %v4927 = vpop.f32.mrb[0].mxu0
      %v4928 = vadd.f32 0.0, %v4927
      %v4929 = vpop.f32.mrb[0].mxu0
      %4930 = vmatprep.mubr.bf16.mxu0 0
      %4931 = vmatmul.mubr.bf16.gmra.mrb[0].mxu0 %v4678
      %v4932 = vpop.f32.mrb[0].mxu0
      %v4933 = vadd.f32 0.0, %v4932
      %v4934 = vpop.f32.mrb[0].mxu0
      %v4935 = vpop.f32.mrb[0].mxu0
      %v4936 = vadd.f32 0.0, %v4935
      %v4937 = vpop.f32.mrb[0].mxu0
      %4938 = vmatprep.mubr.bf16.mxu0 0
      %4939 = vmatmul.mubr.bf16.gmra.mrb[0].mxu0 %v4681
      %v4940 = vpop.f32.mrb[0].mxu0
      %v4941 = vadd.f32 0.0, %v4940
      %v4942 = vpop.f32.mrb[0].mxu0
      %v4943 = vpop.f32.mrb[0].mxu0
      %v4944 = vadd.f32 0.0, %v4943
      %v4945 = vpop.f32.mrb[0].mxu0
      %4946 = vmatprep.mubr.bf16.mxu0 0
      %4947 = vmatmul.mubr.bf16.gmra.mrb[0].mxu0 %v4684
      %v4948 = vpop.f32.mrb[0].mxu0
      %v4949 = vadd.f32 0.0, %v4948
      %v4950 = vpop.f32.mrb[0].mxu0
      %v4951 = vpop.f32.mrb[0].mxu0
      %v4952 = vadd.f32 0.0, %v4951
      %v4953 = vpop.f32.mrb[0].mxu0
      %4954 = vmatprep.mubr.bf16.mxu0 0
      %4955 = vmatmul.mubr.bf16.gmra.mrb[0].mxu0 %v4687
      %v4956 = vpop.f32.mrb[0].mxu0
      %v4957 = vadd.f32 0.0, %v4956
      %v4958 = vpop.f32.mrb[0].mxu0
      %v4959 = vpop.f32.mrb[0].mxu0
      %v4960 = vadd.f32 0.0, %v4959
      %v4961 = vpop.f32.mrb[0].mxu0
      %4962 = vmatprep.mubr.bf16.mxu0 0
      %4963 = vmatmul.mubr.bf16.gmra.mrb[0].mxu0 %v4690
      %v4964 = vpop.f32.mrb[0].mxu0
      %v4965 = vadd.f32 0.0, %v4964
      %v4966 = vpop.f32.mrb[0].mxu0
      %v4967 = vpop.f32.mrb[0].mxu0
      %v4968 = vadd.f32 0.0, %v4967
      %v4969 = vpop.f32.mrb[0].mxu0
      %4970 = vmatprep.mubr.bf16.mxu0 0
      %4971 = vmatmul.mubr.bf16.gmra.mrb[0].mxu0 %v4693
      %v4972 = vpop.f32.mrb[0].mxu0
      %v4973 = vadd.f32 0.0, %v4972
      %v4974 = vpop.f32.mrb[0].mxu0
      %v4975 = vpop.f32.mrb[0].mxu0
      %v4976 = vadd.f32 0.0, %v4975
      %v4977 = vpop.f32.mrb[0].mxu0
      %4978 = vmatprep.mubr.bf16.mxu0 0
      %4979 = vmatmul.mubr.bf16.gmra.mrb[0].mxu0 %v4696
      %v4980 = vpop.f32.mrb[0].mxu0
      %v4981 = vadd.f32 0.0, %v4980
      %v4982 = vpop.f32.mrb[0].mxu0
      %v4983 = vpop.f32.mrb[0].mxu0
      %v4984 = vadd.f32 0.0, %v4983
      %v4985 = vpop.f32.mrb[0].mxu0
      %4986 = vmatprep.mubr.bf16.mxu0 0
      %4987 = vmatmul.mubr.bf16.gmra.mrb[0].mxu0 %v4699
      %v4988 = vpop.f32.mrb[0].mxu0
      %v4989 = vadd.f32 0.0, %v4988
      %v4990 = vpop.f32.mrb[0].mxu0
      %v4991 = vpop.f32.mrb[0].mxu0
      %v4992 = vadd.f32 0.0, %v4991
      %v4993 = vpop.f32.mrb[0].mxu0
      %4994 = vmatprep.mubr.bf16.mxu0 0
      %4995 = vmatmul.mubr.bf16.gmra.mrb[0].mxu0 %v4702
      %v4996 = vpop.f32.mrb[0].mxu0
      %v4997 = vadd.f32 0.0, %v4996
      %v4998 = vpop.f32.mrb[0].mxu0
      %v4999 = vpop.f32.mrb[0].mxu0
      %v5000 = vadd.f32 0.0, %v4999
      %v5001 = vpop.f32.mrb[0].mxu0
      %5002 = vmatprep.mubr.bf16.mxu0 0
      %5003 = vmatmul.mubr.bf16.gmra.mrb[0].mxu0 %v4705
      %v5004 = vpop.f32.mrb[0].mxu0
      %v5005 = vadd.f32 0.0, %v5004
      %v5006 = vpop.f32.mrb[0].mxu0
      %v5007 = vpop.f32.mrb[0].mxu0
      %v5008 = vadd.f32 0.0, %v5007
      %v5009 = vpop.f32.mrb[0].mxu0
      %5010 = vmatprep.mubr.bf16.mxu0 0
      %5011 = vmatmul.mubr.bf16.gmra.mrb[0].mxu0 %v4708
      %v5012 = vpop.f32.mrb[0].mxu0
      %v5013 = vadd.f32 0.0, %v5012
      %v5014 = vpop.f32.mrb[0].mxu0
      %v5015 = vpop.f32.mrb[0].mxu0
      %v5016 = vadd.f32 0.0, %v5015
      %v5017 = vpop.f32.mrb[0].mxu0
      %5018 = vmatprep.mubr.bf16.mxu0 0
      %5019 = vmatmul.mubr.bf16.gmra.mrb[0].mxu0 %v4711
      %v5020 = vpop.f32.mrb[0].mxu0
      %v5021 = vadd.f32 0.0, %v5020
      %v5022 = vpop.f32.mrb[0].mxu0
      %v5023 = vpop.f32.mrb[0].mxu0
      %v5024 = vadd.f32 0.0, %v5023
      %v5025 = vpop.f32.mrb[0].mxu0
      %5026 = vmatprep.mubr.bf16.mxu0 0
      %5027 = vmatmul.mubr.bf16.gmra.mrb[0].mxu0 %v4714
      %v5028 = vpop.f32.mrb[0].mxu0
      %v5029 = vadd.f32 0.0, %v5028
      %v5030 = vpop.f32.mrb[0].mxu0
      %v5031 = vpop.f32.mrb[0].mxu0
      %v5032 = vadd.f32 0.0, %v5031
      %v5033 = vpop.f32.mrb[0].mxu0
      %5034 = vmatprep.mubr.bf16.mxu0 0
      %5035 = vmatmul.mubr.bf16.gmra.mrb[0].mxu0 %v4717
      %v5036 = vpop.f32.mrb[0].mxu0
      %v5037 = vadd.f32 0.0, %v5036
      %v5038 = vpop.f32.mrb[0].mxu0
      %v5039 = vpop.f32.mrb[0].mxu0
      %v5040 = vadd.f32 0.0, %v5039
      %v5041 = vpop.f32.mrb[0].mxu0
      %5042 = vmatprep.mubr.bf16.mxu0 0
      %5043 = vmatmul.mubr.bf16.gmra.mrb[0].mxu0 %v4720
      %v5044 = vpop.f32.mrb[0].mxu0
      %v5045 = vadd.f32 0.0, %v5044
      %v5046 = vpop.f32.mrb[0].mxu0
      %v5047 = vpop.f32.mrb[0].mxu0
      %v5048 = vadd.f32 0.0, %v5047
      %v5049 = vpop.f32.mrb[0].mxu0
      %5050 = vmatprep.mubr.bf16.mxu0 0
      %5051 = vmatmul.mubr.bf16.gmra.mrb[0].mxu0 %v4723
      %v5052 = vpop.f32.mrb[0].mxu0
      %v5053 = vadd.f32 0.0, %v5052
      %v5054 = vpop.f32.mrb[0].mxu0
      %v5055 = vpop.f32.mrb[0].mxu0
      %v5056 = vadd.f32 0.0, %v5055
      %v5057 = vpop.f32.mrb[0].mxu0
      %5058 = vmatprep.mubr.bf16.mxu0 0
      %5059 = vmatmul.mubr.bf16.gmra.mrb[0].mxu0 %v4726
      %v5060 = vpop.f32.mrb[0].mxu0
      %v5061 = vadd.f32 0.0, %v5060
      %v5062 = vpop.f32.mrb[0].mxu0
      %v5063 = vpop.f32.mrb[0].mxu0
      %v5064 = vadd.f32 0.0, %v5063
      %v5065 = vpop.f32.mrb[0].mxu0
      %5066 = vmatprep.mubr.bf16.mxu0 0
      %5067 = vmatmul.mubr.bf16.gmra.mrb[0].mxu0 %v4729
      %v5068 = vpop.f32.mrb[0].mxu0
      %v5069 = vadd.f32 0.0, %v5068
      %v5070 = vpop.f32.mrb[0].mxu0
      %v5071 = vpop.f32.mrb[0].mxu0
      %v5072 = vadd.f32 0.0, %v5071
      %v5073 = vpop.f32.mrb[0].mxu0
      %5074 = vmatprep.mubr.bf16.mxu0 0
      %5075 = vmatmul.mubr.bf16.gmra.mrb[0].mxu0 %v4732
      %v5076 = vpop.f32.mrb[0].mxu0
      %v5077 = vadd.f32 0.0, %v5076
      %v5078 = vpop.f32.mrb[0].mxu0
      %v5079 = vpop.f32.mrb[0].mxu0
      %v5080 = vadd.f32 0.0, %v5079
      %v5081 = vpop.f32.mrb[0].mxu0
      %5082 = vmatprep.mubr.bf16.mxu0 0
      %5083 = vmatmul.mubr.bf16.gmra.mrb[0].mxu0 %v4735
      %v5084 = vpop.f32.mrb[0].mxu0
      %v5085 = vadd.f32 0.0, %v5084
      %v5086 = vpop.f32.mrb[0].mxu0
      %v5087 = vpop.f32.mrb[0].mxu0
      %v5088 = vadd.f32 0.0, %v5087
      %v5089 = vpop.f32.mrb[0].mxu0
      %5090 = vmatprep.mubr.bf16.mxu0 0
      %5091 = vmatmul.mubr.bf16.gmra.mrb[0].mxu0 %v4738
      %v5092 = vpop.f32.mrb[0].mxu0
      %v5093 = vadd.f32 0.0, %v5092
      %v5094 = vpop.f32.mrb[0].mxu0
      %v5095 = vpop.f32.mrb[0].mxu0
      %v5096 = vadd.f32 0.0, %v5095
      %v5097 = vpop.f32.mrb[0].mxu0
      %5098 = vmatprep.mubr.bf16.mxu0 0
      %5099 = vmatmul.mubr.bf16.gmra.mrb[0].mxu0 %v4741
      %v5100 = vpop.f32.mrb[0].mxu0
      %v5101 = vadd.f32 0.0, %v5100
      %v5102 = vpop.f32.mrb[0].mxu0
      %v5103 = vpop.f32.mrb[0].mxu0
      %v5104 = vadd.f32 0.0, %v5103
      %v5105 = vpop.f32.mrb[0].mxu0
      %5106 = vmatprep.mubr.bf16.mxu0 0
      %5107 = vmatmul.mubr.bf16.gmra.mrb[0].mxu0 %v4744
      %v5108 = vpop.f32.mrb[0].mxu0
      %v5109 = vadd.f32 0.0, %v5108
      %v5110 = vpop.f32.mrb[0].mxu0
      %v5111 = vpop.f32.mrb[0].mxu0
      %v5112 = vadd.f32 0.0, %v5111
      %v5113 = vpop.f32.mrb[0].mxu0
      %5114 = vmatprep.mubr.bf16.mxu0 0
      %5115 = vmatmul.mubr.bf16.gmra.mrb[0].mxu0 %v4747
      %v5116 = vpop.f32.mrb[0].mxu0
      %v5117 = vadd.f32 0.0, %v5116
      %v5118 = vpop.f32.mrb[0].mxu0
      %v5119 = vpop.f32.mrb[0].mxu0
      %v5120 = vadd.f32 0.0, %v5119
      %v5121 = vpop.f32.mrb[0].mxu0
      %5122 = vmatprep.mubr.bf16.mxu0 0
      %5123 = vmatmul.mubr.bf16.gmra.mrb[0].mxu0 %v4750
      %v5124 = vpop.f32.mrb[0].mxu0
      %v5125 = vadd.f32 0.0, %v5124
      %v5126 = vpop.f32.mrb[0].mxu0
      %v5127 = vpop.f32.mrb[0].mxu0
      %v5128 = vadd.f32 0.0, %v5127
      %v5129 = vpop.f32.mrb[0].mxu0
      %5130 = vmatprep.mubr.bf16.mxu0 0
      %5131 = vmatmul.mubr.bf16.gmra.mrb[0].mxu0 %v4753
      %v5132 = vpop.f32.mrb[0].mxu0
      %v5133 = vadd.f32 0.0, %v5132
      %v5134 = vpop.f32.mrb[0].mxu0
      %v5135 = vpop.f32.mrb[0].mxu0
      %v5136 = vadd.f32 0.0, %v5135
      %v5137 = vpop.f32.mrb[0].mxu0
      %5138 = vmatprep.mubr.bf16.mxu0 0
      %5139 = vmatmul.mubr.bf16.gmra.mrb[0].mxu0 %v4756
      %v5140 = vpop.f32.mrb[0].mxu0
      %v5141 = vadd.f32 0.0, %v5140
      %v5142 = vpop.f32.mrb[0].mxu0
      %v5143 = vpop.f32.mrb[0].mxu0
      %v5144 = vadd.f32 0.0, %v5143
      %v5145 = vpop.f32.mrb[0].mxu0
      %5146 = vmatprep.mubr.bf16.mxu0 0
      %5147 = vmatmul.mubr.bf16.gmra.mrb[0].mxu0 %v4759
      %v5148 = vpop.f32.mrb[0].mxu0
      %v5149 = vadd.f32 0.0, %v5148
      %v5150 = vpop.f32.mrb[0].mxu0
      %v5151 = vpop.f32.mrb[0].mxu0
      %v5152 = vadd.f32 0.0, %v5151
      %v5153 = vpop.f32.mrb[0].mxu0
      %5154 = vmatprep.mubr.bf16.mxu0 0
      %5155 = vmatmul.mubr.bf16.gmra.mrb[0].mxu0 %v4762
      %v5156 = vpop.f32.mrb[0].mxu0
      %v5157 = vadd.f32 0.0, %v5156
      %v5158 = vpop.f32.mrb[0].mxu0
      %v5159 = vpop.f32.mrb[0].mxu0
      %v5160 = vadd.f32 0.0, %v5159
      %v5161 = vpop.f32.mrb[0].mxu0
      %5162 = vmatprep.mubr.bf16.mxu0 0
      %5163 = vmatmul.mubr.bf16.gmra.mrb[0].mxu0 %v4765
      %v5164 = vpop.f32.mrb[0].mxu0
      %v5165 = vadd.f32 0.0, %v5164
      %v5166 = vpop.f32.mrb[0].mxu0
      %v5167 = vpop.f32.mrb[0].mxu0
      %v5168 = vadd.f32 0.0, %v5167
      %v5169 = vpop.f32.mrb[0].mxu0
      %5170 = vmatprep.mubr.bf16.mxu0 0
      %5171 = vmatmul.mubr.bf16.gmra.mrb[0].mxu0 %v4768
      %v5172 = vpop.f32.mrb[0].mxu0
      %v5173 = vadd.f32 0.0, %v5172
      %v5174 = vpop.f32.mrb[0].mxu0
      %v5175 = vpop.f32.mrb[0].mxu0
      %v5176 = vadd.f32 0.0, %v5175
      %v5177 = vpop.f32.mrb[0].mxu0
      %5178 = vmatprep.mubr.bf16.mxu0 0
      %5179 = vmatmul.mubr.bf16.gmra.mrb[0].mxu0 %v4771
      %v5180 = vpop.f32.mrb[0].mxu0
      %v5181 = vadd.f32 0.0, %v5180
      %v5182 = vpop.f32.mrb[0].mxu0
      %v5183 = vpop.f32.mrb[0].mxu0
      %v5184 = vadd.f32 0.0, %v5183
      %v5185 = vpop.f32.mrb[0].mxu0
      %5186 = vmatprep.mubr.bf16.mxu0 0
      %5187 = vmatmul.mubr.bf16.gmra.mrb[0].mxu0 %v4774
      %v5188 = vpop.f32.mrb[0].mxu0
      %v5189 = vadd.f32 0.0, %v5188
      %v5190 = vpop.f32.mrb[0].mxu0
      %v5191 = vpop.f32.mrb[0].mxu0
      %v5192 = vadd.f32 0.0, %v5191
      %v5193 = vpop.f32.mrb[0].mxu0
      %5194 = vmatprep.mubr.bf16.mxu0 0
      %5195 = vmatmul.mubr.bf16.gmra.mrb[0].mxu0 %v4777
      %v5196 = vpop.f32.mrb[0].mxu0
      %v5197 = vadd.f32 0.0, %v5196
      %v5198 = vpop.f32.mrb[0].mxu0
      %v5199 = vpop.f32.mrb[0].mxu0
      %v5200 = vadd.f32 0.0, %v5199
      %v5201 = vpop.f32.mrb[0].mxu0
      %5202 = vmatprep.mubr.bf16.mxu0 0
      %5203 = vmatmul.mubr.bf16.gmra.mrb[0].mxu0 %v4780
      %v5204 = vpop.f32.mrb[0].mxu0
      %v5205 = vadd.f32 0.0, %v5204
      %v5206 = vpop.f32.mrb[0].mxu0
      %v5207 = vpop.f32.mrb[0].mxu0
      %v5208 = vadd.f32 0.0, %v5207
      %v5209 = vpop.f32.mrb[0].mxu0
      %5210 = vmatprep.mubr.bf16.mxu0 0
      %5211 = vmatmul.mubr.bf16.gmra.mrb[0].mxu0 %v4783
      %v5212 = vpop.f32.mrb[0].mxu0
      %v5213 = vadd.f32 0.0, %v5212
      %v5214 = vpop.f32.mrb[0].mxu0
      %v5215 = vpop.f32.mrb[0].mxu0
      %v5216 = vadd.f32 0.0, %v5215
      %v5217 = vpop.f32.mrb[0].mxu0
      %5218 = vmatprep.mubr.bf16.mxu0 0
      %5219 = vmatmul.mubr.bf16.gmra.mrb[0].mxu0 %v4786
      %v5220 = vpop.f32.mrb[0].mxu0
      %v5221 = vadd.f32 0.0, %v5220
      %v5222 = vpop.f32.mrb[0].mxu0
      %v5223 = vpop.f32.mrb[0].mxu0
      %v5224 = vadd.f32 0.0, %v5223
      %v5225 = vpop.f32.mrb[0].mxu0
      %5226 = vmatprep.mubr.bf16.mxu0 0
      %5227 = vmatmul.mubr.bf16.gmra.mrb[0].mxu0 %v4789
      %v5228 = vpop.f32.mrb[0].mxu0
      %v5229 = vadd.f32 0.0, %v5228
      %v5230 = vpop.f32.mrb[0].mxu0
      %v5231 = vpop.f32.mrb[0].mxu0
      %v5232 = vadd.f32 0.0, %v5231
      %v5233 = vpop.f32.mrb[0].mxu0
      %5234 = vmatprep.mubr.bf16.mxu0 0
      %5235 = vmatmul.mubr.bf16.gmra.mrb[0].mxu0 %v4792
      %v5236 = vpop.f32.mrb[0].mxu0
      %v5237 = vadd.f32 0.0, %v5236
      %v5238 = vpop.f32.mrb[0].mxu0
      %v5239 = vpop.f32.mrb[0].mxu0
      %v5240 = vadd.f32 0.0, %v5239
      %v5241 = vpop.f32.mrb[0].mxu0
      %5242 = vmatprep.mubr.bf16.mxu0 0
      %5243 = vmatmul.mubr.bf16.gmra.mrb[0].mxu0 %v4795
      %v5244 = vpop.f32.mrb[0].mxu0
      %v5245 = vadd.f32 0.0, %v5244
      %v5246 = vpop.f32.mrb[0].mxu0
      %v5247 = vpop.f32.mrb[0].mxu0
      %v5248 = vadd.f32 0.0, %v5247
      %v5249 = vpop.f32.mrb[0].mxu0
      %5250 = vmatprep.mubr.bf16.mxu0 0
      %5251 = vmatmul.mubr.bf16.gmra.mrb[0].mxu0 %v4798
      %v5252 = vpop.f32.mrb[0].mxu0
      %v5253 = vadd.f32 0.0, %v5252
      %v5254 = vpop.f32.mrb[0].mxu0
      %v5255 = vpop.f32.mrb[0].mxu0
      %v5256 = vadd.f32 0.0, %v5255
      %v5257 = vpop.f32.mrb[0].mxu0
      %5258 = vmatprep.mubr.bf16.mxu0 0
      %5259 = vmatmul.mubr.bf16.gmra.mrb[0].mxu0 %v4801
      %v5260 = vpop.f32.mrb[0].mxu0
      %v5261 = vadd.f32 0.0, %v5260
      %v5262 = vpop.f32.mrb[0].mxu0
      %v5263 = vpop.f32.mrb[0].mxu0
      %v5264 = vadd.f32 0.0, %v5263
      %v5265 = vpop.f32.mrb[0].mxu0
      %5266 = vmatprep.mubr.bf16.mxu0 0
      %5267 = vmatmul.mubr.bf16.gmra.mrb[0].mxu0 %v4804
      %v5268 = vpop.f32.mrb[0].mxu0
      %v5269 = vadd.f32 0.0, %v5268
      %v5270 = vpop.f32.mrb[0].mxu0
      %v5271 = vpop.f32.mrb[0].mxu0
      %v5272 = vadd.f32 0.0, %v5271
      %v5273 = vpop.f32.mrb[0].mxu0
      %5274 = vmatprep.mubr.bf16.mxu0 0
      %5275 = vmatmul.mubr.bf16.gmra.mrb[0].mxu0 %v4807
      %v5276 = vpop.f32.mrb[0].mxu0
      %v5277 = vadd.f32 0.0, %v5276
      %v5278 = vpop.f32.mrb[0].mxu0
      %v5279 = vpop.f32.mrb[0].mxu0
      %v5280 = vadd.f32 0.0, %v5279
      %v5281 = vpop.f32.mrb[0].mxu0
      %5282 = vmatprep.mubr.bf16.mxu0 0
      %5283 = vmatmul.mubr.bf16.gmra.mrb[0].mxu0 %v4810
      %v5284 = vpop.f32.mrb[0].mxu0
      %v5285 = vadd.f32 0.0, %v5284
      %v5286 = vpop.f32.mrb[0].mxu0
      %v5287 = vpop.f32.mrb[0].mxu0
      %v5288 = vadd.f32 0.0, %v5287
      %v5289 = vpop.f32.mrb[0].mxu0
      %5290 = vmatprep.mubr.bf16.mxu0 0
      %5291 = vmatmul.mubr.bf16.gmra.mrb[0].mxu0 %v4813
      %v5292 = vpop.f32.mrb[0].mxu0
      %v5293 = vadd.f32 0.0, %v5292
      %v5294 = vpop.f32.mrb[0].mxu0
      %v5295 = vpop.f32.mrb[0].mxu0
      %v5296 = vadd.f32 0.0, %v5295
      %v5297 = vpop.f32.mrb[0].mxu0
      %5298 = vmatprep.mubr.bf16.mxu0 0
      %5299 = vmatmul.mubr.bf16.gmra.mrb[0].mxu0 %v4816
      %v5300 = vpop.f32.mrb[0].mxu0
      %v5301 = vadd.f32 0.0, %v5300
      %v5302 = vpop.f32.mrb[0].mxu0
      %v5303 = vpop.f32.mrb[0].mxu0
      %v5304 = vadd.f32 0.0, %v5303
      %v5305 = vpop.f32.mrb[0].mxu0
      %5306 = vmatprep.mubr.bf16.mxu0 0
      %5307 = vmatmul.mubr.bf16.gmra.mrb[0].mxu0 %v4819
      %v5308 = vpop.f32.mrb[0].mxu0
      %v5309 = vadd.f32 0.0, %v5308
      %v5310 = vpop.f32.mrb[0].mxu0
      %v5311 = vpop.f32.mrb[0].mxu0
      %v5312 = vadd.f32 0.0, %v5311
      %v5313 = vpop.f32.mrb[0].mxu0
      %5314 = vmatprep.mubr.bf16.mxu0 0
      %5315 = vmatmul.mubr.bf16.gmra.mrb[0].mxu0 %v4822
      %v5316 = vpop.f32.mrb[0].mxu0
      %v5317 = vadd.f32 0.0, %v5316
      %v5318 = vpop.f32.mrb[0].mxu0
      %v5319 = vpop.f32.mrb[0].mxu0
      %v5320 = vadd.f32 0.0, %v5319
      %v5321 = vpop.f32.mrb[0].mxu0
      %5322 = vmatprep.mubr.bf16.mxu0 0
      %5323 = vmatmul.mubr.bf16.gmra.mrb[0].mxu0 %v4825
      %v5324 = vpop.f32.mrb[0].mxu0
      %v5325 = vadd.f32 0.0, %v5324
      %v5326 = vpop.f32.mrb[0].mxu0
      %v5327 = vpop.f32.mrb[0].mxu0
      %v5328 = vadd.f32 0.0, %v5327
      %v5329 = vpop.f32.mrb[0].mxu0
      %5330 = vmatprep.mubr.bf16.mxu0 0
      %5331 = vmatmul.mubr.bf16.gmra.mrb[0].mxu0 %v4828
      %v5332 = vpop.f32.mrb[0].mxu0
      %v5333 = vadd.f32 0.0, %v5332
      %v5334 = vpop.f32.mrb[0].mxu0
      %v5335 = vpop.f32.mrb[0].mxu0
      %v5336 = vadd.f32 0.0, %v5335
      %v5337 = vpop.f32.mrb[0].mxu0
      %5338 = vmatprep.mubr.bf16.mxu0 0
      %5339 = vmatmul.mubr.bf16.gmra.mrb[0].mxu0 %v4831
      %v5340 = vpop.f32.mrb[0].mxu0
      %v5341 = vadd.f32 0.0, %v5340
      %v5342 = vpop.f32.mrb[0].mxu0
      %v5343 = vpop.f32.mrb[0].mxu0
      %v5344 = vadd.f32 0.0, %v5343
      %v5345 = vpop.f32.mrb[0].mxu0
      %5346 = vmatprep.mubr.bf16.mxu0 0
      %5347 = vmatmul.mubr.bf16.gmra.mrb[0].mxu0 %v4834
      %v5348 = vpop.f32.mrb[0].mxu0
      %v5349 = vadd.f32 0.0, %v5348
      %v5350 = vpop.f32.mrb[0].mxu0
      %v5351 = vpop.f32.mrb[0].mxu0
      %v5352 = vadd.f32 0.0, %v5351
      %v5353 = vpop.f32.mrb[0].mxu0
      %5354 = vmatprep.mubr.bf16.mxu0 0
      %5355 = vmatmul.mubr.bf16.gmra.mrb[0].mxu0 %v4837
      %v5356 = vpop.f32.mrb[0].mxu0
      %v5357 = vadd.f32 0.0, %v5356
      %v5358 = vpop.f32.mrb[0].mxu0
      %v5359 = vpop.f32.mrb[0].mxu0
      %v5360 = vadd.f32 0.0, %v5359
      %v5361 = vpop.f32.mrb[0].mxu0
      %5362 = vmatprep.mubr.bf16.mxu0 0
      %5363 = vmatmul.mubr.bf16.gmra.mrb[0].mxu0 %v4840
      %v5364 = vpop.f32.mrb[0].mxu0
      %v5365 = vadd.f32 0.0, %v5364
      %v5366 = vpop.f32.mrb[0].mxu0
      %v5367 = vpop.f32.mrb[0].mxu0
      %v5368 = vadd.f32 0.0, %v5367
      %v5369 = vpop.f32.mrb[0].mxu0
      %5370 = vmatprep.mubr.bf16.mxu0 0
      %5371 = vmatmul.mubr.bf16.gmra.mrb[0].mxu0 %v4843
      %v5372 = vpop.f32.mrb[0].mxu0
      %v5373 = vadd.f32 0.0, %v5372
      %v5374 = vpop.f32.mrb[0].mxu0
      %v5375 = vpop.f32.mrb[0].mxu0
      %v5376 = vadd.f32 0.0, %v5375
      %v5377 = vpop.f32.mrb[0].mxu0
      %5378 = vmatprep.mubr.bf16.mxu0 0
      %5379 = vmatmul.mubr.bf16.gmra.mrb[0].mxu0 %v4846
      %v5380 = vpop.f32.mrb[0].mxu0
      %v5381 = vadd.f32 0.0, %v5380
      %v5382 = vpop.f32.mrb[0].mxu0
      %v5383 = vpop.f32.mrb[0].mxu0
      %v5384 = vadd.f32 0.0, %v5383
      %v5385 = vpop.f32.mrb[0].mxu0
      %5386 = vmatprep.mubr.bf16.mxu0 0
      %5387 = vmatmul.mubr.bf16.gmra.mrb[0].mxu0 %v4849
      %v5388 = vpop.f32.mrb[0].mxu0
      %v5389 = vadd.f32 0.0, %v5388
      %v5390 = vpop.f32.mrb[0].mxu0
      %v5391 = vpop.f32.mrb[0].mxu0
      %v5392 = vadd.f32 0.0, %v5391
      %v5393 = vpop.f32.mrb[0].mxu0
      %5394 = vmatprep.mubr.bf16.mxu0 0
      %5395 = vmatmul.mubr.bf16.gmra.mrb[0].mxu0 %v4852
      %v5396 = vpop.f32.mrb[0].mxu0
      %v5397 = vadd.f32 0.0, %v5396
      %v5398 = vpop.f32.mrb[0].mxu0
      %v5399 = vpop.f32.mrb[0].mxu0
      %v5400 = vadd.f32 0.0, %v5399
      %v5401 = vpop.f32.mrb[0].mxu0
      %5402 = vmatprep.mubr.bf16.mxu0 0
      %5403 = vmatmul.mubr.bf16.gmra.mrb[0].mxu0 %v4855
      %v5404 = vpop.f32.mrb[0].mxu0
      %v5405 = vadd.f32 0.0, %v5404
      %v5406 = vpop.f32.mrb[0].mxu0
      %v5407 = vpop.f32.mrb[0].mxu0
      %v5408 = vadd.f32 0.0, %v5407
      %v5409 = vpop.f32.mrb[0].mxu0
      %5410 = vmatprep.mubr.bf16.mxu0 0
      %5411 = vmatmul.mubr.bf16.gmra.mrb[0].mxu0 %v4858
      %v5412 = vpop.f32.mrb[0].mxu0
      %v5413 = vadd.f32 0.0, %v5412
      %v5414 = vpop.f32.mrb[0].mxu0
      %v5415 = vpop.f32.mrb[0].mxu0
      %v5416 = vadd.f32 0.0, %v5415
      %v5417 = vpop.f32.mrb[0].mxu0
      %5418 = vmatprep.mubr.bf16.mxu0 0
      %5419 = vmatmul.mubr.bf16.gmra.mrb[0].mxu0 %v4861
      %v5420 = vpop.f32.mrb[0].mxu0
      %v5421 = vadd.f32 0.0, %v5420
      %v5422 = vpop.f32.mrb[0].mxu0
      %v5423 = vpop.f32.mrb[0].mxu0
      %v5424 = vadd.f32 0.0, %v5423
      %v5425 = vpop.f32.mrb[0].mxu0
      %5426 = vdwg.mxu0
      %v5427 = vadd.f32 %v4387, %v4901
      %v5428 = vadd.f32 %v4388, %v4904
      %v5429 = vadd.f32 %v4389, %v4909
      %v5430 = vadd.f32 %v4390, %v4912
      %v5431 = vadd.f32 %v4391, %v4917
      %v5432 = vadd.f32 %v4392, %v4920
      %v5433 = vadd.f32 %v4393, %v4925
      %v5434 = vadd.f32 %v4394, %v4928
      %v5435 = vadd.f32 %v4395, %v4933
      %v5436 = vadd.f32 %v4396, %v4936
      %v5437 = vadd.f32 %v4397, %v4941
      %v5438 = vadd.f32 %v4398, %v4944
      %v5439 = vadd.f32 %v4399, %v4949
      %v5440 = vadd.f32 %v4400, %v4952
      %v5441 = vadd.f32 %v4401, %v4957
      %v5442 = vadd.f32 %v4402, %v4960
      %v5443 = vadd.f32 %v4403, %v4965
      %v5444 = vadd.f32 %v4404, %v4968
      %v5445 = vadd.f32 %v4405, %v4973
      %v5446 = vadd.f32 %v4406, %v4976
      %v5447 = vadd.f32 %v4407, %v4981
      %v5448 = vadd.f32 %v4408, %v4984
      %v5449 = vadd.f32 %v4409, %v4989
      %v5450 = vadd.f32 %v4410, %v4992
      %v5451 = vadd.f32 %v4411, %v4997
      %v5452 = vadd.f32 %v4412, %v5000
      %v5453 = vadd.f32 %v4413, %v5005
      %v5454 = vadd.f32 %v4414, %v5008
      %v5455 = vadd.f32 %v4415, %v5013
      %v5456 = vadd.f32 %v4416, %v5016
      %v5457 = vadd.f32 %v4417, %v5021
      %v5458 = vadd.f32 %v4418, %v5024
      %v5459 = vadd.f32 %v4419, %v5029
      %v5460 = vadd.f32 %v4420, %v5032
      %v5461 = vadd.f32 %v4421, %v5037
      %v5462 = vadd.f32 %v4422, %v5040
      %v5463 = vadd.f32 %v4423, %v5045
      %v5464 = vadd.f32 %v4424, %v5048
      %v5465 = vadd.f32 %v4425, %v5053
      %v5466 = vadd.f32 %v4426, %v5056
      %v5467 = vadd.f32 %v4427, %v5061
      %v5468 = vadd.f32 %v4428, %v5064
      %v5469 = vadd.f32 %v4429, %v5069
      %v5470 = vadd.f32 %v4430, %v5072
      %v5471 = vadd.f32 %v4431, %v5077
      %v5472 = vadd.f32 %v4432, %v5080
      %v5473 = vadd.f32 %v4433, %v5085
      %v5474 = vadd.f32 %v4434, %v5088
      %v5475 = vadd.f32 %v4435, %v5093
      %v5476 = vadd.f32 %v4436, %v5096
      %v5477 = vadd.f32 %v4437, %v5101
      %v5478 = vadd.f32 %v4438, %v5104
      %v5479 = vadd.f32 %v4439, %v5109
      %v5480 = vadd.f32 %v4440, %v5112
      %v5481 = vadd.f32 %v4441, %v5117
      %v5482 = vadd.f32 %v4442, %v5120
      %v5483 = vadd.f32 %v4443, %v5125
      %v5484 = vadd.f32 %v4444, %v5128
      %v5485 = vadd.f32 %v4445, %v5133
      %v5486 = vadd.f32 %v4446, %v5136
      %v5487 = vadd.f32 %v4447, %v5141
      %v5488 = vadd.f32 %v4448, %v5144
      %v5489 = vadd.f32 %v4449, %v5149
      %v5490 = vadd.f32 %v4450, %v5152
      %v5491 = vadd.f32 %v4451, %v5157
      %v5492 = vadd.f32 %v4452, %v5160
      %v5493 = vadd.f32 %v4453, %v5165
      %v5494 = vadd.f32 %v4454, %v5168
      %v5495 = vadd.f32 %v4455, %v5173
      %v5496 = vadd.f32 %v4456, %v5176
      %v5497 = vadd.f32 %v4457, %v5181
      %v5498 = vadd.f32 %v4458, %v5184
      %v5499 = vadd.f32 %v4459, %v5189
      %v5500 = vadd.f32 %v4460, %v5192
      %v5501 = vadd.f32 %v4461, %v5197
      %v5502 = vadd.f32 %v4462, %v5200
      %v5503 = vadd.f32 %v4463, %v5205
      %v5504 = vadd.f32 %v4464, %v5208
      %v5505 = vadd.f32 %v4465, %v5213
      %v5506 = vadd.f32 %v4466, %v5216
      %v5507 = vadd.f32 %v4467, %v5221
      %v5508 = vadd.f32 %v4468, %v5224
      %v5509 = vadd.f32 %v4469, %v5229
      %v5510 = vadd.f32 %v4470, %v5232
      %v5511 = vadd.f32 %v4471, %v5237
      %v5512 = vadd.f32 %v4472, %v5240
      %v5513 = vadd.f32 %v4473, %v5245
      %v5514 = vadd.f32 %v4474, %v5248
      %v5515 = vadd.f32 %v4475, %v5253
      %v5516 = vadd.f32 %v4476, %v5256
      %v5517 = vadd.f32 %v4477, %v5261
      %v5518 = vadd.f32 %v4478, %v5264
      %v5519 = vadd.f32 %v4479, %v5269
      %v5520 = vadd.f32 %v4480, %v5272
      %v5521 = vadd.f32 %v4481, %v5277
      %v5522 = vadd.f32 %v4482, %v5280
      %v5523 = vadd.f32 %v4483, %v5285
      %v5524 = vadd.f32 %v4484, %v5288
      %v5525 = vadd.f32 %v4485, %v5293
      %v5526 = vadd.f32 %v4486, %v5296
      %v5527 = vadd.f32 %v4487, %v5301
      %v5528 = vadd.f32 %v4488, %v5304
      %v5529 = vadd.f32 %v4489, %v5309
      %v5530 = vadd.f32 %v4490, %v5312
      %v5531 = vadd.f32 %v4491, %v5317
      %v5532 = vadd.f32 %v4492, %v5320
      %v5533 = vadd.f32 %v4493, %v5325
      %v5534 = vadd.f32 %v4494, %v5328
      %v5535 = vadd.f32 %v4495, %v5333
      %v5536 = vadd.f32 %v4496, %v5336
      %v5537 = vadd.f32 %v4497, %v5341
      %v5538 = vadd.f32 %v4498, %v5344
      %v5539 = vadd.f32 %v4499, %v5349
      %v5540 = vadd.f32 %v4500, %v5352
      %v5541 = vadd.f32 %v4501, %v5357
      %v5542 = vadd.f32 %v4502, %v5360
      %v5543 = vadd.f32 %v4503, %v5365
      %v5544 = vadd.f32 %v4504, %v5368
      %v5545 = vadd.f32 %v4505, %v5373
      %v5546 = vadd.f32 %v4506, %v5376
      %v5547 = vadd.f32 %v4507, %v5381
      %v5548 = vadd.f32 %v4508, %v5384
      %v5549 = vadd.f32 %v4509, %v5389
      %v5550 = vadd.f32 %v4510, %v5392
      %v5551 = vadd.f32 %v4511, %v5397
      %v5552 = vadd.f32 %v4512, %v5400
      %v5553 = vadd.f32 %v4513, %v5405
      %v5554 = vadd.f32 %v4514, %v5408
      %v5555 = vadd.f32 %v4515, %v5413
      %v5556 = vadd.f32 %v4516, %v5416
      %v5557 = vadd.f32 %v4517, %v5421
      %v5558 = vadd.f32 %v4518, %v5424
      %vm5559 = vcmp.gt.f32.partialorder %v5427, 0.0
      %vm5560 = vcmp.gt.f32.partialorder %v5428, 0.0
      %vm5561 = vcmp.gt.f32.partialorder %v5429, 0.0
      %vm5562 = vcmp.gt.f32.partialorder %v5430, 0.0
      %vm5563 = vcmp.gt.f32.partialorder %v5431, 0.0
      %vm5564 = vcmp.gt.f32.partialorder %v5432, 0.0
      %vm5565 = vcmp.gt.f32.partialorder %v5433, 0.0
      %vm5566 = vcmp.gt.f32.partialorder %v5434, 0.0
      %vm5567 = vcmp.gt.f32.partialorder %v5435, 0.0
      %vm5568 = vcmp.gt.f32.partialorder %v5436, 0.0
      %vm5569 = vcmp.gt.f32.partialorder %v5437, 0.0
      %vm5570 = vcmp.gt.f32.partialorder %v5438, 0.0
      %vm5571 = vcmp.gt.f32.partialorder %v5439, 0.0
      %vm5572 = vcmp.gt.f32.partialorder %v5440, 0.0
      %vm5573 = vcmp.gt.f32.partialorder %v5441, 0.0
      %vm5574 = vcmp.gt.f32.partialorder %v5442, 0.0
      %vm5575 = vcmp.gt.f32.partialorder %v5443, 0.0
      %vm5576 = vcmp.gt.f32.partialorder %v5444, 0.0
      %vm5577 = vcmp.gt.f32.partialorder %v5445, 0.0
      %vm5578 = vcmp.gt.f32.partialorder %v5446, 0.0
      %vm5579 = vcmp.gt.f32.partialorder %v5447, 0.0
      %vm5580 = vcmp.gt.f32.partialorder %v5448, 0.0
      %vm5581 = vcmp.gt.f32.partialorder %v5449, 0.0
      %vm5582 = vcmp.gt.f32.partialorder %v5450, 0.0
      %vm5583 = vcmp.gt.f32.partialorder %v5451, 0.0
      %vm5584 = vcmp.gt.f32.partialorder %v5452, 0.0
      %vm5585 = vcmp.gt.f32.partialorder %v5453, 0.0
      %vm5586 = vcmp.gt.f32.partialorder %v5454, 0.0
      %vm5587 = vcmp.gt.f32.partialorder %v5455, 0.0
      %vm5588 = vcmp.gt.f32.partialorder %v5456, 0.0
      %vm5589 = vcmp.gt.f32.partialorder %v5457, 0.0
      %vm5590 = vcmp.gt.f32.partialorder %v5458, 0.0
      %vm5591 = vcmp.gt.f32.partialorder %v5459, 0.0
      %vm5592 = vcmp.gt.f32.partialorder %v5460, 0.0
      %vm5593 = vcmp.gt.f32.partialorder %v5461, 0.0
      %vm5594 = vcmp.gt.f32.partialorder %v5462, 0.0
      %vm5595 = vcmp.gt.f32.partialorder %v5463, 0.0
      %vm5596 = vcmp.gt.f32.partialorder %v5464, 0.0
      %vm5597 = vcmp.gt.f32.partialorder %v5465, 0.0
      %vm5598 = vcmp.gt.f32.partialorder %v5466, 0.0
      %vm5599 = vcmp.gt.f32.partialorder %v5467, 0.0
      %vm5600 = vcmp.gt.f32.partialorder %v5468, 0.0
      %vm5601 = vcmp.gt.f32.partialorder %v5469, 0.0
      %vm5602 = vcmp.gt.f32.partialorder %v5470, 0.0
      %vm5603 = vcmp.gt.f32.partialorder %v5471, 0.0
      %vm5604 = vcmp.gt.f32.partialorder %v5472, 0.0
      %vm5605 = vcmp.gt.f32.partialorder %v5473, 0.0
      %vm5606 = vcmp.gt.f32.partialorder %v5474, 0.0
      %vm5607 = vcmp.gt.f32.partialorder %v5475, 0.0
      %vm5608 = vcmp.gt.f32.partialorder %v5476, 0.0
      %vm5609 = vcmp.gt.f32.partialorder %v5477, 0.0
      %vm5610 = vcmp.gt.f32.partialorder %v5478, 0.0
      %vm5611 = vcmp.gt.f32.partialorder %v5479, 0.0
      %vm5612 = vcmp.gt.f32.partialorder %v5480, 0.0
      %vm5613 = vcmp.gt.f32.partialorder %v5481, 0.0
      %vm5614 = vcmp.gt.f32.partialorder %v5482, 0.0
      %vm5615 = vcmp.gt.f32.partialorder %v5483, 0.0
      %vm5616 = vcmp.gt.f32.partialorder %v5484, 0.0
      %vm5617 = vcmp.gt.f32.partialorder %v5485, 0.0
      %vm5618 = vcmp.gt.f32.partialorder %v5486, 0.0
      %vm5619 = vcmp.gt.f32.partialorder %v5487, 0.0
      %vm5620 = vcmp.gt.f32.partialorder %v5488, 0.0
      %vm5621 = vcmp.gt.f32.partialorder %v5489, 0.0
      %vm5622 = vcmp.gt.f32.partialorder %v5490, 0.0
      %vm5623 = vcmp.gt.f32.partialorder %v5491, 0.0
      %vm5624 = vcmp.gt.f32.partialorder %v5492, 0.0
      %vm5625 = vcmp.gt.f32.partialorder %v5493, 0.0
      %vm5626 = vcmp.gt.f32.partialorder %v5494, 0.0
      %vm5627 = vcmp.gt.f32.partialorder %v5495, 0.0
      %vm5628 = vcmp.gt.f32.partialorder %v5496, 0.0
      %vm5629 = vcmp.gt.f32.partialorder %v5497, 0.0
      %vm5630 = vcmp.gt.f32.partialorder %v5498, 0.0
      %vm5631 = vcmp.gt.f32.partialorder %v5499, 0.0
      %vm5632 = vcmp.gt.f32.partialorder %v5500, 0.0
      %vm5633 = vcmp.gt.f32.partialorder %v5501, 0.0
      %vm5634 = vcmp.gt.f32.partialorder %v5502, 0.0
      %vm5635 = vcmp.gt.f32.partialorder %v5503, 0.0
      %vm5636 = vcmp.gt.f32.partialorder %v5504, 0.0
      %vm5637 = vcmp.gt.f32.partialorder %v5505, 0.0
      %vm5638 = vcmp.gt.f32.partialorder %v5506, 0.0
      %vm5639 = vcmp.gt.f32.partialorder %v5507, 0.0
      %vm5640 = vcmp.gt.f32.partialorder %v5508, 0.0
      %vm5641 = vcmp.gt.f32.partialorder %v5509, 0.0
      %vm5642 = vcmp.gt.f32.partialorder %v5510, 0.0
      %vm5643 = vcmp.gt.f32.partialorder %v5511, 0.0
      %vm5644 = vcmp.gt.f32.partialorder %v5512, 0.0
      %vm5645 = vcmp.gt.f32.partialorder %v5513, 0.0
      %vm5646 = vcmp.gt.f32.partialorder %v5514, 0.0
      %vm5647 = vcmp.gt.f32.partialorder %v5515, 0.0
      %vm5648 = vcmp.gt.f32.partialorder %v5516, 0.0
      %vm5649 = vcmp.gt.f32.partialorder %v5517, 0.0
      %vm5650 = vcmp.gt.f32.partialorder %v5518, 0.0
      %vm5651 = vcmp.gt.f32.partialorder %v5519, 0.0
      %vm5652 = vcmp.gt.f32.partialorder %v5520, 0.0
      %vm5653 = vcmp.gt.f32.partialorder %v5521, 0.0
      %vm5654 = vcmp.gt.f32.partialorder %v5522, 0.0
      %vm5655 = vcmp.gt.f32.partialorder %v5523, 0.0
      %vm5656 = vcmp.gt.f32.partialorder %v5524, 0.0
      %vm5657 = vcmp.gt.f32.partialorder %v5525, 0.0
      %vm5658 = vcmp.gt.f32.partialorder %v5526, 0.0
      %vm5659 = vcmp.gt.f32.partialorder %v5527, 0.0
      %vm5660 = vcmp.gt.f32.partialorder %v5528, 0.0
      %vm5661 = vcmp.gt.f32.partialorder %v5529, 0.0
      %vm5662 = vcmp.gt.f32.partialorder %v5530, 0.0
      %vm5663 = vcmp.gt.f32.partialorder %v5531, 0.0
      %vm5664 = vcmp.gt.f32.partialorder %v5532, 0.0
      %vm5665 = vcmp.gt.f32.partialorder %v5533, 0.0
      %vm5666 = vcmp.gt.f32.partialorder %v5534, 0.0
      %vm5667 = vcmp.gt.f32.partialorder %v5535, 0.0
      %vm5668 = vcmp.gt.f32.partialorder %v5536, 0.0
      %vm5669 = vcmp.gt.f32.partialorder %v5537, 0.0
      %vm5670 = vcmp.gt.f32.partialorder %v5538, 0.0
      %vm5671 = vcmp.gt.f32.partialorder %v5539, 0.0
      %vm5672 = vcmp.gt.f32.partialorder %v5540, 0.0
      %vm5673 = vcmp.gt.f32.partialorder %v5541, 0.0
      %vm5674 = vcmp.gt.f32.partialorder %v5542, 0.0
      %vm5675 = vcmp.gt.f32.partialorder %v5543, 0.0
      %vm5676 = vcmp.gt.f32.partialorder %v5544, 0.0
      %vm5677 = vcmp.gt.f32.partialorder %v5545, 0.0
      %vm5678 = vcmp.gt.f32.partialorder %v5546, 0.0
      %vm5679 = vcmp.gt.f32.partialorder %v5547, 0.0
      %vm5680 = vcmp.gt.f32.partialorder %v5548, 0.0
      %vm5681 = vcmp.gt.f32.partialorder %v5549, 0.0
      %vm5682 = vcmp.gt.f32.partialorder %v5550, 0.0
      %vm5683 = vcmp.gt.f32.partialorder %v5551, 0.0
      %vm5684 = vcmp.gt.f32.partialorder %v5552, 0.0
      %vm5685 = vcmp.gt.f32.partialorder %v5553, 0.0
      %vm5686 = vcmp.gt.f32.partialorder %v5554, 0.0
      %vm5687 = vcmp.gt.f32.partialorder %v5555, 0.0
      %vm5688 = vcmp.gt.f32.partialorder %v5556, 0.0
      %vm5689 = vcmp.gt.f32.partialorder %v5557, 0.0
      %vm5690 = vcmp.gt.f32.partialorder %v5558, 0.0
      %v5691 = vmul.f32 %v5427, 0.2
      %v5692 = vmul.f32 %v5428, 0.2
      %v5693 = vmul.f32 %v5429, 0.2
      %v5694 = vmul.f32 %v5430, 0.2
      %v5695 = vmul.f32 %v5431, 0.2
      %v5696 = vmul.f32 %v5432, 0.2
      %v5697 = vmul.f32 %v5433, 0.2
      %v5698 = vmul.f32 %v5434, 0.2
      %v5699 = vmul.f32 %v5435, 0.2
      %v5700 = vmul.f32 %v5436, 0.2
      %v5701 = vmul.f32 %v5437, 0.2
      %v5702 = vmul.f32 %v5438, 0.2
      %v5703 = vmul.f32 %v5439, 0.2
      %v5704 = vmul.f32 %v5440, 0.2
      %v5705 = vmul.f32 %v5441, 0.2
      %v5706 = vmul.f32 %v5442, 0.2
      %v5707 = vmul.f32 %v5443, 0.2
      %v5708 = vmul.f32 %v5444, 0.2
      %v5709 = vmul.f32 %v5445, 0.2
      %v5710 = vmul.f32 %v5446, 0.2
      %v5711 = vmul.f32 %v5447, 0.2
      %v5712 = vmul.f32 %v5448, 0.2
      %v5713 = vmul.f32 %v5449, 0.2
      %v5714 = vmul.f32 %v5450, 0.2
      %v5715 = vmul.f32 %v5451, 0.2
      %v5716 = vmul.f32 %v5452, 0.2
      %v5717 = vmul.f32 %v5453, 0.2
      %v5718 = vmul.f32 %v5454, 0.2
      %v5719 = vmul.f32 %v5455, 0.2
      %v5720 = vmul.f32 %v5456, 0.2
      %v5721 = vmul.f32 %v5457, 0.2
      %v5722 = vmul.f32 %v5458, 0.2
      %v5723 = vmul.f32 %v5459, 0.2
      %v5724 = vmul.f32 %v5460, 0.2
      %v5725 = vmul.f32 %v5461, 0.2
      %v5726 = vmul.f32 %v5462, 0.2
      %v5727 = vmul.f32 %v5463, 0.2
      %v5728 = vmul.f32 %v5464, 0.2
      %v5729 = vmul.f32 %v5465, 0.2
      %v5730 = vmul.f32 %v5466, 0.2
      %v5731 = vmul.f32 %v5467, 0.2
      %v5732 = vmul.f32 %v5468, 0.2
      %v5733 = vmul.f32 %v5469, 0.2
      %v5734 = vmul.f32 %v5470, 0.2
      %v5735 = vmul.f32 %v5471, 0.2
      %v5736 = vmul.f32 %v5472, 0.2
      %v5737 = vmul.f32 %v5473, 0.2
      %v5738 = vmul.f32 %v5474, 0.2
      %v5739 = vmul.f32 %v5475, 0.2
      %v5740 = vmul.f32 %v5476, 0.2
      %v5741 = vmul.f32 %v5477, 0.2
      %v5742 = vmul.f32 %v5478, 0.2
      %v5743 = vmul.f32 %v5479, 0.2
      %v5744 = vmul.f32 %v5480, 0.2
      %v5745 = vmul.f32 %v5481, 0.2
      %v5746 = vmul.f32 %v5482, 0.2
      %v5747 = vmul.f32 %v5483, 0.2
      %v5748 = vmul.f32 %v5484, 0.2
      %v5749 = vmul.f32 %v5485, 0.2
      %v5750 = vmul.f32 %v5486, 0.2
      %v5751 = vmul.f32 %v5487, 0.2
      %v5752 = vmul.f32 %v5488, 0.2
      %v5753 = vmul.f32 %v5489, 0.2
      %v5754 = vmul.f32 %v5490, 0.2
      %v5755 = vmul.f32 %v5491, 0.2
      %v5756 = vmul.f32 %v5492, 0.2
      %v5757 = vmul.f32 %v5493, 0.2
      %v5758 = vmul.f32 %v5494, 0.2
      %v5759 = vmul.f32 %v5495, 0.2
      %v5760 = vmul.f32 %v5496, 0.2
      %v5761 = vmul.f32 %v5497, 0.2
      %v5762 = vmul.f32 %v5498, 0.2
      %v5763 = vmul.f32 %v5499, 0.2
      %v5764 = vmul.f32 %v5500, 0.2
      %v5765 = vmul.f32 %v5501, 0.2
      %v5766 = vmul.f32 %v5502, 0.2
      %v5767 = vmul.f32 %v5503, 0.2
      %v5768 = vmul.f32 %v5504, 0.2
      %v5769 = vmul.f32 %v5505, 0.2
      %v5770 = vmul.f32 %v5506, 0.2
      %v5771 = vmul.f32 %v5507, 0.2
      %v5772 = vmul.f32 %v5508, 0.2
      %v5773 = vmul.f32 %v5509, 0.2
      %v5774 = vmul.f32 %v5510, 0.2
      %v5775 = vmul.f32 %v5511, 0.2
      %v5776 = vmul.f32 %v5512, 0.2
      %v5777 = vmul.f32 %v5513, 0.2
      %v5778 = vmul.f32 %v5514, 0.2
      %v5779 = vmul.f32 %v5515, 0.2
      %v5780 = vmul.f32 %v5516, 0.2
      %v5781 = vmul.f32 %v5517, 0.2
      %v5782 = vmul.f32 %v5518, 0.2
      %v5783 = vmul.f32 %v5519, 0.2
      %v5784 = vmul.f32 %v5520, 0.2
      %v5785 = vmul.f32 %v5521, 0.2
      %v5786 = vmul.f32 %v5522, 0.2
      %v5787 = vmul.f32 %v5523, 0.2
      %v5788 = vmul.f32 %v5524, 0.2
      %v5789 = vmul.f32 %v5525, 0.2
      %v5790 = vmul.f32 %v5526, 0.2
      %v5791 = vmul.f32 %v5527, 0.2
      %v5792 = vmul.f32 %v5528, 0.2
      %v5793 = vmul.f32 %v5529, 0.2
      %v5794 = vmul.f32 %v5530, 0.2
      %v5795 = vmul.f32 %v5531, 0.2
      %v5796 = vmul.f32 %v5532, 0.2
      %v5797 = vmul.f32 %v5533, 0.2
      %v5798 = vmul.f32 %v5534, 0.2
      %v5799 = vmul.f32 %v5535, 0.2
      %v5800 = vmul.f32 %v5536, 0.2
      %v5801 = vmul.f32 %v5537, 0.2
      %v5802 = vmul.f32 %v5538, 0.2
      %v5803 = vmul.f32 %v5539, 0.2
      %v5804 = vmul.f32 %v5540, 0.2
      %v5805 = vmul.f32 %v5541, 0.2
      %v5806 = vmul.f32 %v5542, 0.2
      %v5807 = vmul.f32 %v5543, 0.2
      %v5808 = vmul.f32 %v5544, 0.2
      %v5809 = vmul.f32 %v5545, 0.2
      %v5810 = vmul.f32 %v5546, 0.2
      %v5811 = vmul.f32 %v5547, 0.2
      %v5812 = vmul.f32 %v5548, 0.2
      %v5813 = vmul.f32 %v5549, 0.2
      %v5814 = vmul.f32 %v5550, 0.2
      %v5815 = vmul.f32 %v5551, 0.2
      %v5816 = vmul.f32 %v5552, 0.2
      %v5817 = vmul.f32 %v5553, 0.2
      %v5818 = vmul.f32 %v5554, 0.2
      %v5819 = vmul.f32 %v5555, 0.2
      %v5820 = vmul.f32 %v5556, 0.2
      %v5821 = vmul.f32 %v5557, 0.2
      %v5822 = vmul.f32 %v5558, 0.2
      %v5823 = vsel %vm5559, %v5427, %v5691
      %v5824 = vsel %vm5560, %v5428, %v5692
      %v5825 = vsel %vm5561, %v5429, %v5693
      %v5826 = vsel %vm5562, %v5430, %v5694
      %v5827 = vsel %vm5563, %v5431, %v5695
      %v5828 = vsel %vm5564, %v5432, %v5696
      %v5829 = vsel %vm5565, %v5433, %v5697
      %v5830 = vsel %vm5566, %v5434, %v5698
      %v5831 = vsel %vm5567, %v5435, %v5699
      %v5832 = vsel %vm5568, %v5436, %v5700
      %v5833 = vsel %vm5569, %v5437, %v5701
      %v5834 = vsel %vm5570, %v5438, %v5702
      %v5835 = vsel %vm5571, %v5439, %v5703
      %v5836 = vsel %vm5572, %v5440, %v5704
      %v5837 = vsel %vm5573, %v5441, %v5705
      %v5838 = vsel %vm5574, %v5442, %v5706
      %v5839 = vsel %vm5575, %v5443, %v5707
      %v5840 = vsel %vm5576, %v5444, %v5708
      %v5841 = vsel %vm5577, %v5445, %v5709
      %v5842 = vsel %vm5578, %v5446, %v5710
      %v5843 = vsel %vm5579, %v5447, %v5711
      %v5844 = vsel %vm5580, %v5448, %v5712
      %v5845 = vsel %vm5581, %v5449, %v5713
      %v5846 = vsel %vm5582, %v5450, %v5714
      %v5847 = vsel %vm5583, %v5451, %v5715
      %v5848 = vsel %vm5584, %v5452, %v5716
      %v5849 = vsel %vm5585, %v5453, %v5717
      %v5850 = vsel %vm5586, %v5454, %v5718
      %v5851 = vsel %vm5587, %v5455, %v5719
      %v5852 = vsel %vm5588, %v5456, %v5720
      %v5853 = vsel %vm5589, %v5457, %v5721
      %v5854 = vsel %vm5590, %v5458, %v5722
      %v5855 = vsel %vm5591, %v5459, %v5723
      %v5856 = vsel %vm5592, %v5460, %v5724
      %v5857 = vsel %vm5593, %v5461, %v5725
      %v5858 = vsel %vm5594, %v5462, %v5726
      %v5859 = vsel %vm5595, %v5463, %v5727
      %v5860 = vsel %vm5596, %v5464, %v5728
      %v5861 = vsel %vm5597, %v5465, %v5729
      %v5862 = vsel %vm5598, %v5466, %v5730
      %v5863 = vsel %vm5599, %v5467, %v5731
      %v5864 = vsel %vm5600, %v5468, %v5732
      %v5865 = vsel %vm5601, %v5469, %v5733
      %v5866 = vsel %vm5602, %v5470, %v5734
      %v5867 = vsel %vm5603, %v5471, %v5735
      %v5868 = vsel %vm5604, %v5472, %v5736
      %v5869 = vsel %vm5605, %v5473, %v5737
      %v5870 = vsel %vm5606, %v5474, %v5738
      %v5871 = vsel %vm5607, %v5475, %v5739
      %v5872 = vsel %vm5608, %v5476, %v5740
      %v5873 = vsel %vm5609, %v5477, %v5741
      %v5874 = vsel %vm5610, %v5478, %v5742
      %v5875 = vsel %vm5611, %v5479, %v5743
      %v5876 = vsel %vm5612, %v5480, %v5744
      %v5877 = vsel %vm5613, %v5481, %v5745
      %v5878 = vsel %vm5614, %v5482, %v5746
      %v5879 = vsel %vm5615, %v5483, %v5747
      %v5880 = vsel %vm5616, %v5484, %v5748
      %v5881 = vsel %vm5617, %v5485, %v5749
      %v5882 = vsel %vm5618, %v5486, %v5750
      %v5883 = vsel %vm5619, %v5487, %v5751
      %v5884 = vsel %vm5620, %v5488, %v5752
      %v5885 = vsel %vm5621, %v5489, %v5753
      %v5886 = vsel %vm5622, %v5490, %v5754
      %v5887 = vsel %vm5623, %v5491, %v5755
      %v5888 = vsel %vm5624, %v5492, %v5756
      %v5889 = vsel %vm5625, %v5493, %v5757
      %v5890 = vsel %vm5626, %v5494, %v5758
      %v5891 = vsel %vm5627, %v5495, %v5759
      %v5892 = vsel %vm5628, %v5496, %v5760
      %v5893 = vsel %vm5629, %v5497, %v5761
      %v5894 = vsel %vm5630, %v5498, %v5762
      %v5895 = vsel %vm5631, %v5499, %v5763
      %v5896 = vsel %vm5632, %v5500, %v5764
      %v5897 = vsel %vm5633, %v5501, %v5765
      %v5898 = vsel %vm5634, %v5502, %v5766
      %v5899 = vsel %vm5635, %v5503, %v5767
      %v5900 = vsel %vm5636, %v5504, %v5768
      %v5901 = vsel %vm5637, %v5505, %v5769
      %v5902 = vsel %vm5638, %v5506, %v5770
      %v5903 = vsel %vm5639, %v5507, %v5771
      %v5904 = vsel %vm5640, %v5508, %v5772
      %v5905 = vsel %vm5641, %v5509, %v5773
      %v5906 = vsel %vm5642, %v5510, %v5774
      %v5907 = vsel %vm5643, %v5511, %v5775
      %v5908 = vsel %vm5644, %v5512, %v5776
      %v5909 = vsel %vm5645, %v5513, %v5777
      %v5910 = vsel %vm5646, %v5514, %v5778
      %v5911 = vsel %vm5647, %v5515, %v5779
      %v5912 = vsel %vm5648, %v5516, %v5780
      %v5913 = vsel %vm5649, %v5517, %v5781
      %v5914 = vsel %vm5650, %v5518, %v5782
      %v5915 = vsel %vm5651, %v5519, %v5783
      %v5916 = vsel %vm5652, %v5520, %v5784
      %v5917 = vsel %vm5653, %v5521, %v5785
      %v5918 = vsel %vm5654, %v5522, %v5786
      %v5919 = vsel %vm5655, %v5523, %v5787
      %v5920 = vsel %vm5656, %v5524, %v5788
      %v5921 = vsel %vm5657, %v5525, %v5789
      %v5922 = vsel %vm5658, %v5526, %v5790
      %v5923 = vsel %vm5659, %v5527, %v5791
      %v5924 = vsel %vm5660, %v5528, %v5792
      %v5925 = vsel %vm5661, %v5529, %v5793
      %v5926 = vsel %vm5662, %v5530, %v5794
      %v5927 = vsel %vm5663, %v5531, %v5795
      %v5928 = vsel %vm5664, %v5532, %v5796
      %v5929 = vsel %vm5665, %v5533, %v5797
      %v5930 = vsel %vm5666, %v5534, %v5798
      %v5931 = vsel %vm5667, %v5535, %v5799
      %v5932 = vsel %vm5668, %v5536, %v5800
      %v5933 = vsel %vm5669, %v5537, %v5801
      %v5934 = vsel %vm5670, %v5538, %v5802
      %v5935 = vsel %vm5671, %v5539, %v5803
      %v5936 = vsel %vm5672, %v5540, %v5804
      %v5937 = vsel %vm5673, %v5541, %v5805
      %v5938 = vsel %vm5674, %v5542, %v5806
      %v5939 = vsel %vm5675, %v5543, %v5807
      %v5940 = vsel %vm5676, %v5544, %v5808
      %v5941 = vsel %vm5677, %v5545, %v5809
      %v5942 = vsel %vm5678, %v5546, %v5810
      %v5943 = vsel %vm5679, %v5547, %v5811
      %v5944 = vsel %vm5680, %v5548, %v5812
      %v5945 = vsel %vm5681, %v5549, %v5813
      %v5946 = vsel %vm5682, %v5550, %v5814
      %v5947 = vsel %vm5683, %v5551, %v5815
      %v5948 = vsel %vm5684, %v5552, %v5816
      %v5949 = vsel %vm5685, %v5553, %v5817
      %v5950 = vsel %vm5686, %v5554, %v5818
      %v5951 = vsel %vm5687, %v5555, %v5819
      %v5952 = vsel %vm5688, %v5556, %v5820
      %v5953 = vsel %vm5689, %v5557, %v5821
      %v5954 = vsel %vm5690, %v5558, %v5822
      %v5955 = vpack.c.bf16 %v5824, %v5823
      %v5956 = vpack.c.bf16 %v5826, %v5825
      %v5957 = vpack.c.bf16 %v5828, %v5827
      %v5958 = vpack.c.bf16 %v5830, %v5829
      %v5959 = vpack.c.bf16 %v5832, %v5831
      %v5960 = vpack.c.bf16 %v5834, %v5833
      %v5961 = vpack.c.bf16 %v5836, %v5835
      %v5962 = vpack.c.bf16 %v5838, %v5837
      %v5963 = vpack.c.bf16 %v5840, %v5839
      %v5964 = vpack.c.bf16 %v5842, %v5841
      %v5965 = vpack.c.bf16 %v5844, %v5843
      %v5966 = vpack.c.bf16 %v5846, %v5845
      %v5967 = vpack.c.bf16 %v5848, %v5847
      %v5968 = vpack.c.bf16 %v5850, %v5849
      %v5969 = vpack.c.bf16 %v5852, %v5851
      %v5970 = vpack.c.bf16 %v5854, %v5853
      %v5971 = vpack.c.bf16 %v5856, %v5855
      %v5972 = vpack.c.bf16 %v5858, %v5857
      %v5973 = vpack.c.bf16 %v5860, %v5859
      %v5974 = vpack.c.bf16 %v5862, %v5861
      %v5975 = vpack.c.bf16 %v5864, %v5863
      %v5976 = vpack.c.bf16 %v5866, %v5865
      %v5977 = vpack.c.bf16 %v5868, %v5867
      %v5978 = vpack.c.bf16 %v5870, %v5869
      %v5979 = vpack.c.bf16 %v5872, %v5871
      %v5980 = vpack.c.bf16 %v5874, %v5873
      %v5981 = vpack.c.bf16 %v5876, %v5875
      %v5982 = vpack.c.bf16 %v5878, %v5877
      %v5983 = vpack.c.bf16 %v5880, %v5879
      %v5984 = vpack.c.bf16 %v5882, %v5881
      %v5985 = vpack.c.bf16 %v5884, %v5883
      %v5986 = vpack.c.bf16 %v5886, %v5885
      %v5987 = vpack.c.bf16 %v5888, %v5887
      %v5988 = vpack.c.bf16 %v5890, %v5889
      %v5989 = vpack.c.bf16 %v5892, %v5891
      %v5990 = vpack.c.bf16 %v5894, %v5893
      %v5991 = vpack.c.bf16 %v5896, %v5895
      %v5992 = vpack.c.bf16 %v5898, %v5897
      %v5993 = vpack.c.bf16 %v5900, %v5899
      %v5994 = vpack.c.bf16 %v5902, %v5901
      %v5995 = vpack.c.bf16 %v5904, %v5903
      %v5996 = vpack.c.bf16 %v5906, %v5905
      %v5997 = vpack.c.bf16 %v5908, %v5907
      %v5998 = vpack.c.bf16 %v5910, %v5909
      %v5999 = vpack.c.bf16 %v5912, %v5911
      %v6000 = vpack.c.bf16 %v5914, %v5913
      %v6001 = vpack.c.bf16 %v5916, %v5915
      %v6002 = vpack.c.bf16 %v5918, %v5917
      %v6003 = vpack.c.bf16 %v5920, %v5919
      %v6004 = vpack.c.bf16 %v5922, %v5921
      %v6005 = vpack.c.bf16 %v5924, %v5923
      %v6006 = vpack.c.bf16 %v5926, %v5925
      %v6007 = vpack.c.bf16 %v5928, %v5927
      %v6008 = vpack.c.bf16 %v5930, %v5929
      %v6009 = vpack.c.bf16 %v5932, %v5931
      %v6010 = vpack.c.bf16 %v5934, %v5933
      %v6011 = vpack.c.bf16 %v5936, %v5935
      %v6012 = vpack.c.bf16 %v5938, %v5937
      %v6013 = vpack.c.bf16 %v5940, %v5939
      %v6014 = vpack.c.bf16 %v5942, %v5941
      %v6015 = vpack.c.bf16 %v5944, %v5943
      %v6016 = vpack.c.bf16 %v5946, %v5945
      %v6017 = vpack.c.bf16 %v5948, %v5947
      %v6018 = vpack.c.bf16 %v5950, %v5949
      %v6019 = vpack.c.bf16 %v5952, %v5951
      %v6020 = vpack.c.bf16 %v5954, %v5953
      %v6087 = vunpack.c.l.b16 %v5955
      %v6088 = vunpack.c.h.b16 %v5955
      %v6089 = vunpack.c.l.b16 %v5956
      %v6090 = vunpack.c.h.b16 %v5956
      %v6091 = vunpack.c.l.b16 %v5957
      %v6092 = vunpack.c.h.b16 %v5957
      %v6093 = vunpack.c.l.b16 %v5958
      %v6094 = vunpack.c.h.b16 %v5958
      %v6095 = vunpack.c.l.b16 %v5959
      %v6096 = vunpack.c.h.b16 %v5959
      %v6097 = vunpack.c.l.b16 %v5960
      %v6098 = vunpack.c.h.b16 %v5960
      %v6099 = vunpack.c.l.b16 %v5961
      %v6100 = vunpack.c.h.b16 %v5961
      %v6101 = vunpack.c.l.b16 %v5962
      %v6102 = vunpack.c.h.b16 %v5962
      %v6103 = vunpack.c.l.b16 %v5963
      %v6104 = vunpack.c.h.b16 %v5963
      %v6105 = vunpack.c.l.b16 %v5964
      %v6106 = vunpack.c.h.b16 %v5964
      %v6107 = vunpack.c.l.b16 %v5965
      %v6108 = vunpack.c.h.b16 %v5965
      %v6109 = vunpack.c.l.b16 %v5966
      %v6110 = vunpack.c.h.b16 %v5966
      %v6111 = vunpack.c.l.b16 %v5967
      %v6112 = vunpack.c.h.b16 %v5967
      %v6113 = vunpack.c.l.b16 %v5968
      %v6114 = vunpack.c.h.b16 %v5968
      %v6115 = vunpack.c.l.b16 %v5969
      %v6116 = vunpack.c.h.b16 %v5969
      %v6117 = vunpack.c.l.b16 %v5970
      %v6118 = vunpack.c.h.b16 %v5970
      %v6119 = vunpack.c.l.b16 %v5971
      %v6120 = vunpack.c.h.b16 %v5971
      %v6121 = vunpack.c.l.b16 %v5972
      %v6122 = vunpack.c.h.b16 %v5972
      %v6123 = vunpack.c.l.b16 %v5973
      %v6124 = vunpack.c.h.b16 %v5973
      %v6125 = vunpack.c.l.b16 %v5974
      %v6126 = vunpack.c.h.b16 %v5974
      %v6127 = vunpack.c.l.b16 %v5975
      %v6128 = vunpack.c.h.b16 %v5975
      %v6129 = vunpack.c.l.b16 %v5976
      %v6130 = vunpack.c.h.b16 %v5976
      %v6131 = vunpack.c.l.b16 %v5977
      %v6132 = vunpack.c.h.b16 %v5977
      %v6133 = vunpack.c.l.b16 %v5978
      %v6134 = vunpack.c.h.b16 %v5978
      %v6135 = vunpack.c.l.b16 %v5979
      %v6136 = vunpack.c.h.b16 %v5979
      %v6137 = vunpack.c.l.b16 %v5980
      %v6138 = vunpack.c.h.b16 %v5980
      %v6139 = vunpack.c.l.b16 %v5981
      %v6140 = vunpack.c.h.b16 %v5981
      %v6141 = vunpack.c.l.b16 %v5982
      %v6142 = vunpack.c.h.b16 %v5982
      %v6143 = vunpack.c.l.b16 %v5983
      %v6144 = vunpack.c.h.b16 %v5983
      %v6145 = vunpack.c.l.b16 %v5984
      %v6146 = vunpack.c.h.b16 %v5984
      %v6147 = vunpack.c.l.b16 %v5985
      %v6148 = vunpack.c.h.b16 %v5985
      %v6149 = vunpack.c.l.b16 %v5986
      %v6150 = vunpack.c.h.b16 %v5986
      %v6151 = vunpack.c.l.b16 %v5987
      %v6152 = vunpack.c.h.b16 %v5987
      %v6153 = vunpack.c.l.b16 %v5988
      %v6154 = vunpack.c.h.b16 %v5988
      %v6155 = vunpack.c.l.b16 %v5989
      %v6156 = vunpack.c.h.b16 %v5989
      %v6157 = vunpack.c.l.b16 %v5990
      %v6158 = vunpack.c.h.b16 %v5990
      %v6159 = vunpack.c.l.b16 %v5991
      %v6160 = vunpack.c.h.b16 %v5991
      %v6161 = vunpack.c.l.b16 %v5992
      %v6162 = vunpack.c.h.b16 %v5992
      %v6163 = vunpack.c.l.b16 %v5993
      %v6164 = vunpack.c.h.b16 %v5993
      %v6165 = vunpack.c.l.b16 %v5994
      %v6166 = vunpack.c.h.b16 %v5994
      %v6167 = vunpack.c.l.b16 %v5995
      %v6168 = vunpack.c.h.b16 %v5995
      %v6169 = vunpack.c.l.b16 %v5996
      %v6170 = vunpack.c.h.b16 %v5996
      %v6171 = vunpack.c.l.b16 %v5997
      %v6172 = vunpack.c.h.b16 %v5997
      %v6173 = vunpack.c.l.b16 %v5998
      %v6174 = vunpack.c.h.b16 %v5998
      %v6175 = vunpack.c.l.b16 %v5999
      %v6176 = vunpack.c.h.b16 %v5999
      %v6177 = vunpack.c.l.b16 %v6000
      %v6178 = vunpack.c.h.b16 %v6000
      %v6179 = vunpack.c.l.b16 %v6001
      %v6180 = vunpack.c.h.b16 %v6001
      %v6181 = vunpack.c.l.b16 %v6002
      %v6182 = vunpack.c.h.b16 %v6002
      %v6183 = vunpack.c.l.b16 %v6003
      %v6184 = vunpack.c.h.b16 %v6003
      %v6185 = vunpack.c.l.b16 %v6004
      %v6186 = vunpack.c.h.b16 %v6004
      %v6187 = vunpack.c.l.b16 %v6005
      %v6188 = vunpack.c.h.b16 %v6005
      %v6189 = vunpack.c.l.b16 %v6006
      %v6190 = vunpack.c.h.b16 %v6006
      %v6191 = vunpack.c.l.b16 %v6007
      %v6192 = vunpack.c.h.b16 %v6007
      %v6193 = vunpack.c.l.b16 %v6008
      %v6194 = vunpack.c.h.b16 %v6008
      %v6195 = vunpack.c.l.b16 %v6009
      %v6196 = vunpack.c.h.b16 %v6009
      %v6197 = vunpack.c.l.b16 %v6010
      %v6198 = vunpack.c.h.b16 %v6010
      %v6199 = vunpack.c.l.b16 %v6011
      %v6200 = vunpack.c.h.b16 %v6011
      %v6201 = vunpack.c.l.b16 %v6012
      %v6202 = vunpack.c.h.b16 %v6012
      %v6203 = vunpack.c.l.b16 %v6013
      %v6204 = vunpack.c.h.b16 %v6013
      %v6205 = vunpack.c.l.b16 %v6014
      %v6206 = vunpack.c.h.b16 %v6014
      %v6207 = vunpack.c.l.b16 %v6015
      %v6208 = vunpack.c.h.b16 %v6015
      %v6209 = vunpack.c.l.b16 %v6016
      %v6210 = vunpack.c.h.b16 %v6016
      %v6211 = vunpack.c.l.b16 %v6017
      %v6212 = vunpack.c.h.b16 %v6017
      %v6213 = vunpack.c.l.b16 %v6018
      %v6214 = vunpack.c.h.b16 %v6018
      %v6215 = vunpack.c.l.b16 %v6019
      %v6216 = vunpack.c.h.b16 %v6019
      %v6217 = vunpack.c.l.b16 %v6020
      %v6218 = vunpack.c.h.b16 %v6020
      %v6219 = vpack.c.b16 %v6087, %v6087
      %v6220 = vpack.c.b16 %v6088, %v6088
      %v6221 = vpack.c.b16 %v6089, %v6089
      %v6222 = vpack.c.b16 %v6090, %v6090
      %v6223 = vpack.c.b16 %v6091, %v6091
      %v6224 = vpack.c.b16 %v6092, %v6092
      %v6225 = vpack.c.b16 %v6093, %v6093
      %v6226 = vpack.c.b16 %v6094, %v6094
      %v6227 = vpack.c.b16 %v6095, %v6095
      %v6228 = vpack.c.b16 %v6096, %v6096
      %v6229 = vpack.c.b16 %v6097, %v6097
      %v6230 = vpack.c.b16 %v6098, %v6098
      %v6231 = vpack.c.b16 %v6099, %v6099
      %v6232 = vpack.c.b16 %v6100, %v6100
      %v6233 = vpack.c.b16 %v6101, %v6101
      %v6234 = vpack.c.b16 %v6102, %v6102
      %v6235 = vpack.c.b16 %v6103, %v6103
      %v6236 = vpack.c.b16 %v6104, %v6104
      %v6237 = vpack.c.b16 %v6105, %v6105
      %v6238 = vpack.c.b16 %v6106, %v6106
      %v6239 = vpack.c.b16 %v6107, %v6107
      %v6240 = vpack.c.b16 %v6108, %v6108
      %v6241 = vpack.c.b16 %v6109, %v6109
      %v6242 = vpack.c.b16 %v6110, %v6110
      %v6243 = vpack.c.b16 %v6111, %v6111
      %v6244 = vpack.c.b16 %v6112, %v6112
      %v6245 = vpack.c.b16 %v6113, %v6113
      %v6246 = vpack.c.b16 %v6114, %v6114
      %v6247 = vpack.c.b16 %v6115, %v6115
      %v6248 = vpack.c.b16 %v6116, %v6116
      %v6249 = vpack.c.b16 %v6117, %v6117
      %v6250 = vpack.c.b16 %v6118, %v6118
      %v6251 = vpack.c.b16 %v6119, %v6119
      %v6252 = vpack.c.b16 %v6120, %v6120
      %v6253 = vpack.c.b16 %v6121, %v6121
      %v6254 = vpack.c.b16 %v6122, %v6122
      %v6255 = vpack.c.b16 %v6123, %v6123
      %v6256 = vpack.c.b16 %v6124, %v6124
      %v6257 = vpack.c.b16 %v6125, %v6125
      %v6258 = vpack.c.b16 %v6126, %v6126
      %v6259 = vpack.c.b16 %v6127, %v6127
      %v6260 = vpack.c.b16 %v6128, %v6128
      %v6261 = vpack.c.b16 %v6129, %v6129
      %v6262 = vpack.c.b16 %v6130, %v6130
      %v6263 = vpack.c.b16 %v6131, %v6131
      %v6264 = vpack.c.b16 %v6132, %v6132
      %v6265 = vpack.c.b16 %v6133, %v6133
      %v6266 = vpack.c.b16 %v6134, %v6134
      %v6267 = vpack.c.b16 %v6135, %v6135
      %v6268 = vpack.c.b16 %v6136, %v6136
      %v6269 = vpack.c.b16 %v6137, %v6137
      %v6270 = vpack.c.b16 %v6138, %v6138
      %v6271 = vpack.c.b16 %v6139, %v6139
      %v6272 = vpack.c.b16 %v6140, %v6140
      %v6273 = vpack.c.b16 %v6141, %v6141
      %v6274 = vpack.c.b16 %v6142, %v6142
      %v6275 = vpack.c.b16 %v6143, %v6143
      %v6276 = vpack.c.b16 %v6144, %v6144
      %v6277 = vpack.c.b16 %v6145, %v6145
      %v6278 = vpack.c.b16 %v6146, %v6146
      %v6279 = vpack.c.b16 %v6147, %v6147
      %v6280 = vpack.c.b16 %v6148, %v6148
      %v6281 = vpack.c.b16 %v6149, %v6149
      %v6282 = vpack.c.b16 %v6150, %v6150
      %v6283 = vpack.c.b16 %v6151, %v6151
      %v6284 = vpack.c.b16 %v6152, %v6152
      %v6285 = vpack.c.b16 %v6153, %v6153
      %v6286 = vpack.c.b16 %v6154, %v6154
      %v6287 = vpack.c.b16 %v6155, %v6155
      %v6288 = vpack.c.b16 %v6156, %v6156
      %v6289 = vpack.c.b16 %v6157, %v6157
      %v6290 = vpack.c.b16 %v6158, %v6158
      %v6291 = vpack.c.b16 %v6159, %v6159
      %v6292 = vpack.c.b16 %v6160, %v6160
      %v6293 = vpack.c.b16 %v6161, %v6161
      %v6294 = vpack.c.b16 %v6162, %v6162
      %v6295 = vpack.c.b16 %v6163, %v6163
      %v6296 = vpack.c.b16 %v6164, %v6164
      %v6297 = vpack.c.b16 %v6165, %v6165
      %v6298 = vpack.c.b16 %v6166, %v6166
      %v6299 = vpack.c.b16 %v6167, %v6167
      %v6300 = vpack.c.b16 %v6168, %v6168
      %v6301 = vpack.c.b16 %v6169, %v6169
      %v6302 = vpack.c.b16 %v6170, %v6170
      %v6303 = vpack.c.b16 %v6171, %v6171
      %v6304 = vpack.c.b16 %v6172, %v6172
      %v6305 = vpack.c.b16 %v6173, %v6173
      %v6306 = vpack.c.b16 %v6174, %v6174
      %v6307 = vpack.c.b16 %v6175, %v6175
      %v6308 = vpack.c.b16 %v6176, %v6176
      %v6309 = vpack.c.b16 %v6177, %v6177
      %v6310 = vpack.c.b16 %v6178, %v6178
      %v6311 = vpack.c.b16 %v6179, %v6179
      %v6312 = vpack.c.b16 %v6180, %v6180
      %v6313 = vpack.c.b16 %v6181, %v6181
      %v6314 = vpack.c.b16 %v6182, %v6182
      %v6315 = vpack.c.b16 %v6183, %v6183
      %v6316 = vpack.c.b16 %v6184, %v6184
      %v6317 = vpack.c.b16 %v6185, %v6185
      %v6318 = vpack.c.b16 %v6186, %v6186
      %v6319 = vpack.c.b16 %v6187, %v6187
      %v6320 = vpack.c.b16 %v6188, %v6188
      %v6321 = vpack.c.b16 %v6189, %v6189
      %v6322 = vpack.c.b16 %v6190, %v6190
      %v6323 = vpack.c.b16 %v6191, %v6191
      %v6324 = vpack.c.b16 %v6192, %v6192
      %v6325 = vpack.c.b16 %v6193, %v6193
      %v6326 = vpack.c.b16 %v6194, %v6194
      %v6327 = vpack.c.b16 %v6195, %v6195
      %v6328 = vpack.c.b16 %v6196, %v6196
      %v6329 = vpack.c.b16 %v6197, %v6197
      %v6330 = vpack.c.b16 %v6198, %v6198
      %v6331 = vpack.c.b16 %v6199, %v6199
      %v6332 = vpack.c.b16 %v6200, %v6200
      %v6333 = vpack.c.b16 %v6201, %v6201
      %v6334 = vpack.c.b16 %v6202, %v6202
      %v6335 = vpack.c.b16 %v6203, %v6203
      %v6336 = vpack.c.b16 %v6204, %v6204
      %v6337 = vpack.c.b16 %v6205, %v6205
      %v6338 = vpack.c.b16 %v6206, %v6206
      %v6339 = vpack.c.b16 %v6207, %v6207
      %v6340 = vpack.c.b16 %v6208, %v6208
      %v6341 = vpack.c.b16 %v6209, %v6209
      %v6342 = vpack.c.b16 %v6210, %v6210
      %v6343 = vpack.c.b16 %v6211, %v6211
      %v6344 = vpack.c.b16 %v6212, %v6212
      %v6345 = vpack.c.b16 %v6213, %v6213
      %v6346 = vpack.c.b16 %v6214, %v6214
      %v6347 = vpack.c.b16 %v6215, %v6215
      %v6348 = vpack.c.b16 %v6216, %v6216
      %v6349 = vpack.c.b16 %v6217, %v6217
      %v6350 = vpack.c.b16 %v6218, %v6218
      %vm6483 = vcmask 60416
      %6484 = vst.msk [vmem:[%s143] sm:$0xf] %vm6483, %v6219
      %6485 = vst.msk [vmem:[%s143 + $0x4] sm:$0xf] %vm6483, %v6220
      %6486 = vst.msk [vmem:[%s143 + $0x8] sm:$0xf] %vm6483, %v6221
      %6487 = vst.msk [vmem:[%s143 + $0xc] sm:$0xf] %vm6483, %v6222
      %6488 = vst.msk [vmem:[%s143 + $0x10] sm:$0xf] %vm6483, %v6223
      %6489 = vst.msk [vmem:[%s143 + $0x14] sm:$0xf] %vm6483, %v6224
      %6490 = vst.msk [vmem:[%s143 + $0x18] sm:$0xf] %vm6483, %v6225
      %6491 = vst.msk [vmem:[%s143 + $0x1c] sm:$0xf] %vm6483, %v6226
      %6492 = vst.msk [vmem:[%s143 + $0x20] sm:$0xf] %vm6483, %v6227
      %6493 = vst.msk [vmem:[%s143 + $0x24] sm:$0xf] %vm6483, %v6228
      %6494 = vst.msk [vmem:[%s143 + $0x28] sm:$0xf] %vm6483, %v6229
      %6495 = vst.msk [vmem:[%s143 + $0x2c] sm:$0xf] %vm6483, %v6230
      %6496 = vst.msk [vmem:[%s143 + $0x30] sm:$0xf] %vm6483, %v6231
      %6497 = vst.msk [vmem:[%s143 + $0x34] sm:$0xf] %vm6483, %v6232
      %6498 = vst.msk [vmem:[%s143 + $0x38] sm:$0xf] %vm6483, %v6233
      %6499 = vst.msk [vmem:[%s143 + $0x3c] sm:$0xf] %vm6483, %v6234
      %6500 = vst.msk [vmem:[%s143 + $0x40] sm:$0xf] %vm6483, %v6235
      %6501 = vst.msk [vmem:[%s143 + $0x44] sm:$0xf] %vm6483, %v6236
      %6502 = vst.msk [vmem:[%s143 + $0x48] sm:$0xf] %vm6483, %v6237
      %6503 = vst.msk [vmem:[%s143 + $0x4c] sm:$0xf] %vm6483, %v6238
      %6504 = vst.msk [vmem:[%s143 + $0x50] sm:$0xf] %vm6483, %v6239
      %6505 = vst.msk [vmem:[%s143 + $0x54] sm:$0xf] %vm6483, %v6240
      %6506 = vst.msk [vmem:[%s143 + $0x58] sm:$0xf] %vm6483, %v6241
      %6507 = vst.msk [vmem:[%s143 + $0x5c] sm:$0xf] %vm6483, %v6242
      %6508 = vst.msk [vmem:[%s143 + $0x60] sm:$0xf] %vm6483, %v6243
      %6509 = vst.msk [vmem:[%s143 + $0x64] sm:$0xf] %vm6483, %v6244
      %6510 = vst.msk [vmem:[%s143 + $0x68] sm:$0xf] %vm6483, %v6245
      %6511 = vst.msk [vmem:[%s143 + $0x6c] sm:$0xf] %vm6483, %v6246
      %6512 = vst.msk [vmem:[%s143 + $0x70] sm:$0xf] %vm6483, %v6247
      %6513 = vst.msk [vmem:[%s143 + $0x74] sm:$0xf] %vm6483, %v6248
      %6514 = vst.msk [vmem:[%s143 + $0x78] sm:$0xf] %vm6483, %v6249
      %6515 = vst.msk [vmem:[%s143 + $0x7c] sm:$0xf] %vm6483, %v6250
      %6516 = vst.msk [vmem:[%s143 + $0x80] sm:$0xf] %vm6483, %v6251
      %6517 = vst.msk [vmem:[%s143 + $0x84] sm:$0xf] %vm6483, %v6252
      %6518 = vst.msk [vmem:[%s143 + $0x88] sm:$0xf] %vm6483, %v6253
      %6519 = vst.msk [vmem:[%s143 + $0x8c] sm:$0xf] %vm6483, %v6254
      %6520 = vst.msk [vmem:[%s143 + $0x90] sm:$0xf] %vm6483, %v6255
      %6521 = vst.msk [vmem:[%s143 + $0x94] sm:$0xf] %vm6483, %v6256
      %6522 = vst.msk [vmem:[%s143 + $0x98] sm:$0xf] %vm6483, %v6257
      %6523 = vst.msk [vmem:[%s143 + $0x9c] sm:$0xf] %vm6483, %v6258
      %6524 = vst.msk [vmem:[%s143 + $0xa0] sm:$0xf] %vm6483, %v6259
      %6525 = vst.msk [vmem:[%s143 + $0xa4] sm:$0xf] %vm6483, %v6260
      %6526 = vst.msk [vmem:[%s143 + $0xa8] sm:$0xf] %vm6483, %v6261
      %6527 = vst.msk [vmem:[%s143 + $0xac] sm:$0xf] %vm6483, %v6262
      %6528 = vst.msk [vmem:[%s143 + $0xb0] sm:$0xf] %vm6483, %v6263
      %6529 = vst.msk [vmem:[%s143 + $0xb4] sm:$0xf] %vm6483, %v6264
      %6530 = vst.msk [vmem:[%s143 + $0xb8] sm:$0xf] %vm6483, %v6265
      %6531 = vst.msk [vmem:[%s143 + $0xbc] sm:$0xf] %vm6483, %v6266
      %6532 = vst.msk [vmem:[%s143 + $0xc0] sm:$0xf] %vm6483, %v6267
      %6533 = vst.msk [vmem:[%s143 + $0xc4] sm:$0xf] %vm6483, %v6268
      %6534 = vst.msk [vmem:[%s143 + $0xc8] sm:$0xf] %vm6483, %v6269
      %6535 = vst.msk [vmem:[%s143 + $0xcc] sm:$0xf] %vm6483, %v6270
      %6536 = vst.msk [vmem:[%s143 + $0xd0] sm:$0xf] %vm6483, %v6271
      %6537 = vst.msk [vmem:[%s143 + $0xd4] sm:$0xf] %vm6483, %v6272
      %6538 = vst.msk [vmem:[%s143 + $0xd8] sm:$0xf] %vm6483, %v6273
      %6539 = vst.msk [vmem:[%s143 + $0xdc] sm:$0xf] %vm6483, %v6274
      %6540 = vst.msk [vmem:[%s143 + $0xe0] sm:$0xf] %vm6483, %v6275
      %6541 = vst.msk [vmem:[%s143 + $0xe4] sm:$0xf] %vm6483, %v6276
      %6542 = vst.msk [vmem:[%s143 + $0xe8] sm:$0xf] %vm6483, %v6277
      %6543 = vst.msk [vmem:[%s143 + $0xec] sm:$0xf] %vm6483, %v6278
      %6544 = vst.msk [vmem:[%s143 + $0xf0] sm:$0xf] %vm6483, %v6279
      %6545 = vst.msk [vmem:[%s143 + $0xf4] sm:$0xf] %vm6483, %v6280
      %6546 = vst.msk [vmem:[%s143 + $0xf8] sm:$0xf] %vm6483, %v6281
      %6547 = vst.msk [vmem:[%s143 + $0xfc] sm:$0xf] %vm6483, %v6282
      %6548 = vst.msk [vmem:[%s143 + $0x100] sm:$0xf] %vm6483, %v6283
      %6549 = vst.msk [vmem:[%s143 + $0x104] sm:$0xf] %vm6483, %v6284
      %6550 = vst.msk [vmem:[%s143 + $0x108] sm:$0xf] %vm6483, %v6285
      %6551 = vst.msk [vmem:[%s143 + $0x10c] sm:$0xf] %vm6483, %v6286
      %6552 = vst.msk [vmem:[%s143 + $0x110] sm:$0xf] %vm6483, %v6287
      %6553 = vst.msk [vmem:[%s143 + $0x114] sm:$0xf] %vm6483, %v6288
      %6554 = vst.msk [vmem:[%s143 + $0x118] sm:$0xf] %vm6483, %v6289
      %6555 = vst.msk [vmem:[%s143 + $0x11c] sm:$0xf] %vm6483, %v6290
      %6556 = vst.msk [vmem:[%s143 + $0x120] sm:$0xf] %vm6483, %v6291
      %6557 = vst.msk [vmem:[%s143 + $0x124] sm:$0xf] %vm6483, %v6292
      %6558 = vst.msk [vmem:[%s143 + $0x128] sm:$0xf] %vm6483, %v6293
      %6559 = vst.msk [vmem:[%s143 + $0x12c] sm:$0xf] %vm6483, %v6294
      %6560 = vst.msk [vmem:[%s143 + $0x130] sm:$0xf] %vm6483, %v6295
      %6561 = vst.msk [vmem:[%s143 + $0x134] sm:$0xf] %vm6483, %v6296
      %6562 = vst.msk [vmem:[%s143 + $0x138] sm:$0xf] %vm6483, %v6297
      %6563 = vst.msk [vmem:[%s143 + $0x13c] sm:$0xf] %vm6483, %v6298
      %6564 = vst.msk [vmem:[%s143 + $0x140] sm:$0xf] %vm6483, %v6299
      %6565 = vst.msk [vmem:[%s143 + $0x144] sm:$0xf] %vm6483, %v6300
      %6566 = vst.msk [vmem:[%s143 + $0x148] sm:$0xf] %vm6483, %v6301
      %6567 = vst.msk [vmem:[%s143 + $0x14c] sm:$0xf] %vm6483, %v6302
      %6568 = vst.msk [vmem:[%s143 + $0x150] sm:$0xf] %vm6483, %v6303
      %6569 = vst.msk [vmem:[%s143 + $0x154] sm:$0xf] %vm6483, %v6304
      %6570 = vst.msk [vmem:[%s143 + $0x158] sm:$0xf] %vm6483, %v6305
      %6571 = vst.msk [vmem:[%s143 + $0x15c] sm:$0xf] %vm6483, %v6306
      %6572 = vst.msk [vmem:[%s143 + $0x160] sm:$0xf] %vm6483, %v6307
      %6573 = vst.msk [vmem:[%s143 + $0x164] sm:$0xf] %vm6483, %v6308
      %6574 = vst.msk [vmem:[%s143 + $0x168] sm:$0xf] %vm6483, %v6309
      %6575 = vst.msk [vmem:[%s143 + $0x16c] sm:$0xf] %vm6483, %v6310
      %6576 = vst.msk [vmem:[%s143 + $0x170] sm:$0xf] %vm6483, %v6311
      %6577 = vst.msk [vmem:[%s143 + $0x174] sm:$0xf] %vm6483, %v6312
      %6578 = vst.msk [vmem:[%s143 + $0x178] sm:$0xf] %vm6483, %v6313
      %6579 = vst.msk [vmem:[%s143 + $0x17c] sm:$0xf] %vm6483, %v6314
      %6580 = vst.msk [vmem:[%s143 + $0x180] sm:$0xf] %vm6483, %v6315
      %6581 = vst.msk [vmem:[%s143 + $0x184] sm:$0xf] %vm6483, %v6316
      %6582 = vst.msk [vmem:[%s143 + $0x188] sm:$0xf] %vm6483, %v6317
      %6583 = vst.msk [vmem:[%s143 + $0x18c] sm:$0xf] %vm6483, %v6318
      %6584 = vst.msk [vmem:[%s143 + $0x190] sm:$0xf] %vm6483, %v6319
      %6585 = vst.msk [vmem:[%s143 + $0x194] sm:$0xf] %vm6483, %v6320
      %6586 = vst.msk [vmem:[%s143 + $0x198] sm:$0xf] %vm6483, %v6321
      %6587 = vst.msk [vmem:[%s143 + $0x19c] sm:$0xf] %vm6483, %v6322
      %6588 = vst.msk [vmem:[%s143 + $0x1a0] sm:$0xf] %vm6483, %v6323
      %6589 = vst.msk [vmem:[%s143 + $0x1a4] sm:$0xf] %vm6483, %v6324
      %6590 = vst.msk [vmem:[%s143 + $0x1a8] sm:$0xf] %vm6483, %v6325
      %6591 = vst.msk [vmem:[%s143 + $0x1ac] sm:$0xf] %vm6483, %v6326
      %6592 = vst.msk [vmem:[%s143 + $0x1b0] sm:$0xf] %vm6483, %v6327
      %6593 = vst.msk [vmem:[%s143 + $0x1b4] sm:$0xf] %vm6483, %v6328
      %6594 = vst.msk [vmem:[%s143 + $0x1b8] sm:$0xf] %vm6483, %v6329
      %6595 = vst.msk [vmem:[%s143 + $0x1bc] sm:$0xf] %vm6483, %v6330
      %6596 = vst.msk [vmem:[%s143 + $0x1c0] sm:$0xf] %vm6483, %v6331
      %6597 = vst.msk [vmem:[%s143 + $0x1c4] sm:$0xf] %vm6483, %v6332
      %6598 = vst.msk [vmem:[%s143 + $0x1c8] sm:$0xf] %vm6483, %v6333
      %6599 = vst.msk [vmem:[%s143 + $0x1cc] sm:$0xf] %vm6483, %v6334
      %6600 = vst.msk [vmem:[%s143 + $0x1d0] sm:$0xf] %vm6483, %v6335
      %6601 = vst.msk [vmem:[%s143 + $0x1d4] sm:$0xf] %vm6483, %v6336
      %6602 = vst.msk [vmem:[%s143 + $0x1d8] sm:$0xf] %vm6483, %v6337
      %6603 = vst.msk [vmem:[%s143 + $0x1dc] sm:$0xf] %vm6483, %v6338
      %6604 = vst.msk [vmem:[%s143 + $0x1e0] sm:$0xf] %vm6483, %v6339
      %6605 = vst.msk [vmem:[%s143 + $0x1e4] sm:$0xf] %vm6483, %v6340
      %6606 = vst.msk [vmem:[%s143 + $0x1e8] sm:$0xf] %vm6483, %v6341
      %6607 = vst.msk [vmem:[%s143 + $0x1ec] sm:$0xf] %vm6483, %v6342
      %6608 = vst.msk [vmem:[%s143 + $0x1f0] sm:$0xf] %vm6483, %v6343
      %6609 = vst.msk [vmem:[%s143 + $0x1f4] sm:$0xf] %vm6483, %v6344
      %6610 = vst.msk [vmem:[%s143 + $0x1f8] sm:$0xf] %vm6483, %v6345
      %6611 = vst.msk [vmem:[%s143 + $0x1fc] sm:$0xf] %vm6483, %v6346
      %6612 = vst.msk [vmem:[%s143 + $0x200] sm:$0xf] %vm6483, %v6347
      %6613 = vst.msk [vmem:[%s143 + $0x204] sm:$0xf] %vm6483, %v6348
      %6614 = vst.msk [vmem:[%s143 + $0x208] sm:$0xf] %vm6483, %v6349
      %6615 = vst.msk [vmem:[%s143 + $0x20c] sm:$0xf] %vm6483, %v6350
      %p6616 = scmp.lt.s32.totalorder %s13, 1
      %s6617 = scalar_select %p6616, %s13, 1
      %s6618 = smul.addr %s6617, 132
      %s6619 = smul.addr %s6618, 4
      %s6620 = scalar_lea.vmem %s2, %s6619
      // Predicated region
      $region29: #{discriminator_forward.5} parent=27 // pred_check
        %p6621 = pneg %p78
      $region30: #{discriminator_forward.5} parent=27 // pred_check_branch
        %6623 = sbr.rel (%p6621) target = $region32
      $region31: #{discriminator_forward.5} parent=27 // pred_region
        _
      $region32: #{discriminator_forward.5} parent=27 // pred_fallthru
        _
    $region28: #{discriminator_forward.5} parent=5 // pred_fallthru
      _
    %p6624 = scmp.le.s32.totalorder 2, %s8
    // Predicated region
    $region33: #{discriminator_forward.5} parent=5 // pred_check
      %p6625 = pneg %p6624
    $region34: #{discriminator_forward.5} parent=5 // pred_check_branch
      %6627 = sbr.rel (%p6625) target = $region36
    $region35: #{discriminator_forward.5} parent=5 // pred_region
      %s6628 = ssub.s32 %s8, 2
      // Predicated region
      $region37: #{discriminator_forward.5} parent=35 // pred_check
        %p6629 = pneg %p84
      $region38: #{discriminator_forward.5} parent=35 // pred_check_branch
        %6631 = sbr.rel (%p6629) target = $region40
      $region39: #{discriminator_forward.5} parent=35 // pred_region
        %p6632 = scmp.lt.s32.totalorder %s14, 1
        %s6633 = scalar_select %p6632, %s14, 1
        %s6634 = smul.addr %s6633, 132
        %s6635 = smul.addr %s6634, 4
        %s6636 = scalar_lea.vmem %s2, %s6635
      $region40: #{discriminator_forward.5} parent=35 // pred_fallthru
        _
    $region36: #{discriminator_forward.5} parent=5 // pred_fallthru
      _
  $region6: #{discriminator_forward.5} parent=0 // loop_footer
    %s12 = sadd.s32 1, %s8
  $region7: #{discriminator_forward.5} parent=0 // loop_footer_branch
    %7 = sbr.rel target = $region3
  $region8: #{discriminator_forward.5} parent=0 // loop_exit
    _

// kernel: discriminator_forward.6
$region0: #{discriminator_forward.6}
  #allocation0 [shape = 'u32[]', space=smem, size = 0x4, offset = 0x4, fixed_abs, tag = 'smem constant byte address 0x4 - core index']
  #allocation1 [shape = 'u32[144,128]{1,0:T(1,128)}', space=vmem, size = 0x12000, scoped, tag = 'internal scratch']
  %s0 = inlined_call_operand.vmem [shape: bf16[2,297,32], index: 0, kind: input, shape index: {}]
  %s1 = inlined_call_operand.vmem [shape: bf16[4,32,16], index: 1, kind: input, shape index: {}]
  %s2 = inlined_call_operand.vmem [shape: f32[272,1], index: 2, kind: input, shape index: {}]
  %s3 = inlined_call_operand.vmem [shape: bf16[2,272,16], index: 3, kind: output, shape index: {0}]
  %s4 = inlined_call_operand.vmem [shape: f32[2,1,16], index: 4, kind: output, shape index: {1}]
  %s5 = inlined_call_operand.vmem [shape: f32[2,1,16], index: 5, kind: output, shape index: {2}]
  %6 = xla_tuple %s3, %s4, %s5
  %s7 = sld [smem:[#allocation0]]
  $region61: #{discriminator_forward.6} parent=0
    _
  %s9 = ssub.s32 1, %s7
  %s10 = scalar_select 0, %s9, %s7
  loop: start=0, step=1, limit=4
  $region2: #{discriminator_forward.6} parent=0 // loop_pre_header
    _
  $region3: #{discriminator_forward.6} parent=0 // loop_header
    %s12 = sphi 0, %s16
    %p13 = scmp.ge.s32.totalorder %s12, 4
    %s22 = sphi 0, %s24
    %s25 = sphi 0, %s22
    %s26 = sphi 0, %s25
    %s42 = sphi 0, %s26
    %s46 = sphi 0, %s46
    %s48 = sphi 0, %s46
    %s49 = sphi 0, %s48
    %s63 = sphi 0, %s49
    %s67 = sphi 0, %s67
    %s69 = sphi 0, %s67
    %s70 = sphi 0, %s69
    %s84 = sphi 0, %s70
    %s90 = sphi 0, %s92
    %s93 = sphi 0, %s90
    %s94 = sphi 0, %s93
    %s110 = sphi 0, %s94
    %s116 = sphi 0, %s118
    %s119 = sphi 0, %s116
    %s120 = sphi 0, %s119
    %s136 = sphi 0, %s120
    %s142 = sphi 0, %s144
    %s145 = sphi 0, %s142
    %s146 = sphi 0, %s145
    %s162 = sphi 0, %s146
  $region4: #{discriminator_forward.6} parent=0 // loop_header_branch
    %15 = sbr.rel (%p13) target = $region8
  $region5: #{discriminator_forward.6} parent=0 // loop_body
    %s17 = ssub.s32 %s12, 1
    %s18 = ssub.s32 %s12, 2
    %s19 = sadd.s32 %s12, 1
    %s20 = ssub.s32 %s12, %s19
    %p21 = scmp.eq.s32.totalorder %s20, 0
    %s23 = sadd.s32 %s22, 1
    %s24 = scalar_select %p21, %s22, %s23
    %p27 = pneg %p21
    %p28 = scmp.eq.s32.totalorder %s12, 1
    %p29 = por %p27, %p28
    %p30 = scmp.ne.s32.totalorder %s22, %s25
    %p31 = scmp.eq.s32.totalorder %s12, 0
    %p32 = por %p30, %p31
    %p33 = scmp.ne.s32.totalorder %s22, %s25
    %p34 = scmp.eq.s32.totalorder %s17, 1
    %p35 = por %p33, %p34
    %p36 = scmp.ne.s32.totalorder %s25, %s26
    %p37 = scmp.eq.s32.totalorder %s17, 0
    %p38 = por %p36, %p37
    %p39 = scmp.ne.s32.totalorder %s25, %s26
    %p40 = scmp.eq.s32.totalorder %s18, 1
    %p41 = por %p39, %p40
    %p43 = scmp.ne.s32.totalorder %s26, %s42
    %p44 = scmp.eq.s32.totalorder %s18, 0
    %p45 = por %p43, %p44
    %s47 = sadd.s32 %s46, 1
    %p50 = scmp.eq.s32.totalorder %s12, 1
    %p51 = scmp.ne.s32.totalorder %s46, %s48
    %p52 = scmp.eq.s32.totalorder %s12, 0
    %p53 = por %p51, %p52
    %p54 = scmp.ne.s32.totalorder %s46, %s48
    %p55 = scmp.eq.s32.totalorder %s17, 1
    %p56 = por %p54, %p55
    %p57 = scmp.ne.s32.totalorder %s48, %s49
    %p58 = scmp.eq.s32.totalorder %s17, 0
    %p59 = por %p57, %p58
    %p60 = scmp.ne.s32.totalorder %s48, %s49
    %p61 = scmp.eq.s32.totalorder %s18, 1
    %p62 = por %p60, %p61
    %p64 = scmp.ne.s32.totalorder %s49, %s63
    %p65 = scmp.eq.s32.totalorder %s18, 0
    %p66 = por %p64, %p65
    %s68 = sadd.s32 %s67, 1
    %p71 = scmp.eq.s32.totalorder %s12, 1
    %p72 = scmp.ne.s32.totalorder %s67, %s69
    %p73 = scmp.eq.s32.totalorder %s12, 0
    %p74 = por %p72, %p73
    %p75 = scmp.ne.s32.totalorder %s67, %s69
    %p76 = scmp.eq.s32.totalorder %s17, 1
    %p77 = por %p75, %p76
    %p78 = scmp.ne.s32.totalorder %s69, %s70
    %p79 = scmp.eq.s32.totalorder %s17, 0
    %p80 = por %p78, %p79
    %p81 = scmp.ne.s32.totalorder %s69, %s70
    %p82 = scmp.eq.s32.totalorder %s18, 1
    %p83 = por %p81, %p82
    %p85 = scmp.ne.s32.totalorder %s70, %s84
    %p86 = scmp.eq.s32.totalorder %s18, 0
    %p87 = por %p85, %p86
    %s88 = ssub.s32 %s12, %s19
    %p89 = scmp.eq.s32.totalorder %s88, 0
    %s91 = sadd.s32 %s90, 1
    %s92 = scalar_select %p89, %s90, %s91
    %p95 = pneg %p89
    %p96 = scmp.eq.s32.totalorder %s12, 1
    %p97 = por %p95, %p96
    %p98 = scmp.ne.s32.totalorder %s90, %s93
    %p99 = scmp.eq.s32.totalorder %s12, 0
    %p100 = por %p98, %p99
    %p101 = scmp.ne.s32.totalorder %s90, %s93
    %p102 = scmp.eq.s32.totalorder %s17, 1
    %p103 = por %p101, %p102
    %p104 = scmp.ne.s32.totalorder %s93, %s94
    %p105 = scmp.eq.s32.totalorder %s17, 0
    %p106 = por %p104, %p105
    %p107 = scmp.ne.s32.totalorder %s93, %s94
    %p108 = scmp.eq.s32.totalorder %s18, 1
    %p109 = por %p107, %p108
    %p111 = scmp.ne.s32.totalorder %s94, %s110
    %p112 = scmp.eq.s32.totalorder %s18, 0
    %p113 = por %p111, %p112
    %s114 = ssub.s32 %s12, %s19
    %p115 = scmp.eq.s32.totalorder %s114, 0
    %s117 = sadd.s32 %s116, 1
    %s118 = scalar_select %p115, %s116, %s117
    %p121 = pneg %p115
    %p122 = scmp.eq.s32.totalorder %s12, 1
    %p123 = por %p121, %p122
    %p124 = scmp.ne.s32.totalorder %s116, %s119
    %p125 = scmp.eq.s32.totalorder %s12, 0
    %p126 = por %p124, %p125
    %p127 = scmp.ne.s32.totalorder %s116, %s119
    %p128 = scmp.eq.s32.totalorder %s17, 1
    %p129 = por %p127, %p128
    %p130 = scmp.ne.s32.totalorder %s119, %s120
    %p131 = scmp.eq.s32.totalorder %s17, 0
    %p132 = por %p130, %p131
    %p133 = scmp.ne.s32.totalorder %s119, %s120
    %p134 = scmp.eq.s32.totalorder %s18, 1
    %p135 = por %p133, %p134
    %p137 = scmp.ne.s32.totalorder %s120, %s136
    %p138 = scmp.eq.s32.totalorder %s18, 0
    %p139 = por %p137, %p138
    %s140 = ssub.s32 %s12, %s19
    %p141 = scmp.eq.s32.totalorder %s140, 0
    %s143 = sadd.s32 %s142, 1
    %s144 = scalar_select %p141, %s142, %s143
    %p147 = pneg %p141
    %p148 = scmp.eq.s32.totalorder %s12, 1
    %p149 = por %p147, %p148
    %p150 = scmp.ne.s32.totalorder %s142, %s145
    %p151 = scmp.eq.s32.totalorder %s12, 0
    %p152 = por %p150, %p151
    %p153 = scmp.ne.s32.totalorder %s142, %s145
    %p154 = scmp.eq.s32.totalorder %s17, 1
    %p155 = por %p153, %p154
    %p156 = scmp.ne.s32.totalorder %s145, %s146
    %p157 = scmp.eq.s32.totalorder %s17, 0
    %p158 = por %p156, %p157
    %p159 = scmp.ne.s32.totalorder %s145, %s146
    %p160 = scmp.eq.s32.totalorder %s18, 1
    %p161 = por %p159, %p160
    %p163 = scmp.ne.s32.totalorder %s146, %s162
    %p164 = scmp.eq.s32.totalorder %s18, 0
    %p165 = por %p163, %p164
    %p166 = scmp.le.s32.totalorder 1, %s12
    %p167 = scmp.lt.s32.totalorder %s12, 3
    %p168 = pnand %p166, %p167
    %p169 = pneg %p168
    // Predicated region
    $region9: #{discriminator_forward.6} parent=5 // pred_check
      _
    $region10: #{discriminator_forward.6} parent=5 // pred_check_branch
      %171 = sbr.rel (%p168) target = $region12
    $region11: #{discriminator_forward.6} parent=5 // pred_region
      %s172 = ssub.s32 %s12, 1
      // Predicated region
      $region13: #{discriminator_forward.6} parent=11 // pred_check
        %p173 = pneg %p59
      $region14: #{discriminator_forward.6} parent=11 // pred_check_branch
        %175 = sbr.rel (%p173) target = $region16
      $region15: #{discriminator_forward.6} parent=11 // pred_region
        _
      $region16: #{discriminator_forward.6} parent=11 // pred_fallthru
        _
      // Predicated region
      $region17: #{discriminator_forward.6} parent=11 // pred_check
        %p176 = pneg %p80
      $region18: #{discriminator_forward.6} parent=11 // pred_check_branch
        %178 = sbr.rel (%p176) target = $region20
      $region19: #{discriminator_forward.6} parent=11 // pred_region
        _
      $region20: #{discriminator_forward.6} parent=11 // pred_fallthru
        _
    $region12: #{discriminator_forward.6} parent=5 // pred_fallthru
      _
    %p179 = scmp.lt.s32.totalorder %s12, 2
    // Predicated region
    $region21: #{discriminator_forward.6} parent=5 // pred_check
      %p180 = pneg %p179
    $region22: #{discriminator_forward.6} parent=5 // pred_check_branch
      %182 = sbr.rel (%p180) target = $region24
    $region23: #{discriminator_forward.6} parent=5 // pred_region
      // Predicated region
      $region25: #{discriminator_forward.6} parent=23 // pred_check
        %p183 = pneg %p32
      $region26: #{discriminator_forward.6} parent=23 // pred_check_branch
        %185 = sbr.rel (%p183) target = $region28
      $region27: #{discriminator_forward.6} parent=23 // pred_region
        %p186 = scmp.lt.s32.totalorder %s12, 1
        %s187 = scalar_select %p186, %s12, 1
        %s188 = smul.addr %s187, 38
        %s189 = smul.addr %s188, 4
        %s190 = scalar_lea.vmem %s0, %s189
      $region28: #{discriminator_forward.6} parent=23 // pred_fallthru
        _
    $region24: #{discriminator_forward.6} parent=5 // pred_fallthru
      _
    %p191 = scmp.le.s32.totalorder 1, %s12
    %p192 = scmp.lt.s32.totalorder %s12, 3
    %p193 = pnand %p191, %p192
    %p194 = pneg %p193
    // Predicated region
    $region29: #{discriminator_forward.6} parent=5 // pred_check
      _
    $region30: #{discriminator_forward.6} parent=5 // pred_check_branch
      %196 = sbr.rel (%p193) target = $region32
    $region31: #{discriminator_forward.6} parent=5 // pred_region
      %s197 = ssub.s32 %s12, 1
      %p198 = scmp.lt.s32.totalorder %s17, 1
      %s199 = scalar_select %p198, %s17, 1
      %s200 = smul.addr %s199, 38
      %s201 = smul.addr %s200, 4
      %s202 = scalar_lea.vmem %s0, %s201
      %p203 = pneg %p38
      %p204 = pneg %p35
      %p205 = pneg %p59
      %p206 = pneg %p56
      %p207 = pneg %p80
      %p208 = pneg %p77
      %p209 = pneg %p106
      %p210 = pneg %p103
      %p211 = scmp.lt.s32.totalorder %s17, 1
      %s212 = scalar_select %p211, %s17, 1
      %s213 = smul.addr %s212, 34
      %s214 = smul.addr %s213, 4
      %s215 = scalar_lea.vmem %s3, %s214
      %p216 = pneg %p132
      %p217 = pneg %p129
      %p218 = scmp.lt.s32.totalorder %s17, 1
      %s219 = scalar_select %p218, %s17, 1
      %s220 = scalar_lea.vmem %s4, %s219
      %p221 = pneg %p158
      %p222 = pneg %p155
      %p223 = scmp.lt.s32.totalorder %s17, 1
      %s224 = scalar_select %p223, %s17, 1
      %s225 = scalar_lea.vmem %s5, %s224
      %p226 = scmp.lt.s32.totalorder %s17, 1
      %s227 = scalar_select %p226, %s17, 1
      %s228 = smul.addr %s227, 38
      %s229 = smul.addr %s228, 4
      %s230 = scalar_lea.vmem %s0, %s229
      %p231 = scmp.lt.s32.totalorder %s17, 1
      %s232 = scalar_select %p231, %s17, 1
      %s233 = smul.addr %s232, 34
      %s234 = smul.addr %s233, 4
      %s235 = scalar_lea.vmem %s3, %s234
      %p236 = scmp.lt.s32.totalorder %s17, 1
      %s237 = scalar_select %p236, %s17, 1
      %s238 = scalar_lea.vmem %s4, %s237
      %p239 = scmp.lt.s32.totalorder %s17, 1
      %s240 = scalar_select %p239, %s17, 1
      %s241 = scalar_lea.vmem %s5, %s240
      %v243 = vld [vmem:[%s230] sm:$0xf]
      %v244 = vld [vmem:[%s230 + $0x4] sm:$0xf]
      %v245 = vld [vmem:[%s230 + $0x8] sm:$0xf]
      %v246 = vld [vmem:[%s230 + $0xc] sm:$0xf]
      %v247 = vld [vmem:[%s230 + $0x10] sm:$0xf]
      %v248 = vld [vmem:[%s230 + $0x14] sm:$0xf]
      %v249 = vld [vmem:[%s230 + $0x18] sm:$0xf]
      %v250 = vld [vmem:[%s230 + $0x1c] sm:$0xf]
      %v251 = vld [vmem:[%s230 + $0x20] sm:$0xf]
      %v252 = vld [vmem:[%s230 + $0x24] sm:$0xf]
      %v253 = vld [vmem:[%s230 + $0x28] sm:$0xf]
      %v254 = vld [vmem:[%s230 + $0x2c] sm:$0xf]
      %v255 = vld [vmem:[%s230 + $0x30] sm:$0xf]
      %v256 = vld [vmem:[%s230 + $0x34] sm:$0xf]
      %v257 = vld [vmem:[%s230 + $0x38] sm:$0xf]
      %v258 = vld [vmem:[%s230 + $0x3c] sm:$0xf]
      %v259 = vld [vmem:[%s230 + $0x40] sm:$0xf]
      %v260 = vld [vmem:[%s230 + $0x44] sm:$0xf]
      %v261 = vld [vmem:[%s230 + $0x48] sm:$0xf]
      %v262 = vld [vmem:[%s230 + $0x4c] sm:$0xf]
      %v263 = vld [vmem:[%s230 + $0x50] sm:$0xf]
      %v264 = vld [vmem:[%s230 + $0x54] sm:$0xf]
      %v265 = vld [vmem:[%s230 + $0x58] sm:$0xf]
      %v266 = vld [vmem:[%s230 + $0x5c] sm:$0xf]
      %v267 = vld [vmem:[%s230 + $0x60] sm:$0xf]
      %v268 = vld [vmem:[%s230 + $0x64] sm:$0xf]
      %v269 = vld [vmem:[%s230 + $0x68] sm:$0xf]
      %v270 = vld [vmem:[%s230 + $0x6c] sm:$0xf]
      %v271 = vld [vmem:[%s230 + $0x70] sm:$0xf]
      %v272 = vld [vmem:[%s230 + $0x74] sm:$0xf]
      %v273 = vld [vmem:[%s230 + $0x78] sm:$0xf]
      %v274 = vld [vmem:[%s230 + $0x7c] sm:$0xf]
      %v275 = vld [vmem:[%s230 + $0x80] sm:$0xf]
      %v276 = vld [vmem:[%s230 + $0x84] sm:$0xf]
      %v277 = vld [vmem:[%s1] sm:$0xf]
      %v278 = vld [vmem:[%s1 + $0x4] sm:$0xf]
      %v279 = vld [vmem:[%s1 + $0x8] sm:$0xf]
      %v280 = vld [vmem:[%s1 + $0xc] sm:$0xf]
      %v281 = vld [vmem:[%s230 + $0x88] sm:$0x1]
      %s282 = scalar_lea.vmem %s1, 16
      %v283 = vld [vmem:[%s282] sm:$0xf]
      %v284 = vld [vmem:[%s282 + $0x4] sm:$0xf]
      %v285 = vld [vmem:[%s282 + $0x8] sm:$0xf]
      %v286 = vld [vmem:[%s282 + $0xc] sm:$0xf]
      %v322 = vunpack.c.l.b16 %v243
      %v323 = vunpack.c.l.b16 %v244
      %v324 = vunpack.c.l.b16 %v245
      %v325 = vunpack.c.l.b16 %v246
      %v326 = vunpack.c.l.b16 %v247
      %v327 = vunpack.c.l.b16 %v248
      %v328 = vunpack.c.l.b16 %v249
      %v329 = vunpack.c.l.b16 %v250
      %v330 = vunpack.c.l.b16 %v251
      %v331 = vunpack.c.l.b16 %v252
      %v332 = vunpack.c.l.b16 %v253
      %v333 = vunpack.c.l.b16 %v254
      %v334 = vunpack.c.l.b16 %v255
      %v335 = vunpack.c.l.b16 %v256
      %v336 = vunpack.c.l.b16 %v257
      %v337 = vunpack.c.l.b16 %v258
      %v338 = vunpack.c.l.b16 %v259
      %v339 = vunpack.c.l.b16 %v260
      %v340 = vunpack.c.l.b16 %v261
      %v341 = vunpack.c.l.b16 %v262
      %v342 = vunpack.c.l.b16 %v263
      %v343 = vunpack.c.l.b16 %v264
      %v344 = vunpack.c.l.b16 %v265
      %v345 = vunpack.c.l.b16 %v266
      %v346 = vunpack.c.l.b16 %v267
      %v347 = vunpack.c.l.b16 %v268
      %v348 = vunpack.c.l.b16 %v269
      %v349 = vunpack.c.l.b16 %v270
      %v350 = vunpack.c.l.b16 %v271
      %v351 = vunpack.c.l.b16 %v272
      %v352 = vunpack.c.l.b16 %v273
      %v353 = vunpack.c.l.b16 %v274
      %v354 = vunpack.c.l.b16 %v275
      %v355 = vunpack.c.l.b16 %v276
      %v356 = vunpack.c.l.b16 %v281
      %v357 = vpack.c.b16 %v323, %v322
      %v358 = vpack.c.b16 %v325, %v324
      %v359 = vpack.c.b16 %v327, %v326
      %v360 = vpack.c.b16 %v329, %v328
      %v361 = vpack.c.b16 %v331, %v330
      %v362 = vpack.c.b16 %v333, %v332
      %v363 = vpack.c.b16 %v335, %v334
      %v364 = vpack.c.b16 %v337, %v336
      %v365 = vpack.c.b16 %v339, %v338
      %v366 = vpack.c.b16 %v341, %v340
      %v367 = vpack.c.b16 %v343, %v342
      %v368 = vpack.c.b16 %v345, %v344
      %v369 = vpack.c.b16 %v347, %v346
      %v370 = vpack.c.b16 %v349, %v348
      %v371 = vpack.c.b16 %v351, %v350
      %v372 = vpack.c.b16 %v353, %v352
      %v373 = vpack.c.b16 %v355, %v354
      %v374 = vpack.c.b16 %v356, %v356
      %vm375 = vsmask.f32 7424
      %v377 = vshrl.u32 %v357, 16
      %v379 = vshll.u32 %v357, 16
      %v381 = vrot.slane %v379, 1
      %v382 = vor.u32 %v377, %v381
      %v384 = vshll.u32 %v358, 16
      %v386 = vrot.slane %v384, 1
      %v387 = vsel %vm375, %v382, %v386
      %v388 = vshrl.u32 %v358, 16
      %v390 = vor.u32 %v388, %v386
      %v392 = vshll.u32 %v359, 16
      %v394 = vrot.slane %v392, 1
      %v395 = vsel %vm375, %v390, %v394
      %v396 = vshrl.u32 %v359, 16
      %v398 = vor.u32 %v396, %v394
      %v400 = vshll.u32 %v360, 16
      %v402 = vrot.slane %v400, 1
      %v403 = vsel %vm375, %v398, %v402
      %v404 = vshrl.u32 %v360, 16
      %v406 = vor.u32 %v404, %v402
      %v408 = vshll.u32 %v361, 16
      %v410 = vrot.slane %v408, 1
      %v411 = vsel %vm375, %v406, %v410
      %v412 = vshrl.u32 %v361, 16
      %v414 = vor.u32 %v412, %v410
      %v416 = vshll.u32 %v362, 16
      %v418 = vrot.slane %v416, 1
      %v419 = vsel %vm375, %v414, %v418
      %v420 = vshrl.u32 %v362, 16
      %v422 = vor.u32 %v420, %v418
      %v424 = vshll.u32 %v363, 16
      %v426 = vrot.slane %v424, 1
      %v427 = vsel %vm375, %v422, %v426
      %v428 = vshrl.u32 %v363, 16
      %v430 = vor.u32 %v428, %v426
      %v432 = vshll.u32 %v364, 16
      %v434 = vrot.slane %v432, 1
      %v435 = vsel %vm375, %v430, %v434
      %v436 = vshrl.u32 %v364, 16
      %v438 = vor.u32 %v436, %v434
      %v440 = vshll.u32 %v365, 16
      %v442 = vrot.slane %v440, 1
      %v443 = vsel %vm375, %v438, %v442
      %v444 = vshrl.u32 %v365, 16
      %v446 = vor.u32 %v444, %v442
      %v448 = vshll.u32 %v366, 16
      %v450 = vrot.slane %v448, 1
      %v451 = vsel %vm375, %v446, %v450
      %v452 = vshrl.u32 %v366, 16
      %v454 = vor.u32 %v452, %v450
      %v456 = vshll.u32 %v367, 16
      %v458 = vrot.slane %v456, 1
      %v459 = vsel %vm375, %v454, %v458
      %v460 = vshrl.u32 %v367, 16
      %v462 = vor.u32 %v460, %v458
      %v464 = vshll.u32 %v368, 16
      %v466 = vrot.slane %v464, 1
      %v467 = vsel %vm375, %v462, %v466
      %v468 = vshrl.u32 %v368, 16
      %v470 = vor.u32 %v468, %v466
      %v472 = vshll.u32 %v369, 16
      %v474 = vrot.slane %v472, 1
      %v475 = vsel %vm375, %v470, %v474
      %v476 = vshrl.u32 %v369, 16
      %v478 = vor.u32 %v476, %v474
      %v480 = vshll.u32 %v370, 16
      %v482 = vrot.slane %v480, 1
      %v483 = vsel %vm375, %v478, %v482
      %v484 = vshrl.u32 %v370, 16
      %v486 = vor.u32 %v484, %v482
      %v488 = vshll.u32 %v371, 16
      %v490 = vrot.slane %v488, 1
      %v491 = vsel %vm375, %v486, %v490
      %v492 = vshrl.u32 %v371, 16
      %v494 = vor.u32 %v492, %v490
      %v496 = vshll.u32 %v372, 16
      %v498 = vrot.slane %v496, 1
      %v499 = vsel %vm375, %v494, %v498
      %v500 = vshrl.u32 %v372, 16
      %v502 = vor.u32 %v500, %v498
      %v504 = vshll.u32 %v373, 16
      %v506 = vrot.slane %v504, 1
      %v507 = vsel %vm375, %v502, %v506
      %v508 = vshrl.u32 %v373, 16
      %v510 = vor.u32 %v508, %v506
      %v512 = vshll.u32 %v374, 16
      %v514 = vrot.slane %v512, 1
      %v515 = vsel %vm375, %v510, %v514
      %v520 = vunpack.c.l.b16 %v283
      %v521 = vunpack.c.l.b16 %v284
      %v522 = vunpack.c.l.b16 %v285
      %v523 = vunpack.c.l.b16 %v286
      %v524 = vpack.c.b16 %v521, %v520
      %v525 = vpack.c.b16 %v523, %v522
      %vm528 = vcmask 261120
      %v530 = vsel %vm528, %v387, 0
      %v533 = vsel %vm528, %v395, 0
      %v536 = vsel %vm528, %v403, 0
      %v539 = vsel %vm528, %v411, 0
      %v542 = vsel %vm528, %v419, 0
      %v545 = vsel %vm528, %v427, 0
      %v548 = vsel %vm528, %v435, 0
      %v551 = vsel %vm528, %v443, 0
      %v554 = vsel %vm528, %v451, 0
      %v557 = vsel %vm528, %v459, 0
      %v560 = vsel %vm528, %v467, 0
      %v563 = vsel %vm528, %v475, 0
      %v566 = vsel %vm528, %v483, 0
      %v569 = vsel %vm528, %v491, 0
      %v572 = vsel %vm528, %v499, 0
      %v575 = vsel %vm528, %v507, 0
      %v578 = vsel %vm528, %v515, 0
      %580 = vmatprep.subr.bf16.mxu0 0
      %581 = vmatpush1.bf16.msra.mxu0 %v524
      %582 = vmatprep.subr.bf16.mxu0 0
      %583 = vmatpush1.bf16.msra.mxu0 %v525
      %584 = vmatprep.subr.bf16.mxu0 0
      %585 = vmatpush1.bf16.msra.mxu0 0
      %586 = vmatprep.subr.bf16.mxu0 0
      %587 = vmatpush1.bf16.msra.mxu0 0
      %588 = vmatprep.subr.bf16.mxu0 0
      %589 = vmatpush1.bf16.msra.mxu0 0
      %590 = vmatprep.subr.bf16.mxu0 0
      %591 = vmatpush1.bf16.msra.mxu0 0
      %592 = vmatprep.subr.bf16.mxu0 0
      %593 = vmatpush1.bf16.msra.mxu0 0
      %594 = vmatprep.subr.bf16.mxu0 0
      %595 = vmatpush1.bf16.msra.mxu0 0
      %596 = vmatprep.subr.bf16.mxu0 0
      %597 = vmatpush1.bf16.msra.mxu0 0
      %598 = vmatprep.subr.bf16.mxu0 0
      %599 = vmatpush1.bf16.msra.mxu0 0
      %600 = vmatprep.subr.bf16.mxu0 0
      %601 = vmatpush1.bf16.msra.mxu0 0
      %602 = vmatprep.subr.bf16.mxu0 0
      %603 = vmatpush1.bf16.msra.mxu0 0
      %604 = vmatprep.subr.bf16.mxu0 0
      %605 = vmatpush1.bf16.msra.mxu0 0
      %606 = vmatprep.subr.bf16.mxu0 0
      %607 = vmatpush1.bf16.msra.mxu0 0
      %608 = vmatprep.subr.bf16.mxu0 0
      %609 = vmatpush1.bf16.msra.mxu0 0
      %610 = vmatprep.subr.bf16.mxu0 0
      %611 = vmatpush1.bf16.msra.mxu0 0
      %612 = vmatprep.mubr.bf16.mxu0 0
      %613 = vmatmul.mubr.bf16.gmra.mrb[0].mxu0 %v530
      %v614 = vpop.f32.mrb[0].mxu0
      %v615 = vadd.f32 0.0, %v614
      %v616 = vpop.f32.mrb[0].mxu0
      %v617 = vpop.f32.mrb[0].mxu0
      %v618 = vadd.f32 0.0, %v617
      %v619 = vpop.f32.mrb[0].mxu0
      %620 = vmatprep.mubr.bf16.mxu0 0
      %621 = vmatmul.mubr.bf16.gmra.mrb[0].mxu0 %v533
      %v622 = vpop.f32.mrb[0].mxu0
      %v623 = vadd.f32 0.0, %v622
      %v624 = vpop.f32.mrb[0].mxu0
      %v625 = vpop.f32.mrb[0].mxu0
      %v626 = vadd.f32 0.0, %v625
      %v627 = vpop.f32.mrb[0].mxu0
      %628 = vmatprep.mubr.bf16.mxu0 0
      %629 = vmatmul.mubr.bf16.gmra.mrb[0].mxu0 %v536
      %v630 = vpop.f32.mrb[0].mxu0
      %v631 = vadd.f32 0.0, %v630
      %v632 = vpop.f32.mrb[0].mxu0
      %v633 = vpop.f32.mrb[0].mxu0
      %v634 = vadd.f32 0.0, %v633
      %v635 = vpop.f32.mrb[0].mxu0
      %636 = vmatprep.mubr.bf16.mxu0 0
      %637 = vmatmul.mubr.bf16.gmra.mrb[0].mxu0 %v539
      %v638 = vpop.f32.mrb[0].mxu0
      %v639 = vadd.f32 0.0, %v638
      %v640 = vpop.f32.mrb[0].mxu0
      %v641 = vpop.f32.mrb[0].mxu0
      %v642 = vadd.f32 0.0, %v641
      %v643 = vpop.f32.mrb[0].mxu0
      %644 = vmatprep.mubr.bf16.mxu0 0
      %645 = vmatmul.mubr.bf16.gmra.mrb[0].mxu0 %v542
      %v646 = vpop.f32.mrb[0].mxu0
      %v647 = vadd.f32 0.0, %v646
      %v648 = vpop.f32.mrb[0].mxu0
      %v649 = vpop.f32.mrb[0].mxu0
      %v650 = vadd.f32 0.0, %v649
      %v651 = vpop.f32.mrb[0].mxu0
      %652 = vmatprep.mubr.bf16.mxu0 0
      %653 = vmatmul.mubr.bf16.gmra.mrb[0].mxu0 %v545
      %v654 = vpop.f32.mrb[0].mxu0
      %v655 = vadd.f32 0.0, %v654
      %v656 = vpop.f32.mrb[0].mxu0
      %v657 = vpop.f32.mrb[0].mxu0
      %v658 = vadd.f32 0.0, %v657
      %v659 = vpop.f32.mrb[0].mxu0
      %660 = vmatprep.mubr.bf16.mxu0 0
      %661 = vmatmul.mubr.bf16.gmra.mrb[0].mxu0 %v548
      %v662 = vpop.f32.mrb[0].mxu0
      %v663 = vadd.f32 0.0, %v662
      %v664 = vpop.f32.mrb[0].mxu0
      %v665 = vpop.f32.mrb[0].mxu0
      %v666 = vadd.f32 0.0, %v665
      %v667 = vpop.f32.mrb[0].mxu0
      %668 = vmatprep.mubr.bf16.mxu0 0
      %669 = vmatmul.mubr.bf16.gmra.mrb[0].mxu0 %v551
      %v670 = vpop.f32.mrb[0].mxu0
      %v671 = vadd.f32 0.0, %v670
      %v672 = vpop.f32.mrb[0].mxu0
      %v673 = vpop.f32.mrb[0].mxu0
      %v674 = vadd.f32 0.0, %v673
      %v675 = vpop.f32.mrb[0].mxu0
      %676 = vmatprep.mubr.bf16.mxu0 0
      %677 = vmatmul.mubr.bf16.gmra.mrb[0].mxu0 %v554
      %v678 = vpop.f32.mrb[0].mxu0
      %v679 = vadd.f32 0.0, %v678
      %v680 = vpop.f32.mrb[0].mxu0
      %v681 = vpop.f32.mrb[0].mxu0
      %v682 = vadd.f32 0.0, %v681
      %v683 = vpop.f32.mrb[0].mxu0
      %684 = vmatprep.mubr.bf16.mxu0 0
      %685 = vmatmul.mubr.bf16.gmra.mrb[0].mxu0 %v557
      %v686 = vpop.f32.mrb[0].mxu0
      %v687 = vadd.f32 0.0, %v686
      %v688 = vpop.f32.mrb[0].mxu0
      %v689 = vpop.f32.mrb[0].mxu0
      %v690 = vadd.f32 0.0, %v689
      %v691 = vpop.f32.mrb[0].mxu0
      %692 = vmatprep.mubr.bf16.mxu0 0
      %693 = vmatmul.mubr.bf16.gmra.mrb[0].mxu0 %v560
      %v694 = vpop.f32.mrb[0].mxu0
      %v695 = vadd.f32 0.0, %v694
      %v696 = vpop.f32.mrb[0].mxu0
      %v697 = vpop.f32.mrb[0].mxu0
      %v698 = vadd.f32 0.0, %v697
      %v699 = vpop.f32.mrb[0].mxu0
      %700 = vmatprep.mubr.bf16.mxu0 0
      %701 = vmatmul.mubr.bf16.gmra.mrb[0].mxu0 %v563
      %v702 = vpop.f32.mrb[0].mxu0
      %v703 = vadd.f32 0.0, %v702
      %v704 = vpop.f32.mrb[0].mxu0
      %v705 = vpop.f32.mrb[0].mxu0
      %v706 = vadd.f32 0.0, %v705
      %v707 = vpop.f32.mrb[0].mxu0
      %708 = vmatprep.mubr.bf16.mxu0 0
      %709 = vmatmul.mubr.bf16.gmra.mrb[0].mxu0 %v566
      %v710 = vpop.f32.mrb[0].mxu0
      %v711 = vadd.f32 0.0, %v710
      %v712 = vpop.f32.mrb[0].mxu0
      %v713 = vpop.f32.mrb[0].mxu0
      %v714 = vadd.f32 0.0, %v713
      %v715 = vpop.f32.mrb[0].mxu0
      %716 = vmatprep.mubr.bf16.mxu0 0
      %717 = vmatmul.mubr.bf16.gmra.mrb[0].mxu0 %v569
      %v718 = vpop.f32.mrb[0].mxu0
      %v719 = vadd.f32 0.0, %v718
      %v720 = vpop.f32.mrb[0].mxu0
      %v721 = vpop.f32.mrb[0].mxu0
      %v722 = vadd.f32 0.0, %v721
      %v723 = vpop.f32.mrb[0].mxu0
      %724 = vmatprep.mubr.bf16.mxu0 0
      %725 = vmatmul.mubr.bf16.gmra.mrb[0].mxu0 %v572
      %v726 = vpop.f32.mrb[0].mxu0
      %v727 = vadd.f32 0.0, %v726
      %v728 = vpop.f32.mrb[0].mxu0
      %v729 = vpop.f32.mrb[0].mxu0
      %v730 = vadd.f32 0.0, %v729
      %v731 = vpop.f32.mrb[0].mxu0
      %732 = vmatprep.mubr.bf16.mxu0 0
      %733 = vmatmul.mubr.bf16.gmra.mrb[0].mxu0 %v575
      %v734 = vpop.f32.mrb[0].mxu0
      %v735 = vadd.f32 0.0, %v734
      %v736 = vpop.f32.mrb[0].mxu0
      %v737 = vpop.f32.mrb[0].mxu0
      %v738 = vadd.f32 0.0, %v737
      %v739 = vpop.f32.mrb[0].mxu0
      %740 = vmatprep.mubr.bf16.mxu0 0
      %741 = vmatmul.mubr.bf16.gmra.mrb[0].mxu0 %v578
      %v742 = vpop.f32.mrb[0].mxu0
      %v743 = vadd.f32 0.0, %v742
      %v744 = vpop.f32.mrb[0].mxu0
      %v745 = vpop.f32.mrb[0].mxu0
      %v746 = vadd.f32 0.0, %v745
      %v747 = vpop.f32.mrb[0].mxu0
      %748 = vdwg.mxu0
      %v753 = vunpack.c.l.b16 %v277
      %v754 = vunpack.c.l.b16 %v278
      %v755 = vunpack.c.l.b16 %v279
      %v756 = vunpack.c.l.b16 %v280
      %v757 = vpack.c.b16 %v754, %v753
      %v758 = vpack.c.b16 %v756, %v755
      %v761 = vsel %vm528, %v357, 0
      %v763 = vsel %vm528, %v358, 0
      %v765 = vsel %vm528, %v359, 0
      %v767 = vsel %vm528, %v360, 0
      %v769 = vsel %vm528, %v361, 0
      %v771 = vsel %vm528, %v362, 0
      %v773 = vsel %vm528, %v363, 0
      %v775 = vsel %vm528, %v364, 0
      %v777 = vsel %vm528, %v365, 0
      %v779 = vsel %vm528, %v366, 0
      %v781 = vsel %vm528, %v367, 0
      %v783 = vsel %vm528, %v368, 0
      %v785 = vsel %vm528, %v369, 0
      %v787 = vsel %vm528, %v370, 0
      %v789 = vsel %vm528, %v371, 0
      %v791 = vsel %vm528, %v372, 0
      %v793 = vsel %vm528, %v373, 0
      %795 = vmatprep.subr.bf16.mxu0 0
      %796 = vmatpush1.bf16.msra.mxu0 %v757
      %797 = vmatprep.subr.bf16.mxu0 0
      %798 = vmatpush1.bf16.msra.mxu0 %v758
      %799 = vmatprep.subr.bf16.mxu0 0
      %800 = vmatpush1.bf16.msra.mxu0 0
      %801 = vmatprep.subr.bf16.mxu0 0
      %802 = vmatpush1.bf16.msra.mxu0 0
      %803 = vmatprep.subr.bf16.mxu0 0
      %804 = vmatpush1.bf16.msra.mxu0 0
      %805 = vmatprep.subr.bf16.mxu0 0
      %806 = vmatpush1.bf16.msra.mxu0 0
      %807 = vmatprep.subr.bf16.mxu0 0
      %808 = vmatpush1.bf16.msra.mxu0 0
      %809 = vmatprep.subr.bf16.mxu0 0
      %810 = vmatpush1.bf16.msra.mxu0 0
      %811 = vmatprep.subr.bf16.mxu0 0
      %812 = vmatpush1.bf16.msra.mxu0 0
      %813 = vmatprep.subr.bf16.mxu0 0
      %814 = vmatpush1.bf16.msra.mxu0 0
      %815 = vmatprep.subr.bf16.mxu0 0
      %816 = vmatpush1.bf16.msra.mxu0 0
      %817 = vmatprep.subr.bf16.mxu0 0
      %818 = vmatpush1.bf16.msra.mxu0 0
      %819 = vmatprep.subr.bf16.mxu0 0
      %820 = vmatpush1.bf16.msra.mxu0 0
      %821 = vmatprep.subr.bf16.mxu0 0
      %822 = vmatpush1.bf16.msra.mxu0 0
      %823 = vmatprep.subr.bf16.mxu0 0
      %824 = vmatpush1.bf16.msra.mxu0 0
      %825 = vmatprep.subr.bf16.mxu0 0
      %826 = vmatpush1.bf16.msra.mxu0 0
      %827 = vmatprep.mubr.bf16.mxu0 0
      %828 = vmatmul.mubr.bf16.gmra.mrb[0].mxu0 %v761
      %v829 = vpop.f32.mrb[0].mxu0
      %v830 = vadd.f32 %v615, %v829
      %v831 = vpop.f32.mrb[0].mxu0
      %v832 = vpop.f32.mrb[0].mxu0
      %v833 = vadd.f32 %v618, %v832
      %v834 = vpop.f32.mrb[0].mxu0
      %835 = vmatprep.mubr.bf16.mxu0 0
      %836 = vmatmul.mubr.bf16.gmra.mrb[0].mxu0 %v763
      %v837 = vpop.f32.mrb[0].mxu0
      %v838 = vadd.f32 %v623, %v837
      %v839 = vpop.f32.mrb[0].mxu0
      %v840 = vpop.f32.mrb[0].mxu0
      %v841 = vadd.f32 %v626, %v840
      %v842 = vpop.f32.mrb[0].mxu0
      %843 = vmatprep.mubr.bf16.mxu0 0
      %844 = vmatmul.mubr.bf16.gmra.mrb[0].mxu0 %v765
      %v845 = vpop.f32.mrb[0].mxu0
      %v846 = vadd.f32 %v631, %v845
      %v847 = vpop.f32.mrb[0].mxu0
      %v848 = vpop.f32.mrb[0].mxu0
      %v849 = vadd.f32 %v634, %v848
      %v850 = vpop.f32.mrb[0].mxu0
      %851 = vmatprep.mubr.bf16.mxu0 0
      %852 = vmatmul.mubr.bf16.gmra.mrb[0].mxu0 %v767
      %v853 = vpop.f32.mrb[0].mxu0
      %v854 = vadd.f32 %v639, %v853
      %v855 = vpop.f32.mrb[0].mxu0
      %v856 = vpop.f32.mrb[0].mxu0
      %v857 = vadd.f32 %v642, %v856
      %v858 = vpop.f32.mrb[0].mxu0
      %859 = vmatprep.mubr.bf16.mxu0 0
      %860 = vmatmul.mubr.bf16.gmra.mrb[0].mxu0 %v769
      %v861 = vpop.f32.mrb[0].mxu0
      %v862 = vadd.f32 %v647, %v861
      %v863 = vpop.f32.mrb[0].mxu0
      %v864 = vpop.f32.mrb[0].mxu0
      %v865 = vadd.f32 %v650, %v864
      %v866 = vpop.f32.mrb[0].mxu0
      %867 = vmatprep.mubr.bf16.mxu0 0
      %868 = vmatmul.mubr.bf16.gmra.mrb[0].mxu0 %v771
      %v869 = vpop.f32.mrb[0].mxu0
      %v870 = vadd.f32 %v655, %v869
      %v871 = vpop.f32.mrb[0].mxu0
      %v872 = vpop.f32.mrb[0].mxu0
      %v873 = vadd.f32 %v658, %v872
      %v874 = vpop.f32.mrb[0].mxu0
      %875 = vmatprep.mubr.bf16.mxu0 0
      %876 = vmatmul.mubr.bf16.gmra.mrb[0].mxu0 %v773
      %v877 = vpop.f32.mrb[0].mxu0
      %v878 = vadd.f32 %v663, %v877
      %v879 = vpop.f32.mrb[0].mxu0
      %v880 = vpop.f32.mrb[0].mxu0
      %v881 = vadd.f32 %v666, %v880
      %v882 = vpop.f32.mrb[0].mxu0
      %883 = vmatprep.mubr.bf16.mxu0 0
      %884 = vmatmul.mubr.bf16.gmra.mrb[0].mxu0 %v775
      %v885 = vpop.f32.mrb[0].mxu0
      %v886 = vadd.f32 %v671, %v885
      %v887 = vpop.f32.mrb[0].mxu0
      %v888 = vpop.f32.mrb[0].mxu0
      %v889 = vadd.f32 %v674, %v888
      %v890 = vpop.f32.mrb[0].mxu0
      %891 = vmatprep.mubr.bf16.mxu0 0
      %892 = vmatmul.mubr.bf16.gmra.mrb[0].mxu0 %v777
      %v893 = vpop.f32.mrb[0].mxu0
      %v894 = vadd.f32 %v679, %v893
      %v895 = vpop.f32.mrb[0].mxu0
      %v896 = vpop.f32.mrb[0].mxu0
      %v897 = vadd.f32 %v682, %v896
      %v898 = vpop.f32.mrb[0].mxu0
      %899 = vmatprep.mubr.bf16.mxu0 0
      %900 = vmatmul.mubr.bf16.gmra.mrb[0].mxu0 %v779
      %v901 = vpop.f32.mrb[0].mxu0
      %v902 = vadd.f32 %v687, %v901
      %v903 = vpop.f32.mrb[0].mxu0
      %v904 = vpop.f32.mrb[0].mxu0
      %v905 = vadd.f32 %v690, %v904
      %v906 = vpop.f32.mrb[0].mxu0
      %907 = vmatprep.mubr.bf16.mxu0 0
      %908 = vmatmul.mubr.bf16.gmra.mrb[0].mxu0 %v781
      %v909 = vpop.f32.mrb[0].mxu0
      %v910 = vadd.f32 %v695, %v909
      %v911 = vpop.f32.mrb[0].mxu0
      %v912 = vpop.f32.mrb[0].mxu0
      %v913 = vadd.f32 %v698, %v912
      %v914 = vpop.f32.mrb[0].mxu0
      %915 = vmatprep.mubr.bf16.mxu0 0
      %916 = vmatmul.mubr.bf16.gmra.mrb[0].mxu0 %v783
      %v917 = vpop.f32.mrb[0].mxu0
      %v918 = vadd.f32 %v703, %v917
      %v919 = vpop.f32.mrb[0].mxu0
      %v920 = vpop.f32.mrb[0].mxu0
      %v921 = vadd.f32 %v706, %v920
      %v922 = vpop.f32.mrb[0].mxu0
      %923 = vmatprep.mubr.bf16.mxu0 0
      %924 = vmatmul.mubr.bf16.gmra.mrb[0].mxu0 %v785
      %v925 = vpop.f32.mrb[0].mxu0
      %v926 = vadd.f32 %v711, %v925
      %v927 = vpop.f32.mrb[0].mxu0
      %v928 = vpop.f32.mrb[0].mxu0
      %v929 = vadd.f32 %v714, %v928
      %v930 = vpop.f32.mrb[0].mxu0
      %931 = vmatprep.mubr.bf16.mxu0 0
      %932 = vmatmul.mubr.bf16.gmra.mrb[0].mxu0 %v787
      %v933 = vpop.f32.mrb[0].mxu0
      %v934 = vadd.f32 %v719, %v933
      %v935 = vpop.f32.mrb[0].mxu0
      %v936 = vpop.f32.mrb[0].mxu0
      %v937 = vadd.f32 %v722, %v936
      %v938 = vpop.f32.mrb[0].mxu0
      %939 = vmatprep.mubr.bf16.mxu0 0
      %940 = vmatmul.mubr.bf16.gmra.mrb[0].mxu0 %v789
      %v941 = vpop.f32.mrb[0].mxu0
      %v942 = vadd.f32 %v727, %v941
      %v943 = vpop.f32.mrb[0].mxu0
      %v944 = vpop.f32.mrb[0].mxu0
      %v945 = vadd.f32 %v730, %v944
      %v946 = vpop.f32.mrb[0].mxu0
      %947 = vmatprep.mubr.bf16.mxu0 0
      %948 = vmatmul.mubr.bf16.gmra.mrb[0].mxu0 %v791
      %v949 = vpop.f32.mrb[0].mxu0
      %v950 = vadd.f32 %v735, %v949
      %v951 = vpop.f32.mrb[0].mxu0
      %v952 = vpop.f32.mrb[0].mxu0
      %v953 = vadd.f32 %v738, %v952
      %v954 = vpop.f32.mrb[0].mxu0
      %955 = vmatprep.mubr.bf16.mxu0 0
      %956 = vmatmul.mubr.bf16.gmra.mrb[0].mxu0 %v793
      %v957 = vpop.f32.mrb[0].mxu0
      %v958 = vadd.f32 %v743, %v957
      %v959 = vpop.f32.mrb[0].mxu0
      %v960 = vpop.f32.mrb[0].mxu0
      %v961 = vadd.f32 %v746, %v960
      %v962 = vpop.f32.mrb[0].mxu0
      %963 = vdwg.mxu0
      %v964 = vld [vmem:[%s230 + $0x8] sm:$0xf]
      %v965 = vld [vmem:[%s230 + $0xc] sm:$0xf]
      %v966 = vld [vmem:[%s230 + $0x10] sm:$0xf]
      %v967 = vld [vmem:[%s230 + $0x14] sm:$0xf]
      %v968 = vld [vmem:[%s230 + $0x18] sm:$0xf]
      %v969 = vld [vmem:[%s230 + $0x1c] sm:$0xf]
      %v970 = vld [vmem:[%s230 + $0x20] sm:$0xf]
      %v971 = vld [vmem:[%s230 + $0x24] sm:$0xf]
      %v972 = vld [vmem:[%s230 + $0x28] sm:$0xf]
      %v973 = vld [vmem:[%s230 + $0x2c] sm:$0xf]
      %v974 = vld [vmem:[%s230 + $0x30] sm:$0xf]
      %v975 = vld [vmem:[%s230 + $0x34] sm:$0xf]
      %v976 = vld [vmem:[%s230 + $0x38] sm:$0xf]
      %v977 = vld [vmem:[%s230 + $0x3c] sm:$0xf]
      %v978 = vld [vmem:[%s230 + $0x40] sm:$0xf]
      %v979 = vld [vmem:[%s230 + $0x44] sm:$0xf]
      %v980 = vld [vmem:[%s230 + $0x48] sm:$0xf]
      %v981 = vld [vmem:[%s230 + $0x4c] sm:$0xf]
      %v982 = vld [vmem:[%s230 + $0x50] sm:$0xf]
      %v983 = vld [vmem:[%s230 + $0x54] sm:$0xf]
      %v984 = vld [vmem:[%s230 + $0x58] sm:$0xf]
      %v985 = vld [vmem:[%s230 + $0x5c] sm:$0xf]
      %v986 = vld [vmem:[%s230 + $0x60] sm:$0xf]
      %v987 = vld [vmem:[%s230 + $0x64] sm:$0xf]
      %v988 = vld [vmem:[%s230 + $0x68] sm:$0xf]
      %v989 = vld [vmem:[%s230 + $0x6c] sm:$0xf]
      %v990 = vld [vmem:[%s230 + $0x70] sm:$0xf]
      %v991 = vld [vmem:[%s230 + $0x74] sm:$0xf]
      %v992 = vld [vmem:[%s230 + $0x78] sm:$0xf]
      %v993 = vld [vmem:[%s230 + $0x7c] sm:$0xf]
      %v994 = vld [vmem:[%s230 + $0x80] sm:$0xf]
      %v995 = vld [vmem:[%s230 + $0x84] sm:$0xf]
      %v996 = vld [vmem:[%s230 + $0x88] sm:$0xf]
      %v997 = vld [vmem:[%s230 + $0x8c] sm:$0xf]
      %v998 = vld [vmem:[%s230 + $0x90] sm:$0x1]
      %s999 = scalar_lea.vmem %s1, 32
      %v1000 = vld [vmem:[%s999] sm:$0xf]
      %v1001 = vld [vmem:[%s999 + $0x4] sm:$0xf]
      %v1002 = vld [vmem:[%s999 + $0x8] sm:$0xf]
      %v1003 = vld [vmem:[%s999 + $0xc] sm:$0xf]
      %v1039 = vunpack.c.l.b16 %v964
      %v1040 = vunpack.c.l.b16 %v965
      %v1041 = vunpack.c.l.b16 %v966
      %v1042 = vunpack.c.l.b16 %v967
      %v1043 = vunpack.c.l.b16 %v968
      %v1044 = vunpack.c.l.b16 %v969
      %v1045 = vunpack.c.l.b16 %v970
      %v1046 = vunpack.c.l.b16 %v971
      %v1047 = vunpack.c.l.b16 %v972
      %v1048 = vunpack.c.l.b16 %v973
      %v1049 = vunpack.c.l.b16 %v974
      %v1050 = vunpack.c.l.b16 %v975
      %v1051 = vunpack.c.l.b16 %v976
      %v1052 = vunpack.c.l.b16 %v977
      %v1053 = vunpack.c.l.b16 %v978
      %v1054 = vunpack.c.l.b16 %v979
      %v1055 = vunpack.c.l.b16 %v980
      %v1056 = vunpack.c.l.b16 %v981
      %v1057 = vunpack.c.l.b16 %v982
      %v1058 = vunpack.c.l.b16 %v983
      %v1059 = vunpack.c.l.b16 %v984
      %v1060 = vunpack.c.l.b16 %v985
      %v1061 = vunpack.c.l.b16 %v986
      %v1062 = vunpack.c.l.b16 %v987
      %v1063 = vunpack.c.l.b16 %v988
      %v1064 = vunpack.c.l.b16 %v989
      %v1065 = vunpack.c.l.b16 %v990
      %v1066 = vunpack.c.l.b16 %v991
      %v1067 = vunpack.c.l.b16 %v992
      %v1068 = vunpack.c.l.b16 %v993
      %v1069 = vunpack.c.l.b16 %v994
      %v1070 = vunpack.c.l.b16 %v995
      %v1071 = vunpack.c.l.b16 %v996
      %v1072 = vunpack.c.l.b16 %v997
      %v1073 = vunpack.c.l.b16 %v998
      %v1074 = vpack.c.b16 %v1040, %v1039
      %v1075 = vpack.c.b16 %v1042, %v1041
      %v1076 = vpack.c.b16 %v1044, %v1043
      %v1077 = vpack.c.b16 %v1046, %v1045
      %v1078 = vpack.c.b16 %v1048, %v1047
      %v1079 = vpack.c.b16 %v1050, %v1049
      %v1080 = vpack.c.b16 %v1052, %v1051
      %v1081 = vpack.c.b16 %v1054, %v1053
      %v1082 = vpack.c.b16 %v1056, %v1055
      %v1083 = vpack.c.b16 %v1058, %v1057
      %v1084 = vpack.c.b16 %v1060, %v1059
      %v1085 = vpack.c.b16 %v1062, %v1061
      %v1086 = vpack.c.b16 %v1064, %v1063
      %v1087 = vpack.c.b16 %v1066, %v1065
      %v1088 = vpack.c.b16 %v1068, %v1067
      %v1089 = vpack.c.b16 %v1070, %v1069
      %v1090 = vpack.c.b16 %v1072, %v1071
      %v1091 = vpack.c.b16 %v1073, %v1073
      %v1093 = vshrl.u32 %v1074, 16
      %v1095 = vshll.u32 %v1074, 16
      %v1097 = vrot.slane %v1095, 1
      %v1098 = vor.u32 %v1093, %v1097
      %v1100 = vshll.u32 %v1075, 16
      %v1102 = vrot.slane %v1100, 1
      %v1103 = vsel %vm375, %v1098, %v1102
      %v1104 = vshrl.u32 %v1075, 16
      %v1106 = vor.u32 %v1104, %v1102
      %v1108 = vshll.u32 %v1076, 16
      %v1110 = vrot.slane %v1108, 1
      %v1111 = vsel %vm375, %v1106, %v1110
      %v1112 = vshrl.u32 %v1076, 16
      %v1114 = vor.u32 %v1112, %v1110
      %v1116 = vshll.u32 %v1077, 16
      %v1118 = vrot.slane %v1116, 1
      %v1119 = vsel %vm375, %v1114, %v1118
      %v1120 = vshrl.u32 %v1077, 16
      %v1122 = vor.u32 %v1120, %v1118
      %v1124 = vshll.u32 %v1078, 16
      %v1126 = vrot.slane %v1124, 1
      %v1127 = vsel %vm375, %v1122, %v1126
      %v1128 = vshrl.u32 %v1078, 16
      %v1130 = vor.u32 %v1128, %v1126
      %v1132 = vshll.u32 %v1079, 16
      %v1134 = vrot.slane %v1132, 1
      %v1135 = vsel %vm375, %v1130, %v1134
      %v1136 = vshrl.u32 %v1079, 16
      %v1138 = vor.u32 %v1136, %v1134
      %v1140 = vshll.u32 %v1080, 16
      %v1142 = vrot.slane %v1140, 1
      %v1143 = vsel %vm375, %v1138, %v1142
      %v1144 = vshrl.u32 %v1080, 16
      %v1146 = vor.u32 %v1144, %v1142
      %v1148 = vshll.u32 %v1081, 16
      %v1150 = vrot.slane %v1148, 1
      %v1151 = vsel %vm375, %v1146, %v1150
      %v1152 = vshrl.u32 %v1081, 16
      %v1154 = vor.u32 %v1152, %v1150
      %v1156 = vshll.u32 %v1082, 16
      %v1158 = vrot.slane %v1156, 1
      %v1159 = vsel %vm375, %v1154, %v1158
      %v1160 = vshrl.u32 %v1082, 16
      %v1162 = vor.u32 %v1160, %v1158
      %v1164 = vshll.u32 %v1083, 16
      %v1166 = vrot.slane %v1164, 1
      %v1167 = vsel %vm375, %v1162, %v1166
      %v1168 = vshrl.u32 %v1083, 16
      %v1170 = vor.u32 %v1168, %v1166
      %v1172 = vshll.u32 %v1084, 16
      %v1174 = vrot.slane %v1172, 1
      %v1175 = vsel %vm375, %v1170, %v1174
      %v1176 = vshrl.u32 %v1084, 16
      %v1178 = vor.u32 %v1176, %v1174
      %v1180 = vshll.u32 %v1085, 16
      %v1182 = vrot.slane %v1180, 1
      %v1183 = vsel %vm375, %v1178, %v1182
      %v1184 = vshrl.u32 %v1085, 16
      %v1186 = vor.u32 %v1184, %v1182
      %v1188 = vshll.u32 %v1086, 16
      %v1190 = vrot.slane %v1188, 1
      %v1191 = vsel %vm375, %v1186, %v1190
      %v1192 = vshrl.u32 %v1086, 16
      %v1194 = vor.u32 %v1192, %v1190
      %v1196 = vshll.u32 %v1087, 16
      %v1198 = vrot.slane %v1196, 1
      %v1199 = vsel %vm375, %v1194, %v1198
      %v1200 = vshrl.u32 %v1087, 16
      %v1202 = vor.u32 %v1200, %v1198
      %v1204 = vshll.u32 %v1088, 16
      %v1206 = vrot.slane %v1204, 1
      %v1207 = vsel %vm375, %v1202, %v1206
      %v1208 = vshrl.u32 %v1088, 16
      %v1210 = vor.u32 %v1208, %v1206
      %v1212 = vshll.u32 %v1089, 16
      %v1214 = vrot.slane %v1212, 1
      %v1215 = vsel %vm375, %v1210, %v1214
      %v1216 = vshrl.u32 %v1089, 16
      %v1218 = vor.u32 %v1216, %v1214
      %v1220 = vshll.u32 %v1090, 16
      %v1222 = vrot.slane %v1220, 1
      %v1223 = vsel %vm375, %v1218, %v1222
      %v1224 = vshrl.u32 %v1090, 16
      %v1226 = vor.u32 %v1224, %v1222
      %v1228 = vshll.u32 %v1091, 16
      %v1230 = vrot.slane %v1228, 1
      %v1231 = vsel %vm375, %v1226, %v1230
      %v1236 = vunpack.c.l.b16 %v1000
      %v1237 = vunpack.c.l.b16 %v1001
      %v1238 = vunpack.c.l.b16 %v1002
      %v1239 = vunpack.c.l.b16 %v1003
      %v1240 = vpack.c.b16 %v1237, %v1236
      %v1241 = vpack.c.b16 %v1239, %v1238
      %v1245 = vsel %vm528, %v1103, 0
      %v1248 = vsel %vm528, %v1111, 0
      %v1251 = vsel %vm528, %v1119, 0
      %v1254 = vsel %vm528, %v1127, 0
      %v1257 = vsel %vm528, %v1135, 0
      %v1260 = vsel %vm528, %v1143, 0
      %v1263 = vsel %vm528, %v1151, 0
      %v1266 = vsel %vm528, %v1159, 0
      %v1269 = vsel %vm528, %v1167, 0
      %v1272 = vsel %vm528, %v1175, 0
      %v1275 = vsel %vm528, %v1183, 0
      %v1278 = vsel %vm528, %v1191, 0
      %v1281 = vsel %vm528, %v1199, 0
      %v1284 = vsel %vm528, %v1207, 0
      %v1287 = vsel %vm528, %v1215, 0
      %v1290 = vsel %vm528, %v1223, 0
      %v1293 = vsel %vm528, %v1231, 0
      %1295 = vmatprep.subr.bf16.mxu0 0
      %1296 = vmatpush1.bf16.msra.mxu0 %v1240
      %1297 = vmatprep.subr.bf16.mxu0 0
      %1298 = vmatpush1.bf16.msra.mxu0 %v1241
      %1299 = vmatprep.subr.bf16.mxu0 0
      %1300 = vmatpush1.bf16.msra.mxu0 0
      %1301 = vmatprep.subr.bf16.mxu0 0
      %1302 = vmatpush1.bf16.msra.mxu0 0
      %1303 = vmatprep.subr.bf16.mxu0 0
      %1304 = vmatpush1.bf16.msra.mxu0 0
      %1305 = vmatprep.subr.bf16.mxu0 0
      %1306 = vmatpush1.bf16.msra.mxu0 0
      %1307 = vmatprep.subr.bf16.mxu0 0
      %1308 = vmatpush1.bf16.msra.mxu0 0
      %1309 = vmatprep.subr.bf16.mxu0 0
      %1310 = vmatpush1.bf16.msra.mxu0 0
      %1311 = vmatprep.subr.bf16.mxu0 0
      %1312 = vmatpush1.bf16.msra.mxu0 0
      %1313 = vmatprep.subr.bf16.mxu0 0
      %1314 = vmatpush1.bf16.msra.mxu0 0
      %1315 = vmatprep.subr.bf16.mxu0 0
      %1316 = vmatpush1.bf16.msra.mxu0 0
      %1317 = vmatprep.subr.bf16.mxu0 0
      %1318 = vmatpush1.bf16.msra.mxu0 0
      %1319 = vmatprep.subr.bf16.mxu0 0
      %1320 = vmatpush1.bf16.msra.mxu0 0
      %1321 = vmatprep.subr.bf16.mxu0 0
      %1322 = vmatpush1.bf16.msra.mxu0 0
      %1323 = vmatprep.subr.bf16.mxu0 0
      %1324 = vmatpush1.bf16.msra.mxu0 0
      %1325 = vmatprep.subr.bf16.mxu0 0
      %1326 = vmatpush1.bf16.msra.mxu0 0
      %1327 = vmatprep.mubr.bf16.mxu0 0
      %1328 = vmatmul.mubr.bf16.gmra.mrb[0].mxu0 %v1245
      %v1329 = vpop.f32.mrb[0].mxu0
      %v1330 = vadd.f32 0.0, %v1329
      %v1331 = vpop.f32.mrb[0].mxu0
      %v1332 = vpop.f32.mrb[0].mxu0
      %v1333 = vadd.f32 0.0, %v1332
      %v1334 = vpop.f32.mrb[0].mxu0
      %1335 = vmatprep.mubr.bf16.mxu0 0
      %1336 = vmatmul.mubr.bf16.gmra.mrb[0].mxu0 %v1248
      %v1337 = vpop.f32.mrb[0].mxu0
      %v1338 = vadd.f32 0.0, %v1337
      %v1339 = vpop.f32.mrb[0].mxu0
      %v1340 = vpop.f32.mrb[0].mxu0
      %v1341 = vadd.f32 0.0, %v1340
      %v1342 = vpop.f32.mrb[0].mxu0
      %1343 = vmatprep.mubr.bf16.mxu0 0
      %1344 = vmatmul.mubr.bf16.gmra.mrb[0].mxu0 %v1251
      %v1345 = vpop.f32.mrb[0].mxu0
      %v1346 = vadd.f32 0.0, %v1345
      %v1347 = vpop.f32.mrb[0].mxu0
      %v1348 = vpop.f32.mrb[0].mxu0
      %v1349 = vadd.f32 0.0, %v1348
      %v1350 = vpop.f32.mrb[0].mxu0
      %1351 = vmatprep.mubr.bf16.mxu0 0
      %1352 = vmatmul.mubr.bf16.gmra.mrb[0].mxu0 %v1254
      %v1353 = vpop.f32.mrb[0].mxu0
      %v1354 = vadd.f32 0.0, %v1353
      %v1355 = vpop.f32.mrb[0].mxu0
      %v1356 = vpop.f32.mrb[0].mxu0
      %v1357 = vadd.f32 0.0, %v1356
      %v1358 = vpop.f32.mrb[0].mxu0
      %1359 = vmatprep.mubr.bf16.mxu0 0
      %1360 = vmatmul.mubr.bf16.gmra.mrb[0].mxu0 %v1257
      %v1361 = vpop.f32.mrb[0].mxu0
      %v1362 = vadd.f32 0.0, %v1361
      %v1363 = vpop.f32.mrb[0].mxu0
      %v1364 = vpop.f32.mrb[0].mxu0
      %v1365 = vadd.f32 0.0, %v1364
      %v1366 = vpop.f32.mrb[0].mxu0
      %1367 = vmatprep.mubr.bf16.mxu0 0
      %1368 = vmatmul.mubr.bf16.gmra.mrb[0].mxu0 %v1260
      %v1369 = vpop.f32.mrb[0].mxu0
      %v1370 = vadd.f32 0.0, %v1369
      %v1371 = vpop.f32.mrb[0].mxu0
      %v1372 = vpop.f32.mrb[0].mxu0
      %v1373 = vadd.f32 0.0, %v1372
      %v1374 = vpop.f32.mrb[0].mxu0
      %1375 = vmatprep.mubr.bf16.mxu0 0
      %1376 = vmatmul.mubr.bf16.gmra.mrb[0].mxu0 %v1263
      %v1377 = vpop.f32.mrb[0].mxu0
      %v1378 = vadd.f32 0.0, %v1377
      %v1379 = vpop.f32.mrb[0].mxu0
      %v1380 = vpop.f32.mrb[0].mxu0
      %v1381 = vadd.f32 0.0, %v1380
      %v1382 = vpop.f32.mrb[0].mxu0
      %1383 = vmatprep.mubr.bf16.mxu0 0
      %1384 = vmatmul.mubr.bf16.gmra.mrb[0].mxu0 %v1266
      %v1385 = vpop.f32.mrb[0].mxu0
      %v1386 = vadd.f32 0.0, %v1385
      %v1387 = vpop.f32.mrb[0].mxu0
      %v1388 = vpop.f32.mrb[0].mxu0
      %v1389 = vadd.f32 0.0, %v1388
      %v1390 = vpop.f32.mrb[0].mxu0
      %1391 = vmatprep.mubr.bf16.mxu0 0
      %1392 = vmatmul.mubr.bf16.gmra.mrb[0].mxu0 %v1269
      %v1393 = vpop.f32.mrb[0].mxu0
      %v1394 = vadd.f32 0.0, %v1393
      %v1395 = vpop.f32.mrb[0].mxu0
      %v1396 = vpop.f32.mrb[0].mxu0
      %v1397 = vadd.f32 0.0, %v1396
      %v1398 = vpop.f32.mrb[0].mxu0
      %1399 = vmatprep.mubr.bf16.mxu0 0
      %1400 = vmatmul.mubr.bf16.gmra.mrb[0].mxu0 %v1272
      %v1401 = vpop.f32.mrb[0].mxu0
      %v1402 = vadd.f32 0.0, %v1401
      %v1403 = vpop.f32.mrb[0].mxu0
      %v1404 = vpop.f32.mrb[0].mxu0
      %v1405 = vadd.f32 0.0, %v1404
      %v1406 = vpop.f32.mrb[0].mxu0
      %1407 = vmatprep.mubr.bf16.mxu0 0
      %1408 = vmatmul.mubr.bf16.gmra.mrb[0].mxu0 %v1275
      %v1409 = vpop.f32.mrb[0].mxu0
      %v1410 = vadd.f32 0.0, %v1409
      %v1411 = vpop.f32.mrb[0].mxu0
      %v1412 = vpop.f32.mrb[0].mxu0
      %v1413 = vadd.f32 0.0, %v1412
      %v1414 = vpop.f32.mrb[0].mxu0
      %1415 = vmatprep.mubr.bf16.mxu0 0
      %1416 = vmatmul.mubr.bf16.gmra.mrb[0].mxu0 %v1278
      %v1417 = vpop.f32.mrb[0].mxu0
      %v1418 = vadd.f32 0.0, %v1417
      %v1419 = vpop.f32.mrb[0].mxu0
      %v1420 = vpop.f32.mrb[0].mxu0
      %v1421 = vadd.f32 0.0, %v1420
      %v1422 = vpop.f32.mrb[0].mxu0
      %1423 = vmatprep.mubr.bf16.mxu0 0
      %1424 = vmatmul.mubr.bf16.gmra.mrb[0].mxu0 %v1281
      %v1425 = vpop.f32.mrb[0].mxu0
      %v1426 = vadd.f32 0.0, %v1425
      %v1427 = vpop.f32.mrb[0].mxu0
      %v1428 = vpop.f32.mrb[0].mxu0
      %v1429 = vadd.f32 0.0, %v1428
      %v1430 = vpop.f32.mrb[0].mxu0
      %1431 = vmatprep.mubr.bf16.mxu0 0
      %1432 = vmatmul.mubr.bf16.gmra.mrb[0].mxu0 %v1284
      %v1433 = vpop.f32.mrb[0].mxu0
      %v1434 = vadd.f32 0.0, %v1433
      %v1435 = vpop.f32.mrb[0].mxu0
      %v1436 = vpop.f32.mrb[0].mxu0
      %v1437 = vadd.f32 0.0, %v1436
      %v1438 = vpop.f32.mrb[0].mxu0
      %1439 = vmatprep.mubr.bf16.mxu0 0
      %1440 = vmatmul.mubr.bf16.gmra.mrb[0].mxu0 %v1287
      %v1441 = vpop.f32.mrb[0].mxu0
      %v1442 = vadd.f32 0.0, %v1441
      %v1443 = vpop.f32.mrb[0].mxu0
      %v1444 = vpop.f32.mrb[0].mxu0
      %v1445 = vadd.f32 0.0, %v1444
      %v1446 = vpop.f32.mrb[0].mxu0
      %1447 = vmatprep.mubr.bf16.mxu0 0
      %1448 = vmatmul.mubr.bf16.gmra.mrb[0].mxu0 %v1290
      %v1449 = vpop.f32.mrb[0].mxu0
      %v1450 = vadd.f32 0.0, %v1449
      %v1451 = vpop.f32.mrb[0].mxu0
      %v1452 = vpop.f32.mrb[0].mxu0
      %v1453 = vadd.f32 0.0, %v1452
      %v1454 = vpop.f32.mrb[0].mxu0
      %1455 = vmatprep.mubr.bf16.mxu0 0
      %1456 = vmatmul.mubr.bf16.gmra.mrb[0].mxu0 %v1293
      %v1457 = vpop.f32.mrb[0].mxu0
      %v1458 = vadd.f32 0.0, %v1457
      %v1459 = vpop.f32.mrb[0].mxu0
      %v1460 = vpop.f32.mrb[0].mxu0
      %v1461 = vadd.f32 0.0, %v1460
      %v1462 = vpop.f32.mrb[0].mxu0
      %1463 = vdwg.mxu0
      %v1464 = vadd.f32 %v830, %v1330
      %v1465 = vadd.f32 %v833, %v1333
      %v1466 = vadd.f32 %v838, %v1338
      %v1467 = vadd.f32 %v841, %v1341
      %v1468 = vadd.f32 %v846, %v1346
      %v1469 = vadd.f32 %v849, %v1349
      %v1470 = vadd.f32 %v854, %v1354
      %v1471 = vadd.f32 %v857, %v1357
      %v1472 = vadd.f32 %v862, %v1362
      %v1473 = vadd.f32 %v865, %v1365
      %v1474 = vadd.f32 %v870, %v1370
      %v1475 = vadd.f32 %v873, %v1373
      %v1476 = vadd.f32 %v878, %v1378
      %v1477 = vadd.f32 %v881, %v1381
      %v1478 = vadd.f32 %v886, %v1386
      %v1479 = vadd.f32 %v889, %v1389
      %v1480 = vadd.f32 %v894, %v1394
      %v1481 = vadd.f32 %v897, %v1397
      %v1482 = vadd.f32 %v902, %v1402
      %v1483 = vadd.f32 %v905, %v1405
      %v1484 = vadd.f32 %v910, %v1410
      %v1485 = vadd.f32 %v913, %v1413
      %v1486 = vadd.f32 %v918, %v1418
      %v1487 = vadd.f32 %v921, %v1421
      %v1488 = vadd.f32 %v926, %v1426
      %v1489 = vadd.f32 %v929, %v1429
      %v1490 = vadd.f32 %v934, %v1434
      %v1491 = vadd.f32 %v937, %v1437
      %v1492 = vadd.f32 %v942, %v1442
      %v1493 = vadd.f32 %v945, %v1445
      %v1494 = vadd.f32 %v950, %v1450
      %v1495 = vadd.f32 %v953, %v1453
      %v1496 = vadd.f32 %v958, %v1458
      %v1497 = vadd.f32 %v961, %v1461
      %v1498 = vld [vmem:[%s230 + $0x8] sm:$0xe]
      %s1499 = scalar_lea.vmem %s1, 48
      %v1500 = vld [vmem:[%s1499] sm:$0xf]
      %v1501 = vld [vmem:[%s1499 + $0x4] sm:$0xf]
      %v1502 = vld [vmem:[%s1499 + $0x8] sm:$0xf]
      %v1503 = vld [vmem:[%s1499 + $0xc] sm:$0xf]
      %v1505 = vunpack.c.l.b16 %v1498
      %v1506 = vpack.c.b16 %v1040, %v1505
      %vm1507 = vcmask 1046528
      %v1508 = vrot.slane %v1506, 1
      %v1509 = vrot.slane %v1075, 1
      %v1510 = vsel %vm1507, %v1508, %v1509
      %v1511 = vrot.slane %v1076, 1
      %v1512 = vsel %vm1507, %v1509, %v1511
      %v1513 = vrot.slane %v1077, 1
      %v1514 = vsel %vm1507, %v1511, %v1513
      %v1515 = vrot.slane %v1078, 1
      %v1516 = vsel %vm1507, %v1513, %v1515
      %v1517 = vrot.slane %v1079, 1
      %v1518 = vsel %vm1507, %v1515, %v1517
      %v1519 = vrot.slane %v1080, 1
      %v1520 = vsel %vm1507, %v1517, %v1519
      %v1521 = vrot.slane %v1081, 1
      %v1522 = vsel %vm1507, %v1519, %v1521
      %v1523 = vrot.slane %v1082, 1
      %v1524 = vsel %vm1507, %v1521, %v1523
      %v1525 = vrot.slane %v1083, 1
      %v1526 = vsel %vm1507, %v1523, %v1525
      %v1527 = vrot.slane %v1084, 1
      %v1528 = vsel %vm1507, %v1525, %v1527
      %v1529 = vrot.slane %v1085, 1
      %v1530 = vsel %vm1507, %v1527, %v1529
      %v1531 = vrot.slane %v1086, 1
      %v1532 = vsel %vm1507, %v1529, %v1531
      %v1533 = vrot.slane %v1087, 1
      %v1534 = vsel %vm1507, %v1531, %v1533
      %v1535 = vrot.slane %v1088, 1
      %v1536 = vsel %vm1507, %v1533, %v1535
      %v1537 = vrot.slane %v1089, 1
      %v1538 = vsel %vm1507, %v1535, %v1537
      %v1539 = vrot.slane %v1090, 1
      %v1540 = vsel %vm1507, %v1537, %v1539
      %v1541 = vrot.slane %v1091, 1
      %v1542 = vsel %vm1507, %v1539, %v1541
      %v1547 = vunpack.c.l.b16 %v1500
      %v1548 = vunpack.c.l.b16 %v1501
      %v1549 = vunpack.c.l.b16 %v1502
      %v1550 = vunpack.c.l.b16 %v1503
      %v1551 = vpack.c.b16 %v1548, %v1547
      %v1552 = vpack.c.b16 %v1550, %v1549
      %v1556 = vsel %vm528, %v1510, 0
      %v1559 = vsel %vm528, %v1512, 0
      %v1562 = vsel %vm528, %v1514, 0
      %v1565 = vsel %vm528, %v1516, 0
      %v1568 = vsel %vm528, %v1518, 0
      %v1571 = vsel %vm528, %v1520, 0
      %v1574 = vsel %vm528, %v1522, 0
      %v1577 = vsel %vm528, %v1524, 0
      %v1580 = vsel %vm528, %v1526, 0
      %v1583 = vsel %vm528, %v1528, 0
      %v1586 = vsel %vm528, %v1530, 0
      %v1589 = vsel %vm528, %v1532, 0
      %v1592 = vsel %vm528, %v1534, 0
      %v1595 = vsel %vm528, %v1536, 0
      %v1598 = vsel %vm528, %v1538, 0
      %v1601 = vsel %vm528, %v1540, 0
      %v1604 = vsel %vm528, %v1542, 0
      %1606 = vmatprep.subr.bf16.mxu0 0
      %1607 = vmatpush1.bf16.msra.mxu0 %v1551
      %1608 = vmatprep.subr.bf16.mxu0 0
      %1609 = vmatpush1.bf16.msra.mxu0 %v1552
      %1610 = vmatprep.subr.bf16.mxu0 0
      %1611 = vmatpush1.bf16.msra.mxu0 0
      %1612 = vmatprep.subr.bf16.mxu0 0
      %1613 = vmatpush1.bf16.msra.mxu0 0
      %1614 = vmatprep.subr.bf16.mxu0 0
      %1615 = vmatpush1.bf16.msra.mxu0 0
      %1616 = vmatprep.subr.bf16.mxu0 0
      %1617 = vmatpush1.bf16.msra.mxu0 0
      %1618 = vmatprep.subr.bf16.mxu0 0
      %1619 = vmatpush1.bf16.msra.mxu0 0
      %1620 = vmatprep.subr.bf16.mxu0 0
      %1621 = vmatpush1.bf16.msra.mxu0 0
      %1622 = vmatprep.subr.bf16.mxu0 0
      %1623 = vmatpush1.bf16.msra.mxu0 0
      %1624 = vmatprep.subr.bf16.mxu0 0
      %1625 = vmatpush1.bf16.msra.mxu0 0
      %1626 = vmatprep.subr.bf16.mxu0 0
      %1627 = vmatpush1.bf16.msra.mxu0 0
      %1628 = vmatprep.subr.bf16.mxu0 0
      %1629 = vmatpush1.bf16.msra.mxu0 0
      %1630 = vmatprep.subr.bf16.mxu0 0
      %1631 = vmatpush1.bf16.msra.mxu0 0
      %1632 = vmatprep.subr.bf16.mxu0 0
      %1633 = vmatpush1.bf16.msra.mxu0 0
      %1634 = vmatprep.subr.bf16.mxu0 0
      %1635 = vmatpush1.bf16.msra.mxu0 0
      %1636 = vmatprep.subr.bf16.mxu0 0
      %1637 = vmatpush1.bf16.msra.mxu0 0
      %1638 = vmatprep.mubr.bf16.mxu0 0
      %1639 = vmatmul.mubr.bf16.gmra.mrb[0].mxu0 %v1556
      %v1640 = vpop.f32.mrb[0].mxu0
      %v1641 = vadd.f32 0.0, %v1640
      %v1642 = vpop.f32.mrb[0].mxu0
      %v1643 = vpop.f32.mrb[0].mxu0
      %v1644 = vadd.f32 0.0, %v1643
      %v1645 = vpop.f32.mrb[0].mxu0
      %1646 = vmatprep.mubr.bf16.mxu0 0
      %1647 = vmatmul.mubr.bf16.gmra.mrb[0].mxu0 %v1559
      %v1648 = vpop.f32.mrb[0].mxu0
      %v1649 = vadd.f32 0.0, %v1648
      %v1650 = vpop.f32.mrb[0].mxu0
      %v1651 = vpop.f32.mrb[0].mxu0
      %v1652 = vadd.f32 0.0, %v1651
      %v1653 = vpop.f32.mrb[0].mxu0
      %1654 = vmatprep.mubr.bf16.mxu0 0
      %1655 = vmatmul.mubr.bf16.gmra.mrb[0].mxu0 %v1562
      %v1656 = vpop.f32.mrb[0].mxu0
      %v1657 = vadd.f32 0.0, %v1656
      %v1658 = vpop.f32.mrb[0].mxu0
      %v1659 = vpop.f32.mrb[0].mxu0
      %v1660 = vadd.f32 0.0, %v1659
      %v1661 = vpop.f32.mrb[0].mxu0
      %1662 = vmatprep.mubr.bf16.mxu0 0
      %1663 = vmatmul.mubr.bf16.gmra.mrb[0].mxu0 %v1565
      %v1664 = vpop.f32.mrb[0].mxu0
      %v1665 = vadd.f32 0.0, %v1664
      %v1666 = vpop.f32.mrb[0].mxu0
      %v1667 = vpop.f32.mrb[0].mxu0
      %v1668 = vadd.f32 0.0, %v1667
      %v1669 = vpop.f32.mrb[0].mxu0
      %1670 = vmatprep.mubr.bf16.mxu0 0
      %1671 = vmatmul.mubr.bf16.gmra.mrb[0].mxu0 %v1568
      %v1672 = vpop.f32.mrb[0].mxu0
      %v1673 = vadd.f32 0.0, %v1672
      %v1674 = vpop.f32.mrb[0].mxu0
      %v1675 = vpop.f32.mrb[0].mxu0
      %v1676 = vadd.f32 0.0, %v1675
      %v1677 = vpop.f32.mrb[0].mxu0
      %1678 = vmatprep.mubr.bf16.mxu0 0
      %1679 = vmatmul.mubr.bf16.gmra.mrb[0].mxu0 %v1571
      %v1680 = vpop.f32.mrb[0].mxu0
      %v1681 = vadd.f32 0.0, %v1680
      %v1682 = vpop.f32.mrb[0].mxu0
      %v1683 = vpop.f32.mrb[0].mxu0
      %v1684 = vadd.f32 0.0, %v1683
      %v1685 = vpop.f32.mrb[0].mxu0
      %1686 = vmatprep.mubr.bf16.mxu0 0
      %1687 = vmatmul.mubr.bf16.gmra.mrb[0].mxu0 %v1574
      %v1688 = vpop.f32.mrb[0].mxu0
      %v1689 = vadd.f32 0.0, %v1688
      %v1690 = vpop.f32.mrb[0].mxu0
      %v1691 = vpop.f32.mrb[0].mxu0
      %v1692 = vadd.f32 0.0, %v1691
      %v1693 = vpop.f32.mrb[0].mxu0
      %1694 = vmatprep.mubr.bf16.mxu0 0
      %1695 = vmatmul.mubr.bf16.gmra.mrb[0].mxu0 %v1577
      %v1696 = vpop.f32.mrb[0].mxu0
      %v1697 = vadd.f32 0.0, %v1696
      %v1698 = vpop.f32.mrb[0].mxu0
      %v1699 = vpop.f32.mrb[0].mxu0
      %v1700 = vadd.f32 0.0, %v1699
      %v1701 = vpop.f32.mrb[0].mxu0
      %1702 = vmatprep.mubr.bf16.mxu0 0
      %1703 = vmatmul.mubr.bf16.gmra.mrb[0].mxu0 %v1580
      %v1704 = vpop.f32.mrb[0].mxu0
      %v1705 = vadd.f32 0.0, %v1704
      %v1706 = vpop.f32.mrb[0].mxu0
      %v1707 = vpop.f32.mrb[0].mxu0
      %v1708 = vadd.f32 0.0, %v1707
      %v1709 = vpop.f32.mrb[0].mxu0
      %1710 = vmatprep.mubr.bf16.mxu0 0
      %1711 = vmatmul.mubr.bf16.gmra.mrb[0].mxu0 %v1583
      %v1712 = vpop.f32.mrb[0].mxu0
      %v1713 = vadd.f32 0.0, %v1712
      %v1714 = vpop.f32.mrb[0].mxu0
      %v1715 = vpop.f32.mrb[0].mxu0
      %v1716 = vadd.f32 0.0, %v1715
      %v1717 = vpop.f32.mrb[0].mxu0
      %1718 = vmatprep.mubr.bf16.mxu0 0
      %1719 = vmatmul.mubr.bf16.gmra.mrb[0].mxu0 %v1586
      %v1720 = vpop.f32.mrb[0].mxu0
      %v1721 = vadd.f32 0.0, %v1720
      %v1722 = vpop.f32.mrb[0].mxu0
      %v1723 = vpop.f32.mrb[0].mxu0
      %v1724 = vadd.f32 0.0, %v1723
      %v1725 = vpop.f32.mrb[0].mxu0
      %1726 = vmatprep.mubr.bf16.mxu0 0
      %1727 = vmatmul.mubr.bf16.gmra.mrb[0].mxu0 %v1589
      %v1728 = vpop.f32.mrb[0].mxu0
      %v1729 = vadd.f32 0.0, %v1728
      %v1730 = vpop.f32.mrb[0].mxu0
      %v1731 = vpop.f32.mrb[0].mxu0
      %v1732 = vadd.f32 0.0, %v1731
      %v1733 = vpop.f32.mrb[0].mxu0
      %1734 = vmatprep.mubr.bf16.mxu0 0
      %1735 = vmatmul.mubr.bf16.gmra.mrb[0].mxu0 %v1592
      %v1736 = vpop.f32.mrb[0].mxu0
      %v1737 = vadd.f32 0.0, %v1736
      %v1738 = vpop.f32.mrb[0].mxu0
      %v1739 = vpop.f32.mrb[0].mxu0
      %v1740 = vadd.f32 0.0, %v1739
      %v1741 = vpop.f32.mrb[0].mxu0
      %1742 = vmatprep.mubr.bf16.mxu0 0
      %1743 = vmatmul.mubr.bf16.gmra.mrb[0].mxu0 %v1595
      %v1744 = vpop.f32.mrb[0].mxu0
      %v1745 = vadd.f32 0.0, %v1744
      %v1746 = vpop.f32.mrb[0].mxu0
      %v1747 = vpop.f32.mrb[0].mxu0
      %v1748 = vadd.f32 0.0, %v1747
      %v1749 = vpop.f32.mrb[0].mxu0
      %1750 = vmatprep.mubr.bf16.mxu0 0
      %1751 = vmatmul.mubr.bf16.gmra.mrb[0].mxu0 %v1598
      %v1752 = vpop.f32.mrb[0].mxu0
      %v1753 = vadd.f32 0.0, %v1752
      %v1754 = vpop.f32.mrb[0].mxu0
      %v1755 = vpop.f32.mrb[0].mxu0
      %v1756 = vadd.f32 0.0, %v1755
      %v1757 = vpop.f32.mrb[0].mxu0
      %1758 = vmatprep.mubr.bf16.mxu0 0
      %1759 = vmatmul.mubr.bf16.gmra.mrb[0].mxu0 %v1601
      %v1760 = vpop.f32.mrb[0].mxu0
      %v1761 = vadd.f32 0.0, %v1760
      %v1762 = vpop.f32.mrb[0].mxu0
      %v1763 = vpop.f32.mrb[0].mxu0
      %v1764 = vadd.f32 0.0, %v1763
      %v1765 = vpop.f32.mrb[0].mxu0
      %1766 = vmatprep.mubr.bf16.mxu0 0
      %1767 = vmatmul.mubr.bf16.gmra.mrb[0].mxu0 %v1604
      %v1768 = vpop.f32.mrb[0].mxu0
      %v1769 = vadd.f32 0.0, %v1768
      %v1770 = vpop.f32.mrb[0].mxu0
      %v1771 = vpop.f32.mrb[0].mxu0
      %v1772 = vadd.f32 0.0, %v1771
      %v1773 = vpop.f32.mrb[0].mxu0
      %1774 = vdwg.mxu0
      %v1775 = vadd.f32 %v1464, %v1641
      %v1776 = vadd.f32 %v1465, %v1644
      %v1777 = vadd.f32 %v1466, %v1649
      %v1778 = vadd.f32 %v1467, %v1652
      %v1779 = vadd.f32 %v1468, %v1657
      %v1780 = vadd.f32 %v1469, %v1660
      %v1781 = vadd.f32 %v1470, %v1665
      %v1782 = vadd.f32 %v1471, %v1668
      %v1783 = vadd.f32 %v1472, %v1673
      %v1784 = vadd.f32 %v1473, %v1676
      %v1785 = vadd.f32 %v1474, %v1681
      %v1786 = vadd.f32 %v1475, %v1684
      %v1787 = vadd.f32 %v1476, %v1689
      %v1788 = vadd.f32 %v1477, %v1692
      %v1789 = vadd.f32 %v1478, %v1697
      %v1790 = vadd.f32 %v1479, %v1700
      %v1791 = vadd.f32 %v1480, %v1705
      %v1792 = vadd.f32 %v1481, %v1708
      %v1793 = vadd.f32 %v1482, %v1713
      %v1794 = vadd.f32 %v1483, %v1716
      %v1795 = vadd.f32 %v1484, %v1721
      %v1796 = vadd.f32 %v1485, %v1724
      %v1797 = vadd.f32 %v1486, %v1729
      %v1798 = vadd.f32 %v1487, %v1732
      %v1799 = vadd.f32 %v1488, %v1737
      %v1800 = vadd.f32 %v1489, %v1740
      %v1801 = vadd.f32 %v1490, %v1745
      %v1802 = vadd.f32 %v1491, %v1748
      %v1803 = vadd.f32 %v1492, %v1753
      %v1804 = vadd.f32 %v1493, %v1756
      %v1805 = vadd.f32 %v1494, %v1761
      %v1806 = vadd.f32 %v1495, %v1764
      %v1807 = vadd.f32 %v1496, %v1769
      %v1808 = vadd.f32 %v1497, %v1772
      %v1809 = vpack.c.bf16 %v1776, %v1775
      %v1810 = vpack.c.bf16 %v1778, %v1777
      %v1811 = vpack.c.bf16 %v1780, %v1779
      %v1812 = vpack.c.bf16 %v1782, %v1781
      %v1813 = vpack.c.bf16 %v1784, %v1783
      %v1814 = vpack.c.bf16 %v1786, %v1785
      %v1815 = vpack.c.bf16 %v1788, %v1787
      %v1816 = vpack.c.bf16 %v1790, %v1789
      %v1817 = vpack.c.bf16 %v1792, %v1791
      %v1818 = vpack.c.bf16 %v1794, %v1793
      %v1819 = vpack.c.bf16 %v1796, %v1795
      %v1820 = vpack.c.bf16 %v1798, %v1797
      %v1821 = vpack.c.bf16 %v1800, %v1799
      %v1822 = vpack.c.bf16 %v1802, %v1801
      %v1823 = vpack.c.bf16 %v1804, %v1803
      %v1824 = vpack.c.bf16 %v1806, %v1805
      %v1825 = vpack.c.bf16 %v1808, %v1807
      %v1843 = vunpack.c.l.b16 %v1809
      %v1844 = vunpack.c.h.b16 %v1809
      %v1845 = vunpack.c.l.b16 %v1810
      %v1846 = vunpack.c.h.b16 %v1810
      %v1847 = vunpack.c.l.b16 %v1811
      %v1848 = vunpack.c.h.b16 %v1811
      %v1849 = vunpack.c.l.b16 %v1812
      %v1850 = vunpack.c.h.b16 %v1812
      %v1851 = vunpack.c.l.b16 %v1813
      %v1852 = vunpack.c.h.b16 %v1813
      %v1853 = vunpack.c.l.b16 %v1814
      %v1854 = vunpack.c.h.b16 %v1814
      %v1855 = vunpack.c.l.b16 %v1815
      %v1856 = vunpack.c.h.b16 %v1815
      %v1857 = vunpack.c.l.b16 %v1816
      %v1858 = vunpack.c.h.b16 %v1816
      %v1859 = vunpack.c.l.b16 %v1817
      %v1860 = vunpack.c.h.b16 %v1817
      %v1861 = vunpack.c.l.b16 %v1818
      %v1862 = vunpack.c.h.b16 %v1818
      %v1863 = vunpack.c.l.b16 %v1819
      %v1864 = vunpack.c.h.b16 %v1819
      %v1865 = vunpack.c.l.b16 %v1820
      %v1866 = vunpack.c.h.b16 %v1820
      %v1867 = vunpack.c.l.b16 %v1821
      %v1868 = vunpack.c.h.b16 %v1821
      %v1869 = vunpack.c.l.b16 %v1822
      %v1870 = vunpack.c.h.b16 %v1822
      %v1871 = vunpack.c.l.b16 %v1823
      %v1872 = vunpack.c.h.b16 %v1823
      %v1873 = vunpack.c.l.b16 %v1824
      %v1874 = vunpack.c.h.b16 %v1824
      %v1875 = vunpack.c.l.b16 %v1825
      %v1876 = vunpack.c.h.b16 %v1825
      %v1877 = vpack.c.b16 %v1843, %v1843
      %v1878 = vpack.c.b16 %v1844, %v1844
      %v1879 = vpack.c.b16 %v1845, %v1845
      %v1880 = vpack.c.b16 %v1846, %v1846
      %v1881 = vpack.c.b16 %v1847, %v1847
      %v1882 = vpack.c.b16 %v1848, %v1848
      %v1883 = vpack.c.b16 %v1849, %v1849
      %v1884 = vpack.c.b16 %v1850, %v1850
      %v1885 = vpack.c.b16 %v1851, %v1851
      %v1886 = vpack.c.b16 %v1852, %v1852
      %v1887 = vpack.c.b16 %v1853, %v1853
      %v1888 = vpack.c.b16 %v1854, %v1854
      %v1889 = vpack.c.b16 %v1855, %v1855
      %v1890 = vpack.c.b16 %v1856, %v1856
      %v1891 = vpack.c.b16 %v1857, %v1857
      %v1892 = vpack.c.b16 %v1858, %v1858
      %v1893 = vpack.c.b16 %v1859, %v1859
      %v1894 = vpack.c.b16 %v1860, %v1860
      %v1895 = vpack.c.b16 %v1861, %v1861
      %v1896 = vpack.c.b16 %v1862, %v1862
      %v1897 = vpack.c.b16 %v1863, %v1863
      %v1898 = vpack.c.b16 %v1864, %v1864
      %v1899 = vpack.c.b16 %v1865, %v1865
      %v1900 = vpack.c.b16 %v1866, %v1866
      %v1901 = vpack.c.b16 %v1867, %v1867
      %v1902 = vpack.c.b16 %v1868, %v1868
      %v1903 = vpack.c.b16 %v1869, %v1869
      %v1904 = vpack.c.b16 %v1870, %v1870
      %v1905 = vpack.c.b16 %v1871, %v1871
      %v1906 = vpack.c.b16 %v1872, %v1872
      %v1907 = vpack.c.b16 %v1873, %v1873
      %v1908 = vpack.c.b16 %v1874, %v1874
      %v1909 = vpack.c.b16 %v1875, %v1875
      %v1910 = vpack.c.b16 %v1876, %v1876
      %vm1945 = vcmask 125952
      %1946 = vst.msk [vmem:[%s235] sm:$0xf] %vm1945, %v1877
      %1947 = vst.msk [vmem:[%s235 + $0x4] sm:$0xf] %vm1945, %v1878
      %1948 = vst.msk [vmem:[%s235 + $0x8] sm:$0xf] %vm1945, %v1879
      %1949 = vst.msk [vmem:[%s235 + $0xc] sm:$0xf] %vm1945, %v1880
      %1950 = vst.msk [vmem:[%s235 + $0x10] sm:$0xf] %vm1945, %v1881
      %1951 = vst.msk [vmem:[%s235 + $0x14] sm:$0xf] %vm1945, %v1882
      %1952 = vst.msk [vmem:[%s235 + $0x18] sm:$0xf] %vm1945, %v1883
      %1953 = vst.msk [vmem:[%s235 + $0x1c] sm:$0xf] %vm1945, %v1884
      %1954 = vst.msk [vmem:[%s235 + $0x20] sm:$0xf] %vm1945, %v1885
      %1955 = vst.msk [vmem:[%s235 + $0x24] sm:$0xf] %vm1945, %v1886
      %1956 = vst.msk [vmem:[%s235 + $0x28] sm:$0xf] %vm1945, %v1887
      %1957 = vst.msk [vmem:[%s235 + $0x2c] sm:$0xf] %vm1945, %v1888
      %1958 = vst.msk [vmem:[%s235 + $0x30] sm:$0xf] %vm1945, %v1889
      %1959 = vst.msk [vmem:[%s235 + $0x34] sm:$0xf] %vm1945, %v1890
      %1960 = vst.msk [vmem:[%s235 + $0x38] sm:$0xf] %vm1945, %v1891
      %1961 = vst.msk [vmem:[%s235 + $0x3c] sm:$0xf] %vm1945, %v1892
      %1962 = vst.msk [vmem:[%s235 + $0x40] sm:$0xf] %vm1945, %v1893
      %1963 = vst.msk [vmem:[%s235 + $0x44] sm:$0xf] %vm1945, %v1894
      %1964 = vst.msk [vmem:[%s235 + $0x48] sm:$0xf] %vm1945, %v1895
      %1965 = vst.msk [vmem:[%s235 + $0x4c] sm:$0xf] %vm1945, %v1896
      %1966 = vst.msk [vmem:[%s235 + $0x50] sm:$0xf] %vm1945, %v1897
      %1967 = vst.msk [vmem:[%s235 + $0x54] sm:$0xf] %vm1945, %v1898
      %1968 = vst.msk [vmem:[%s235 + $0x58] sm:$0xf] %vm1945, %v1899
      %1969 = vst.msk [vmem:[%s235 + $0x5c] sm:$0xf] %vm1945, %v1900
      %1970 = vst.msk [vmem:[%s235 + $0x60] sm:$0xf] %vm1945, %v1901
      %1971 = vst.msk [vmem:[%s235 + $0x64] sm:$0xf] %vm1945, %v1902
      %1972 = vst.msk [vmem:[%s235 + $0x68] sm:$0xf] %vm1945, %v1903
      %1973 = vst.msk [vmem:[%s235 + $0x6c] sm:$0xf] %vm1945, %v1904
      %1974 = vst.msk [vmem:[%s235 + $0x70] sm:$0xf] %vm1945, %v1905
      %1975 = vst.msk [vmem:[%s235 + $0x74] sm:$0xf] %vm1945, %v1906
      %1976 = vst.msk [vmem:[%s235 + $0x78] sm:$0xf] %vm1945, %v1907
      %1977 = vst.msk [vmem:[%s235 + $0x7c] sm:$0xf] %vm1945, %v1908
      %1978 = vst.msk [vmem:[%s235 + $0x80] sm:$0xf] %vm1945, %v1909
      %1979 = vst.msk [vmem:[%s235 + $0x84] sm:$0xf] %vm1945, %v1910
      %v1980 = vld [vmem:[%s2] sm:$0xff]
      %v1981 = vld [vmem:[%s2 + $0x8] sm:$0xff]
      %v1982 = vld [vmem:[%s2 + $0x10] sm:$0xff]
      %v1983 = vld [vmem:[%s2 + $0x18] sm:$0xff]
      %v1984 = vld [vmem:[%s2 + $0x20] sm:$0xff]
      %v1985 = vld [vmem:[%s2 + $0x28] sm:$0xff]
      %v1986 = vld [vmem:[%s2 + $0x30] sm:$0xff]
      %v1987 = vld [vmem:[%s2 + $0x38] sm:$0xff]
      %v1988 = vld [vmem:[%s2 + $0x40] sm:$0xff]
      %v1989 = vld [vmem:[%s2 + $0x48] sm:$0xff]
      %v1990 = vld [vmem:[%s2 + $0x50] sm:$0xff]
      %v1991 = vld [vmem:[%s2 + $0x58] sm:$0xff]
      %v1992 = vld [vmem:[%s2 + $0x60] sm:$0xff]
      %v1993 = vld [vmem:[%s2 + $0x68] sm:$0xff]
      %v1994 = vld [vmem:[%s2 + $0x70] sm:$0xff]
      %v1995 = vld [vmem:[%s2 + $0x78] sm:$0xff]
      %v1996 = vld [vmem:[%s2 + $0x80] sm:$0xff]
      %v1997 = vld [vmem:[%s2 + $0x88] sm:$0xff]
      %v1998 = vld [vmem:[%s2 + $0x90] sm:$0xff]
      %v1999 = vld [vmem:[%s2 + $0x98] sm:$0xff]
      %v2000 = vld [vmem:[%s2 + $0xa0] sm:$0xff]
      %v2001 = vld [vmem:[%s2 + $0xa8] sm:$0xff]
      %v2002 = vld [vmem:[%s2 + $0xb0] sm:$0xff]
      %v2003 = vld [vmem:[%s2 + $0xb8] sm:$0xff]
      %v2004 = vld [vmem:[%s2 + $0xc0] sm:$0xff]
      %v2005 = vld [vmem:[%s2 + $0xc8] sm:$0xff]
      %v2006 = vld [vmem:[%s2 + $0xd0] sm:$0xff]
      %v2007 = vld [vmem:[%s2 + $0xd8] sm:$0xff]
      %v2008 = vld [vmem:[%s2 + $0xe0] sm:$0xff]
      %v2009 = vld [vmem:[%s2 + $0xe8] sm:$0xff]
      %v2010 = vld [vmem:[%s2 + $0xf0] sm:$0xff]
      %v2011 = vld [vmem:[%s2 + $0xf8] sm:$0xff]
      %v2012 = vld [vmem:[%s2 + $0x100] sm:$0xff]
      %v2013 = vld [vmem:[%s2 + $0x108] sm:$0xff]
      %2015 = vset.pattern.permute.xlu0 0
      %2016 = vperm.xlu0 %2015, %v1980
      %v2017 = vpop.permute.xlu0 %2016
      %2020 = vset.pattern.permute.xlu0 0
      %2021 = vperm.xlu0 %2020, %v1981
      %v2022 = vpop.permute.xlu0 %2021
      %2025 = vset.pattern.permute.xlu0 0
      %2026 = vperm.xlu0 %2025, %v1982
      %v2027 = vpop.permute.xlu0 %2026
      %2030 = vset.pattern.permute.xlu0 0
      %2031 = vperm.xlu0 %2030, %v1983
      %v2032 = vpop.permute.xlu0 %2031
      %2035 = vset.pattern.permute.xlu0 0
      %2036 = vperm.xlu0 %2035, %v1984
      %v2037 = vpop.permute.xlu0 %2036
      %2040 = vset.pattern.permute.xlu0 0
      %2041 = vperm.xlu0 %2040, %v1985
      %v2042 = vpop.permute.xlu0 %2041
      %2045 = vset.pattern.permute.xlu0 0
      %2046 = vperm.xlu0 %2045, %v1986
      %v2047 = vpop.permute.xlu0 %2046
      %2050 = vset.pattern.permute.xlu0 0
      %2051 = vperm.xlu0 %2050, %v1987
      %v2052 = vpop.permute.xlu0 %2051
      %2055 = vset.pattern.permute.xlu0 0
      %2056 = vperm.xlu0 %2055, %v1988
      %v2057 = vpop.permute.xlu0 %2056
      %2060 = vset.pattern.permute.xlu0 0
      %2061 = vperm.xlu0 %2060, %v1989
      %v2062 = vpop.permute.xlu0 %2061
      %2065 = vset.pattern.permute.xlu0 0
      %2066 = vperm.xlu0 %2065, %v1990
      %v2067 = vpop.permute.xlu0 %2066
      %2070 = vset.pattern.permute.xlu0 0
      %2071 = vperm.xlu0 %2070, %v1991
      %v2072 = vpop.permute.xlu0 %2071
      %2075 = vset.pattern.permute.xlu0 0
      %2076 = vperm.xlu0 %2075, %v1992
      %v2077 = vpop.permute.xlu0 %2076
      %2080 = vset.pattern.permute.xlu0 0
      %2081 = vperm.xlu0 %2080, %v1993
      %v2082 = vpop.permute.xlu0 %2081
      %2085 = vset.pattern.permute.xlu0 0
      %2086 = vperm.xlu0 %2085, %v1994
      %v2087 = vpop.permute.xlu0 %2086
      %2090 = vset.pattern.permute.xlu0 0
      %2091 = vperm.xlu0 %2090, %v1995
      %v2092 = vpop.permute.xlu0 %2091
      %2095 = vset.pattern.permute.xlu0 0
      %2096 = vperm.xlu0 %2095, %v1996
      %v2097 = vpop.permute.xlu0 %2096
      %2100 = vset.pattern.permute.xlu0 0
      %2101 = vperm.xlu0 %2100, %v1997
      %v2102 = vpop.permute.xlu0 %2101
      %2105 = vset.pattern.permute.xlu0 0
      %2106 = vperm.xlu0 %2105, %v1998
      %v2107 = vpop.permute.xlu0 %2106
      %2110 = vset.pattern.permute.xlu0 0
      %2111 = vperm.xlu0 %2110, %v1999
      %v2112 = vpop.permute.xlu0 %2111
      %2115 = vset.pattern.permute.xlu0 0
      %2116 = vperm.xlu0 %2115, %v2000
      %v2117 = vpop.permute.xlu0 %2116
      %2120 = vset.pattern.permute.xlu0 0
      %2121 = vperm.xlu0 %2120, %v2001
      %v2122 = vpop.permute.xlu0 %2121
      %2125 = vset.pattern.permute.xlu0 0
      %2126 = vperm.xlu0 %2125, %v2002
      %v2127 = vpop.permute.xlu0 %2126
      %2130 = vset.pattern.permute.xlu0 0
      %2131 = vperm.xlu0 %2130, %v2003
      %v2132 = vpop.permute.xlu0 %2131
      %2135 = vset.pattern.permute.xlu0 0
      %2136 = vperm.xlu0 %2135, %v2004
      %v2137 = vpop.permute.xlu0 %2136
      %2140 = vset.pattern.permute.xlu0 0
      %2141 = vperm.xlu0 %2140, %v2005
      %v2142 = vpop.permute.xlu0 %2141
      %2145 = vset.pattern.permute.xlu0 0
      %2146 = vperm.xlu0 %2145, %v2006
      %v2147 = vpop.permute.xlu0 %2146
      %2150 = vset.pattern.permute.xlu0 0
      %2151 = vperm.xlu0 %2150, %v2007
      %v2152 = vpop.permute.xlu0 %2151
      %2155 = vset.pattern.permute.xlu0 0
      %2156 = vperm.xlu0 %2155, %v2008
      %v2157 = vpop.permute.xlu0 %2156
      %2160 = vset.pattern.permute.xlu0 0
      %2161 = vperm.xlu0 %2160, %v2009
      %v2162 = vpop.permute.xlu0 %2161
      %2165 = vset.pattern.permute.xlu0 0
      %2166 = vperm.xlu0 %2165, %v2010
      %v2167 = vpop.permute.xlu0 %2166
      %2170 = vset.pattern.permute.xlu0 0
      %2171 = vperm.xlu0 %2170, %v2011
      %v2172 = vpop.permute.xlu0 %2171
      %2175 = vset.pattern.permute.xlu0 0
      %2176 = vperm.xlu0 %2175, %v2012
      %v2177 = vpop.permute.xlu0 %2176
      %2180 = vset.pattern.permute.xlu0 0
      %2181 = vperm.xlu0 %2180, %v2013
      %v2182 = vpop.permute.xlu0 %2181
      %v2184 = vmul.f32 %v1775, %v2017
      %v2185 = vmul.f32 %v1776, %v2022
      %v2186 = vmul.f32 %v1777, %v2027
      %v2187 = vmul.f32 %v1778, %v2032
      %v2188 = vmul.f32 %v1779, %v2037
      %v2189 = vmul.f32 %v1780, %v2042
      %v2190 = vmul.f32 %v1781, %v2047
      %v2191 = vmul.f32 %v1782, %v2052
      %v2192 = vmul.f32 %v1783, %v2057
      %v2193 = vmul.f32 %v1784, %v2062
      %v2194 = vmul.f32 %v1785, %v2067
      %v2195 = vmul.f32 %v1786, %v2072
      %v2196 = vmul.f32 %v1787, %v2077
      %v2197 = vmul.f32 %v1788, %v2082
      %v2198 = vmul.f32 %v1789, %v2087
      %v2199 = vmul.f32 %v1790, %v2092
      %v2200 = vmul.f32 %v1791, %v2097
      %v2201 = vmul.f32 %v1792, %v2102
      %v2202 = vmul.f32 %v1793, %v2107
      %v2203 = vmul.f32 %v1794, %v2112
      %v2204 = vmul.f32 %v1795, %v2117
      %v2205 = vmul.f32 %v1796, %v2122
      %v2206 = vmul.f32 %v1797, %v2127
      %v2207 = vmul.f32 %v1798, %v2132
      %v2208 = vmul.f32 %v1799, %v2137
      %v2209 = vmul.f32 %v1800, %v2142
      %v2210 = vmul.f32 %v1801, %v2147
      %v2211 = vmul.f32 %v1802, %v2152
      %v2212 = vmul.f32 %v1803, %v2157
      %v2213 = vmul.f32 %v1804, %v2162
      %v2214 = vmul.f32 %v1805, %v2167
      %v2215 = vmul.f32 %v1806, %v2172
      %v2216 = vmul.f32 %v1807, %v2177
      %v2217 = vmul.f32 %v1808, %v2182
      %vm2218 = vcmask 130048
      %v2219 = vsel %vm2218, %v2184, 0.0
      %v2220 = vsel %vm2218, %v2185, 0.0
      %v2221 = vadd.f32 %v2219, %v2220
      %v2222 = vsel %vm2218, %v2186, 0.0
      %v2223 = vadd.f32 %v2221, %v2222
      %v2224 = vsel %vm2218, %v2187, 0.0
      %v2225 = vadd.f32 %v2223, %v2224
      %v2226 = vsel %vm2218, %v2188, 0.0
      %v2227 = vadd.f32 %v2225, %v2226
      %v2228 = vsel %vm2218, %v2189, 0.0
      %v2229 = vadd.f32 %v2227, %v2228
      %v2230 = vsel %vm2218, %v2190, 0.0
      %v2231 = vadd.f32 %v2229, %v2230
      %v2232 = vsel %vm2218, %v2191, 0.0
      %v2233 = vadd.f32 %v2231, %v2232
      %v2234 = vsel %vm2218, %v2192, 0.0
      %v2235 = vadd.f32 %v2233, %v2234
      %v2236 = vsel %vm2218, %v2193, 0.0
      %v2237 = vadd.f32 %v2235, %v2236
      %v2238 = vsel %vm2218, %v2194, 0.0
      %v2239 = vadd.f32 %v2237, %v2238
      %v2240 = vsel %vm2218, %v2195, 0.0
      %v2241 = vadd.f32 %v2239, %v2240
      %v2242 = vsel %vm2218, %v2196, 0.0
      %v2243 = vadd.f32 %v2241, %v2242
      %v2244 = vsel %vm2218, %v2197, 0.0
      %v2245 = vadd.f32 %v2243, %v2244
      %v2246 = vsel %vm2218, %v2198, 0.0
      %v2247 = vadd.f32 %v2245, %v2246
      %v2248 = vsel %vm2218, %v2199, 0.0
      %v2249 = vadd.f32 %v2247, %v2248
      %v2250 = vsel %vm2218, %v2200, 0.0
      %v2251 = vadd.f32 %v2249, %v2250
      %v2252 = vsel %vm2218, %v2201, 0.0
      %v2253 = vadd.f32 %v2251, %v2252
      %v2254 = vsel %vm2218, %v2202, 0.0
      %v2255 = vadd.f32 %v2253, %v2254
      %v2256 = vsel %vm2218, %v2203, 0.0
      %v2257 = vadd.f32 %v2255, %v2256
      %v2258 = vsel %vm2218, %v2204, 0.0
      %v2259 = vadd.f32 %v2257, %v2258
      %v2260 = vsel %vm2218, %v2205, 0.0
      %v2261 = vadd.f32 %v2259, %v2260
      %v2262 = vsel %vm2218, %v2206, 0.0
      %v2263 = vadd.f32 %v2261, %v2262
      %v2264 = vsel %vm2218, %v2207, 0.0
      %v2265 = vadd.f32 %v2263, %v2264
      %v2266 = vsel %vm2218, %v2208, 0.0
      %v2267 = vadd.f32 %v2265, %v2266
      %v2268 = vsel %vm2218, %v2209, 0.0
      %v2269 = vadd.f32 %v2267, %v2268
      %v2270 = vsel %vm2218, %v2210, 0.0
      %v2271 = vadd.f32 %v2269, %v2270
      %v2272 = vsel %vm2218, %v2211, 0.0
      %v2273 = vadd.f32 %v2271, %v2272
      %v2274 = vsel %vm2218, %v2212, 0.0
      %v2275 = vadd.f32 %v2273, %v2274
      %v2276 = vsel %vm2218, %v2213, 0.0
      %v2277 = vadd.f32 %v2275, %v2276
      %v2278 = vsel %vm2218, %v2214, 0.0
      %v2279 = vadd.f32 %v2277, %v2278
      %v2280 = vsel %vm2218, %v2215, 0.0
      %v2281 = vadd.f32 %v2279, %v2280
      %v2282 = vsel %vm2218, %v2216, 0.0
      %v2283 = vadd.f32 %v2281, %v2282
      %v2284 = vsel %vm2218, %v2217, 0.0
      %v2285 = vadd.f32 %v2283, %v2284
      %v2286 = vrot.slane %v2285, 4
      %v2287 = vadd.f32 %v2285, %v2286
      %v2288 = vrot.slane %v2287, 2
      %v2289 = vadd.f32 %v2287, %v2288
      %v2290 = vrot.slane %v2289, 1
      %v2291 = vadd.f32 %v2289, %v2290
      %vm2292 = vcmask 122880
      %2293 = vst.msk [vmem:[%s238] sm:$0x1] %vm2292, %v2291
      %v2294 = vmul.f32 %v2184, %v2184
      %v2295 = vmul.f32 %v2185, %v2185
      %v2296 = vmul.f32 %v2186, %v2186
      %v2297 = vmul.f32 %v2187, %v2187
      %v2298 = vmul.f32 %v2188, %v2188
      %v2299 = vmul.f32 %v2189, %v2189
      %v2300 = vmul.f32 %v2190, %v2190
      %v2301 = vmul.f32 %v2191, %v2191
      %v2302 = vmul.f32 %v2192, %v2192
      %v2303 = vmul.f32 %v2193, %v2193
      %v2304 = vmul.f32 %v2194, %v2194
      %v2305 = vmul.f32 %v2195, %v2195
      %v2306 = vmul.f32 %v2196, %v2196
      %v2307 = vmul.f32 %v2197, %v2197
      %v2308 = vmul.f32 %v2198, %v2198
      %v2309 = vmul.f32 %v2199, %v2199
      %v2310 = vmul.f32 %v2200, %v2200
      %v2311 = vmul.f32 %v2201, %v2201
      %v2312 = vmul.f32 %v2202, %v2202
      %v2313 = vmul.f32 %v2203, %v2203
      %v2314 = vmul.f32 %v2204, %v2204
      %v2315 = vmul.f32 %v2205, %v2205
      %v2316 = vmul.f32 %v2206, %v2206
      %v2317 = vmul.f32 %v2207, %v2207
      %v2318 = vmul.f32 %v2208, %v2208
      %v2319 = vmul.f32 %v2209, %v2209
      %v2320 = vmul.f32 %v2210, %v2210
      %v2321 = vmul.f32 %v2211, %v2211
      %v2322 = vmul.f32 %v2212, %v2212
      %v2323 = vmul.f32 %v2213, %v2213
      %v2324 = vmul.f32 %v2214, %v2214
      %v2325 = vmul.f32 %v2215, %v2215
      %v2326 = vmul.f32 %v2216, %v2216
      %v2327 = vmul.f32 %v2217, %v2217
      %v2328 = vsel %vm2218, %v2294, 0.0
      %v2329 = vsel %vm2218, %v2295, 0.0
      %v2330 = vadd.f32 %v2328, %v2329
      %v2331 = vsel %vm2218, %v2296, 0.0
      %v2332 = vadd.f32 %v2330, %v2331
      %v2333 = vsel %vm2218, %v2297, 0.0
      %v2334 = vadd.f32 %v2332, %v2333
      %v2335 = vsel %vm2218, %v2298, 0.0
      %v2336 = vadd.f32 %v2334, %v2335
      %v2337 = vsel %vm2218, %v2299, 0.0
      %v2338 = vadd.f32 %v2336, %v2337
      %v2339 = vsel %vm2218, %v2300, 0.0
      %v2340 = vadd.f32 %v2338, %v2339
      %v2341 = vsel %vm2218, %v2301, 0.0
      %v2342 = vadd.f32 %v2340, %v2341
      %v2343 = vsel %vm2218, %v2302, 0.0
      %v2344 = vadd.f32 %v2342, %v2343
      %v2345 = vsel %vm2218, %v2303, 0.0
      %v2346 = vadd.f32 %v2344, %v2345
      %v2347 = vsel %vm2218, %v2304, 0.0
      %v2348 = vadd.f32 %v2346, %v2347
      %v2349 = vsel %vm2218, %v2305, 0.0
      %v2350 = vadd.f32 %v2348, %v2349
      %v2351 = vsel %vm2218, %v2306, 0.0
      %v2352 = vadd.f32 %v2350, %v2351
      %v2353 = vsel %vm2218, %v2307, 0.0
      %v2354 = vadd.f32 %v2352, %v2353
      %v2355 = vsel %vm2218, %v2308, 0.0
      %v2356 = vadd.f32 %v2354, %v2355
      %v2357 = vsel %vm2218, %v2309, 0.0
      %v2358 = vadd.f32 %v2356, %v2357
      %v2359 = vsel %vm2218, %v2310, 0.0
      %v2360 = vadd.f32 %v2358, %v2359
      %v2361 = vsel %vm2218, %v2311, 0.0
      %v2362 = vadd.f32 %v2360, %v2361
      %v2363 = vsel %vm2218, %v2312, 0.0
      %v2364 = vadd.f32 %v2362, %v2363
      %v2365 = vsel %vm2218, %v2313, 0.0
      %v2366 = vadd.f32 %v2364, %v2365
      %v2367 = vsel %vm2218, %v2314, 0.0
      %v2368 = vadd.f32 %v2366, %v2367
      %v2369 = vsel %vm2218, %v2315, 0.0
      %v2370 = vadd.f32 %v2368, %v2369
      %v2371 = vsel %vm2218, %v2316, 0.0
      %v2372 = vadd.f32 %v2370, %v2371
      %v2373 = vsel %vm2218, %v2317, 0.0
      %v2374 = vadd.f32 %v2372, %v2373
      %v2375 = vsel %vm2218, %v2318, 0.0
      %v2376 = vadd.f32 %v2374, %v2375
      %v2377 = vsel %vm2218, %v2319, 0.0
      %v2378 = vadd.f32 %v2376, %v2377
      %v2379 = vsel %vm2218, %v2320, 0.0
      %v2380 = vadd.f32 %v2378, %v2379
      %v2381 = vsel %vm2218, %v2321, 0.0
      %v2382 = vadd.f32 %v2380, %v2381
      %v2383 = vsel %vm2218, %v2322, 0.0
      %v2384 = vadd.f32 %v2382, %v2383
      %v2385 = vsel %vm2218, %v2323, 0.0
      %v2386 = vadd.f32 %v2384, %v2385
      %v2387 = vsel %vm2218, %v2324, 0.0
      %v2388 = vadd.f32 %v2386, %v2387
      %v2389 = vsel %vm2218, %v2325, 0.0
      %v2390 = vadd.f32 %v2388, %v2389
      %v2391 = vsel %vm2218, %v2326, 0.0
      %v2392 = vadd.f32 %v2390, %v2391
      %v2393 = vsel %vm2218, %v2327, 0.0
      %v2394 = vadd.f32 %v2392, %v2393
      %v2395 = vrot.slane %v2394, 4
      %v2396 = vadd.f32 %v2394, %v2395
      %v2397 = vrot.slane %v2396, 2
      %v2398 = vadd.f32 %v2396, %v2397
      %v2399 = vrot.slane %v2398, 1
      %v2400 = vadd.f32 %v2398, %v2399
      %2401 = vst.msk [vmem:[%s241] sm:$0x1] %vm2292, %v2400
      %p2402 = scmp.lt.s32.totalorder %s17, 1
      %s2403 = scalar_select %p2402, %s17, 1
      %s2404 = smul.addr %s2403, 34
      %s2405 = smul.addr %s2404, 4
      %s2406 = scalar_lea.vmem %s3, %s2405
      %p2407 = scmp.lt.s32.totalorder %s17, 1
      %s2408 = scalar_select %p2407, %s17, 1
      %s2409 = scalar_lea.vmem %s4, %s2408
      %p2410 = scmp.lt.s32.totalorder %s17, 1
      %s2411 = scalar_select %p2410, %s17, 1
      %s2412 = scalar_lea.vmem %s5, %s2411
      // Predicated region
      $region33: #{discriminator_forward.6} parent=31 // pred_check
        %p2413 = pneg %p103
      $region34: #{discriminator_forward.6} parent=31 // pred_check_branch
        %2415 = sbr.rel (%p2413) target = $region36
      $region35: #{discriminator_forward.6} parent=31 // pred_region
        _
      $region36: #{discriminator_forward.6} parent=31 // pred_fallthru
        _
      // Predicated region
      $region37: #{discriminator_forward.6} parent=31 // pred_check
        %p2416 = pneg %p129
      $region38: #{discriminator_forward.6} parent=31 // pred_check_branch
        %2418 = sbr.rel (%p2416) target = $region40
      $region39: #{discriminator_forward.6} parent=31 // pred_region
        _
      $region40: #{discriminator_forward.6} parent=31 // pred_fallthru
        _
      // Predicated region
      $region41: #{discriminator_forward.6} parent=31 // pred_check
        %p2419 = pneg %p155
      $region42: #{discriminator_forward.6} parent=31 // pred_check_branch
        %2421 = sbr.rel (%p2419) target = $region44
      $region43: #{discriminator_forward.6} parent=31 // pred_region
        _
      $region44: #{discriminator_forward.6} parent=31 // pred_fallthru
        _
    $region32: #{discriminator_forward.6} parent=5 // pred_fallthru
      _
    %p2422 = scmp.le.s32.totalorder 2, %s12
    // Predicated region
    $region45: #{discriminator_forward.6} parent=5 // pred_check
      %p2423 = pneg %p2422
    $region46: #{discriminator_forward.6} parent=5 // pred_check_branch
      %2425 = sbr.rel (%p2423) target = $region48
    $region47: #{discriminator_forward.6} parent=5 // pred_region
      %s2426 = ssub.s32 %s12, 2
      // Predicated region
      $region49: #{discriminator_forward.6} parent=47 // pred_check
        %p2427 = pneg %p109
      $region50: #{discriminator_forward.6} parent=47 // pred_check_branch
        %2429 = sbr.rel (%p2427) target = $region52
      $region51: #{discriminator_forward.6} parent=47 // pred_region
        %p2430 = scmp.lt.s32.totalorder %s18, 1
        %s2431 = scalar_select %p2430, %s18, 1
        %s2432 = smul.addr %s2431, 34
        %s2433 = smul.addr %s2432, 4
        %s2434 = scalar_lea.vmem %s3, %s2433
      $region52: #{discriminator_forward.6} parent=47 // pred_fallthru
        _
      // Predicated region
      $region53: #{discriminator_forward.6} parent=47 // pred_check
        %p2435 = pneg %p135
      $region54: #{discriminator_forward.6} parent=47 // pred_check_branch
        %2437 = sbr.rel (%p2435) target = $region56
      $region55: #{discriminator_forward.6} parent=47 // pred_region
        %p2438 = scmp.lt.s32.totalorder %s18, 1
        %s2439 = scalar_select %p2438, %s18, 1
        %s2440 = scalar_lea.vmem %s4, %s2439
      $region56: #{discriminator_forward.6} parent=47 // pred_fallthru
        _
      // Predicated region
      $region57: #{discriminator_forward.6} parent=47 // pred_check
        %p2441 = pneg %p161
      $region58: #{discriminator_forward.6} parent=47 // pred_check_branch
        %2443 = sbr.rel (%p2441) target = $region60
      $region59: #{discriminator_forward.6} parent=47 // pred_region
        %p2444 = scmp.lt.s32.totalorder %s18, 1
        %s2445 = scalar_select %p2444, %s18, 1
        %s2446 = scalar_lea.vmem %s5, %s2445
      $region60: #{discriminator_forward.6} parent=47 // pred_fallthru
        _
    $region48: #{discriminator_forward.6} parent=5 // pred_fallthru
      _
  $region6: #{discriminator_forward.6} parent=0 // loop_footer
    %s16 = sadd.s32 1, %s12
  $region7: #{discriminator_forward.6} parent=0 // loop_footer_branch
    %11 = sbr.rel target = $region3
  $region8: #{discriminator_forward.6} parent=0 // loop_exit
    _

// kernel: discriminator_forward.7
$region0: #{discriminator_forward.7}
  #allocation0 [shape = 'u32[]', space=smem, size = 0x4, offset = 0x4, fixed_abs, tag = 'smem constant byte address 0x4 - core index']
  #allocation1 [shape = 'u32[144,128]{1,0:T(1,128)}', space=vmem, size = 0x12000, scoped, tag = 'internal scratch']
  %s0 = inlined_call_operand.vmem [shape: bf16[2,89,64], index: 0, kind: input, shape index: {}]
  %s1 = inlined_call_operand.vmem [shape: bf16[4,64,32], index: 1, kind: input, shape index: {}]
  %s2 = inlined_call_operand.vmem [shape: f32[72,1], index: 2, kind: input, shape index: {}]
  %s3 = inlined_call_operand.vmem [shape: bf16[2,72,32], index: 3, kind: output, shape index: {0}]
  %s4 = inlined_call_operand.vmem [shape: f32[2,1,32], index: 4, kind: output, shape index: {1}]
  %s5 = inlined_call_operand.vmem [shape: f32[2,1,32], index: 5, kind: output, shape index: {2}]
  %6 = xla_tuple %s3, %s4, %s5
  %s7 = sld [smem:[#allocation0]]
  $region61: #{discriminator_forward.7} parent=0
    _
  %s9 = ssub.s32 1, %s7
  %s10 = scalar_select 0, %s9, %s7
  loop: start=0, step=1, limit=4
  $region2: #{discriminator_forward.7} parent=0 // loop_pre_header
    _
  $region3: #{discriminator_forward.7} parent=0 // loop_header
    %s12 = sphi 0, %s16
    %p13 = scmp.ge.s32.totalorder %s12, 4
    %s22 = sphi 0, %s24
    %s25 = sphi 0, %s22
    %s26 = sphi 0, %s25
    %s42 = sphi 0, %s26
    %s46 = sphi 0, %s46
    %s48 = sphi 0, %s46
    %s49 = sphi 0, %s48
    %s63 = sphi 0, %s49
    %s67 = sphi 0, %s67
    %s69 = sphi 0, %s67
    %s70 = sphi 0, %s69
    %s84 = sphi 0, %s70
    %s90 = sphi 0, %s92
    %s93 = sphi 0, %s90
    %s94 = sphi 0, %s93
    %s110 = sphi 0, %s94
    %s116 = sphi 0, %s118
    %s119 = sphi 0, %s116
    %s120 = sphi 0, %s119
    %s136 = sphi 0, %s120
    %s142 = sphi 0, %s144
    %s145 = sphi 0, %s142
    %s146 = sphi 0, %s145
    %s162 = sphi 0, %s146
  $region4: #{discriminator_forward.7} parent=0 // loop_header_branch
    %15 = sbr.rel (%p13) target = $region8
  $region5: #{discriminator_forward.7} parent=0 // loop_body
    %s17 = ssub.s32 %s12, 1
    %s18 = ssub.s32 %s12, 2
    %s19 = sadd.s32 %s12, 1
    %s20 = ssub.s32 %s12, %s19
    %p21 = scmp.eq.s32.totalorder %s20, 0
    %s23 = sadd.s32 %s22, 1
    %s24 = scalar_select %p21, %s22, %s23
    %p27 = pneg %p21
    %p28 = scmp.eq.s32.totalorder %s12, 1
    %p29 = por %p27, %p28
    %p30 = scmp.ne.s32.totalorder %s22, %s25
    %p31 = scmp.eq.s32.totalorder %s12, 0
    %p32 = por %p30, %p31
    %p33 = scmp.ne.s32.totalorder %s22, %s25
    %p34 = scmp.eq.s32.totalorder %s17, 1
    %p35 = por %p33, %p34
    %p36 = scmp.ne.s32.totalorder %s25, %s26
    %p37 = scmp.eq.s32.totalorder %s17, 0
    %p38 = por %p36, %p37
    %p39 = scmp.ne.s32.totalorder %s25, %s26
    %p40 = scmp.eq.s32.totalorder %s18, 1
    %p41 = por %p39, %p40
    %p43 = scmp.ne.s32.totalorder %s26, %s42
    %p44 = scmp.eq.s32.totalorder %s18, 0
    %p45 = por %p43, %p44
    %s47 = sadd.s32 %s46, 1
    %p50 = scmp.eq.s32.totalorder %s12, 1
    %p51 = scmp.ne.s32.totalorder %s46, %s48
    %p52 = scmp.eq.s32.totalorder %s12, 0
    %p53 = por %p51, %p52
    %p54 = scmp.ne.s32.totalorder %s46, %s48
    %p55 = scmp.eq.s32.totalorder %s17, 1
    %p56 = por %p54, %p55
    %p57 = scmp.ne.s32.totalorder %s48, %s49
    %p58 = scmp.eq.s32.totalorder %s17, 0
    %p59 = por %p57, %p58
    %p60 = scmp.ne.s32.totalorder %s48, %s49
    %p61 = scmp.eq.s32.totalorder %s18, 1
    %p62 = por %p60, %p61
    %p64 = scmp.ne.s32.totalorder %s49, %s63
    %p65 = scmp.eq.s32.totalorder %s18, 0
    %p66 = por %p64, %p65
    %s68 = sadd.s32 %s67, 1
    %p71 = scmp.eq.s32.totalorder %s12, 1
    %p72 = scmp.ne.s32.totalorder %s67, %s69
    %p73 = scmp.eq.s32.totalorder %s12, 0
    %p74 = por %p72, %p73
    %p75 = scmp.ne.s32.totalorder %s67, %s69
    %p76 = scmp.eq.s32.totalorder %s17, 1
    %p77 = por %p75, %p76
    %p78 = scmp.ne.s32.totalorder %s69, %s70
    %p79 = scmp.eq.s32.totalorder %s17, 0
    %p80 = por %p78, %p79
    %p81 = scmp.ne.s32.totalorder %s69, %s70
    %p82 = scmp.eq.s32.totalorder %s18, 1
    %p83 = por %p81, %p82
    %p85 = scmp.ne.s32.totalorder %s70, %s84
    %p86 = scmp.eq.s32.totalorder %s18, 0
    %p87 = por %p85, %p86
    %s88 = ssub.s32 %s12, %s19
    %p89 = scmp.eq.s32.totalorder %s88, 0
    %s91 = sadd.s32 %s90, 1
    %s92 = scalar_select %p89, %s90, %s91
    %p95 = pneg %p89
    %p96 = scmp.eq.s32.totalorder %s12, 1
    %p97 = por %p95, %p96
    %p98 = scmp.ne.s32.totalorder %s90, %s93
    %p99 = scmp.eq.s32.totalorder %s12, 0
    %p100 = por %p98, %p99
    %p101 = scmp.ne.s32.totalorder %s90, %s93
    %p102 = scmp.eq.s32.totalorder %s17, 1
    %p103 = por %p101, %p102
    %p104 = scmp.ne.s32.totalorder %s93, %s94
    %p105 = scmp.eq.s32.totalorder %s17, 0
    %p106 = por %p104, %p105
    %p107 = scmp.ne.s32.totalorder %s93, %s94
    %p108 = scmp.eq.s32.totalorder %s18, 1
    %p109 = por %p107, %p108
    %p111 = scmp.ne.s32.totalorder %s94, %s110
    %p112 = scmp.eq.s32.totalorder %s18, 0
    %p113 = por %p111, %p112
    %s114 = ssub.s32 %s12, %s19
    %p115 = scmp.eq.s32.totalorder %s114, 0
    %s117 = sadd.s32 %s116, 1
    %s118 = scalar_select %p115, %s116, %s117
    %p121 = pneg %p115
    %p122 = scmp.eq.s32.totalorder %s12, 1
    %p123 = por %p121, %p122
    %p124 = scmp.ne.s32.totalorder %s116, %s119
    %p125 = scmp.eq.s32.totalorder %s12, 0
    %p126 = por %p124, %p125
    %p127 = scmp.ne.s32.totalorder %s116, %s119
    %p128 = scmp.eq.s32.totalorder %s17, 1
    %p129 = por %p127, %p128
    %p130 = scmp.ne.s32.totalorder %s119, %s120
    %p131 = scmp.eq.s32.totalorder %s17, 0
    %p132 = por %p130, %p131
    %p133 = scmp.ne.s32.totalorder %s119, %s120
    %p134 = scmp.eq.s32.totalorder %s18, 1
    %p135 = por %p133, %p134
    %p137 = scmp.ne.s32.totalorder %s120, %s136
    %p138 = scmp.eq.s32.totalorder %s18, 0
    %p139 = por %p137, %p138
    %s140 = ssub.s32 %s12, %s19
    %p141 = scmp.eq.s32.totalorder %s140, 0
    %s143 = sadd.s32 %s142, 1
    %s144 = scalar_select %p141, %s142, %s143
    %p147 = pneg %p141
    %p148 = scmp.eq.s32.totalorder %s12, 1
    %p149 = por %p147, %p148
    %p150 = scmp.ne.s32.totalorder %s142, %s145
    %p151 = scmp.eq.s32.totalorder %s12, 0
    %p152 = por %p150, %p151
    %p153 = scmp.ne.s32.totalorder %s142, %s145
    %p154 = scmp.eq.s32.totalorder %s17, 1
    %p155 = por %p153, %p154
    %p156 = scmp.ne.s32.totalorder %s145, %s146
    %p157 = scmp.eq.s32.totalorder %s17, 0
    %p158 = por %p156, %p157
    %p159 = scmp.ne.s32.totalorder %s145, %s146
    %p160 = scmp.eq.s32.totalorder %s18, 1
    %p161 = por %p159, %p160
    %p163 = scmp.ne.s32.totalorder %s146, %s162
    %p164 = scmp.eq.s32.totalorder %s18, 0
    %p165 = por %p163, %p164
    %p166 = scmp.le.s32.totalorder 1, %s12
    %p167 = scmp.lt.s32.totalorder %s12, 3
    %p168 = pnand %p166, %p167
    %p169 = pneg %p168
    // Predicated region
    $region9: #{discriminator_forward.7} parent=5 // pred_check
      _
    $region10: #{discriminator_forward.7} parent=5 // pred_check_branch
      %171 = sbr.rel (%p168) target = $region12
    $region11: #{discriminator_forward.7} parent=5 // pred_region
      %s172 = ssub.s32 %s12, 1
      // Predicated region
      $region13: #{discriminator_forward.7} parent=11 // pred_check
        %p173 = pneg %p59
      $region14: #{discriminator_forward.7} parent=11 // pred_check_branch
        %175 = sbr.rel (%p173) target = $region16
      $region15: #{discriminator_forward.7} parent=11 // pred_region
        _
      $region16: #{discriminator_forward.7} parent=11 // pred_fallthru
        _
      // Predicated region
      $region17: #{discriminator_forward.7} parent=11 // pred_check
        %p176 = pneg %p80
      $region18: #{discriminator_forward.7} parent=11 // pred_check_branch
        %178 = sbr.rel (%p176) target = $region20
      $region19: #{discriminator_forward.7} parent=11 // pred_region
        _
      $region20: #{discriminator_forward.7} parent=11 // pred_fallthru
        _
    $region12: #{discriminator_forward.7} parent=5 // pred_fallthru
      _
    %p179 = scmp.lt.s32.totalorder %s12, 2
    // Predicated region
    $region21: #{discriminator_forward.7} parent=5 // pred_check
      %p180 = pneg %p179
    $region22: #{discriminator_forward.7} parent=5 // pred_check_branch
      %182 = sbr.rel (%p180) target = $region24
    $region23: #{discriminator_forward.7} parent=5 // pred_region
      // Predicated region
      $region25: #{discriminator_forward.7} parent=23 // pred_check
        %p183 = pneg %p32
      $region26: #{discriminator_forward.7} parent=23 // pred_check_branch
        %185 = sbr.rel (%p183) target = $region28
      $region27: #{discriminator_forward.7} parent=23 // pred_region
        %p186 = scmp.lt.s32.totalorder %s12, 1
        %s187 = scalar_select %p186, %s12, 1
        %s188 = smul.addr %s187, 12
        %s189 = smul.addr %s188, 4
        %s190 = scalar_lea.vmem %s0, %s189
      $region28: #{discriminator_forward.7} parent=23 // pred_fallthru
        _
    $region24: #{discriminator_forward.7} parent=5 // pred_fallthru
      _
    %p191 = scmp.le.s32.totalorder 1, %s12
    %p192 = scmp.lt.s32.totalorder %s12, 3
    %p193 = pnand %p191, %p192
    %p194 = pneg %p193
    // Predicated region
    $region29: #{discriminator_forward.7} parent=5 // pred_check
      _
    $region30: #{discriminator_forward.7} parent=5 // pred_check_branch
      %196 = sbr.rel (%p193) target = $region32
    $region31: #{discriminator_forward.7} parent=5 // pred_region
      %s197 = ssub.s32 %s12, 1
      %p198 = scmp.lt.s32.totalorder %s17, 1
      %s199 = scalar_select %p198, %s17, 1
      %s200 = smul.addr %s199, 12
      %s201 = smul.addr %s200, 4
      %s202 = scalar_lea.vmem %s0, %s201
      %p203 = pneg %p38
      %p204 = pneg %p35
      %p205 = pneg %p59
      %p206 = pneg %p56
      %p207 = pneg %p80
      %p208 = pneg %p77
      %p209 = pneg %p106
      %p210 = pneg %p103
      %p211 = scmp.lt.s32.totalorder %s17, 1
      %s212 = scalar_select %p211, %s17, 1
      %s213 = smul.addr %s212, 9
      %s214 = smul.addr %s213, 4
      %s215 = scalar_lea.vmem %s3, %s214
      %p216 = pneg %p132
      %p217 = pneg %p129
      %p218 = scmp.lt.s32.totalorder %s17, 1
      %s219 = scalar_select %p218, %s17, 1
      %s220 = scalar_lea.vmem %s4, %s219
      %p221 = pneg %p158
      %p222 = pneg %p155
      %p223 = scmp.lt.s32.totalorder %s17, 1
      %s224 = scalar_select %p223, %s17, 1
      %s225 = scalar_lea.vmem %s5, %s224
      %p226 = scmp.lt.s32.totalorder %s17, 1
      %s227 = scalar_select %p226, %s17, 1
      %s228 = smul.addr %s227, 12
      %s229 = smul.addr %s228, 4
      %s230 = scalar_lea.vmem %s0, %s229
      %p231 = scmp.lt.s32.totalorder %s17, 1
      %s232 = scalar_select %p231, %s17, 1
      %s233 = smul.addr %s232, 9
      %s234 = smul.addr %s233, 4
      %s235 = scalar_lea.vmem %s3, %s234
      %p236 = scmp.lt.s32.totalorder %s17, 1
      %s237 = scalar_select %p236, %s17, 1
      %s238 = scalar_lea.vmem %s4, %s237
      %p239 = scmp.lt.s32.totalorder %s17, 1
      %s240 = scalar_select %p239, %s17, 1
      %s241 = scalar_lea.vmem %s5, %s240
      %v243 = vld [vmem:[%s230] sm:$0xf]
      %v244 = vld [vmem:[%s230 + $0x4] sm:$0xf]
      %v245 = vld [vmem:[%s230 + $0x8] sm:$0xf]
      %v246 = vld [vmem:[%s230 + $0xc] sm:$0xf]
      %v247 = vld [vmem:[%s230 + $0x10] sm:$0xf]
      %v248 = vld [vmem:[%s230 + $0x14] sm:$0xf]
      %v249 = vld [vmem:[%s230 + $0x18] sm:$0xf]
      %v250 = vld [vmem:[%s230 + $0x1c] sm:$0xf]
      %v251 = vld [vmem:[%s230 + $0x20] sm:$0xf]
      %v252 = vld [vmem:[%s1] sm:$0xf]
      %v253 = vld [vmem:[%s1 + $0x4] sm:$0xf]
      %v254 = vld [vmem:[%s1 + $0x8] sm:$0xf]
      %v255 = vld [vmem:[%s1 + $0xc] sm:$0xf]
      %v256 = vld [vmem:[%s1 + $0x10] sm:$0xf]
      %v257 = vld [vmem:[%s1 + $0x14] sm:$0xf]
      %v258 = vld [vmem:[%s1 + $0x18] sm:$0xf]
      %v259 = vld [vmem:[%s1 + $0x1c] sm:$0xf]
      %v260 = vld [vmem:[%s230 + $0x24] sm:$0x1]
      %s261 = scalar_lea.vmem %s1, 32
      %v262 = vld [vmem:[%s261] sm:$0xf]
      %v263 = vld [vmem:[%s261 + $0x4] sm:$0xf]
      %v264 = vld [vmem:[%s261 + $0x8] sm:$0xf]
      %v265 = vld [vmem:[%s261 + $0xc] sm:$0xf]
      %v266 = vld [vmem:[%s261 + $0x10] sm:$0xf]
      %v267 = vld [vmem:[%s261 + $0x14] sm:$0xf]
      %v268 = vld [vmem:[%s261 + $0x18] sm:$0xf]
      %v269 = vld [vmem:[%s261 + $0x1c] sm:$0xf]
      %v280 = vunpack.c.l.b16 %v243
      %v281 = vunpack.c.l.b16 %v244
      %v282 = vunpack.c.l.b16 %v245
      %v283 = vunpack.c.l.b16 %v246
      %v284 = vunpack.c.l.b16 %v247
      %v285 = vunpack.c.l.b16 %v248
      %v286 = vunpack.c.l.b16 %v249
      %v287 = vunpack.c.l.b16 %v250
      %v288 = vunpack.c.l.b16 %v251
      %v289 = vunpack.c.l.b16 %v260
      %v290 = vpack.c.b16 %v281, %v280
      %v291 = vpack.c.b16 %v283, %v282
      %v292 = vpack.c.b16 %v285, %v284
      %v293 = vpack.c.b16 %v287, %v286
      %v294 = vpack.c.b16 %v289, %v288
      %vm295 = vsmask.f32 7424
      %v297 = vshrl.u32 %v290, 16
      %v299 = vshll.u32 %v290, 16
      %v301 = vrot.slane %v299, 1
      %v302 = vor.u32 %v297, %v301
      %v304 = vshll.u32 %v291, 16
      %v306 = vrot.slane %v304, 1
      %v307 = vsel %vm295, %v302, %v306
      %v308 = vshrl.u32 %v291, 16
      %v310 = vor.u32 %v308, %v306
      %v312 = vshll.u32 %v292, 16
      %v314 = vrot.slane %v312, 1
      %v315 = vsel %vm295, %v310, %v314
      %v316 = vshrl.u32 %v292, 16
      %v318 = vor.u32 %v316, %v314
      %v320 = vshll.u32 %v293, 16
      %v322 = vrot.slane %v320, 1
      %v323 = vsel %vm295, %v318, %v322
      %v324 = vshrl.u32 %v293, 16
      %v326 = vor.u32 %v324, %v322
      %v328 = vshll.u32 %v294, 16
      %v330 = vrot.slane %v328, 1
      %v331 = vsel %vm295, %v326, %v330
      %v332 = vshrl.u32 %v294, 16
      %v334 = vor.u32 %v332, %v330
      %v343 = vunpack.c.l.b16 %v262
      %v344 = vunpack.c.l.b16 %v263
      %v345 = vunpack.c.l.b16 %v264
      %v346 = vunpack.c.l.b16 %v265
      %v347 = vunpack.c.l.b16 %v266
      %v348 = vunpack.c.l.b16 %v267
      %v349 = vunpack.c.l.b16 %v268
      %v350 = vunpack.c.l.b16 %v269
      %v351 = vpack.c.b16 %v344, %v343
      %v352 = vpack.c.b16 %v346, %v345
      %v353 = vpack.c.b16 %v348, %v347
      %v354 = vpack.c.b16 %v350, %v349
      %vm359 = vcmask 523264
      %v361 = vsel %vm359, %v307, 0
      %v364 = vsel %vm359, %v315, 0
      %v367 = vsel %vm359, %v323, 0
      %v370 = vsel %vm359, %v331, 0
      %v373 = vsel %vm359, %v334, 0
      %375 = vmatprep.subr.bf16.mxu0 0
      %376 = vmatpush1.bf16.msra.mxu0 %v351
      %377 = vmatprep.subr.bf16.mxu0 0
      %378 = vmatpush1.bf16.msra.mxu0 %v352
      %379 = vmatprep.subr.bf16.mxu0 0
      %380 = vmatpush1.bf16.msra.mxu0 %v353
      %381 = vmatprep.subr.bf16.mxu0 0
      %382 = vmatpush1.bf16.msra.mxu0 %v354
      %383 = vmatprep.subr.bf16.mxu0 0
      %384 = vmatpush1.bf16.msra.mxu0 0
      %385 = vmatprep.subr.bf16.mxu0 0
      %386 = vmatpush1.bf16.msra.mxu0 0
      %387 = vmatprep.subr.bf16.mxu0 0
      %388 = vmatpush1.bf16.msra.mxu0 0
      %389 = vmatprep.subr.bf16.mxu0 0
      %390 = vmatpush1.bf16.msra.mxu0 0
      %391 = vmatprep.subr.bf16.mxu0 0
      %392 = vmatpush1.bf16.msra.mxu0 0
      %393 = vmatprep.subr.bf16.mxu0 0
      %394 = vmatpush1.bf16.msra.mxu0 0
      %395 = vmatprep.subr.bf16.mxu0 0
      %396 = vmatpush1.bf16.msra.mxu0 0
      %397 = vmatprep.subr.bf16.mxu0 0
      %398 = vmatpush1.bf16.msra.mxu0 0
      %399 = vmatprep.subr.bf16.mxu0 0
      %400 = vmatpush1.bf16.msra.mxu0 0
      %401 = vmatprep.subr.bf16.mxu0 0
      %402 = vmatpush1.bf16.msra.mxu0 0
      %403 = vmatprep.subr.bf16.mxu0 0
      %404 = vmatpush1.bf16.msra.mxu0 0
      %405 = vmatprep.subr.bf16.mxu0 0
      %406 = vmatpush1.bf16.msra.mxu0 0
      %407 = vmatprep.mubr.bf16.mxu0 0
      %408 = vmatmul.mubr.bf16.gmra.mrb[0].mxu0 %v361
      %v409 = vpop.f32.mrb[0].mxu0
      %v410 = vadd.f32 0.0, %v409
      %v411 = vpop.f32.mrb[0].mxu0
      %v412 = vpop.f32.mrb[0].mxu0
      %v413 = vadd.f32 0.0, %v412
      %v414 = vpop.f32.mrb[0].mxu0
      %415 = vmatprep.mubr.bf16.mxu0 0
      %416 = vmatmul.mubr.bf16.gmra.mrb[0].mxu0 %v364
      %v417 = vpop.f32.mrb[0].mxu0
      %v418 = vadd.f32 0.0, %v417
      %v419 = vpop.f32.mrb[0].mxu0
      %v420 = vpop.f32.mrb[0].mxu0
      %v421 = vadd.f32 0.0, %v420
      %v422 = vpop.f32.mrb[0].mxu0
      %423 = vmatprep.mubr.bf16.mxu0 0
      %424 = vmatmul.mubr.bf16.gmra.mrb[0].mxu0 %v367
      %v425 = vpop.f32.mrb[0].mxu0
      %v426 = vadd.f32 0.0, %v425
      %v427 = vpop.f32.mrb[0].mxu0
      %v428 = vpop.f32.mrb[0].mxu0
      %v429 = vadd.f32 0.0, %v428
      %v430 = vpop.f32.mrb[0].mxu0
      %431 = vmatprep.mubr.bf16.mxu0 0
      %432 = vmatmul.mubr.bf16.gmra.mrb[0].mxu0 %v370
      %v433 = vpop.f32.mrb[0].mxu0
      %v434 = vadd.f32 0.0, %v433
      %v435 = vpop.f32.mrb[0].mxu0
      %v436 = vpop.f32.mrb[0].mxu0
      %v437 = vadd.f32 0.0, %v436
      %v438 = vpop.f32.mrb[0].mxu0
      %439 = vmatprep.mubr.bf16.mxu0 0
      %440 = vmatmul.mubr.bf16.gmra.mrb[0].mxu0 %v373
      %v441 = vpop.f32.mrb[0].mxu0
      %v442 = vadd.f32 0.0, %v441
      %v443 = vpop.f32.mrb[0].mxu0
      %v444 = vpop.f32.mrb[0].mxu0
      %v445 = vpop.f32.mrb[0].mxu0
      %446 = vdwg.mxu0
      %v447 = vpack.c.b16 %v288, %v288
      %v456 = vunpack.c.l.b16 %v252
      %v457 = vunpack.c.l.b16 %v253
      %v458 = vunpack.c.l.b16 %v254
      %v459 = vunpack.c.l.b16 %v255
      %v460 = vunpack.c.l.b16 %v256
      %v461 = vunpack.c.l.b16 %v257
      %v462 = vunpack.c.l.b16 %v258
      %v463 = vunpack.c.l.b16 %v259
      %v464 = vpack.c.b16 %v457, %v456
      %v465 = vpack.c.b16 %v459, %v458
      %v466 = vpack.c.b16 %v461, %v460
      %v467 = vpack.c.b16 %v463, %v462
      %v472 = vsel %vm359, %v290, 0
      %v474 = vsel %vm359, %v291, 0
      %v476 = vsel %vm359, %v292, 0
      %v478 = vsel %vm359, %v293, 0
      %v481 = vsel %vm359, %v447, 0
      %483 = vmatprep.subr.bf16.mxu0 0
      %484 = vmatpush1.bf16.msra.mxu0 %v464
      %485 = vmatprep.subr.bf16.mxu0 0
      %486 = vmatpush1.bf16.msra.mxu0 %v465
      %487 = vmatprep.subr.bf16.mxu0 0
      %488 = vmatpush1.bf16.msra.mxu0 %v466
      %489 = vmatprep.subr.bf16.mxu0 0
      %490 = vmatpush1.bf16.msra.mxu0 %v467
      %491 = vmatprep.subr.bf16.mxu0 0
      %492 = vmatpush1.bf16.msra.mxu0 0
      %493 = vmatprep.subr.bf16.mxu0 0
      %494 = vmatpush1.bf16.msra.mxu0 0
      %495 = vmatprep.subr.bf16.mxu0 0
      %496 = vmatpush1.bf16.msra.mxu0 0
      %497 = vmatprep.subr.bf16.mxu0 0
      %498 = vmatpush1.bf16.msra.mxu0 0
      %499 = vmatprep.subr.bf16.mxu0 0
      %500 = vmatpush1.bf16.msra.mxu0 0
      %501 = vmatprep.subr.bf16.mxu0 0
      %502 = vmatpush1.bf16.msra.mxu0 0
      %503 = vmatprep.subr.bf16.mxu0 0
      %504 = vmatpush1.bf16.msra.mxu0 0
      %505 = vmatprep.subr.bf16.mxu0 0
      %506 = vmatpush1.bf16.msra.mxu0 0
      %507 = vmatprep.subr.bf16.mxu0 0
      %508 = vmatpush1.bf16.msra.mxu0 0
      %509 = vmatprep.subr.bf16.mxu0 0
      %510 = vmatpush1.bf16.msra.mxu0 0
      %511 = vmatprep.subr.bf16.mxu0 0
      %512 = vmatpush1.bf16.msra.mxu0 0
      %513 = vmatprep.subr.bf16.mxu0 0
      %514 = vmatpush1.bf16.msra.mxu0 0
      %515 = vmatprep.mubr.bf16.mxu0 0
      %516 = vmatmul.mubr.bf16.gmra.mrb[0].mxu0 %v472
      %v517 = vpop.f32.mrb[0].mxu0
      %v518 = vadd.f32 %v410, %v517
      %v519 = vpop.f32.mrb[0].mxu0
      %v520 = vpop.f32.mrb[0].mxu0
      %v521 = vadd.f32 %v413, %v520
      %v522 = vpop.f32.mrb[0].mxu0
      %523 = vmatprep.mubr.bf16.mxu0 0
      %524 = vmatmul.mubr.bf16.gmra.mrb[0].mxu0 %v474
      %v525 = vpop.f32.mrb[0].mxu0
      %v526 = vadd.f32 %v418, %v525
      %v527 = vpop.f32.mrb[0].mxu0
      %v528 = vpop.f32.mrb[0].mxu0
      %v529 = vadd.f32 %v421, %v528
      %v530 = vpop.f32.mrb[0].mxu0
      %531 = vmatprep.mubr.bf16.mxu0 0
      %532 = vmatmul.mubr.bf16.gmra.mrb[0].mxu0 %v476
      %v533 = vpop.f32.mrb[0].mxu0
      %v534 = vadd.f32 %v426, %v533
      %v535 = vpop.f32.mrb[0].mxu0
      %v536 = vpop.f32.mrb[0].mxu0
      %v537 = vadd.f32 %v429, %v536
      %v538 = vpop.f32.mrb[0].mxu0
      %539 = vmatprep.mubr.bf16.mxu0 0
      %540 = vmatmul.mubr.bf16.gmra.mrb[0].mxu0 %v478
      %v541 = vpop.f32.mrb[0].mxu0
      %v542 = vadd.f32 %v434, %v541
      %v543 = vpop.f32.mrb[0].mxu0
      %v544 = vpop.f32.mrb[0].mxu0
      %v545 = vadd.f32 %v437, %v544
      %v546 = vpop.f32.mrb[0].mxu0
      %547 = vmatprep.mubr.bf16.mxu0 0
      %548 = vmatmul.mubr.bf16.gmra.mrb[0].mxu0 %v481
      %v549 = vpop.f32.mrb[0].mxu0
      %v550 = vadd.f32 %v442, %v549
      %v551 = vpop.f32.mrb[0].mxu0
      %v552 = vpop.f32.mrb[0].mxu0
      %v553 = vpop.f32.mrb[0].mxu0
      %554 = vdwg.mxu0
      %v555 = vld [vmem:[%s230 + $0x4] sm:$0xf]
      %v556 = vld [vmem:[%s230 + $0x8] sm:$0xf]
      %v557 = vld [vmem:[%s230 + $0xc] sm:$0xf]
      %v558 = vld [vmem:[%s230 + $0x10] sm:$0xf]
      %v559 = vld [vmem:[%s230 + $0x14] sm:$0xf]
      %v560 = vld [vmem:[%s230 + $0x18] sm:$0xf]
      %v561 = vld [vmem:[%s230 + $0x1c] sm:$0xf]
      %v562 = vld [vmem:[%s230 + $0x20] sm:$0xf]
      %v563 = vld [vmem:[%s230 + $0x24] sm:$0xf]
      %v564 = vld [vmem:[%s230 + $0x28] sm:$0x1]
      %s565 = scalar_lea.vmem %s1, 64
      %v566 = vld [vmem:[%s565] sm:$0xf]
      %v567 = vld [vmem:[%s565 + $0x4] sm:$0xf]
      %v568 = vld [vmem:[%s565 + $0x8] sm:$0xf]
      %v569 = vld [vmem:[%s565 + $0xc] sm:$0xf]
      %v570 = vld [vmem:[%s565 + $0x10] sm:$0xf]
      %v571 = vld [vmem:[%s565 + $0x14] sm:$0xf]
      %v572 = vld [vmem:[%s565 + $0x18] sm:$0xf]
      %v573 = vld [vmem:[%s565 + $0x1c] sm:$0xf]
      %v584 = vunpack.c.l.b16 %v555
      %v585 = vunpack.c.l.b16 %v556
      %v586 = vunpack.c.l.b16 %v557
      %v587 = vunpack.c.l.b16 %v558
      %v588 = vunpack.c.l.b16 %v559
      %v589 = vunpack.c.l.b16 %v560
      %v590 = vunpack.c.l.b16 %v561
      %v591 = vunpack.c.l.b16 %v562
      %v592 = vunpack.c.l.b16 %v563
      %v593 = vunpack.c.l.b16 %v564
      %v594 = vpack.c.b16 %v585, %v584
      %v595 = vpack.c.b16 %v587, %v586
      %v596 = vpack.c.b16 %v589, %v588
      %v597 = vpack.c.b16 %v591, %v590
      %v598 = vpack.c.b16 %v593, %v592
      %v600 = vshrl.u32 %v594, 16
      %v602 = vshll.u32 %v594, 16
      %v604 = vrot.slane %v602, 1
      %v605 = vor.u32 %v600, %v604
      %v607 = vshll.u32 %v595, 16
      %v609 = vrot.slane %v607, 1
      %v610 = vsel %vm295, %v605, %v609
      %v611 = vshrl.u32 %v595, 16
      %v613 = vor.u32 %v611, %v609
      %v615 = vshll.u32 %v596, 16
      %v617 = vrot.slane %v615, 1
      %v618 = vsel %vm295, %v613, %v617
      %v619 = vshrl.u32 %v596, 16
      %v621 = vor.u32 %v619, %v617
      %v623 = vshll.u32 %v597, 16
      %v625 = vrot.slane %v623, 1
      %v626 = vsel %vm295, %v621, %v625
      %v627 = vshrl.u32 %v597, 16
      %v629 = vor.u32 %v627, %v625
      %v631 = vshll.u32 %v598, 16
      %v633 = vrot.slane %v631, 1
      %v634 = vsel %vm295, %v629, %v633
      %v635 = vshrl.u32 %v598, 16
      %v637 = vor.u32 %v635, %v633
      %v646 = vunpack.c.l.b16 %v566
      %v647 = vunpack.c.l.b16 %v567
      %v648 = vunpack.c.l.b16 %v568
      %v649 = vunpack.c.l.b16 %v569
      %v650 = vunpack.c.l.b16 %v570
      %v651 = vunpack.c.l.b16 %v571
      %v652 = vunpack.c.l.b16 %v572
      %v653 = vunpack.c.l.b16 %v573
      %v654 = vpack.c.b16 %v647, %v646
      %v655 = vpack.c.b16 %v649, %v648
      %v656 = vpack.c.b16 %v651, %v650
      %v657 = vpack.c.b16 %v653, %v652
      %v663 = vsel %vm359, %v610, 0
      %v666 = vsel %vm359, %v618, 0
      %v669 = vsel %vm359, %v626, 0
      %v672 = vsel %vm359, %v634, 0
      %v675 = vsel %vm359, %v637, 0
      %677 = vmatprep.subr.bf16.mxu0 0
      %678 = vmatpush1.bf16.msra.mxu0 %v654
      %679 = vmatprep.subr.bf16.mxu0 0
      %680 = vmatpush1.bf16.msra.mxu0 %v655
      %681 = vmatprep.subr.bf16.mxu0 0
      %682 = vmatpush1.bf16.msra.mxu0 %v656
      %683 = vmatprep.subr.bf16.mxu0 0
      %684 = vmatpush1.bf16.msra.mxu0 %v657
      %685 = vmatprep.subr.bf16.mxu0 0
      %686 = vmatpush1.bf16.msra.mxu0 0
      %687 = vmatprep.subr.bf16.mxu0 0
      %688 = vmatpush1.bf16.msra.mxu0 0
      %689 = vmatprep.subr.bf16.mxu0 0
      %690 = vmatpush1.bf16.msra.mxu0 0
      %691 = vmatprep.subr.bf16.mxu0 0
      %692 = vmatpush1.bf16.msra.mxu0 0
      %693 = vmatprep.subr.bf16.mxu0 0
      %694 = vmatpush1.bf16.msra.mxu0 0
      %695 = vmatprep.subr.bf16.mxu0 0
      %696 = vmatpush1.bf16.msra.mxu0 0
      %697 = vmatprep.subr.bf16.mxu0 0
      %698 = vmatpush1.bf16.msra.mxu0 0
      %699 = vmatprep.subr.bf16.mxu0 0
      %700 = vmatpush1.bf16.msra.mxu0 0
      %701 = vmatprep.subr.bf16.mxu0 0
      %702 = vmatpush1.bf16.msra.mxu0 0
      %703 = vmatprep.subr.bf16.mxu0 0
      %704 = vmatpush1.bf16.msra.mxu0 0
      %705 = vmatprep.subr.bf16.mxu0 0
      %706 = vmatpush1.bf16.msra.mxu0 0
      %707 = vmatprep.subr.bf16.mxu0 0
      %708 = vmatpush1.bf16.msra.mxu0 0
      %709 = vmatprep.mubr.bf16.mxu0 0
      %710 = vmatmul.mubr.bf16.gmra.mrb[0].mxu0 %v663
      %v711 = vpop.f32.mrb[0].mxu0
      %v712 = vadd.f32 0.0, %v711
      %v713 = vpop.f32.mrb[0].mxu0
      %v714 = vpop.f32.mrb[0].mxu0
      %v715 = vadd.f32 0.0, %v714
      %v716 = vpop.f32.mrb[0].mxu0
      %717 = vmatprep.mubr.bf16.mxu0 0
      %718 = vmatmul.mubr.bf16.gmra.mrb[0].mxu0 %v666
      %v719 = vpop.f32.mrb[0].mxu0
      %v720 = vadd.f32 0.0, %v719
      %v721 = vpop.f32.mrb[0].mxu0
      %v722 = vpop.f32.mrb[0].mxu0
      %v723 = vadd.f32 0.0, %v722
      %v724 = vpop.f32.mrb[0].mxu0
      %725 = vmatprep.mubr.bf16.mxu0 0
      %726 = vmatmul.mubr.bf16.gmra.mrb[0].mxu0 %v669
      %v727 = vpop.f32.mrb[0].mxu0
      %v728 = vadd.f32 0.0, %v727
      %v729 = vpop.f32.mrb[0].mxu0
      %v730 = vpop.f32.mrb[0].mxu0
      %v731 = vadd.f32 0.0, %v730
      %v732 = vpop.f32.mrb[0].mxu0
      %733 = vmatprep.mubr.bf16.mxu0 0
      %734 = vmatmul.mubr.bf16.gmra.mrb[0].mxu0 %v672
      %v735 = vpop.f32.mrb[0].mxu0
      %v736 = vadd.f32 0.0, %v735
      %v737 = vpop.f32.mrb[0].mxu0
      %v738 = vpop.f32.mrb[0].mxu0
      %v739 = vadd.f32 0.0, %v738
      %v740 = vpop.f32.mrb[0].mxu0
      %741 = vmatprep.mubr.bf16.mxu0 0
      %742 = vmatmul.mubr.bf16.gmra.mrb[0].mxu0 %v675
      %v743 = vpop.f32.mrb[0].mxu0
      %v744 = vadd.f32 0.0, %v743
      %v745 = vpop.f32.mrb[0].mxu0
      %v746 = vpop.f32.mrb[0].mxu0
      %v747 = vpop.f32.mrb[0].mxu0
      %748 = vdwg.mxu0
      %v749 = vadd.f32 %v518, %v712
      %v750 = vadd.f32 %v521, %v715
      %v751 = vadd.f32 %v526, %v720
      %v752 = vadd.f32 %v529, %v723
      %v753 = vadd.f32 %v534, %v728
      %v754 = vadd.f32 %v537, %v731
      %v755 = vadd.f32 %v542, %v736
      %v756 = vadd.f32 %v545, %v739
      %v757 = vadd.f32 %v550, %v744
      %v758 = vld [vmem:[%s230 + $0x4] sm:$0xe]
      %s759 = scalar_lea.vmem %s1, 96
      %v760 = vld [vmem:[%s759] sm:$0xf]
      %v761 = vld [vmem:[%s759 + $0x4] sm:$0xf]
      %v762 = vld [vmem:[%s759 + $0x8] sm:$0xf]
      %v763 = vld [vmem:[%s759 + $0xc] sm:$0xf]
      %v764 = vld [vmem:[%s759 + $0x10] sm:$0xf]
      %v765 = vld [vmem:[%s759 + $0x14] sm:$0xf]
      %v766 = vld [vmem:[%s759 + $0x18] sm:$0xf]
      %v767 = vld [vmem:[%s759 + $0x1c] sm:$0xf]
      %v769 = vunpack.c.l.b16 %v758
      %v770 = vpack.c.b16 %v585, %v769
      %vm771 = vcmask 1046528
      %v772 = vrot.slane %v770, 1
      %v773 = vrot.slane %v595, 1
      %v774 = vsel %vm771, %v772, %v773
      %v775 = vrot.slane %v596, 1
      %v776 = vsel %vm771, %v773, %v775
      %v777 = vrot.slane %v597, 1
      %v778 = vsel %vm771, %v775, %v777
      %v779 = vrot.slane %v598, 1
      %v780 = vsel %vm771, %v777, %v779
      %v789 = vunpack.c.l.b16 %v760
      %v790 = vunpack.c.l.b16 %v761
      %v791 = vunpack.c.l.b16 %v762
      %v792 = vunpack.c.l.b16 %v763
      %v793 = vunpack.c.l.b16 %v764
      %v794 = vunpack.c.l.b16 %v765
      %v795 = vunpack.c.l.b16 %v766
      %v796 = vunpack.c.l.b16 %v767
      %v797 = vpack.c.b16 %v790, %v789
      %v798 = vpack.c.b16 %v792, %v791
      %v799 = vpack.c.b16 %v794, %v793
      %v800 = vpack.c.b16 %v796, %v795
      %v806 = vsel %vm359, %v774, 0
      %v809 = vsel %vm359, %v776, 0
      %v812 = vsel %vm359, %v778, 0
      %v815 = vsel %vm359, %v780, 0
      %v818 = vsel %vm359, %v779, 0
      %820 = vmatprep.subr.bf16.mxu0 0
      %821 = vmatpush1.bf16.msra.mxu0 %v797
      %822 = vmatprep.subr.bf16.mxu0 0
      %823 = vmatpush1.bf16.msra.mxu0 %v798
      %824 = vmatprep.subr.bf16.mxu0 0
      %825 = vmatpush1.bf16.msra.mxu0 %v799
      %826 = vmatprep.subr.bf16.mxu0 0
      %827 = vmatpush1.bf16.msra.mxu0 %v800
      %828 = vmatprep.subr.bf16.mxu0 0
      %829 = vmatpush1.bf16.msra.mxu0 0
      %830 = vmatprep.subr.bf16.mxu0 0
      %831 = vmatpush1.bf16.msra.mxu0 0
      %832 = vmatprep.subr.bf16.mxu0 0
      %833 = vmatpush1.bf16.msra.mxu0 0
      %834 = vmatprep.subr.bf16.mxu0 0
      %835 = vmatpush1.bf16.msra.mxu0 0
      %836 = vmatprep.subr.bf16.mxu0 0
      %837 = vmatpush1.bf16.msra.mxu0 0
      %838 = vmatprep.subr.bf16.mxu0 0
      %839 = vmatpush1.bf16.msra.mxu0 0
      %840 = vmatprep.subr.bf16.mxu0 0
      %841 = vmatpush1.bf16.msra.mxu0 0
      %842 = vmatprep.subr.bf16.mxu0 0
      %843 = vmatpush1.bf16.msra.mxu0 0
      %844 = vmatprep.subr.bf16.mxu0 0
      %845 = vmatpush1.bf16.msra.mxu0 0
      %846 = vmatprep.subr.bf16.mxu0 0
      %847 = vmatpush1.bf16.msra.mxu0 0
      %848 = vmatprep.subr.bf16.mxu0 0
      %849 = vmatpush1.bf16.msra.mxu0 0
      %850 = vmatprep.subr.bf16.mxu0 0
      %851 = vmatpush1.bf16.msra.mxu0 0
      %852 = vmatprep.mubr.bf16.mxu0 0
      %853 = vmatmul.mubr.bf16.gmra.mrb[0].mxu0 %v806
      %v854 = vpop.f32.mrb[0].mxu0
      %v855 = vadd.f32 0.0, %v854
      %v856 = vpop.f32.mrb[0].mxu0
      %v857 = vpop.f32.mrb[0].mxu0
      %v858 = vadd.f32 0.0, %v857
      %v859 = vpop.f32.mrb[0].mxu0
      %860 = vmatprep.mubr.bf16.mxu0 0
      %861 = vmatmul.mubr.bf16.gmra.mrb[0].mxu0 %v809
      %v862 = vpop.f32.mrb[0].mxu0
      %v863 = vadd.f32 0.0, %v862
      %v864 = vpop.f32.mrb[0].mxu0
      %v865 = vpop.f32.mrb[0].mxu0
      %v866 = vadd.f32 0.0, %v865
      %v867 = vpop.f32.mrb[0].mxu0
      %868 = vmatprep.mubr.bf16.mxu0 0
      %869 = vmatmul.mubr.bf16.gmra.mrb[0].mxu0 %v812
      %v870 = vpop.f32.mrb[0].mxu0
      %v871 = vadd.f32 0.0, %v870
      %v872 = vpop.f32.mrb[0].mxu0
      %v873 = vpop.f32.mrb[0].mxu0
      %v874 = vadd.f32 0.0, %v873
      %v875 = vpop.f32.mrb[0].mxu0
      %876 = vmatprep.mubr.bf16.mxu0 0
      %877 = vmatmul.mubr.bf16.gmra.mrb[0].mxu0 %v815
      %v878 = vpop.f32.mrb[0].mxu0
      %v879 = vadd.f32 0.0, %v878
      %v880 = vpop.f32.mrb[0].mxu0
      %v881 = vpop.f32.mrb[0].mxu0
      %v882 = vadd.f32 0.0, %v881
      %v883 = vpop.f32.mrb[0].mxu0
      %884 = vmatprep.mubr.bf16.mxu0 0
      %885 = vmatmul.mubr.bf16.gmra.mrb[0].mxu0 %v818
      %v886 = vpop.f32.mrb[0].mxu0
      %v887 = vadd.f32 0.0, %v886
      %v888 = vpop.f32.mrb[0].mxu0
      %v889 = vpop.f32.mrb[0].mxu0
      %v890 = vpop.f32.mrb[0].mxu0
      %891 = vdwg.mxu0
      %v892 = vadd.f32 %v749, %v855
      %v893 = vadd.f32 %v750, %v858
      %v894 = vadd.f32 %v751, %v863
      %v895 = vadd.f32 %v752, %v866
      %v896 = vadd.f32 %v753, %v871
      %v897 = vadd.f32 %v754, %v874
      %v898 = vadd.f32 %v755, %v879
      %v899 = vadd.f32 %v756, %v882
      %v900 = vadd.f32 %v757, %v887
      %v901 = vpack.c.bf16 %v893, %v892
      %v902 = vpack.c.bf16 %v895, %v894
      %v903 = vpack.c.bf16 %v897, %v896
      %v904 = vpack.c.bf16 %v899, %v898
      %v905 = vpack.c.bf16 %v900, %v900
      %v911 = vunpack.c.l.b16 %v901
      %v912 = vunpack.c.h.b16 %v901
      %v913 = vunpack.c.l.b16 %v902
      %v914 = vunpack.c.h.b16 %v902
      %v915 = vunpack.c.l.b16 %v903
      %v916 = vunpack.c.h.b16 %v903
      %v917 = vunpack.c.l.b16 %v904
      %v918 = vunpack.c.h.b16 %v904
      %v919 = vunpack.c.l.b16 %v905
      %v920 = vpack.c.b16 %v911, %v911
      %v921 = vpack.c.b16 %v912, %v912
      %v922 = vpack.c.b16 %v913, %v913
      %v923 = vpack.c.b16 %v914, %v914
      %v924 = vpack.c.b16 %v915, %v915
      %v925 = vpack.c.b16 %v916, %v916
      %v926 = vpack.c.b16 %v917, %v917
      %v927 = vpack.c.b16 %v918, %v918
      %v928 = vpack.c.b16 %v919, %v919
      %vm938 = vcmask 257024
      %939 = vst.msk [vmem:[%s235] sm:$0xf] %vm938, %v920
      %940 = vst.msk [vmem:[%s235 + $0x4] sm:$0xf] %vm938, %v921
      %941 = vst.msk [vmem:[%s235 + $0x8] sm:$0xf] %vm938, %v922
      %942 = vst.msk [vmem:[%s235 + $0xc] sm:$0xf] %vm938, %v923
      %943 = vst.msk [vmem:[%s235 + $0x10] sm:$0xf] %vm938, %v924
      %944 = vst.msk [vmem:[%s235 + $0x14] sm:$0xf] %vm938, %v925
      %945 = vst.msk [vmem:[%s235 + $0x18] sm:$0xf] %vm938, %v926
      %946 = vst.msk [vmem:[%s235 + $0x1c] sm:$0xf] %vm938, %v927
      %947 = vst.msk [vmem:[%s235 + $0x20] sm:$0xf] %vm938, %v928
      %v948 = vld [vmem:[%s2] sm:$0xff]
      %v949 = vld [vmem:[%s2 + $0x8] sm:$0xff]
      %v950 = vld [vmem:[%s2 + $0x10] sm:$0xff]
      %v951 = vld [vmem:[%s2 + $0x18] sm:$0xff]
      %v952 = vld [vmem:[%s2 + $0x20] sm:$0xff]
      %v953 = vld [vmem:[%s2 + $0x28] sm:$0xff]
      %v954 = vld [vmem:[%s2 + $0x30] sm:$0xff]
      %v955 = vld [vmem:[%s2 + $0x38] sm:$0xff]
      %v956 = vld [vmem:[%s2 + $0x40] sm:$0xff]
      %958 = vset.pattern.permute.xlu0 0
      %959 = vperm.xlu0 %958, %v948
      %v960 = vpop.permute.xlu0 %959
      %963 = vset.pattern.permute.xlu0 0
      %964 = vperm.xlu0 %963, %v949
      %v965 = vpop.permute.xlu0 %964
      %968 = vset.pattern.permute.xlu0 0
      %969 = vperm.xlu0 %968, %v950
      %v970 = vpop.permute.xlu0 %969
      %973 = vset.pattern.permute.xlu0 0
      %974 = vperm.xlu0 %973, %v951
      %v975 = vpop.permute.xlu0 %974
      %978 = vset.pattern.permute.xlu0 0
      %979 = vperm.xlu0 %978, %v952
      %v980 = vpop.permute.xlu0 %979
      %983 = vset.pattern.permute.xlu0 0
      %984 = vperm.xlu0 %983, %v953
      %v985 = vpop.permute.xlu0 %984
      %988 = vset.pattern.permute.xlu0 0
      %989 = vperm.xlu0 %988, %v954
      %v990 = vpop.permute.xlu0 %989
      %993 = vset.pattern.permute.xlu0 0
      %994 = vperm.xlu0 %993, %v955
      %v995 = vpop.permute.xlu0 %994
      %998 = vset.pattern.permute.xlu0 0
      %999 = vperm.xlu0 %998, %v956
      %v1000 = vpop.permute.xlu0 %999
      %v1002 = vmul.f32 %v892, %v960
      %v1003 = vmul.f32 %v893, %v965
      %v1004 = vmul.f32 %v894, %v970
      %v1005 = vmul.f32 %v895, %v975
      %v1006 = vmul.f32 %v896, %v980
      %v1007 = vmul.f32 %v897, %v985
      %v1008 = vmul.f32 %v898, %v990
      %v1009 = vmul.f32 %v899, %v995
      %v1010 = vmul.f32 %v900, %v1000
      %vm1011 = vcmask 261120
      %v1012 = vsel %vm1011, %v1002, 0.0
      %v1013 = vsel %vm1011, %v1003, 0.0
      %v1014 = vadd.f32 %v1012, %v1013
      %v1015 = vsel %vm1011, %v1004, 0.0
      %v1016 = vadd.f32 %v1014, %v1015
      %v1017 = vsel %vm1011, %v1005, 0.0
      %v1018 = vadd.f32 %v1016, %v1017
      %v1019 = vsel %vm1011, %v1006, 0.0
      %v1020 = vadd.f32 %v1018, %v1019
      %v1021 = vsel %vm1011, %v1007, 0.0
      %v1022 = vadd.f32 %v1020, %v1021
      %v1023 = vsel %vm1011, %v1008, 0.0
      %v1024 = vadd.f32 %v1022, %v1023
      %v1025 = vsel %vm1011, %v1009, 0.0
      %v1026 = vadd.f32 %v1024, %v1025
      %v1027 = vsel %vm1011, %v1010, 0.0
      %v1028 = vadd.f32 %v1026, %v1027
      %v1029 = vrot.slane %v1028, 4
      %v1030 = vadd.f32 %v1028, %v1029
      %v1031 = vrot.slane %v1030, 2
      %v1032 = vadd.f32 %v1030, %v1031
      %v1033 = vrot.slane %v1032, 1
      %v1034 = vadd.f32 %v1032, %v1033
      %vm1035 = vcmask 253952
      %1036 = vst.msk [vmem:[%s238] sm:$0x1] %vm1035, %v1034
      %v1037 = vmul.f32 %v1002, %v1002
      %v1038 = vmul.f32 %v1003, %v1003
      %v1039 = vmul.f32 %v1004, %v1004
      %v1040 = vmul.f32 %v1005, %v1005
      %v1041 = vmul.f32 %v1006, %v1006
      %v1042 = vmul.f32 %v1007, %v1007
      %v1043 = vmul.f32 %v1008, %v1008
      %v1044 = vmul.f32 %v1009, %v1009
      %v1045 = vmul.f32 %v1010, %v1010
      %v1046 = vsel %vm1011, %v1037, 0.0
      %v1047 = vsel %vm1011, %v1038, 0.0
      %v1048 = vadd.f32 %v1046, %v1047
      %v1049 = vsel %vm1011, %v1039, 0.0
      %v1050 = vadd.f32 %v1048, %v1049
      %v1051 = vsel %vm1011, %v1040, 0.0
      %v1052 = vadd.f32 %v1050, %v1051
      %v1053 = vsel %vm1011, %v1041, 0.0
      %v1054 = vadd.f32 %v1052, %v1053
      %v1055 = vsel %vm1011, %v1042, 0.0
      %v1056 = vadd.f32 %v1054, %v1055
      %v1057 = vsel %vm1011, %v1043, 0.0
      %v1058 = vadd.f32 %v1056, %v1057
      %v1059 = vsel %vm1011, %v1044, 0.0
      %v1060 = vadd.f32 %v1058, %v1059
      %v1061 = vsel %vm1011, %v1045, 0.0
      %v1062 = vadd.f32 %v1060, %v1061
      %v1063 = vrot.slane %v1062, 4
      %v1064 = vadd.f32 %v1062, %v1063
      %v1065 = vrot.slane %v1064, 2
      %v1066 = vadd.f32 %v1064, %v1065
      %v1067 = vrot.slane %v1066, 1
      %v1068 = vadd.f32 %v1066, %v1067
      %1069 = vst.msk [vmem:[%s241] sm:$0x1] %vm1035, %v1068
      %p1070 = scmp.lt.s32.totalorder %s17, 1
      %s1071 = scalar_select %p1070, %s17, 1
      %s1072 = smul.addr %s1071, 9
      %s1073 = smul.addr %s1072, 4
      %s1074 = scalar_lea.vmem %s3, %s1073
      %p1075 = scmp.lt.s32.totalorder %s17, 1
      %s1076 = scalar_select %p1075, %s17, 1
      %s1077 = scalar_lea.vmem %s4, %s1076
      %p1078 = scmp.lt.s32.totalorder %s17, 1
      %s1079 = scalar_select %p1078, %s17, 1
      %s1080 = scalar_lea.vmem %s5, %s1079
      // Predicated region
      $region33: #{discriminator_forward.7} parent=31 // pred_check
        %p1081 = pneg %p103
      $region34: #{discriminator_forward.7} parent=31 // pred_check_branch
        %1083 = sbr.rel (%p1081) target = $region36
      $region35: #{discriminator_forward.7} parent=31 // pred_region
        _
      $region36: #{discriminator_forward.7} parent=31 // pred_fallthru
        _
      // Predicated region
      $region37: #{discriminator_forward.7} parent=31 // pred_check
        %p1084 = pneg %p129
      $region38: #{discriminator_forward.7} parent=31 // pred_check_branch
        %1086 = sbr.rel (%p1084) target = $region40
      $region39: #{discriminator_forward.7} parent=31 // pred_region
        _
      $region40: #{discriminator_forward.7} parent=31 // pred_fallthru
        _
      // Predicated region
      $region41: #{discriminator_forward.7} parent=31 // pred_check
        %p1087 = pneg %p155
      $region42: #{discriminator_forward.7} parent=31 // pred_check_branch
        %1089 = sbr.rel (%p1087) target = $region44
      $region43: #{discriminator_forward.7} parent=31 // pred_region
        _
      $region44: #{discriminator_forward.7} parent=31 // pred_fallthru
        _
    $region32: #{discriminator_forward.7} parent=5 // pred_fallthru
      _
    %p1090 = scmp.le.s32.totalorder 2, %s12
    // Predicated region
    $region45: #{discriminator_forward.7} parent=5 // pred_check
      %p1091 = pneg %p1090
    $region46: #{discriminator_forward.7} parent=5 // pred_check_branch
      %1093 = sbr.rel (%p1091) target = $region48
    $region47: #{discriminator_forward.7} parent=5 // pred_region
      %s1094 = ssub.s32 %s12, 2
      // Predicated region
      $region49: #{discriminator_forward.7} parent=47 // pred_check
        %p1095 = pneg %p109
      $region50: #{discriminator_forward.7} parent=47 // pred_check_branch
        %1097 = sbr.rel (%p1095) target = $region52
      $region51: #{discriminator_forward.7} parent=47 // pred_region
        %p1098 = scmp.lt.s32.totalorder %s18, 1
        %s1099 = scalar_select %p1098, %s18, 1
        %s1100 = smul.addr %s1099, 9
        %s1101 = smul.addr %s1100, 4
        %s1102 = scalar_lea.vmem %s3, %s1101
      $region52: #{discriminator_forward.7} parent=47 // pred_fallthru
        _
      // Predicated region
      $region53: #{discriminator_forward.7} parent=47 // pred_check
        %p1103 = pneg %p135
      $region54: #{discriminator_forward.7} parent=47 // pred_check_branch
        %1105 = sbr.rel (%p1103) target = $region56
      $region55: #{discriminator_forward.7} parent=47 // pred_region
        %p1106 = scmp.lt.s32.totalorder %s18, 1
        %s1107 = scalar_select %p1106, %s18, 1
        %s1108 = scalar_lea.vmem %s4, %s1107
      $region56: #{discriminator_forward.7} parent=47 // pred_fallthru
        _
      // Predicated region
      $region57: #{discriminator_forward.7} parent=47 // pred_check
        %p1109 = pneg %p161
      $region58: #{discriminator_forward.7} parent=47 // pred_check_branch
        %1111 = sbr.rel (%p1109) target = $region60
      $region59: #{discriminator_forward.7} parent=47 // pred_region
        %p1112 = scmp.lt.s32.totalorder %s18, 1
        %s1113 = scalar_select %p1112, %s18, 1
        %s1114 = scalar_lea.vmem %s5, %s1113
      $region60: #{discriminator_forward.7} parent=47 // pred_fallthru
        _
    $region48: #{discriminator_forward.7} parent=5 // pred_fallthru
      _
  $region6: #{discriminator_forward.7} parent=0 // loop_footer
    %s16 = sadd.s32 1, %s12
  $region7: #{discriminator_forward.7} parent=0 // loop_footer_branch
    %11 = sbr.rel target = $region3
  $region8: #{discriminator_forward.7} parent=0 // loop_exit
    _

// kernel: discriminator_forward.8
$region0: #{discriminator_forward.8}
  #allocation0 [shape = 'u32[]', space=smem, size = 0x4, offset = 0x4, fixed_abs, tag = 'smem constant byte address 0x4 - core index']
  #allocation1 [shape = 'u32[144,128]{1,0:T(1,128)}', space=vmem, size = 0x12000, scoped, tag = 'internal scratch']
  %s0 = inlined_call_operand.vmem [shape: bf16[2,33,128], index: 0, kind: input, shape index: {}]
  %s1 = inlined_call_operand.vmem [shape: bf16[4,128,64], index: 1, kind: input, shape index: {}]
  %s2 = inlined_call_operand.vmem [shape: f32[20,1], index: 2, kind: input, shape index: {}]
  %s3 = inlined_call_operand.vmem [shape: bf16[2,20,64], index: 3, kind: output, shape index: {0}]
  %s4 = inlined_call_operand.vmem [shape: f32[2,1,64], index: 4, kind: output, shape index: {1}]
  %s5 = inlined_call_operand.vmem [shape: f32[2,1,64], index: 5, kind: output, shape index: {2}]
  %6 = xla_tuple %s3, %s4, %s5
  %s7 = sld [smem:[#allocation0]]
  $region61: #{discriminator_forward.8} parent=0
    _
  %s9 = ssub.s32 1, %s7
  %s10 = scalar_select 0, %s9, %s7
  loop: start=0, step=1, limit=4
  $region2: #{discriminator_forward.8} parent=0 // loop_pre_header
    _
  $region3: #{discriminator_forward.8} parent=0 // loop_header
    %s12 = sphi 0, %s16
    %p13 = scmp.ge.s32.totalorder %s12, 4
    %s22 = sphi 0, %s24
    %s25 = sphi 0, %s22
    %s26 = sphi 0, %s25
    %s42 = sphi 0, %s26
    %s46 = sphi 0, %s46
    %s48 = sphi 0, %s46
    %s49 = sphi 0, %s48
    %s63 = sphi 0, %s49
    %s67 = sphi 0, %s67
    %s69 = sphi 0, %s67
    %s70 = sphi 0, %s69
    %s84 = sphi 0, %s70
    %s90 = sphi 0, %s92
    %s93 = sphi 0, %s90
    %s94 = sphi 0, %s93
    %s110 = sphi 0, %s94
    %s116 = sphi 0, %s118
    %s119 = sphi 0, %s116
    %s120 = sphi 0, %s119
    %s136 = sphi 0, %s120
    %s142 = sphi 0, %s144
    %s145 = sphi 0, %s142
    %s146 = sphi 0, %s145
    %s162 = sphi 0, %s146
  $region4: #{discriminator_forward.8} parent=0 // loop_header_branch
    %15 = sbr.rel (%p13) target = $region8
  $region5: #{discriminator_forward.8} parent=0 // loop_body
    %s17 = ssub.s32 %s12, 1
    %s18 = ssub.s32 %s12, 2
    %s19 = sadd.s32 %s12, 1
    %s20 = ssub.s32 %s12, %s19
    %p21 = scmp.eq.s32.totalorder %s20, 0
    %s23 = sadd.s32 %s22, 1
    %s24 = scalar_select %p21, %s22, %s23
    %p27 = pneg %p21
    %p28 = scmp.eq.s32.totalorder %s12, 1
    %p29 = por %p27, %p28
    %p30 = scmp.ne.s32.totalorder %s22, %s25
    %p31 = scmp.eq.s32.totalorder %s12, 0
    %p32 = por %p30, %p31
    %p33 = scmp.ne.s32.totalorder %s22, %s25
    %p34 = scmp.eq.s32.totalorder %s17, 1
    %p35 = por %p33, %p34
    %p36 = scmp.ne.s32.totalorder %s25, %s26
    %p37 = scmp.eq.s32.totalorder %s17, 0
    %p38 = por %p36, %p37
    %p39 = scmp.ne.s32.totalorder %s25, %s26
    %p40 = scmp.eq.s32.totalorder %s18, 1
    %p41 = por %p39, %p40
    %p43 = scmp.ne.s32.totalorder %s26, %s42
    %p44 = scmp.eq.s32.totalorder %s18, 0
    %p45 = por %p43, %p44
    %s47 = sadd.s32 %s46, 1
    %p50 = scmp.eq.s32.totalorder %s12, 1
    %p51 = scmp.ne.s32.totalorder %s46, %s48
    %p52 = scmp.eq.s32.totalorder %s12, 0
    %p53 = por %p51, %p52
    %p54 = scmp.ne.s32.totalorder %s46, %s48
    %p55 = scmp.eq.s32.totalorder %s17, 1
    %p56 = por %p54, %p55
    %p57 = scmp.ne.s32.totalorder %s48, %s49
    %p58 = scmp.eq.s32.totalorder %s17, 0
    %p59 = por %p57, %p58
    %p60 = scmp.ne.s32.totalorder %s48, %s49
    %p61 = scmp.eq.s32.totalorder %s18, 1
    %p62 = por %p60, %p61
    %p64 = scmp.ne.s32.totalorder %s49, %s63
    %p65 = scmp.eq.s32.totalorder %s18, 0
    %p66 = por %p64, %p65
    %s68 = sadd.s32 %s67, 1
    %p71 = scmp.eq.s32.totalorder %s12, 1
    %p72 = scmp.ne.s32.totalorder %s67, %s69
    %p73 = scmp.eq.s32.totalorder %s12, 0
    %p74 = por %p72, %p73
    %p75 = scmp.ne.s32.totalorder %s67, %s69
    %p76 = scmp.eq.s32.totalorder %s17, 1
    %p77 = por %p75, %p76
    %p78 = scmp.ne.s32.totalorder %s69, %s70
    %p79 = scmp.eq.s32.totalorder %s17, 0
    %p80 = por %p78, %p79
    %p81 = scmp.ne.s32.totalorder %s69, %s70
    %p82 = scmp.eq.s32.totalorder %s18, 1
    %p83 = por %p81, %p82
    %p85 = scmp.ne.s32.totalorder %s70, %s84
    %p86 = scmp.eq.s32.totalorder %s18, 0
    %p87 = por %p85, %p86
    %s88 = ssub.s32 %s12, %s19
    %p89 = scmp.eq.s32.totalorder %s88, 0
    %s91 = sadd.s32 %s90, 1
    %s92 = scalar_select %p89, %s90, %s91
    %p95 = pneg %p89
    %p96 = scmp.eq.s32.totalorder %s12, 1
    %p97 = por %p95, %p96
    %p98 = scmp.ne.s32.totalorder %s90, %s93
    %p99 = scmp.eq.s32.totalorder %s12, 0
    %p100 = por %p98, %p99
    %p101 = scmp.ne.s32.totalorder %s90, %s93
    %p102 = scmp.eq.s32.totalorder %s17, 1
    %p103 = por %p101, %p102
    %p104 = scmp.ne.s32.totalorder %s93, %s94
    %p105 = scmp.eq.s32.totalorder %s17, 0
    %p106 = por %p104, %p105
    %p107 = scmp.ne.s32.totalorder %s93, %s94
    %p108 = scmp.eq.s32.totalorder %s18, 1
    %p109 = por %p107, %p108
    %p111 = scmp.ne.s32.totalorder %s94, %s110
    %p112 = scmp.eq.s32.totalorder %s18, 0
    %p113 = por %p111, %p112
    %s114 = ssub.s32 %s12, %s19
    %p115 = scmp.eq.s32.totalorder %s114, 0
    %s117 = sadd.s32 %s116, 1
    %s118 = scalar_select %p115, %s116, %s117
    %p121 = pneg %p115
    %p122 = scmp.eq.s32.totalorder %s12, 1
    %p123 = por %p121, %p122
    %p124 = scmp.ne.s32.totalorder %s116, %s119
    %p125 = scmp.eq.s32.totalorder %s12, 0
    %p126 = por %p124, %p125
    %p127 = scmp.ne.s32.totalorder %s116, %s119
    %p128 = scmp.eq.s32.totalorder %s17, 1
    %p129 = por %p127, %p128
    %p130 = scmp.ne.s32.totalorder %s119, %s120
    %p131 = scmp.eq.s32.totalorder %s17, 0
    %p132 = por %p130, %p131
    %p133 = scmp.ne.s32.totalorder %s119, %s120
    %p134 = scmp.eq.s32.totalorder %s18, 1
    %p135 = por %p133, %p134
    %p137 = scmp.ne.s32.totalorder %s120, %s136
    %p138 = scmp.eq.s32.totalorder %s18, 0
    %p139 = por %p137, %p138
    %s140 = ssub.s32 %s12, %s19
    %p141 = scmp.eq.s32.totalorder %s140, 0
    %s143 = sadd.s32 %s142, 1
    %s144 = scalar_select %p141, %s142, %s143
    %p147 = pneg %p141
    %p148 = scmp.eq.s32.totalorder %s12, 1
    %p149 = por %p147, %p148
    %p150 = scmp.ne.s32.totalorder %s142, %s145
    %p151 = scmp.eq.s32.totalorder %s12, 0
    %p152 = por %p150, %p151
    %p153 = scmp.ne.s32.totalorder %s142, %s145
    %p154 = scmp.eq.s32.totalorder %s17, 1
    %p155 = por %p153, %p154
    %p156 = scmp.ne.s32.totalorder %s145, %s146
    %p157 = scmp.eq.s32.totalorder %s17, 0
    %p158 = por %p156, %p157
    %p159 = scmp.ne.s32.totalorder %s145, %s146
    %p160 = scmp.eq.s32.totalorder %s18, 1
    %p161 = por %p159, %p160
    %p163 = scmp.ne.s32.totalorder %s146, %s162
    %p164 = scmp.eq.s32.totalorder %s18, 0
    %p165 = por %p163, %p164
    %p166 = scmp.le.s32.totalorder 1, %s12
    %p167 = scmp.lt.s32.totalorder %s12, 3
    %p168 = pnand %p166, %p167
    %p169 = pneg %p168
    // Predicated region
    $region9: #{discriminator_forward.8} parent=5 // pred_check
      _
    $region10: #{discriminator_forward.8} parent=5 // pred_check_branch
      %171 = sbr.rel (%p168) target = $region12
    $region11: #{discriminator_forward.8} parent=5 // pred_region
      %s172 = ssub.s32 %s12, 1
      // Predicated region
      $region13: #{discriminator_forward.8} parent=11 // pred_check
        %p173 = pneg %p59
      $region14: #{discriminator_forward.8} parent=11 // pred_check_branch
        %175 = sbr.rel (%p173) target = $region16
      $region15: #{discriminator_forward.8} parent=11 // pred_region
        _
      $region16: #{discriminator_forward.8} parent=11 // pred_fallthru
        _
      // Predicated region
      $region17: #{discriminator_forward.8} parent=11 // pred_check
        %p176 = pneg %p80
      $region18: #{discriminator_forward.8} parent=11 // pred_check_branch
        %178 = sbr.rel (%p176) target = $region20
      $region19: #{discriminator_forward.8} parent=11 // pred_region
        _
      $region20: #{discriminator_forward.8} parent=11 // pred_fallthru
        _
    $region12: #{discriminator_forward.8} parent=5 // pred_fallthru
      _
    %p179 = scmp.lt.s32.totalorder %s12, 2
    // Predicated region
    $region21: #{discriminator_forward.8} parent=5 // pred_check
      %p180 = pneg %p179
    $region22: #{discriminator_forward.8} parent=5 // pred_check_branch
      %182 = sbr.rel (%p180) target = $region24
    $region23: #{discriminator_forward.8} parent=5 // pred_region
      // Predicated region
      $region25: #{discriminator_forward.8} parent=23 // pred_check
        %p183 = pneg %p32
      $region26: #{discriminator_forward.8} parent=23 // pred_check_branch
        %185 = sbr.rel (%p183) target = $region28
      $region27: #{discriminator_forward.8} parent=23 // pred_region
        %p186 = scmp.lt.s32.totalorder %s12, 1
        %s187 = scalar_select %p186, %s12, 1
        %s188 = smul.addr %s187, 5
        %s189 = smul.addr %s188, 4
        %s190 = scalar_lea.vmem %s0, %s189
      $region28: #{discriminator_forward.8} parent=23 // pred_fallthru
        _
    $region24: #{discriminator_forward.8} parent=5 // pred_fallthru
      _
    %p191 = scmp.le.s32.totalorder 1, %s12
    %p192 = scmp.lt.s32.totalorder %s12, 3
    %p193 = pnand %p191, %p192
    %p194 = pneg %p193
    // Predicated region
    $region29: #{discriminator_forward.8} parent=5 // pred_check
      _
    $region30: #{discriminator_forward.8} parent=5 // pred_check_branch
      %196 = sbr.rel (%p193) target = $region32
    $region31: #{discriminator_forward.8} parent=5 // pred_region
      %s197 = ssub.s32 %s12, 1
      %p198 = scmp.lt.s32.totalorder %s17, 1
      %s199 = scalar_select %p198, %s17, 1
      %s200 = smul.addr %s199, 5
      %s201 = smul.addr %s200, 4
      %s202 = scalar_lea.vmem %s0, %s201
      %p203 = pneg %p38
      %p204 = pneg %p35
      %p205 = pneg %p59
      %p206 = pneg %p56
      %p207 = pneg %p80
      %p208 = pneg %p77
      %p209 = pneg %p106
      %p210 = pneg %p103
      %p211 = scmp.lt.s32.totalorder %s17, 1
      %s212 = scalar_select %p211, %s17, 1
      %s213 = smul.addr %s212, 3
      %s214 = smul.addr %s213, 4
      %s215 = scalar_lea.vmem %s3, %s214
      %p216 = pneg %p132
      %p217 = pneg %p129
      %p218 = scmp.lt.s32.totalorder %s17, 1
      %s219 = scalar_select %p218, %s17, 1
      %s220 = scalar_lea.vmem %s4, %s219
      %p221 = pneg %p158
      %p222 = pneg %p155
      %p223 = scmp.lt.s32.totalorder %s17, 1
      %s224 = scalar_select %p223, %s17, 1
      %s225 = scalar_lea.vmem %s5, %s224
      %p226 = scmp.lt.s32.totalorder %s17, 1
      %s227 = scalar_select %p226, %s17, 1
      %s228 = smul.addr %s227, 5
      %s229 = smul.addr %s228, 4
      %s230 = scalar_lea.vmem %s0, %s229
      %p231 = scmp.lt.s32.totalorder %s17, 1
      %s232 = scalar_select %p231, %s17, 1
      %s233 = smul.addr %s232, 3
      %s234 = smul.addr %s233, 4
      %s235 = scalar_lea.vmem %s3, %s234
      %p236 = scmp.lt.s32.totalorder %s17, 1
      %s237 = scalar_select %p236, %s17, 1
      %s238 = scalar_lea.vmem %s4, %s237
      %p239 = scmp.lt.s32.totalorder %s17, 1
      %s240 = scalar_select %p239, %s17, 1
      %s241 = scalar_lea.vmem %s5, %s240
      %v243 = vld [vmem:[%s230] sm:$0xf]
      %v244 = vld [vmem:[%s230 + $0x4] sm:$0xf]
      %v245 = vld [vmem:[%s230 + $0x8] sm:$0x3]
      %v246 = vld [vmem:[%s1] sm:$0xf]
      %v247 = vld [vmem:[%s1 + $0x4] sm:$0xf]
      %v248 = vld [vmem:[%s1 + $0x8] sm:$0xf]
      %v249 = vld [vmem:[%s1 + $0xc] sm:$0xf]
      %v250 = vld [vmem:[%s1 + $0x10] sm:$0xf]
      %v251 = vld [vmem:[%s1 + $0x14] sm:$0xf]
      %v252 = vld [vmem:[%s1 + $0x18] sm:$0xf]
      %v253 = vld [vmem:[%s1 + $0x1c] sm:$0xf]
      %v254 = vld [vmem:[%s1 + $0x20] sm:$0xf]
      %v255 = vld [vmem:[%s1 + $0x24] sm:$0xf]
      %v256 = vld [vmem:[%s1 + $0x28] sm:$0xf]
      %v257 = vld [vmem:[%s1 + $0x2c] sm:$0xf]
      %v258 = vld [vmem:[%s1 + $0x30] sm:$0xf]
      %v259 = vld [vmem:[%s1 + $0x34] sm:$0xf]
      %v260 = vld [vmem:[%s1 + $0x38] sm:$0xf]
      %v261 = vld [vmem:[%s1 + $0x3c] sm:$0xf]
      %v262 = vld [vmem:[%s230 + $0x8] sm:$0x7]
      %s263 = scalar_lea.vmem %s1, 64
      %v264 = vld [vmem:[%s263] sm:$0xf]
      %v265 = vld [vmem:[%s263 + $0x4] sm:$0xf]
      %v266 = vld [vmem:[%s263 + $0x8] sm:$0xf]
      %v267 = vld [vmem:[%s263 + $0xc] sm:$0xf]
      %v268 = vld [vmem:[%s263 + $0x10] sm:$0xf]
      %v269 = vld [vmem:[%s263 + $0x14] sm:$0xf]
      %v270 = vld [vmem:[%s263 + $0x18] sm:$0xf]
      %v271 = vld [vmem:[%s263 + $0x1c] sm:$0xf]
      %v272 = vld [vmem:[%s263 + $0x20] sm:$0xf]
      %v273 = vld [vmem:[%s263 + $0x24] sm:$0xf]
      %v274 = vld [vmem:[%s263 + $0x28] sm:$0xf]
      %v275 = vld [vmem:[%s263 + $0x2c] sm:$0xf]
      %v276 = vld [vmem:[%s263 + $0x30] sm:$0xf]
      %v277 = vld [vmem:[%s263 + $0x34] sm:$0xf]
      %v278 = vld [vmem:[%s263 + $0x38] sm:$0xf]
      %v279 = vld [vmem:[%s263 + $0x3c] sm:$0xf]
      %v283 = vunpack.c.l.b16 %v243
      %v284 = vunpack.c.l.b16 %v244
      %v285 = vunpack.c.l.b16 %v262
      %v286 = vpack.c.b16 %v284, %v283
      %v287 = vpack.c.b16 %v285, %v285
      %vm288 = vsmask.f32 7424
      %v290 = vshrl.u32 %v286, 16
      %v292 = vshll.u32 %v286, 16
      %v294 = vrot.slane %v292, 1
      %v295 = vor.u32 %v290, %v294
      %v297 = vshll.u32 %v287, 16
      %v299 = vrot.slane %v297, 1
      %v300 = vsel %vm288, %v295, %v299
      %v301 = vshrl.u32 %v287, 16
      %v303 = vor.u32 %v301, %v299
      %v322 = vunpack.c.l.b16 %v264
      %v323 = vunpack.c.l.b16 %v265
      %v324 = vunpack.c.l.b16 %v266
      %v325 = vunpack.c.l.b16 %v267
      %v326 = vunpack.c.l.b16 %v268
      %v327 = vunpack.c.l.b16 %v269
      %v328 = vunpack.c.l.b16 %v270
      %v329 = vunpack.c.l.b16 %v271
      %v330 = vunpack.c.l.b16 %v272
      %v331 = vunpack.c.l.b16 %v273
      %v332 = vunpack.c.l.b16 %v274
      %v333 = vunpack.c.l.b16 %v275
      %v334 = vunpack.c.l.b16 %v276
      %v335 = vunpack.c.l.b16 %v277
      %v336 = vunpack.c.l.b16 %v278
      %v337 = vunpack.c.l.b16 %v279
      %v338 = vpack.c.b16 %v323, %v322
      %v339 = vpack.c.b16 %v325, %v324
      %v340 = vpack.c.b16 %v327, %v326
      %v341 = vpack.c.b16 %v329, %v328
      %v342 = vpack.c.b16 %v331, %v330
      %v343 = vpack.c.b16 %v333, %v332
      %v344 = vpack.c.b16 %v335, %v334
      %v345 = vpack.c.b16 %v337, %v336
      %354 = vmatprep.subr.bf16.mxu0 0
      %355 = vmatpush1.bf16.msra.mxu0 %v338
      %356 = vmatprep.subr.bf16.mxu0 0
      %357 = vmatpush1.bf16.msra.mxu0 %v339
      %358 = vmatprep.subr.bf16.mxu0 0
      %359 = vmatpush1.bf16.msra.mxu0 %v340
      %360 = vmatprep.subr.bf16.mxu0 0
      %361 = vmatpush1.bf16.msra.mxu0 %v341
      %362 = vmatprep.subr.bf16.mxu0 0
      %363 = vmatpush1.bf16.msra.mxu0 %v342
      %364 = vmatprep.subr.bf16.mxu0 0
      %365 = vmatpush1.bf16.msra.mxu0 %v343
      %366 = vmatprep.subr.bf16.mxu0 0
      %367 = vmatpush1.bf16.msra.mxu0 %v344
      %368 = vmatprep.subr.bf16.mxu0 0
      %369 = vmatpush1.bf16.msra.mxu0 %v345
      %370 = vmatprep.subr.bf16.mxu0 0
      %371 = vmatpush1.bf16.msra.mxu0 0
      %372 = vmatprep.subr.bf16.mxu0 0
      %373 = vmatpush1.bf16.msra.mxu0 0
      %374 = vmatprep.subr.bf16.mxu0 0
      %375 = vmatpush1.bf16.msra.mxu0 0
      %376 = vmatprep.subr.bf16.mxu0 0
      %377 = vmatpush1.bf16.msra.mxu0 0
      %378 = vmatprep.subr.bf16.mxu0 0
      %379 = vmatpush1.bf16.msra.mxu0 0
      %380 = vmatprep.subr.bf16.mxu0 0
      %381 = vmatpush1.bf16.msra.mxu0 0
      %382 = vmatprep.subr.bf16.mxu0 0
      %383 = vmatpush1.bf16.msra.mxu0 0
      %384 = vmatprep.subr.bf16.mxu0 0
      %385 = vmatpush1.bf16.msra.mxu0 0
      %386 = vmatprep.mubr.bf16.mxu0 0
      %387 = vmatmul.mubr.bf16.gmra.mrb[0].mxu0 %v300
      %v388 = vpop.f32.mrb[0].mxu0
      %v389 = vadd.f32 0.0, %v388
      %v390 = vpop.f32.mrb[0].mxu0
      %v391 = vpop.f32.mrb[0].mxu0
      %v392 = vadd.f32 0.0, %v391
      %v393 = vpop.f32.mrb[0].mxu0
      %394 = vmatprep.mubr.bf16.mxu0 0
      %395 = vmatmul.mubr.bf16.gmra.mrb[0].mxu0 %v303
      %v396 = vpop.f32.mrb[0].mxu0
      %v397 = vadd.f32 0.0, %v396
      %v398 = vpop.f32.mrb[0].mxu0
      %v399 = vpop.f32.mrb[0].mxu0
      %v400 = vpop.f32.mrb[0].mxu0
      %401 = vdwg.mxu0
      %v403 = vunpack.c.l.b16 %v245
      %v404 = vpack.c.b16 %v403, %v403
      %v423 = vunpack.c.l.b16 %v246
      %v424 = vunpack.c.l.b16 %v247
      %v425 = vunpack.c.l.b16 %v248
      %v426 = vunpack.c.l.b16 %v249
      %v427 = vunpack.c.l.b16 %v250
      %v428 = vunpack.c.l.b16 %v251
      %v429 = vunpack.c.l.b16 %v252
      %v430 = vunpack.c.l.b16 %v253
      %v431 = vunpack.c.l.b16 %v254
      %v432 = vunpack.c.l.b16 %v255
      %v433 = vunpack.c.l.b16 %v256
      %v434 = vunpack.c.l.b16 %v257
      %v435 = vunpack.c.l.b16 %v258
      %v436 = vunpack.c.l.b16 %v259
      %v437 = vunpack.c.l.b16 %v260
      %v438 = vunpack.c.l.b16 %v261
      %v439 = vpack.c.b16 %v424, %v423
      %v440 = vpack.c.b16 %v426, %v425
      %v441 = vpack.c.b16 %v428, %v427
      %v442 = vpack.c.b16 %v430, %v429
      %v443 = vpack.c.b16 %v432, %v431
      %v444 = vpack.c.b16 %v434, %v433
      %v445 = vpack.c.b16 %v436, %v435
      %v446 = vpack.c.b16 %v438, %v437
      %455 = vmatprep.subr.bf16.mxu0 0
      %456 = vmatpush1.bf16.msra.mxu0 %v439
      %457 = vmatprep.subr.bf16.mxu0 0
      %458 = vmatpush1.bf16.msra.mxu0 %v440
      %459 = vmatprep.subr.bf16.mxu0 0
      %460 = vmatpush1.bf16.msra.mxu0 %v441
      %461 = vmatprep.subr.bf16.mxu0 0
      %462 = vmatpush1.bf16.msra.mxu0 %v442
      %463 = vmatprep.subr.bf16.mxu0 0
      %464 = vmatpush1.bf16.msra.mxu0 %v443
      %465 = vmatprep.subr.bf16.mxu0 0
      %466 = vmatpush1.bf16.msra.mxu0 %v444
      %467 = vmatprep.subr.bf16.mxu0 0
      %468 = vmatpush1.bf16.msra.mxu0 %v445
      %469 = vmatprep.subr.bf16.mxu0 0
      %470 = vmatpush1.bf16.msra.mxu0 %v446
      %471 = vmatprep.subr.bf16.mxu0 0
      %472 = vmatpush1.bf16.msra.mxu0 0
      %473 = vmatprep.subr.bf16.mxu0 0
      %474 = vmatpush1.bf16.msra.mxu0 0
      %475 = vmatprep.subr.bf16.mxu0 0
      %476 = vmatpush1.bf16.msra.mxu0 0
      %477 = vmatprep.subr.bf16.mxu0 0
      %478 = vmatpush1.bf16.msra.mxu0 0
      %479 = vmatprep.subr.bf16.mxu0 0
      %480 = vmatpush1.bf16.msra.mxu0 0
      %481 = vmatprep.subr.bf16.mxu0 0
      %482 = vmatpush1.bf16.msra.mxu0 0
      %483 = vmatprep.subr.bf16.mxu0 0
      %484 = vmatpush1.bf16.msra.mxu0 0
      %485 = vmatprep.subr.bf16.mxu0 0
      %486 = vmatpush1.bf16.msra.mxu0 0
      %487 = vmatprep.mubr.bf16.mxu0 0
      %488 = vmatmul.mubr.bf16.gmra.mrb[0].mxu0 %v286
      %v489 = vpop.f32.mrb[0].mxu0
      %v490 = vadd.f32 %v389, %v489
      %v491 = vpop.f32.mrb[0].mxu0
      %v492 = vpop.f32.mrb[0].mxu0
      %v493 = vadd.f32 %v392, %v492
      %v494 = vpop.f32.mrb[0].mxu0
      %495 = vmatprep.mubr.bf16.mxu0 0
      %496 = vmatmul.mubr.bf16.gmra.mrb[0].mxu0 %v404
      %v497 = vpop.f32.mrb[0].mxu0
      %v498 = vadd.f32 %v397, %v497
      %v499 = vpop.f32.mrb[0].mxu0
      %v500 = vpop.f32.mrb[0].mxu0
      %v501 = vpop.f32.mrb[0].mxu0
      %502 = vdwg.mxu0
      %v503 = vld [vmem:[%s230] sm:$0xc]
      %v504 = vld [vmem:[%s230 + $0x4] sm:$0xf]
      %v505 = vld [vmem:[%s230 + $0x8] sm:$0xf]
      %v506 = vld [vmem:[%s230 + $0xc] sm:$0x1]
      %s507 = scalar_lea.vmem %s1, 128
      %v508 = vld [vmem:[%s507] sm:$0xf]
      %v509 = vld [vmem:[%s507 + $0x4] sm:$0xf]
      %v510 = vld [vmem:[%s507 + $0x8] sm:$0xf]
      %v511 = vld [vmem:[%s507 + $0xc] sm:$0xf]
      %v512 = vld [vmem:[%s507 + $0x10] sm:$0xf]
      %v513 = vld [vmem:[%s507 + $0x14] sm:$0xf]
      %v514 = vld [vmem:[%s507 + $0x18] sm:$0xf]
      %v515 = vld [vmem:[%s507 + $0x1c] sm:$0xf]
      %v516 = vld [vmem:[%s507 + $0x20] sm:$0xf]
      %v517 = vld [vmem:[%s507 + $0x24] sm:$0xf]
      %v518 = vld [vmem:[%s507 + $0x28] sm:$0xf]
      %v519 = vld [vmem:[%s507 + $0x2c] sm:$0xf]
      %v520 = vld [vmem:[%s507 + $0x30] sm:$0xf]
      %v521 = vld [vmem:[%s507 + $0x34] sm:$0xf]
      %v522 = vld [vmem:[%s507 + $0x38] sm:$0xf]
      %v523 = vld [vmem:[%s507 + $0x3c] sm:$0xf]
      %v528 = vunpack.c.l.b16 %v503
      %v529 = vunpack.c.l.b16 %v504
      %v530 = vunpack.c.l.b16 %v505
      %v531 = vunpack.c.l.b16 %v506
      %v532 = vpack.c.b16 %v529, %v528
      %v533 = vpack.c.b16 %v531, %v530
      %vm534 = vsmask.f32 5376
      %v536 = vshrl.u32 %v532, 16
      %v538 = vrot.slane %v536, 2
      %v539 = vshll.u32 %v532, 16
      %v541 = vrot.slane %v539, 3
      %v542 = vor.u32 %v538, %v541
      %v544 = vshrl.u32 %v533, 16
      %v546 = vrot.slane %v544, 2
      %v547 = vshll.u32 %v533, 16
      %v549 = vrot.slane %v547, 3
      %v550 = vor.u32 %v546, %v549
      %v551 = vsel %vm534, %v542, %v550
      %v570 = vunpack.c.l.b16 %v508
      %v571 = vunpack.c.l.b16 %v509
      %v572 = vunpack.c.l.b16 %v510
      %v573 = vunpack.c.l.b16 %v511
      %v574 = vunpack.c.l.b16 %v512
      %v575 = vunpack.c.l.b16 %v513
      %v576 = vunpack.c.l.b16 %v514
      %v577 = vunpack.c.l.b16 %v515
      %v578 = vunpack.c.l.b16 %v516
      %v579 = vunpack.c.l.b16 %v517
      %v580 = vunpack.c.l.b16 %v518
      %v581 = vunpack.c.l.b16 %v519
      %v582 = vunpack.c.l.b16 %v520
      %v583 = vunpack.c.l.b16 %v521
      %v584 = vunpack.c.l.b16 %v522
      %v585 = vunpack.c.l.b16 %v523
      %v586 = vpack.c.b16 %v571, %v570
      %v587 = vpack.c.b16 %v573, %v572
      %v588 = vpack.c.b16 %v575, %v574
      %v589 = vpack.c.b16 %v577, %v576
      %v590 = vpack.c.b16 %v579, %v578
      %v591 = vpack.c.b16 %v581, %v580
      %v592 = vpack.c.b16 %v583, %v582
      %v593 = vpack.c.b16 %v585, %v584
      %602 = vmatprep.subr.bf16.mxu0 0
      %603 = vmatpush1.bf16.msra.mxu0 %v586
      %604 = vmatprep.subr.bf16.mxu0 0
      %605 = vmatpush1.bf16.msra.mxu0 %v587
      %606 = vmatprep.subr.bf16.mxu0 0
      %607 = vmatpush1.bf16.msra.mxu0 %v588
      %608 = vmatprep.subr.bf16.mxu0 0
      %609 = vmatpush1.bf16.msra.mxu0 %v589
      %610 = vmatprep.subr.bf16.mxu0 0
      %611 = vmatpush1.bf16.msra.mxu0 %v590
      %612 = vmatprep.subr.bf16.mxu0 0
      %613 = vmatpush1.bf16.msra.mxu0 %v591
      %614 = vmatprep.subr.bf16.mxu0 0
      %615 = vmatpush1.bf16.msra.mxu0 %v592
      %616 = vmatprep.subr.bf16.mxu0 0
      %617 = vmatpush1.bf16.msra.mxu0 %v593
      %618 = vmatprep.subr.bf16.mxu0 0
      %619 = vmatpush1.bf16.msra.mxu0 0
      %620 = vmatprep.subr.bf16.mxu0 0
      %621 = vmatpush1.bf16.msra.mxu0 0
      %622 = vmatprep.subr.bf16.mxu0 0
      %623 = vmatpush1.bf16.msra.mxu0 0
      %624 = vmatprep.subr.bf16.mxu0 0
      %625 = vmatpush1.bf16.msra.mxu0 0
      %626 = vmatprep.subr.bf16.mxu0 0
      %627 = vmatpush1.bf16.msra.mxu0 0
      %628 = vmatprep.subr.bf16.mxu0 0
      %629 = vmatpush1.bf16.msra.mxu0 0
      %630 = vmatprep.subr.bf16.mxu0 0
      %631 = vmatpush1.bf16.msra.mxu0 0
      %632 = vmatprep.subr.bf16.mxu0 0
      %633 = vmatpush1.bf16.msra.mxu0 0
      %634 = vmatprep.mubr.bf16.mxu0 0
      %635 = vmatmul.mubr.bf16.gmra.mrb[0].mxu0 %v551
      %v636 = vpop.f32.mrb[0].mxu0
      %v637 = vadd.f32 0.0, %v636
      %v638 = vpop.f32.mrb[0].mxu0
      %v639 = vpop.f32.mrb[0].mxu0
      %v640 = vadd.f32 0.0, %v639
      %v641 = vpop.f32.mrb[0].mxu0
      %642 = vmatprep.mubr.bf16.mxu0 0
      %643 = vmatmul.mubr.bf16.gmra.mrb[0].mxu0 %v550
      %v644 = vpop.f32.mrb[0].mxu0
      %v645 = vadd.f32 0.0, %v644
      %v646 = vpop.f32.mrb[0].mxu0
      %v647 = vpop.f32.mrb[0].mxu0
      %v648 = vpop.f32.mrb[0].mxu0
      %649 = vdwg.mxu0
      %v650 = vadd.f32 %v490, %v637
      %v651 = vadd.f32 %v493, %v640
      %v652 = vadd.f32 %v498, %v645
      %v653 = vld [vmem:[%s230] sm:$0x8]
      %s654 = scalar_lea.vmem %s1, 192
      %v655 = vld [vmem:[%s654] sm:$0xf]
      %v656 = vld [vmem:[%s654 + $0x4] sm:$0xf]
      %v657 = vld [vmem:[%s654 + $0x8] sm:$0xf]
      %v658 = vld [vmem:[%s654 + $0xc] sm:$0xf]
      %v659 = vld [vmem:[%s654 + $0x10] sm:$0xf]
      %v660 = vld [vmem:[%s654 + $0x14] sm:$0xf]
      %v661 = vld [vmem:[%s654 + $0x18] sm:$0xf]
      %v662 = vld [vmem:[%s654 + $0x1c] sm:$0xf]
      %v663 = vld [vmem:[%s654 + $0x20] sm:$0xf]
      %v664 = vld [vmem:[%s654 + $0x24] sm:$0xf]
      %v665 = vld [vmem:[%s654 + $0x28] sm:$0xf]
      %v666 = vld [vmem:[%s654 + $0x2c] sm:$0xf]
      %v667 = vld [vmem:[%s654 + $0x30] sm:$0xf]
      %v668 = vld [vmem:[%s654 + $0x34] sm:$0xf]
      %v669 = vld [vmem:[%s654 + $0x38] sm:$0xf]
      %v670 = vld [vmem:[%s654 + $0x3c] sm:$0xf]
      %v672 = vunpack.c.l.b16 %v653
      %v673 = vpack.c.b16 %v529, %v672
      %vm674 = vcmask 1044480
      %v675 = vrot.slane %v673, 3
      %v676 = vrot.slane %v533, 3
      %v677 = vsel %vm674, %v675, %v676
      %v696 = vunpack.c.l.b16 %v655
      %v697 = vunpack.c.l.b16 %v656
      %v698 = vunpack.c.l.b16 %v657
      %v699 = vunpack.c.l.b16 %v658
      %v700 = vunpack.c.l.b16 %v659
      %v701 = vunpack.c.l.b16 %v660
      %v702 = vunpack.c.l.b16 %v661
      %v703 = vunpack.c.l.b16 %v662
      %v704 = vunpack.c.l.b16 %v663
      %v705 = vunpack.c.l.b16 %v664
      %v706 = vunpack.c.l.b16 %v665
      %v707 = vunpack.c.l.b16 %v666
      %v708 = vunpack.c.l.b16 %v667
      %v709 = vunpack.c.l.b16 %v668
      %v710 = vunpack.c.l.b16 %v669
      %v711 = vunpack.c.l.b16 %v670
      %v712 = vpack.c.b16 %v697, %v696
      %v713 = vpack.c.b16 %v699, %v698
      %v714 = vpack.c.b16 %v701, %v700
      %v715 = vpack.c.b16 %v703, %v702
      %v716 = vpack.c.b16 %v705, %v704
      %v717 = vpack.c.b16 %v707, %v706
      %v718 = vpack.c.b16 %v709, %v708
      %v719 = vpack.c.b16 %v711, %v710
      %728 = vmatprep.subr.bf16.mxu0 0
      %729 = vmatpush1.bf16.msra.mxu0 %v712
      %730 = vmatprep.subr.bf16.mxu0 0
      %731 = vmatpush1.bf16.msra.mxu0 %v713
      %732 = vmatprep.subr.bf16.mxu0 0
      %733 = vmatpush1.bf16.msra.mxu0 %v714
      %734 = vmatprep.subr.bf16.mxu0 0
      %735 = vmatpush1.bf16.msra.mxu0 %v715
      %736 = vmatprep.subr.bf16.mxu0 0
      %737 = vmatpush1.bf16.msra.mxu0 %v716
      %738 = vmatprep.subr.bf16.mxu0 0
      %739 = vmatpush1.bf16.msra.mxu0 %v717
      %740 = vmatprep.subr.bf16.mxu0 0
      %741 = vmatpush1.bf16.msra.mxu0 %v718
      %742 = vmatprep.subr.bf16.mxu0 0
      %743 = vmatpush1.bf16.msra.mxu0 %v719
      %744 = vmatprep.subr.bf16.mxu0 0
      %745 = vmatpush1.bf16.msra.mxu0 0
      %746 = vmatprep.subr.bf16.mxu0 0
      %747 = vmatpush1.bf16.msra.mxu0 0
      %748 = vmatprep.subr.bf16.mxu0 0
      %749 = vmatpush1.bf16.msra.mxu0 0
      %750 = vmatprep.subr.bf16.mxu0 0
      %751 = vmatpush1.bf16.msra.mxu0 0
      %752 = vmatprep.subr.bf16.mxu0 0
      %753 = vmatpush1.bf16.msra.mxu0 0
      %754 = vmatprep.subr.bf16.mxu0 0
      %755 = vmatpush1.bf16.msra.mxu0 0
      %756 = vmatprep.subr.bf16.mxu0 0
      %757 = vmatpush1.bf16.msra.mxu0 0
      %758 = vmatprep.subr.bf16.mxu0 0
      %759 = vmatpush1.bf16.msra.mxu0 0
      %760 = vmatprep.mubr.bf16.mxu0 0
      %761 = vmatmul.mubr.bf16.gmra.mrb[0].mxu0 %v677
      %v762 = vpop.f32.mrb[0].mxu0
      %v763 = vadd.f32 0.0, %v762
      %v764 = vpop.f32.mrb[0].mxu0
      %v765 = vpop.f32.mrb[0].mxu0
      %v766 = vadd.f32 0.0, %v765
      %v767 = vpop.f32.mrb[0].mxu0
      %768 = vmatprep.mubr.bf16.mxu0 0
      %769 = vmatmul.mubr.bf16.gmra.mrb[0].mxu0 %v676
      %v770 = vpop.f32.mrb[0].mxu0
      %v771 = vadd.f32 0.0, %v770
      %v772 = vpop.f32.mrb[0].mxu0
      %v773 = vpop.f32.mrb[0].mxu0
      %v774 = vpop.f32.mrb[0].mxu0
      %775 = vdwg.mxu0
      %v776 = vadd.f32 %v650, %v763
      %v777 = vadd.f32 %v651, %v766
      %v778 = vadd.f32 %v652, %v771
      %v779 = vpack.c.bf16 %v777, %v776
      %v780 = vpack.c.bf16 %v778, %v778
      %v783 = vunpack.c.l.b16 %v779
      %v784 = vunpack.c.h.b16 %v779
      %v785 = vunpack.c.l.b16 %v780
      %v786 = vpack.c.b16 %v783, %v783
      %v787 = vpack.c.b16 %v784, %v784
      %v788 = vpack.c.b16 %v785, %v785
      %vm792 = vcmask 519168
      %793 = vst.msk [vmem:[%s235] sm:$0xf] %vm792, %v786
      %794 = vst.msk [vmem:[%s235 + $0x4] sm:$0xf] %vm792, %v787
      %vm795 = vcmask 517120
      %796 = vst.msk [vmem:[%s235 + $0x8] sm:$0x3] %vm795, %v788
      %v797 = vld [vmem:[%s2] sm:$0xff]
      %v798 = vld [vmem:[%s2 + $0x8] sm:$0xff]
      %v799 = vld [vmem:[%s2 + $0x10] sm:$0xf]
      %801 = vset.pattern.permute.xlu0 0
      %802 = vperm.xlu0 %801, %v797
      %v803 = vpop.permute.xlu0 %802
      %806 = vset.pattern.permute.xlu0 0
      %807 = vperm.xlu0 %806, %v798
      %v808 = vpop.permute.xlu0 %807
      %811 = vset.pattern.permute.xlu0 0
      %812 = vperm.xlu0 %811, %v799
      %v813 = vpop.permute.xlu0 %812
      %v815 = vmul.f32 %v776, %v803
      %v816 = vmul.f32 %v777, %v808
      %v817 = vmul.f32 %v778, %v813
      %vm818 = vcmask 523264
      %v819 = vsel %vm818, %v815, 0.0
      %v820 = vsel %vm818, %v816, 0.0
      %v821 = vadd.f32 %v819, %v820
      %v822 = vsel %vm792, %v817, 0.0
      %v823 = vadd.f32 %v821, %v822
      %v824 = vrot.slane %v823, 4
      %v825 = vadd.f32 %v823, %v824
      %v826 = vrot.slane %v825, 2
      %v827 = vadd.f32 %v825, %v826
      %v828 = vrot.slane %v827, 1
      %v829 = vadd.f32 %v827, %v828
      %vm830 = vcmask 516096
      %831 = vst.msk [vmem:[%s238] sm:$0x1] %vm830, %v829
      %v832 = vmul.f32 %v815, %v815
      %v833 = vmul.f32 %v816, %v816
      %v834 = vmul.f32 %v817, %v817
      %v835 = vsel %vm818, %v832, 0.0
      %v836 = vsel %vm818, %v833, 0.0
      %v837 = vadd.f32 %v835, %v836
      %v838 = vsel %vm792, %v834, 0.0
      %v839 = vadd.f32 %v837, %v838
      %v840 = vrot.slane %v839, 4
      %v841 = vadd.f32 %v839, %v840
      %v842 = vrot.slane %v841, 2
      %v843 = vadd.f32 %v841, %v842
      %v844 = vrot.slane %v843, 1
      %v845 = vadd.f32 %v843, %v844
      %846 = vst.msk [vmem:[%s241] sm:$0x1] %vm830, %v845
      %p847 = scmp.lt.s32.totalorder %s17, 1
      %s848 = scalar_select %p847, %s17, 1
      %s849 = smul.addr %s848, 3
      %s850 = smul.addr %s849, 4
      %s851 = scalar_lea.vmem %s3, %s850
      %p852 = scmp.lt.s32.totalorder %s17, 1
      %s853 = scalar_select %p852, %s17, 1
      %s854 = scalar_lea.vmem %s4, %s853
      %p855 = scmp.lt.s32.totalorder %s17, 1
      %s856 = scalar_select %p855, %s17, 1
      %s857 = scalar_lea.vmem %s5, %s856
      // Predicated region
      $region33: #{discriminator_forward.8} parent=31 // pred_check
        %p858 = pneg %p103
      $region34: #{discriminator_forward.8} parent=31 // pred_check_branch
        %860 = sbr.rel (%p858) target = $region36
      $region35: #{discriminator_forward.8} parent=31 // pred_region
        _
      $region36: #{discriminator_forward.8} parent=31 // pred_fallthru
        _
      // Predicated region
      $region37: #{discriminator_forward.8} parent=31 // pred_check
        %p861 = pneg %p129
      $region38: #{discriminator_forward.8} parent=31 // pred_check_branch
        %863 = sbr.rel (%p861) target = $region40
      $region39: #{discriminator_forward.8} parent=31 // pred_region
        _
      $region40: #{discriminator_forward.8} parent=31 // pred_fallthru
        _
      // Predicated region
      $region41: #{discriminator_forward.8} parent=31 // pred_check
        %p864 = pneg %p155
      $region42: #{discriminator_forward.8} parent=31 // pred_check_branch
        %866 = sbr.rel (%p864) target = $region44
      $region43: #{discriminator_forward.8} parent=31 // pred_region
        _
      $region44: #{discriminator_forward.8} parent=31 // pred_fallthru
        _
    $region32: #{discriminator_forward.8} parent=5 // pred_fallthru
      _
    %p867 = scmp.le.s32.totalorder 2, %s12
    // Predicated region
    $region45: #{discriminator_forward.8} parent=5 // pred_check
      %p868 = pneg %p867
    $region46: #{discriminator_forward.8} parent=5 // pred_check_branch
      %870 = sbr.rel (%p868) target = $region48
    $region47: #{discriminator_forward.8} parent=5 // pred_region
      %s871 = ssub.s32 %s12, 2
      // Predicated region
      $region49: #{discriminator_forward.8} parent=47 // pred_check
        %p872 = pneg %p109
      $region50: #{discriminator_forward.8} parent=47 // pred_check_branch
        %874 = sbr.rel (%p872) target = $region52
      $region51: #{discriminator_forward.8} parent=47 // pred_region
        %p875 = scmp.lt.s32.totalorder %s18, 1
        %s876 = scalar_select %p875, %s18, 1
        %s877 = smul.addr %s876, 3
        %s878 = smul.addr %s877, 4
        %s879 = scalar_lea.vmem %s3, %s878
      $region52: #{discriminator_forward.8} parent=47 // pred_fallthru
        _
      // Predicated region
      $region53: #{discriminator_forward.8} parent=47 // pred_check
        %p880 = pneg %p135
      $region54: #{discriminator_forward.8} parent=47 // pred_check_branch
        %882 = sbr.rel (%p880) target = $region56
      $region55: #{discriminator_forward.8} parent=47 // pred_region
        %p883 = scmp.lt.s32.totalorder %s18, 1
        %s884 = scalar_select %p883, %s18, 1
        %s885 = scalar_lea.vmem %s4, %s884
      $region56: #{discriminator_forward.8} parent=47 // pred_fallthru
        _
      // Predicated region
      $region57: #{discriminator_forward.8} parent=47 // pred_check
        %p886 = pneg %p161
      $region58: #{discriminator_forward.8} parent=47 // pred_check_branch
        %888 = sbr.rel (%p886) target = $region60
      $region59: #{discriminator_forward.8} parent=47 // pred_region
        %p889 = scmp.lt.s32.totalorder %s18, 1
        %s890 = scalar_select %p889, %s18, 1
        %s891 = scalar_lea.vmem %s5, %s890
      $region60: #{discriminator_forward.8} parent=47 // pred_fallthru
        _
    $region48: #{discriminator_forward.8} parent=5 // pred_fallthru
      _
  $region6: #{discriminator_forward.8} parent=0 // loop_footer
    %s16 = sadd.s32 1, %s12
  $region7: #{discriminator_forward.8} parent=0 // loop_footer_branch
    %11 = sbr.rel target = $region3
  $region8: #{discriminator_forward.8} parent=0 // loop_exit
    _

// kernel: discriminator_forward.9
$region0: #{discriminator_forward.9}
  #allocation0 [shape = 'u32[]', space=smem, size = 0x4, offset = 0x4, fixed_abs, tag = 'smem constant byte address 0x4 - core index']
  #allocation1 [shape = 'u32[144,128]{1,0:T(1,128)}', space=vmem, size = 0x12000, scoped, tag = 'internal scratch']
  %s0 = inlined_call_operand.vmem [shape: bf16[2,1024], index: 0, kind: input, shape index: {}]
  %s1 = inlined_call_operand.vmem [shape: bf16[1024,128], index: 1, kind: input, shape index: {}]
  %s2 = inlined_call_operand.vmem [shape: f32[2,128], index: 2, kind: output, shape index: {}]
  %s3 = sld [smem:[#allocation0]]
  $region18: #{discriminator_forward.9} parent=0
    _
  %s5 = ssub.s32 1, %s3
  %s6 = scalar_select 0, %s5, %s3
  // Predicated region
  $region2: #{discriminator_forward.9} parent=0 // pred_check
    _
  $region3: #{discriminator_forward.9} parent=0 // pred_check_branch
    %8 = sbr.rel (0) target = $region5
  $region4: #{discriminator_forward.9} parent=0 // pred_region
    _
  $region5: #{discriminator_forward.9} parent=0 // pred_fallthru
    _
  // Predicated region
  $region6: #{discriminator_forward.9} parent=0 // pred_check
    _
  $region7: #{discriminator_forward.9} parent=0 // pred_check_branch
    %10 = sbr.rel (0) target = $region9
  $region8: #{discriminator_forward.9} parent=0 // pred_region
    _
  $region9: #{discriminator_forward.9} parent=0 // pred_fallthru
    _
  %v12 = vld [vmem:[%s0] sm:$0xff]
  %v13 = vld [vmem:[%s1] sm:$0xf]
  %v14 = vld [vmem:[%s1 + $0x4] sm:$0xf]
  %v15 = vld [vmem:[%s1 + $0x8] sm:$0xf]
  %v16 = vld [vmem:[%s1 + $0xc] sm:$0xf]
  %v17 = vld [vmem:[%s1 + $0x10] sm:$0xf]
  %v18 = vld [vmem:[%s1 + $0x14] sm:$0xf]
  %v19 = vld [vmem:[%s1 + $0x18] sm:$0xf]
  %v20 = vld [vmem:[%s1 + $0x1c] sm:$0xf]
  %v21 = vld [vmem:[%s1 + $0x20] sm:$0xf]
  %v22 = vld [vmem:[%s1 + $0x24] sm:$0xf]
  %v23 = vld [vmem:[%s1 + $0x28] sm:$0xf]
  %v24 = vld [vmem:[%s1 + $0x2c] sm:$0xf]
  %v25 = vld [vmem:[%s1 + $0x30] sm:$0xf]
  %v26 = vld [vmem:[%s1 + $0x34] sm:$0xf]
  %v27 = vld [vmem:[%s1 + $0x38] sm:$0xf]
  %v28 = vld [vmem:[%s1 + $0x3c] sm:$0xf]
  %v29 = vld [vmem:[%s1 + $0x40] sm:$0xf]
  %v30 = vld [vmem:[%s1 + $0x44] sm:$0xf]
  %v31 = vld [vmem:[%s1 + $0x48] sm:$0xf]
  %v32 = vld [vmem:[%s1 + $0x4c] sm:$0xf]
  %v33 = vld [vmem:[%s1 + $0x50] sm:$0xf]
  %v34 = vld [vmem:[%s1 + $0x54] sm:$0xf]
  %v35 = vld [vmem:[%s1 + $0x58] sm:$0xf]
  %v36 = vld [vmem:[%s1 + $0x5c] sm:$0xf]
  %v37 = vld [vmem:[%s1 + $0x60] sm:$0xf]
  %v38 = vld [vmem:[%s1 + $0x64] sm:$0xf]
  %v39 = vld [vmem:[%s1 + $0x68] sm:$0xf]
  %v40 = vld [vmem:[%s1 + $0x6c] sm:$0xf]
  %v41 = vld [vmem:[%s1 + $0x70] sm:$0xf]
  %v42 = vld [vmem:[%s1 + $0x74] sm:$0xf]
  %v43 = vld [vmem:[%s1 + $0x78] sm:$0xf]
  %v44 = vld [vmem:[%s1 + $0x7c] sm:$0xf]
  %v45 = vld [vmem:[%s1 + $0x80] sm:$0xf]
  %v46 = vld [vmem:[%s1 + $0x84] sm:$0xf]
  %v47 = vld [vmem:[%s1 + $0x88] sm:$0xf]
  %v48 = vld [vmem:[%s1 + $0x8c] sm:$0xf]
  %v49 = vld [vmem:[%s1 + $0x90] sm:$0xf]
  %v50 = vld [vmem:[%s1 + $0x94] sm:$0xf]
  %v51 = vld [vmem:[%s1 + $0x98] sm:$0xf]
  %v52 = vld [vmem:[%s1 + $0x9c] sm:$0xf]
  %v53 = vld [vmem:[%s1 + $0xa0] sm:$0xf]
  %v54 = vld [vmem:[%s1 + $0xa4] sm:$0xf]
  %v55 = vld [vmem:[%s1 + $0xa8] sm:$0xf]
  %v56 = vld [vmem:[%s1 + $0xac] sm:$0xf]
  %v57 = vld [vmem:[%s1 + $0xb0] sm:$0xf]
  %v58 = vld [vmem:[%s1 + $0xb4] sm:$0xf]
  %v59 = vld [vmem:[%s1 + $0xb8] sm:$0xf]
  %v60 = vld [vmem:[%s1 + $0xbc] sm:$0xf]
  %v61 = vld [vmem:[%s1 + $0xc0] sm:$0xf]
  %v62 = vld [vmem:[%s1 + $0xc4] sm:$0xf]
  %v63 = vld [vmem:[%s1 + $0xc8] sm:$0xf]
  %v64 = vld [vmem:[%s1 + $0xcc] sm:$0xf]
  %v65 = vld [vmem:[%s1 + $0xd0] sm:$0xf]
  %v66 = vld [vmem:[%s1 + $0xd4] sm:$0xf]
  %v67 = vld [vmem:[%s1 + $0xd8] sm:$0xf]
  %v68 = vld [vmem:[%s1 + $0xdc] sm:$0xf]
  %v69 = vld [vmem:[%s1 + $0xe0] sm:$0xf]
  %v70 = vld [vmem:[%s1 + $0xe4] sm:$0xf]
  %v71 = vld [vmem:[%s1 + $0xe8] sm:$0xf]
  %v72 = vld [vmem:[%s1 + $0xec] sm:$0xf]
  %v73 = vld [vmem:[%s1 + $0xf0] sm:$0xf]
  %v74 = vld [vmem:[%s1 + $0xf4] sm:$0xf]
  %v75 = vld [vmem:[%s1 + $0xf8] sm:$0xf]
  %v76 = vld [vmem:[%s1 + $0xfc] sm:$0xf]
  %v77 = vld [vmem:[%s1 + $0x100] sm:$0xf]
  %v78 = vld [vmem:[%s1 + $0x104] sm:$0xf]
  %v79 = vld [vmem:[%s1 + $0x108] sm:$0xf]
  %v80 = vld [vmem:[%s1 + $0x10c] sm:$0xf]
  %v81 = vld [vmem:[%s1 + $0x110] sm:$0xf]
  %v82 = vld [vmem:[%s1 + $0x114] sm:$0xf]
  %v83 = vld [vmem:[%s1 + $0x118] sm:$0xf]
  %v84 = vld [vmem:[%s1 + $0x11c] sm:$0xf]
  %v85 = vld [vmem:[%s1 + $0x120] sm:$0xf]
  %v86 = vld [vmem:[%s1 + $0x124] sm:$0xf]
  %v87 = vld [vmem:[%s1 + $0x128] sm:$0xf]
  %v88 = vld [vmem:[%s1 + $0x12c] sm:$0xf]
  %v89 = vld [vmem:[%s1 + $0x130] sm:$0xf]
  %v90 = vld [vmem:[%s1 + $0x134] sm:$0xf]
  %v91 = vld [vmem:[%s1 + $0x138] sm:$0xf]
  %v92 = vld [vmem:[%s1 + $0x13c] sm:$0xf]
  %v93 = vld [vmem:[%s1 + $0x140] sm:$0xf]
  %v94 = vld [vmem:[%s1 + $0x144] sm:$0xf]
  %v95 = vld [vmem:[%s1 + $0x148] sm:$0xf]
  %v96 = vld [vmem:[%s1 + $0x14c] sm:$0xf]
  %v97 = vld [vmem:[%s1 + $0x150] sm:$0xf]
  %v98 = vld [vmem:[%s1 + $0x154] sm:$0xf]
  %v99 = vld [vmem:[%s1 + $0x158] sm:$0xf]
  %v100 = vld [vmem:[%s1 + $0x15c] sm:$0xf]
  %v101 = vld [vmem:[%s1 + $0x160] sm:$0xf]
  %v102 = vld [vmem:[%s1 + $0x164] sm:$0xf]
  %v103 = vld [vmem:[%s1 + $0x168] sm:$0xf]
  %v104 = vld [vmem:[%s1 + $0x16c] sm:$0xf]
  %v105 = vld [vmem:[%s1 + $0x170] sm:$0xf]
  %v106 = vld [vmem:[%s1 + $0x174] sm:$0xf]
  %v107 = vld [vmem:[%s1 + $0x178] sm:$0xf]
  %v108 = vld [vmem:[%s1 + $0x17c] sm:$0xf]
  %v109 = vld [vmem:[%s1 + $0x180] sm:$0xf]
  %v110 = vld [vmem:[%s1 + $0x184] sm:$0xf]
  %v111 = vld [vmem:[%s1 + $0x188] sm:$0xf]
  %v112 = vld [vmem:[%s1 + $0x18c] sm:$0xf]
  %v113 = vld [vmem:[%s1 + $0x190] sm:$0xf]
  %v114 = vld [vmem:[%s1 + $0x194] sm:$0xf]
  %v115 = vld [vmem:[%s1 + $0x198] sm:$0xf]
  %v116 = vld [vmem:[%s1 + $0x19c] sm:$0xf]
  %v117 = vld [vmem:[%s1 + $0x1a0] sm:$0xf]
  %v118 = vld [vmem:[%s1 + $0x1a4] sm:$0xf]
  %v119 = vld [vmem:[%s1 + $0x1a8] sm:$0xf]
  %v120 = vld [vmem:[%s1 + $0x1ac] sm:$0xf]
  %v121 = vld [vmem:[%s1 + $0x1b0] sm:$0xf]
  %v122 = vld [vmem:[%s1 + $0x1b4] sm:$0xf]
  %v123 = vld [vmem:[%s1 + $0x1b8] sm:$0xf]
  %v124 = vld [vmem:[%s1 + $0x1bc] sm:$0xf]
  %v125 = vld [vmem:[%s1 + $0x1c0] sm:$0xf]
  %v126 = vld [vmem:[%s1 + $0x1c4] sm:$0xf]
  %v127 = vld [vmem:[%s1 + $0x1c8] sm:$0xf]
  %v128 = vld [vmem:[%s1 + $0x1cc] sm:$0xf]
  %v129 = vld [vmem:[%s1 + $0x1d0] sm:$0xf]
  %v130 = vld [vmem:[%s1 + $0x1d4] sm:$0xf]
  %v131 = vld [vmem:[%s1 + $0x1d8] sm:$0xf]
  %v132 = vld [vmem:[%s1 + $0x1dc] sm:$0xf]
  %v133 = vld [vmem:[%s1 + $0x1e0] sm:$0xf]
  %v134 = vld [vmem:[%s1 + $0x1e4] sm:$0xf]
  %v135 = vld [vmem:[%s1 + $0x1e8] sm:$0xf]
  %v136 = vld [vmem:[%s1 + $0x1ec] sm:$0xf]
  %v137 = vld [vmem:[%s1 + $0x1f0] sm:$0xf]
  %v138 = vld [vmem:[%s1 + $0x1f4] sm:$0xf]
  %v139 = vld [vmem:[%s1 + $0x1f8] sm:$0xf]
  %v140 = vld [vmem:[%s1 + $0x1fc] sm:$0xf]
  %v142 = vcombine.high %v12, %v12
  %v144 = vunpack.c.l.s4 1966171168
  %v145 = vunpack.c.0.s8 %v144
  %v146 = vlaneseq
  %v147 = vshrl.u32 %v146, 7
  %v148 = vsub.s32 %v145, %v147
  %v149 = vrot.slane %v12, %v148
  %v151 = vunpack.c.l.s4 1966171168
  %v152 = vunpack.c.0.s8 %v151
  %v153 = vlaneseq
  %v154 = vshrl.u32 %v153, 7
  %v155 = vsub.s32 %v152, %v154
  %v156 = vrot.slane %v142, %v155
  %v157 = vcombine.high %v149, %v149
  %v158 = vcombine.high %v156, %v156
  %v160 = vunpack.c.l.s4 1966171168
  %v161 = vunpack.c.0.s8 %v160
  %v162 = vlaneseq
  %v163 = vshrl.u32 %v162, 7
  %v164 = vsub.s32 %v161, %v163
  %v165 = vrot.slane %v149, %v164
  %v167 = vunpack.c.l.s4 1966171168
  %v168 = vunpack.c.0.s8 %v167
  %v169 = vlaneseq
  %v170 = vshrl.u32 %v169, 7
  %v171 = vsub.s32 %v168, %v170
  %v172 = vrot.slane %v156, %v171
  %v174 = vunpack.c.l.s4 1966171168
  %v175 = vunpack.c.0.s8 %v174
  %v176 = vlaneseq
  %v177 = vshrl.u32 %v176, 7
  %v178 = vsub.s32 %v175, %v177
  %v179 = vrot.slane %v157, %v178
  %v181 = vunpack.c.l.s4 1966171168
  %v182 = vunpack.c.0.s8 %v181
  %v183 = vlaneseq
  %v184 = vshrl.u32 %v183, 7
  %v185 = vsub.s32 %v182, %v184
  %v186 = vrot.slane %v158, %v185
  %v187 = vcombine.high %v165, %v165
  %v188 = vcombine.high %v172, %v172
  %v189 = vcombine.high %v179, %v179
  %v190 = vcombine.high %v186, %v186
  %v327 = vunpack.c.l.b16 %v13
  %v328 = vunpack.c.l.b16 %v14
  %v329 = vunpack.c.l.b16 %v15
  %v330 = vunpack.c.l.b16 %v16
  %v331 = vunpack.c.l.b16 %v17
  %v332 = vunpack.c.l.b16 %v18
  %v333 = vunpack.c.l.b16 %v19
  %v334 = vunpack.c.l.b16 %v20
  %v335 = vunpack.c.l.b16 %v21
  %v336 = vunpack.c.l.b16 %v22
  %v337 = vunpack.c.l.b16 %v23
  %v338 = vunpack.c.l.b16 %v24
  %v339 = vunpack.c.l.b16 %v25
  %v340 = vunpack.c.l.b16 %v26
  %v341 = vunpack.c.l.b16 %v27
  %v342 = vunpack.c.l.b16 %v28
  %v343 = vunpack.c.l.b16 %v29
  %v344 = vunpack.c.l.b16 %v30
  %v345 = vunpack.c.l.b16 %v31
  %v346 = vunpack.c.l.b16 %v32
  %v347 = vunpack.c.l.b16 %v33
  %v348 = vunpack.c.l.b16 %v34
  %v349 = vunpack.c.l.b16 %v35
  %v350 = vunpack.c.l.b16 %v36
  %v351 = vunpack.c.l.b16 %v37
  %v352 = vunpack.c.l.b16 %v38
  %v353 = vunpack.c.l.b16 %v39
  %v354 = vunpack.c.l.b16 %v40
  %v355 = vunpack.c.l.b16 %v41
  %v356 = vunpack.c.l.b16 %v42
  %v357 = vunpack.c.l.b16 %v43
  %v358 = vunpack.c.l.b16 %v44
  %v359 = vunpack.c.l.b16 %v45
  %v360 = vunpack.c.l.b16 %v46
  %v361 = vunpack.c.l.b16 %v47
  %v362 = vunpack.c.l.b16 %v48
  %v363 = vunpack.c.l.b16 %v49
  %v364 = vunpack.c.l.b16 %v50
  %v365 = vunpack.c.l.b16 %v51
  %v366 = vunpack.c.l.b16 %v52
  %v367 = vunpack.c.l.b16 %v53
  %v368 = vunpack.c.l.b16 %v54
  %v369 = vunpack.c.l.b16 %v55
  %v370 = vunpack.c.l.b16 %v56
  %v371 = vunpack.c.l.b16 %v57
  %v372 = vunpack.c.l.b16 %v58
  %v373 = vunpack.c.l.b16 %v59
  %v374 = vunpack.c.l.b16 %v60
  %v375 = vunpack.c.l.b16 %v61
  %v376 = vunpack.c.l.b16 %v62
  %v377 = vunpack.c.l.b16 %v63
  %v378 = vunpack.c.l.b16 %v64
  %v379 = vunpack.c.l.b16 %v65
  %v380 = vunpack.c.l.b16 %v66
  %v381 = vunpack.c.l.b16 %v67
  %v382 = vunpack.c.l.b16 %v68
  %v383 = vunpack.c.l.b16 %v69
  %v384 = vunpack.c.l.b16 %v70
  %v385 = vunpack.c.l.b16 %v71
  %v386 = vunpack.c.l.b16 %v72
  %v387 = vunpack.c.l.b16 %v73
  %v388 = vunpack.c.l.b16 %v74
  %v389 = vunpack.c.l.b16 %v75
  %v390 = vunpack.c.l.b16 %v76
  %v391 = vunpack.c.l.b16 %v77
  %v392 = vunpack.c.l.b16 %v78
  %v393 = vunpack.c.l.b16 %v79
  %v394 = vunpack.c.l.b16 %v80
  %v395 = vunpack.c.l.b16 %v81
  %v396 = vunpack.c.l.b16 %v82
  %v397 = vunpack.c.l.b16 %v83
  %v398 = vunpack.c.l.b16 %v84
  %v399 = vunpack.c.l.b16 %v85
  %v400 = vunpack.c.l.b16 %v86
  %v401 = vunpack.c.l.b16 %v87
  %v402 = vunpack.c.l.b16 %v88
  %v403 = vunpack.c.l.b16 %v89
  %v404 = vunpack.c.l.b16 %v90
  %v405 = vunpack.c.l.b16 %v91
  %v406 = vunpack.c.l.b16 %v92
  %v407 = vunpack.c.l.b16 %v93
  %v408 = vunpack.c.l.b16 %v94
  %v409 = vunpack.c.l.b16 %v95
  %v410 = vunpack.c.l.b16 %v96
  %v411 = vunpack.c.l.b16 %v97
  %v412 = vunpack.c.l.b16 %v98
  %v413 = vunpack.c.l.b16 %v99
  %v414 = vunpack.c.l.b16 %v100
  %v415 = vunpack.c.l.b16 %v101
  %v416 = vunpack.c.l.b16 %v102
  %v417 = vunpack.c.l.b16 %v103
  %v418 = vunpack.c.l.b16 %v104
  %v419 = vunpack.c.l.b16 %v105
  %v420 = vunpack.c.l.b16 %v106
  %v421 = vunpack.c.l.b16 %v107
  %v422 = vunpack.c.l.b16 %v108
  %v423 = vunpack.c.l.b16 %v109
  %v424 = vunpack.c.l.b16 %v110
  %v425 = vunpack.c.l.b16 %v111
  %v426 = vunpack.c.l.b16 %v112
  %v427 = vunpack.c.l.b16 %v113
  %v428 = vunpack.c.l.b16 %v114
  %v429 = vunpack.c.l.b16 %v115
  %v430 = vunpack.c.l.b16 %v116
  %v431 = vunpack.c.l.b16 %v117
  %v432 = vunpack.c.l.b16 %v118
  %v433 = vunpack.c.l.b16 %v119
  %v434 = vunpack.c.l.b16 %v120
  %v435 = vunpack.c.l.b16 %v121
  %v436 = vunpack.c.l.b16 %v122
  %v437 = vunpack.c.l.b16 %v123
  %v438 = vunpack.c.l.b16 %v124
  %v439 = vunpack.c.l.b16 %v125
  %v440 = vunpack.c.l.b16 %v126
  %v441 = vunpack.c.l.b16 %v127
  %v442 = vunpack.c.l.b16 %v128
  %v443 = vunpack.c.l.b16 %v129
  %v444 = vunpack.c.l.b16 %v130
  %v445 = vunpack.c.l.b16 %v131
  %v446 = vunpack.c.l.b16 %v132
  %v447 = vunpack.c.l.b16 %v133
  %v448 = vunpack.c.l.b16 %v134
  %v449 = vunpack.c.l.b16 %v135
  %v450 = vunpack.c.l.b16 %v136
  %v451 = vunpack.c.l.b16 %v137
  %v452 = vunpack.c.l.b16 %v138
  %v453 = vunpack.c.l.b16 %v139
  %v454 = vunpack.c.l.b16 %v140
  %v455 = vpack.c.b16 %v328, %v327
  %v456 = vpack.c.b16 %v330, %v329
  %v457 = vpack.c.b16 %v332, %v331
  %v458 = vpack.c.b16 %v334, %v333
  %v459 = vpack.c.b16 %v336, %v335
  %v460 = vpack.c.b16 %v338, %v337
  %v461 = vpack.c.b16 %v340, %v339
  %v462 = vpack.c.b16 %v342, %v341
  %v463 = vpack.c.b16 %v344, %v343
  %v464 = vpack.c.b16 %v346, %v345
  %v465 = vpack.c.b16 %v348, %v347
  %v466 = vpack.c.b16 %v350, %v349
  %v467 = vpack.c.b16 %v352, %v351
  %v468 = vpack.c.b16 %v354, %v353
  %v469 = vpack.c.b16 %v356, %v355
  %v470 = vpack.c.b16 %v358, %v357
  %v471 = vpack.c.b16 %v360, %v359
  %v472 = vpack.c.b16 %v362, %v361
  %v473 = vpack.c.b16 %v364, %v363
  %v474 = vpack.c.b16 %v366, %v365
  %v475 = vpack.c.b16 %v368, %v367
  %v476 = vpack.c.b16 %v370, %v369
  %v477 = vpack.c.b16 %v372, %v371
  %v478 = vpack.c.b16 %v374, %v373
  %v479 = vpack.c.b16 %v376, %v375
  %v480 = vpack.c.b16 %v378, %v377
  %v481 = vpack.c.b16 %v380, %v379
  %v482 = vpack.c.b16 %v382, %v381
  %v483 = vpack.c.b16 %v384, %v383
  %v484 = vpack.c.b16 %v386, %v385
  %v485 = vpack.c.b16 %v388, %v387
  %v486 = vpack.c.b16 %v390, %v389
  %v487 = vpack.c.b16 %v392, %v391
  %v488 = vpack.c.b16 %v394, %v393
  %v489 = vpack.c.b16 %v396, %v395
  %v490 = vpack.c.b16 %v398, %v397
  %v491 = vpack.c.b16 %v400, %v399
  %v492 = vpack.c.b16 %v402, %v401
  %v493 = vpack.c.b16 %v404, %v403
  %v494 = vpack.c.b16 %v406, %v405
  %v495 = vpack.c.b16 %v408, %v407
  %v496 = vpack.c.b16 %v410, %v409
  %v497 = vpack.c.b16 %v412, %v411
  %v498 = vpack.c.b16 %v414, %v413
  %v499 = vpack.c.b16 %v416, %v415
  %v500 = vpack.c.b16 %v418, %v417
  %v501 = vpack.c.b16 %v420, %v419
  %v502 = vpack.c.b16 %v422, %v421
  %v503 = vpack.c.b16 %v424, %v423
  %v504 = vpack.c.b16 %v426, %v425
  %v505 = vpack.c.b16 %v428, %v427
  %v506 = vpack.c.b16 %v430, %v429
  %v507 = vpack.c.b16 %v432, %v431
  %v508 = vpack.c.b16 %v434, %v433
  %v509 = vpack.c.b16 %v436, %v435
  %v510 = vpack.c.b16 %v438, %v437
  %v511 = vpack.c.b16 %v440, %v439
  %v512 = vpack.c.b16 %v442, %v441
  %v513 = vpack.c.b16 %v444, %v443
  %v514 = vpack.c.b16 %v446, %v445
  %v515 = vpack.c.b16 %v448, %v447
  %v516 = vpack.c.b16 %v450, %v449
  %v517 = vpack.c.b16 %v452, %v451
  %v518 = vpack.c.b16 %v454, %v453
  %583 = vmatprep.subr.bf16.mxu0 0
  %584 = vmatpush1.bf16.msra.mxu0 %v455
  %585 = vmatprep.subr.bf16.mxu0 0
  %586 = vmatpush1.bf16.msra.mxu0 %v456
  %587 = vmatprep.subr.bf16.mxu0 0
  %588 = vmatpush1.bf16.msra.mxu0 %v457
  %589 = vmatprep.subr.bf16.mxu0 0
  %590 = vmatpush1.bf16.msra.mxu0 %v458
  %591 = vmatprep.subr.bf16.mxu0 0
  %592 = vmatpush1.bf16.msra.mxu0 %v459
  %593 = vmatprep.subr.bf16.mxu0 0
  %594 = vmatpush1.bf16.msra.mxu0 %v460
  %595 = vmatprep.subr.bf16.mxu0 0
  %596 = vmatpush1.bf16.msra.mxu0 %v461
  %597 = vmatprep.subr.bf16.mxu0 0
  %598 = vmatpush1.bf16.msra.mxu0 %v462
  %599 = vmatprep.subr.bf16.mxu0 0
  %600 = vmatpush1.bf16.msra.mxu0 %v463
  %601 = vmatprep.subr.bf16.mxu0 0
  %602 = vmatpush1.bf16.msra.mxu0 %v464
  %603 = vmatprep.subr.bf16.mxu0 0
  %604 = vmatpush1.bf16.msra.mxu0 %v465
  %605 = vmatprep.subr.bf16.mxu0 0
  %606 = vmatpush1.bf16.msra.mxu0 %v466
  %607 = vmatprep.subr.bf16.mxu0 0
  %608 = vmatpush1.bf16.msra.mxu0 %v467
  %609 = vmatprep.subr.bf16.mxu0 0
  %610 = vmatpush1.bf16.msra.mxu0 %v468
  %611 = vmatprep.subr.bf16.mxu0 0
  %612 = vmatpush1.bf16.msra.mxu0 %v469
  %613 = vmatprep.subr.bf16.mxu0 0
  %614 = vmatpush1.bf16.msra.mxu0 %v470
  %615 = vmatprep.mubr.bf16.mxu0 %v179
  %616 = vmatmul.mubr.bf16.gmra.mrb[0].mxu0 %v165
  %v617 = vpop.f32.mrb[0].mxu0
  %v618 = vadd.f32 0.0, %v617
  %v619 = vpop.f32.mrb[0].mxu0
  %v620 = vpop.f32.mrb[0].mxu0
  %v621 = vpop.f32.mrb[0].mxu0
  %622 = vdwg.mxu0
  %623 = vmatprep.subr.bf16.mxu0 0
  %624 = vmatpush1.bf16.msra.mxu0 %v471
  %625 = vmatprep.subr.bf16.mxu0 0
  %626 = vmatpush1.bf16.msra.mxu0 %v472
  %627 = vmatprep.subr.bf16.mxu0 0
  %628 = vmatpush1.bf16.msra.mxu0 %v473
  %629 = vmatprep.subr.bf16.mxu0 0
  %630 = vmatpush1.bf16.msra.mxu0 %v474
  %631 = vmatprep.subr.bf16.mxu0 0
  %632 = vmatpush1.bf16.msra.mxu0 %v475
  %633 = vmatprep.subr.bf16.mxu0 0
  %634 = vmatpush1.bf16.msra.mxu0 %v476
  %635 = vmatprep.subr.bf16.mxu0 0
  %636 = vmatpush1.bf16.msra.mxu0 %v477
  %637 = vmatprep.subr.bf16.mxu0 0
  %638 = vmatpush1.bf16.msra.mxu0 %v478
  %639 = vmatprep.subr.bf16.mxu0 0
  %640 = vmatpush1.bf16.msra.mxu0 %v479
  %641 = vmatprep.subr.bf16.mxu0 0
  %642 = vmatpush1.bf16.msra.mxu0 %v480
  %643 = vmatprep.subr.bf16.mxu0 0
  %644 = vmatpush1.bf16.msra.mxu0 %v481
  %645 = vmatprep.subr.bf16.mxu0 0
  %646 = vmatpush1.bf16.msra.mxu0 %v482
  %647 = vmatprep.subr.bf16.mxu0 0
  %648 = vmatpush1.bf16.msra.mxu0 %v483
  %649 = vmatprep.subr.bf16.mxu0 0
  %650 = vmatpush1.bf16.msra.mxu0 %v484
  %651 = vmatprep.subr.bf16.mxu0 0
  %652 = vmatpush1.bf16.msra.mxu0 %v485
  %653 = vmatprep.subr.bf16.mxu0 0
  %654 = vmatpush1.bf16.msra.mxu0 %v486
  %655 = vmatprep.mubr.bf16.mxu0 %v189
  %656 = vmatmul.mubr.bf16.gmra.mrb[0].mxu0 %v187
  %v657 = vpop.f32.mrb[0].mxu0
  %v658 = vadd.f32 %v618, %v657
  %v659 = vpop.f32.mrb[0].mxu0
  %v660 = vpop.f32.mrb[0].mxu0
  %v661 = vpop.f32.mrb[0].mxu0
  %662 = vdwg.mxu0
  %663 = vmatprep.subr.bf16.mxu0 0
  %664 = vmatpush1.bf16.msra.mxu0 %v487
  %665 = vmatprep.subr.bf16.mxu0 0
  %666 = vmatpush1.bf16.msra.mxu0 %v488
  %667 = vmatprep.subr.bf16.mxu0 0
  %668 = vmatpush1.bf16.msra.mxu0 %v489
  %669 = vmatprep.subr.bf16.mxu0 0
  %670 = vmatpush1.bf16.msra.mxu0 %v490
  %671 = vmatprep.subr.bf16.mxu0 0
  %672 = vmatpush1.bf16.msra.mxu0 %v491
  %673 = vmatprep.subr.bf16.mxu0 0
  %674 = vmatpush1.bf16.msra.mxu0 %v492
  %675 = vmatprep.subr.bf16.mxu0 0
  %676 = vmatpush1.bf16.msra.mxu0 %v493
  %677 = vmatprep.subr.bf16.mxu0 0
  %678 = vmatpush1.bf16.msra.mxu0 %v494
  %679 = vmatprep.subr.bf16.mxu0 0
  %680 = vmatpush1.bf16.msra.mxu0 %v495
  %681 = vmatprep.subr.bf16.mxu0 0
  %682 = vmatpush1.bf16.msra.mxu0 %v496
  %683 = vmatprep.subr.bf16.mxu0 0
  %684 = vmatpush1.bf16.msra.mxu0 %v497
  %685 = vmatprep.subr.bf16.mxu0 0
  %686 = vmatpush1.bf16.msra.mxu0 %v498
  %687 = vmatprep.subr.bf16.mxu0 0
  %688 = vmatpush1.bf16.msra.mxu0 %v499
  %689 = vmatprep.subr.bf16.mxu0 0
  %690 = vmatpush1.bf16.msra.mxu0 %v500
  %691 = vmatprep.subr.bf16.mxu0 0
  %692 = vmatpush1.bf16.msra.mxu0 %v501
  %693 = vmatprep.subr.bf16.mxu0 0
  %694 = vmatpush1.bf16.msra.mxu0 %v502
  %695 = vmatprep.mubr.bf16.mxu0 %v186
  %696 = vmatmul.mubr.bf16.gmra.mrb[0].mxu0 %v172
  %v697 = vpop.f32.mrb[0].mxu0
  %v698 = vadd.f32 %v658, %v697
  %v699 = vpop.f32.mrb[0].mxu0
  %v700 = vpop.f32.mrb[0].mxu0
  %v701 = vpop.f32.mrb[0].mxu0
  %702 = vdwg.mxu0
  %703 = vmatprep.subr.bf16.mxu0 0
  %704 = vmatpush1.bf16.msra.mxu0 %v503
  %705 = vmatprep.subr.bf16.mxu0 0
  %706 = vmatpush1.bf16.msra.mxu0 %v504
  %707 = vmatprep.subr.bf16.mxu0 0
  %708 = vmatpush1.bf16.msra.mxu0 %v505
  %709 = vmatprep.subr.bf16.mxu0 0
  %710 = vmatpush1.bf16.msra.mxu0 %v506
  %711 = vmatprep.subr.bf16.mxu0 0
  %712 = vmatpush1.bf16.msra.mxu0 %v507
  %713 = vmatprep.subr.bf16.mxu0 0
  %714 = vmatpush1.bf16.msra.mxu0 %v508
  %715 = vmatprep.subr.bf16.mxu0 0
  %716 = vmatpush1.bf16.msra.mxu0 %v509
  %717 = vmatprep.subr.bf16.mxu0 0
  %718 = vmatpush1.bf16.msra.mxu0 %v510
  %719 = vmatprep.subr.bf16.mxu0 0
  %720 = vmatpush1.bf16.msra.mxu0 %v511
  %721 = vmatprep.subr.bf16.mxu0 0
  %722 = vmatpush1.bf16.msra.mxu0 %v512
  %723 = vmatprep.subr.bf16.mxu0 0
  %724 = vmatpush1.bf16.msra.mxu0 %v513
  %725 = vmatprep.subr.bf16.mxu0 0
  %726 = vmatpush1.bf16.msra.mxu0 %v514
  %727 = vmatprep.subr.bf16.mxu0 0
  %728 = vmatpush1.bf16.msra.mxu0 %v515
  %729 = vmatprep.subr.bf16.mxu0 0
  %730 = vmatpush1.bf16.msra.mxu0 %v516
  %731 = vmatprep.subr.bf16.mxu0 0
  %732 = vmatpush1.bf16.msra.mxu0 %v517
  %733 = vmatprep.subr.bf16.mxu0 0
  %734 = vmatpush1.bf16.msra.mxu0 %v518
  %735 = vmatprep.mubr.bf16.mxu0 %v190
  %736 = vmatmul.mubr.bf16.gmra.mrb[0].mxu0 %v188
  %v737 = vpop.f32.mrb[0].mxu0
  %v738 = vadd.f32 %v698, %v737
  %v739 = vpop.f32.mrb[0].mxu0
  %v740 = vpop.f32.mrb[0].mxu0
  %v741 = vpop.f32.mrb[0].mxu0
  %742 = vdwg.mxu0
  %v743 = vxor.u32 %v738, 2147483648
  %v744 = vmul.f32 %v743, 1.442695
  %v745 = vpow.pop %v744
  %v746 = vadd.f32 %v745, 1.0
  %v747 = vrcp.pop %v746
  %v748 = vmul.f32 1.0, %v747
  %749 = vst [vmem:[%s2] sm:$0x3] %v748
  // Predicated region
  $region10: #{discriminator_forward.9} parent=0 // pred_check
    _
  $region11: #{discriminator_forward.9} parent=0 // pred_check_branch
    %751 = sbr.rel (0) target = $region13
  $region12: #{discriminator_forward.9} parent=0 // pred_region
    _
  $region13: #{discriminator_forward.9} parent=0 // pred_fallthru
    _
  // Predicated region
  $region14: #{discriminator_forward.9} parent=0 // pred_check
    _
  $region15: #{discriminator_forward.9} parent=0 // pred_check_branch
    %753 = sbr.rel (0) target = $region17
  $region16: #{discriminator_forward.9} parent=0 // pred_region
    _
  $region17: #{discriminator_forward.9} parent=0 // pred_fallthru
    _

</llo_original>
